<compile_context>
chip_gen: v6e
topology: v6e:2x2x1
jax: 0.10.0
libtpu: 0.0.40
codegen_flags: <defaults>
</compile_context>

<pallas_src>
import functools

import jax
import jax.numpy as jnp
from jax.experimental import pallas as pl
from jax.experimental.pallas import tpu as pltpu

LANE = 128


def _round_up(x, m):
    return (x + m - 1) // m * m


def _pick_tm(M, tm_max):
    """Row-tile size: sublane-aligned, <= tm_max, and split into >= 2 grid
    steps whenever possible so the "parallel" grid axis can shard across both
    v7x TensorCores (negligible cost on single-TC v5e/v6e)."""
    if M <= 8:
        return M                       # block == full dim (exempt from 8-row rule)
    Mp = _round_up(M, 8)
    half = _round_up((Mp + 1) // 2, 8)
    return max(8, min(tm_max, Mp, half))


# ----------------------------------------------------------------------------
# Pallas kernel: fused  out = (x @ w + b)  with optional ReLU.
# x tile (tm, K) bf16, w (K, N) bf16, b (1, N) f32; accumulate in f32.
# N is always a multiple of 128 (lane-dense, unmasked stores); K is the real
# (compacted) contraction width.
# ----------------------------------------------------------------------------
def _matmul_bias_kernel(x_ref, w_ref, b_ref, o_ref, *, relu):
    acc = jnp.dot(x_ref[...], w_ref[...], preferred_element_type=jnp.float32)
    acc = acc + b_ref[...]                     # (1, N) broadcasts over rows
    if relu:
        acc = jnp.maximum(acc, 0.0)
    o_ref[...] = acc.astype(o_ref.dtype)


def pallas_matmul_bias(x, w, b, *, relu, out_dtype=jnp.float32, tm_max=512):
    """x: (M, K); w: (K, N) bf16; b: (N,) f32.  N % 128 == 0."""
    M, K = x.shape
    K2, N = w.shape
    assert K == K2 and N % LANE == 0

    tm = _pick_tm(M, tm_max)
    grid_m = pl.cdiv(M, tm)
    out_bytes = jnp.dtype(out_dtype).itemsize
    cost = pl.CostEstimate(
        flops=2 * M * K * N,
        transcendentals=0,
        bytes_accessed=M * K * 2 + K * N * 2 + N * 4 + M * N * out_bytes)

    return pl.pallas_call(
        functools.partial(_matmul_bias_kernel, relu=relu),
        out_shape=jax.ShapeDtypeStruct((M, N), out_dtype),
        grid=(grid_m,),
        in_specs=[
            pl.BlockSpec((tm, K), lambda i: (i, 0)),
            pl.BlockSpec((K, N), lambda i: (0, 0)),
            pl.BlockSpec((1, N), lambda i: (0, 0)),
        ],
        out_specs=pl.BlockSpec((tm, N), lambda i: (i, 0)),
        compiler_params=pltpu.CompilerParams(
            dimension_semantics=("parallel",)),
        cost_estimate=cost,
    )(x.astype(jnp.bfloat16), w.astype(jnp.bfloat16),
      b.reshape(1, N).astype(jnp.float32))


# ----------------------------------------------------------------------------
# Pallas kernel: fused  fc2( relu(fc1(x)) )  — 256-wide hidden stays in VMEM.
# ----------------------------------------------------------------------------
def _fused_fc_kernel(x_ref, w1_ref, b1_ref, w2_ref, b2_ref, o_ref):
    h = jnp.dot(x_ref[...], w1_ref[...], preferred_element_type=jnp.float32)
    h = jnp.maximum(h + b1_ref[...], 0.0)
    out = jnp.dot(h.astype(jnp.bfloat16), w2_ref[...],
                  preferred_element_type=jnp.float32)
    o_ref[...] = (out + b2_ref[...]).astype(o_ref.dtype)


def pallas_fused_fc(x, w1, b1, w2, b2, *, tm_max=256):
    """x: (M, K1); w1: (K1, N1) bf16; w2: (N1, N2) bf16.  N1, N2 % 128 == 0."""
    M, K1 = x.shape
    N1 = w1.shape[1]
    N2 = w2.shape[1]

    tm = _pick_tm(M, tm_max)
    grid_m = pl.cdiv(M, tm)
    cost = pl.CostEstimate(
        flops=2 * M * K1 * N1 + 2 * M * N1 * N2,
        transcendentals=0,
        bytes_accessed=(M * K1 * 2 + K1 * N1 * 2 + N1 * N2 * 2
                        + (N1 + N2) * 4 + M * N2 * 4))

    return pl.pallas_call(
        _fused_fc_kernel,
        out_shape=jax.ShapeDtypeStruct((M, N2), jnp.float32),
        grid=(grid_m,),
        in_specs=[
            pl.BlockSpec((tm, K1), lambda i: (i, 0)),
            pl.BlockSpec((K1, N1), lambda i: (0, 0)),
            pl.BlockSpec((1, N1), lambda i: (0, 0)),
            pl.BlockSpec((N1, N2), lambda i: (0, 0)),
            pl.BlockSpec((1, N2), lambda i: (0, 0)),
        ],
        out_specs=pl.BlockSpec((tm, N2), lambda i: (i, 0)),
        compiler_params=pltpu.CompilerParams(
            dimension_semantics=("parallel",)),
        cost_estimate=cost,
    )(x.astype(jnp.bfloat16),
      w1.astype(jnp.bfloat16), b1.reshape(1, N1).astype(jnp.float32),
      w2.astype(jnp.bfloat16), b2.reshape(1, N2).astype(jnp.float32))


# ----------------------------------------------------------------------------
# im2col glue (plain JAX) on NHWC input.  No transposes: the feature dim of
# the patch matrix is ordered (kh, kw, c), matching the prepared weights.
# The input is sliced to the REAL channel count before this (K-compaction).
# ----------------------------------------------------------------------------
def im2col_nhwc(x, k, stride, pad):
    N, H, W, C = x.shape
    xp = jnp.pad(x, ((0, 0), (pad, pad), (pad, pad), (0, 0)))
    oh = (H + 2 * pad - k) // stride + 1
    ow = (W + 2 * pad - k) // stride + 1
    pieces = [xp[:, i:i + stride * oh:stride, j:j + stride * ow:stride, :]
              for i in range(k) for j in range(k)]
    p = jnp.concatenate(pieces, axis=-1)          # (N, oh, ow, k*k*C)
    return p.reshape(N * oh * ow, k * k * C), oh, ow


def conv2d_relu(x, w_mat, b, *, k, stride, pad, cin):
    """x: (N, H, W, C_store) NHWC bf16; w_mat: (k*k*cin, OC_pad) bf16."""
    n = x.shape[0]
    if x.shape[-1] != cin:
        x = x[..., :cin]        # drop lane padding BEFORE it enters K
    patches, oh, ow = im2col_nhwc(x, k, stride, pad)
    out = pallas_matmul_bias(patches, w_mat, b, relu=True,
                             out_dtype=jnp.bfloat16)   # (N*oh*ow, OC_pad)
    return out.reshape(n, oh, ow, -1)                  # NHWC, lane-dense channels


# ----------------------------------------------------------------------------
# Parameter construction: synthesize PyTorch-layout params deterministically,
# then prepare them ONCE into kernel-friendly (padded N, compacted K) layout.
# ----------------------------------------------------------------------------
def _pad_axis(x, axis, target):
    pad = [(0, 0)] * x.ndim
    pad[axis] = (0, target - x.shape[axis])
    return jnp.pad(x, pad)


def _prep_conv(w, b, oc_pad):
    # w: (OC, IC, KH, KW) -> (KH*KW*IC, oc_pad) bf16, rows ordered (kh, kw, c).
    oc, ic, kh, kw = w.shape
    wm = w.transpose(2, 3, 1, 0).reshape(kh * kw * ic, oc)
    wm = _pad_axis(wm, 1, oc_pad).astype(jnp.bfloat16)
    bm = _pad_axis(b, 0, oc_pad).astype(jnp.float32)
    return wm, bm


def prepare_params(raw):
    p = {}
    p["conv1_wm"], p["conv1_b"] = _prep_conv(raw["conv1_w"], raw["conv1_b"], LANE)
    p["conv2_wm"], p["conv2_b"] = _prep_conv(raw["conv2_w"], raw["conv2_b"], LANE)
    p["conv3_wm"], p["conv3_b"] = _prep_conv(raw["conv3_w"], raw["conv3_b"], LANE)

    # fc1: (200, 2880) with PyTorch (c=80, h=6, w=6) flatten order.
    # Re-order rows to the NHWC flatten order (h, w, c); K stays 2880 (real),
    # only the output width is padded 200 -> 256.
    fc1 = raw["fc1_w"].reshape(200, 80, 6, 6).transpose(2, 3, 1, 0)  # (6,6,80,200)
    fc1 = fc1.reshape(6 * 6 * 80, 200)
    p["fc1_wm"] = _pad_axis(fc1, 1, 256).astype(jnp.bfloat16)
    p["fc1_b"] = _pad_axis(raw["fc1_b"], 0, 256).astype(jnp.float32)

    fc2 = raw["fc2_w"].T                                             # (200, 10)
    fc2 = _pad_axis(fc2, 0, 256)           # rows 200..255 hit zeroed hidden units
    fc2 = _pad_axis(fc2, 1, LANE)
    p["fc2_wm"] = fc2.astype(jnp.bfloat16)
    p["fc2_b"] = _pad_axis(raw["fc2_b"], 0, LANE).astype(jnp.float32)
    return p


def init_params(key):
    ks = jax.random.split(key, 10)

    def w(k, shape, fan_in):
        return jax.random.normal(k, shape, jnp.float32) / jnp.sqrt(fan_in)

    raw = {
        "conv1_w": w(ks[0], (40, 1, 3, 3), 1 * 9),
        "conv1_b": w(ks[1], (40,), 9),
        "conv2_w": w(ks[2], (60, 40, 3, 3), 40 * 9),
        "conv2_b": w(ks[3], (60,), 40 * 9),
        "conv3_w": w(ks[4], (80, 60, 5, 5), 60 * 25),
        "conv3_b": w(ks[5], (80,), 60 * 25),
        "fc1_w":   w(ks[6], (200, 6 * 6 * 80), 6 * 6 * 80),
        "fc1_b":   w(ks[7], (200,), 6 * 6 * 80),
        "fc2_w":   w(ks[8], (10, 200), 200),
        "fc2_b":   w(ks[9], (10,), 200),
    }
    return prepare_params(raw)


# ----------------------------------------------------------------------------
# Full forward pass (mirrors extraCNN.forward, eval mode).
# ----------------------------------------------------------------------------
def extra_cnn_forward(params, x):
    x = x.reshape((-1, 1, 28, 28))
    n = x.shape[0]
    # NCHW -> NHWC is a pure reshape for C=1; build activations in bf16 so the
    # conv1 patch matrix is materialized directly in bf16 (no extra f32 pass).
    x = x.reshape(n, 28, 28, 1).astype(jnp.bfloat16)

    # Conv2d(1, 40, 3, 1, 2) + ReLU   -> (n, 30, 30, 128-padded)   K = 9
    x = conv2d_relu(x, params["conv1_wm"], params["conv1_b"],
                    k=3, stride=1, pad=2, cin=1)
    # Conv2d(40, 60, 3, 2, 2) + ReLU  -> (n, 16, 16, 128-padded)   K = 360
    x = conv2d_relu(x, params["conv2_wm"], params["conv2_b"],
                    k=3, stride=2, pad=2, cin=40)
    # Dropout(0.2): identity at inference time.
    # Conv2d(60, 80, 5, 3, 2) + ReLU  -> (n, 6, 6, 128-padded)     K = 1500
    x = conv2d_relu(x, params["conv3_wm"], params["conv3_b"],
                    k=5, stride=3, pad=2, cin=60)

    # Flatten only the real 80 channels -> (n, 2880), matching fc1 row order.
    x = x[..., :80].reshape(n, 6 * 6 * 80)

    # Fused Linear(2880, 200) + ReLU + Linear(200, 10), widths padded 256/128.
    out = pallas_fused_fc(x, params["fc1_wm"], params["fc1_b"],
                          params["fc2_wm"], params["fc2_b"])
    return out[:, :10]


if __name__ == "__main__":
    key = jax.random.PRNGKey(0)
    pkey, xkey = jax.random.split(key)
    params = init_params(pkey)

    # MNIST-shaped input; forward reshapes to (-1, 1, 28, 28). batch = 2.
    x = jax.random.normal(xkey, (2, 1, 28, 28), jnp.float32)

    fwd = jax.jit(extra_cnn_forward)
    out = jax.block_until_ready(fwd(params, x))
    assert out.shape == (2, 10), out.shape
    assert bool(jnp.all(jnp.isfinite(out)))
    print("KERNEL_OK")
</pallas_src>

<mosaic_0001>
module attributes {stable_mosaic.version = 11 : i64} {
  func.func @_matmul_bias_kernel(%arg0: i32, %arg1: memref<512x9xbf16, #tpu.memory_space<vmem>>, %arg2: memref<9x128xbf16, #tpu.memory_space<vmem>>, %arg3: memref<1x128xf32, #tpu.memory_space<vmem>>, %arg4: memref<512x128xbf16, #tpu.memory_space<vmem>>) attributes {dimension_semantics = [#tpu.dimension_semantics<parallel>], iteration_bounds = array<i64: 4>, scalar_prefetch = 0 : i64, scratch_operands = 0 : i64, tpu.core_type = #tpu.core_type<tc>, window_params = [{transform_indices = @transform_0, window_bounds = array<i64: 512, 9>}, {pipeline_mode = #tpu.pipeline_mode<synchronous>, transform_indices = @transform_1, window_bounds = array<i64: 9, 128>}, {pipeline_mode = #tpu.pipeline_mode<synchronous>, transform_indices = @transform_2, window_bounds = array<i64: 1, 128>}, {transform_indices = @transform_3, window_bounds = array<i64: 512, 128>}]} {
    %c0 = arith.constant 0 : index
    %c0_0 = arith.constant 0 : index
    %0 = vector.load %arg1[%c0, %c0_0] : memref<512x9xbf16, #tpu.memory_space<vmem>>, vector<512x9xbf16>
    %c0_1 = arith.constant 0 : index
    %c0_2 = arith.constant 0 : index
    %1 = vector.load %arg2[%c0_1, %c0_2] : memref<9x128xbf16, #tpu.memory_space<vmem>>, vector<9x128xbf16>
    %cst = arith.constant dense<0.000000e+00> : vector<512x128xf32>
    %2 = tpu.matmul %0, %1, %cst {dimension_numbers = #tpu.dot_dimension_numbers<[1], [0], [0], [1], [0, 0, 1, 1], [], []>} : vector<512x9xbf16>, vector<9x128xbf16>, vector<512x128xf32> -> vector<512x128xf32>
    %c0_3 = arith.constant 0 : index
    %c0_4 = arith.constant 0 : index
    %3 = vector.load %arg3[%c0_3, %c0_4] : memref<1x128xf32, #tpu.memory_space<vmem>>, vector<1x128xf32>
    %4 = vector.broadcast %3 : vector<1x128xf32> to vector<512x128xf32>
    %5 = arith.addf %2, %4 : vector<512x128xf32>
    %cst_5 = arith.constant 0.000000e+00 : f32
    %6 = vector.broadcast %cst_5 : f32 to vector<512x128xf32>
    %7 = arith.maximumf %5, %6 : vector<512x128xf32>
    %8 = arith.truncf %7 : vector<512x128xf32> to vector<512x128xbf16>
    %c0_6 = arith.constant 0 : index
    %c0_7 = arith.constant 0 : index
    %9 = vector.load %arg4[%c0_6, %c0_7] : memref<512x128xbf16, #tpu.memory_space<vmem>>, vector<512x128xbf16>
    tpu.vector_store %arg4[%c0_6, %c0_7], %8 {strides = array<i32>} : memref<512x128xbf16, #tpu.memory_space<vmem>>, vector<512x128xbf16>,
    return
  }
  func.func @transform_0(%arg0: i32) -> (i32, i32) {
    %c0_i32 = arith.constant 0 : i32
    %c0_i32_0 = arith.constant 0 : i32
    return %arg0, %c0_i32 : i32, i32
  }
  func.func @transform_1(%arg0: i32) -> (i32, i32) {
    %c0_i32 = arith.constant 0 : i32
    %c0_i32_0 = arith.constant 0 : i32
    %c0_i32_1 = arith.constant 0 : i32
    return %c0_i32, %c0_i32_0 : i32, i32
  }
  func.func @transform_2(%arg0: i32) -> (i32, i32) {
    %c0_i32 = arith.constant 0 : i32
    %c0_i32_0 = arith.constant 0 : i32
    %c0_i32_1 = arith.constant 0 : i32
    return %c0_i32, %c0_i32_0 : i32, i32
  }
  func.func @transform_3(%arg0: i32) -> (i32, i32) {
    %c0_i32 = arith.constant 0 : i32
    %c0_i32_0 = arith.constant 0 : i32
    return %arg0, %c0_i32 : i32, i32
  }
}

module attributes {stable_mosaic.version = 11 : i64} {
  func.func @_matmul_bias_kernel(%arg0: i32, %arg1: memref<256x360xbf16, #tpu.memory_space<vmem>>, %arg2: memref<360x128xbf16, #tpu.memory_space<vmem>>, %arg3: memref<1x128xf32, #tpu.memory_space<vmem>>, %arg4: memref<256x128xbf16, #tpu.memory_space<vmem>>) attributes {dimension_semantics = [#tpu.dimension_semantics<parallel>], iteration_bounds = array<i64: 2>, scalar_prefetch = 0 : i64, scratch_operands = 0 : i64, tpu.core_type = #tpu.core_type<tc>, window_params = [{transform_indices = @transform_0, window_bounds = array<i64: 256, 360>}, {pipeline_mode = #tpu.pipeline_mode<synchronous>, transform_indices = @transform_1, window_bounds = array<i64: 360, 128>}, {pipeline_mode = #tpu.pipeline_mode<synchronous>, transform_indices = @transform_2, window_bounds = array<i64: 1, 128>}, {transform_indices = @transform_3, window_bounds = array<i64: 256, 128>}]} {
    %c0 = arith.constant 0 : index
    %c0_0 = arith.constant 0 : index
    %0 = vector.load %arg1[%c0, %c0_0] : memref<256x360xbf16, #tpu.memory_space<vmem>>, vector<256x360xbf16>
    %c0_1 = arith.constant 0 : index
    %c0_2 = arith.constant 0 : index
    %1 = vector.load %arg2[%c0_1, %c0_2] : memref<360x128xbf16, #tpu.memory_space<vmem>>, vector<360x128xbf16>
    %cst = arith.constant dense<0.000000e+00> : vector<256x128xf32>
    %2 = tpu.matmul %0, %1, %cst {dimension_numbers = #tpu.dot_dimension_numbers<[1], [0], [0], [1], [0, 0, 1, 1], [], []>} : vector<256x360xbf16>, vector<360x128xbf16>, vector<256x128xf32> -> vector<256x128xf32>
    %c0_3 = arith.constant 0 : index
    %c0_4 = arith.constant 0 : index
    %3 = vector.load %arg3[%c0_3, %c0_4] : memref<1x128xf32, #tpu.memory_space<vmem>>, vector<1x128xf32>
    %4 = vector.broadcast %3 : vector<1x128xf32> to vector<256x128xf32>
    %5 = arith.addf %2, %4 : vector<256x128xf32>
    %cst_5 = arith.constant 0.000000e+00 : f32
    %6 = vector.broadcast %cst_5 : f32 to vector<256x128xf32>
    %7 = arith.maximumf %5, %6 : vector<256x128xf32>
    %8 = arith.truncf %7 : vector<256x128xf32> to vector<256x128xbf16>
    %c0_6 = arith.constant 0 : index
    %c0_7 = arith.constant 0 : index
    %9 = vector.load %arg4[%c0_6, %c0_7] : memref<256x128xbf16, #tpu.memory_space<vmem>>, vector<256x128xbf16>
    tpu.vector_store %arg4[%c0_6, %c0_7], %8 {strides = array<i32>} : memref<256x128xbf16, #tpu.memory_space<vmem>>, vector<256x128xbf16>,
    return
  }
  func.func @transform_0(%arg0: i32) -> (i32, i32) {
    %c0_i32 = arith.constant 0 : i32
    %c0_i32_0 = arith.constant 0 : i32
    return %arg0, %c0_i32 : i32, i32
  }
  func.func @transform_1(%arg0: i32) -> (i32, i32) {
    %c0_i32 = arith.constant 0 : i32
    %c0_i32_0 = arith.constant 0 : i32
    %c0_i32_1 = arith.constant 0 : i32
    return %c0_i32, %c0_i32_0 : i32, i32
  }
  func.func @transform_2(%arg0: i32) -> (i32, i32) {
    %c0_i32 = arith.constant 0 : i32
    %c0_i32_0 = arith.constant 0 : i32
    %c0_i32_1 = arith.constant 0 : i32
    return %c0_i32, %c0_i32_0 : i32, i32
  }
  func.func @transform_3(%arg0: i32) -> (i32, i32) {
    %c0_i32 = arith.constant 0 : i32
    %c0_i32_0 = arith.constant 0 : i32
    return %arg0, %c0_i32 : i32, i32
  }
}

module attributes {stable_mosaic.version = 11 : i64} {
  func.func @_matmul_bias_kernel(%arg0: i32, %arg1: memref<40x1500xbf16, #tpu.memory_space<vmem>>, %arg2: memref<1500x128xbf16, #tpu.memory_space<vmem>>, %arg3: memref<1x128xf32, #tpu.memory_space<vmem>>, %arg4: memref<40x128xbf16, #tpu.memory_space<vmem>>) attributes {dimension_semantics = [#tpu.dimension_semantics<parallel>], iteration_bounds = array<i64: 2>, scalar_prefetch = 0 : i64, scratch_operands = 0 : i64, tpu.core_type = #tpu.core_type<tc>, window_params = [{transform_indices = @transform_0, window_bounds = array<i64: 40, 1500>}, {pipeline_mode = #tpu.pipeline_mode<synchronous>, transform_indices = @transform_1, window_bounds = array<i64: 1500, 128>}, {pipeline_mode = #tpu.pipeline_mode<synchronous>, transform_indices = @transform_2, window_bounds = array<i64: 1, 128>}, {transform_indices = @transform_3, window_bounds = array<i64: 40, 128>}]} {
    %c0 = arith.constant 0 : index
    %c0_0 = arith.constant 0 : index
    %0 = vector.load %arg1[%c0, %c0_0] : memref<40x1500xbf16, #tpu.memory_space<vmem>>, vector<40x1500xbf16>
    %c0_1 = arith.constant 0 : index
    %c0_2 = arith.constant 0 : index
    %1 = vector.load %arg2[%c0_1, %c0_2] : memref<1500x128xbf16, #tpu.memory_space<vmem>>, vector<1500x128xbf16>
    %cst = arith.constant dense<0.000000e+00> : vector<40x128xf32>
    %2 = tpu.matmul %0, %1, %cst {dimension_numbers = #tpu.dot_dimension_numbers<[1], [0], [0], [1], [0, 0, 1, 1], [], []>} : vector<40x1500xbf16>, vector<1500x128xbf16>, vector<40x128xf32> -> vector<40x128xf32>
    %c0_3 = arith.constant 0 : index
    %c0_4 = arith.constant 0 : index
    %3 = vector.load %arg3[%c0_3, %c0_4] : memref<1x128xf32, #tpu.memory_space<vmem>>, vector<1x128xf32>
    %4 = vector.broadcast %3 : vector<1x128xf32> to vector<40x128xf32>
    %5 = arith.addf %2, %4 : vector<40x128xf32>
    %cst_5 = arith.constant 0.000000e+00 : f32
    %6 = vector.broadcast %cst_5 : f32 to vector<40x128xf32>
    %7 = arith.maximumf %5, %6 : vector<40x128xf32>
    %8 = arith.truncf %7 : vector<40x128xf32> to vector<40x128xbf16>
    %c0_6 = arith.constant 0 : index
    %c0_7 = arith.constant 0 : index
    %9 = vector.load %arg4[%c0_6, %c0_7] : memref<40x128xbf16, #tpu.memory_space<vmem>>, vector<40x128xbf16>
    tpu.vector_store %arg4[%c0_6, %c0_7], %8 {strides = array<i32>} : memref<40x128xbf16, #tpu.memory_space<vmem>>, vector<40x128xbf16>,
    return
  }
  func.func @transform_0(%arg0: i32) -> (i32, i32) {
    %c0_i32 = arith.constant 0 : i32
    %c0_i32_0 = arith.constant 0 : i32
    return %arg0, %c0_i32 : i32, i32
  }
  func.func @transform_1(%arg0: i32) -> (i32, i32) {
    %c0_i32 = arith.constant 0 : i32
    %c0_i32_0 = arith.constant 0 : i32
    %c0_i32_1 = arith.constant 0 : i32
    return %c0_i32, %c0_i32_0 : i32, i32
  }
  func.func @transform_2(%arg0: i32) -> (i32, i32) {
    %c0_i32 = arith.constant 0 : i32
    %c0_i32_0 = arith.constant 0 : i32
    %c0_i32_1 = arith.constant 0 : i32
    return %c0_i32, %c0_i32_0 : i32, i32
  }
  func.func @transform_3(%arg0: i32) -> (i32, i32) {
    %c0_i32 = arith.constant 0 : i32
    %c0_i32_0 = arith.constant 0 : i32
    return %arg0, %c0_i32 : i32, i32
  }
}

module attributes {stable_mosaic.version = 11 : i64} {
  func.func @_fused_fc_kernel(%arg0: i32, %arg1: memref<2x2880xbf16, #tpu.memory_space<vmem>>, %arg2: memref<2880x256xbf16, #tpu.memory_space<vmem>>, %arg3: memref<1x256xf32, #tpu.memory_space<vmem>>, %arg4: memref<256x128xbf16, #tpu.memory_space<vmem>>, %arg5: memref<1x128xf32, #tpu.memory_space<vmem>>, %arg6: memref<2x128xf32, #tpu.memory_space<vmem>>) attributes {dimension_semantics = [#tpu.dimension_semantics<parallel>], iteration_bounds = array<i64: 1>, scalar_prefetch = 0 : i64, scratch_operands = 0 : i64, tpu.core_type = #tpu.core_type<tc>, window_params = [{transform_indices = @transform_0, window_bounds = array<i64: 2, 2880>}, {pipeline_mode = #tpu.pipeline_mode<synchronous>, transform_indices = @transform_1, window_bounds = array<i64: 2880, 256>}, {pipeline_mode = #tpu.pipeline_mode<synchronous>, transform_indices = @transform_2, window_bounds = array<i64: 1, 256>}, {pipeline_mode = #tpu.pipeline_mode<synchronous>, transform_indices = @transform_3, window_bounds = array<i64: 256, 128>}, {pipeline_mode = #tpu.pipeline_mode<synchronous>, transform_indices = @transform_4, window_bounds = array<i64: 1, 128>}, {transform_indices = @transform_5, window_bounds = array<i64: 2, 128>}]} {
    %c0 = arith.constant 0 : index
    %c0_0 = arith.constant 0 : index
    %0 = vector.load %arg1[%c0, %c0_0] : memref<2x2880xbf16, #tpu.memory_space<vmem>>, vector<2x2880xbf16>
    %c0_1 = arith.constant 0 : index
    %c0_2 = arith.constant 0 : index
    %1 = vector.load %arg2[%c0_1, %c0_2] : memref<2880x256xbf16, #tpu.memory_space<vmem>>, vector<2880x256xbf16>
    %cst = arith.constant dense<0.000000e+00> : vector<2x256xf32>
    %2 = tpu.matmul %0, %1, %cst {dimension_numbers = #tpu.dot_dimension_numbers<[1], [0], [0], [1], [0, 0, 1, 1], [], []>} : vector<2x2880xbf16>, vector<2880x256xbf16>, vector<2x256xf32> -> vector<2x256xf32>
    %c0_3 = arith.constant 0 : index
    %c0_4 = arith.constant 0 : index
    %3 = vector.load %arg3[%c0_3, %c0_4] : memref<1x256xf32, #tpu.memory_space<vmem>>, vector<1x256xf32>
    %4 = vector.broadcast %3 : vector<1x256xf32> to vector<2x256xf32>
    %5 = arith.addf %2, %4 : vector<2x256xf32>
    %cst_5 = arith.constant 0.000000e+00 : f32
    %6 = vector.broadcast %cst_5 : f32 to vector<2x256xf32>
    %7 = arith.maximumf %5, %6 : vector<2x256xf32>
    %8 = arith.truncf %7 : vector<2x256xf32> to vector<2x256xbf16>
    %c0_6 = arith.constant 0 : index
    %c0_7 = arith.constant 0 : index
    %9 = vector.load %arg4[%c0_6, %c0_7] : memref<256x128xbf16, #tpu.memory_space<vmem>>, vector<256x128xbf16>
    %cst_8 = arith.constant dense<0.000000e+00> : vector<2x128xf32>
    %10 = tpu.matmul %8, %9, %cst_8 {dimension_numbers = #tpu.dot_dimension_numbers<[1], [0], [0], [1], [0, 0, 1, 1], [], []>} : vector<2x256xbf16>, vector<256x128xbf16>, vector<2x128xf32> -> vector<2x128xf32>
    %c0_9 = arith.constant 0 : index
    %c0_10 = arith.constant 0 : index
    %11 = vector.load %arg5[%c0_9, %c0_10] : memref<1x128xf32, #tpu.memory_space<vmem>>, vector<1x128xf32>
    %12 = vector.broadcast %11 : vector<1x128xf32> to vector<2x128xf32>
    %13 = arith.addf %10, %12 : vector<2x128xf32>
    %c0_11 = arith.constant 0 : index
    %c0_12 = arith.constant 0 : index
    %14 = vector.load %arg6[%c0_11, %c0_12] : memref<2x128xf32, #tpu.memory_space<vmem>>, vector<2x128xf32>
    tpu.vector_store %arg6[%c0_11, %c0_12], %13 {strides = array<i32>} : memref<2x128xf32, #tpu.memory_space<vmem>>, vector<2x128xf32>,
    return
  }
  func.func @transform_0(%arg0: i32) -> (i32, i32) {
    %c0_i32 = arith.constant 0 : i32
    %c0_i32_0 = arith.constant 0 : i32
    return %arg0, %c0_i32 : i32, i32
  }
  func.func @transform_1(%arg0: i32) -> (i32, i32) {
    %c0_i32 = arith.constant 0 : i32
    %c0_i32_0 = arith.constant 0 : i32
    %c0_i32_1 = arith.constant 0 : i32
    return %c0_i32, %c0_i32_0 : i32, i32
  }
  func.func @transform_2(%arg0: i32) -> (i32, i32) {
    %c0_i32 = arith.constant 0 : i32
    %c0_i32_0 = arith.constant 0 : i32
    %c0_i32_1 = arith.constant 0 : i32
    return %c0_i32, %c0_i32_0 : i32, i32
  }
  func.func @transform_3(%arg0: i32) -> (i32, i32) {
    %c0_i32 = arith.constant 0 : i32
    %c0_i32_0 = arith.constant 0 : i32
    %c0_i32_1 = arith.constant 0 : i32
    return %c0_i32, %c0_i32_0 : i32, i32
  }
  func.func @transform_4(%arg0: i32) -> (i32, i32) {
    %c0_i32 = arith.constant 0 : i32
    %c0_i32_0 = arith.constant 0 : i32
    %c0_i32_1 = arith.constant 0 : i32
    return %c0_i32, %c0_i32_0 : i32, i32
  }
  func.func @transform_5(%arg0: i32) -> (i32, i32) {
    %c0_i32 = arith.constant 0 : i32
    %c0_i32_0 = arith.constant 0 : i32
    return %arg0, %c0_i32 : i32, i32
  }
}

</mosaic_0001>

<llo_original>
// kernel: extra_cnn_forward.4
$region0: #{extra_cnn_forward.4}
  #allocation0 [shape = 'u32[]', space=smem, size = 0x4, offset = 0x4, fixed_abs, tag = 'smem constant byte address 0x4 - core index']
  #allocation1 [shape = 'u32[144,128]{1,0:T(1,128)}', space=vmem, size = 0x12000, scoped, tag = 'internal scratch']
  %s0 = inlined_call_operand.vmem [shape: bf16[1800,9], index: 0, kind: input, shape index: {}]
  %s1 = inlined_call_operand.hbm [shape: bf16[9,128], index: 1, kind: input, shape index: {}]
  %s2 = inlined_call_operand.hbm [shape: f32[1,128], index: 2, kind: input, shape index: {}]
  %s3 = inlined_call_operand.vmem [shape: bf16[1800,128], index: 3, kind: output, shape index: {}]
  %s4 = sld [smem:[#allocation0]]
  $region97: #{extra_cnn_forward.4} parent=0
    _
  %s6 = ssub.s32 1, %s4
  %s7 = scalar_select 0, %s6, %s4
  $region1: #{extra_cnn_forward.4} parent=0
    #allocation2 [shape = 'u8[4096]{0}', space=vmem, size = 0x1000, scoped, tag = 'input window, operand 1, single buffered']
    #allocation3 [shape = 's32[2]{0}', space=sflag, size = 0x8, scoped, tag = 'scoped memory for extra_cnn_forward.4']
    #allocation4 [shape = 'u8[512]{0}', space=vmem, size = 0x400, scoped, tag = 'input window, operand 2, single buffered']
    #allocation5 [shape = 's32[1]{0}', space=sflag, size = 0x4, scoped, tag = 'scoped memory for extra_cnn_forward.4']
    #allocation6 [shape = 'u8[262144]{0}', space=vmem, size = 0x40000, scoped, tag = 'output window, operand 0']
    %8 = vsyncpa [#allocation3], 0
    %9 = vsyncpa [#allocation5], 0
    loop: start=0, step=1, limit=6
    $region2: #{extra_cnn_forward.4} parent=1 // loop_pre_header
      _
    $region3: #{extra_cnn_forward.4} parent=1 // loop_header
      %s11 = sphi 0, %s15
      %p12 = scmp.ge.s32.totalorder %s11, 6
      %s21 = sphi 0, %s23
      %s24 = sphi 0, %s21
      %s25 = sphi 0, %s24
      %s41 = sphi 0, %s25
      %s45 = sphi 0, %s45
      %s47 = sphi 0, %s45
      %s48 = sphi 0, %s47
      %s62 = sphi 0, %s48
      %s66 = sphi 0, %s66
      %s68 = sphi 0, %s66
      %s69 = sphi 0, %s68
      %s83 = sphi 0, %s69
      %s89 = sphi 0, %s91
      %s92 = sphi 0, %s89
      %s93 = sphi 0, %s92
      %s109 = sphi 0, %s93
    $region4: #{extra_cnn_forward.4} parent=1 // loop_header_branch
      %14 = sbr.rel (%p12) target = $region8
    $region5: #{extra_cnn_forward.4} parent=1 // loop_body
      %s16 = ssub.s32 %s11, 1
      %s17 = ssub.s32 %s11, 2
      %s18 = sadd.s32 %s11, 1
      %s19 = ssub.s32 %s11, %s18
      %p20 = scmp.eq.s32.totalorder %s19, 0
      %s22 = sadd.s32 %s21, 1
      %s23 = scalar_select %p20, %s21, %s22
      %p26 = pneg %p20
      %p27 = scmp.eq.s32.totalorder %s11, 3
      %p28 = por %p26, %p27
      %p29 = scmp.ne.s32.totalorder %s21, %s24
      %p30 = scmp.eq.s32.totalorder %s11, 0
      %p31 = por %p29, %p30
      %p32 = scmp.ne.s32.totalorder %s21, %s24
      %p33 = scmp.eq.s32.totalorder %s16, 3
      %p34 = por %p32, %p33
      %p35 = scmp.ne.s32.totalorder %s24, %s25
      %p36 = scmp.eq.s32.totalorder %s16, 0
      %p37 = por %p35, %p36
      %p38 = scmp.ne.s32.totalorder %s24, %s25
      %p39 = scmp.eq.s32.totalorder %s17, 3
      %p40 = por %p38, %p39
      %p42 = scmp.ne.s32.totalorder %s25, %s41
      %p43 = scmp.eq.s32.totalorder %s17, 0
      %p44 = por %p42, %p43
      %s46 = sadd.s32 %s45, 1
      %p49 = scmp.eq.s32.totalorder %s11, 3
      %p50 = scmp.ne.s32.totalorder %s45, %s47
      %p51 = scmp.eq.s32.totalorder %s11, 0
      %p52 = por %p50, %p51
      %p53 = scmp.ne.s32.totalorder %s45, %s47
      %p54 = scmp.eq.s32.totalorder %s16, 3
      %p55 = por %p53, %p54
      %p56 = scmp.ne.s32.totalorder %s47, %s48
      %p57 = scmp.eq.s32.totalorder %s16, 0
      %p58 = por %p56, %p57
      %p59 = scmp.ne.s32.totalorder %s47, %s48
      %p60 = scmp.eq.s32.totalorder %s17, 3
      %p61 = por %p59, %p60
      %p63 = scmp.ne.s32.totalorder %s48, %s62
      %p64 = scmp.eq.s32.totalorder %s17, 0
      %p65 = por %p63, %p64
      %s67 = sadd.s32 %s66, 1
      %p70 = scmp.eq.s32.totalorder %s11, 3
      %p71 = scmp.ne.s32.totalorder %s66, %s68
      %p72 = scmp.eq.s32.totalorder %s11, 0
      %p73 = por %p71, %p72
      %p74 = scmp.ne.s32.totalorder %s66, %s68
      %p75 = scmp.eq.s32.totalorder %s16, 3
      %p76 = por %p74, %p75
      %p77 = scmp.ne.s32.totalorder %s68, %s69
      %p78 = scmp.eq.s32.totalorder %s16, 0
      %p79 = por %p77, %p78
      %p80 = scmp.ne.s32.totalorder %s68, %s69
      %p81 = scmp.eq.s32.totalorder %s17, 3
      %p82 = por %p80, %p81
      %p84 = scmp.ne.s32.totalorder %s69, %s83
      %p85 = scmp.eq.s32.totalorder %s17, 0
      %p86 = por %p84, %p85
      %s87 = ssub.s32 %s11, %s18
      %p88 = scmp.eq.s32.totalorder %s87, 0
      %s90 = sadd.s32 %s89, 1
      %s91 = scalar_select %p88, %s89, %s90
      %p94 = pneg %p88
      %p95 = scmp.eq.s32.totalorder %s11, 3
      %p96 = por %p94, %p95
      %p97 = scmp.ne.s32.totalorder %s89, %s92
      %p98 = scmp.eq.s32.totalorder %s11, 0
      %p99 = por %p97, %p98
      %p100 = scmp.ne.s32.totalorder %s89, %s92
      %p101 = scmp.eq.s32.totalorder %s16, 3
      %p102 = por %p100, %p101
      %p103 = scmp.ne.s32.totalorder %s92, %s93
      %p104 = scmp.eq.s32.totalorder %s16, 0
      %p105 = por %p103, %p104
      %p106 = scmp.ne.s32.totalorder %s92, %s93
      %p107 = scmp.eq.s32.totalorder %s17, 3
      %p108 = por %p106, %p107
      %p110 = scmp.ne.s32.totalorder %s93, %s109
      %p111 = scmp.eq.s32.totalorder %s17, 0
      %p112 = por %p110, %p111
      %p113 = scmp.le.s32.totalorder 1, %s11
      %p114 = scmp.lt.s32.totalorder %s11, 5
      %p115 = pnand %p113, %p114
      %p116 = pneg %p115
      // Predicated region
      $region9: #{extra_cnn_forward.4} parent=5 // pred_check
        _
      $region10: #{extra_cnn_forward.4} parent=5 // pred_check_branch
        %118 = sbr.rel (%p115) target = $region12
      $region11: #{extra_cnn_forward.4} parent=5 // pred_region
        %s119 = ssub.s32 %s11, 1
        // Predicated region
        $region13: #{extra_cnn_forward.4} parent=11 // pred_check
          %p120 = pneg %p58
        $region14: #{extra_cnn_forward.4} parent=11 // pred_check_branch
          %122 = sbr.rel (%p120) target = $region16
        $region15: #{extra_cnn_forward.4} parent=11 // pred_region
          %s124 = ssub.s32 128, 128
          %125 = vsyncadd [#allocation3], %s124
          %s126 = sshll.u32 [#allocation2], 4
          %s127 = int_to_ptr.vmem [resolvable:$true] %s126
          %132 = dma.hbm_to_vmem [thread:$0]  %s1, 128, %s127, [#allocation3], 64, 64, 4
        $region16: #{extra_cnn_forward.4} parent=11 // pred_fallthru
          _
        // Predicated region
        $region17: #{extra_cnn_forward.4} parent=11 // pred_check
          %p133 = pneg %p79
        $region18: #{extra_cnn_forward.4} parent=11 // pred_check_branch
          %135 = sbr.rel (%p133) target = $region20
        $region19: #{extra_cnn_forward.4} parent=11 // pred_region
          %s137 = ssub.s32 16, 16
          %138 = vsyncadd [#allocation5], %s137
          %s140 = sshll.u32 [#allocation4], 4
          %s141 = int_to_ptr.vmem [resolvable:$true] %s140
          %143 = dma.hbm_to_vmem [thread:$0]  %s2, 16, %s141, [#allocation5]
        $region20: #{extra_cnn_forward.4} parent=11 // pred_fallthru
          _
      $region12: #{extra_cnn_forward.4} parent=5 // pred_fallthru
        _
      %p144 = scmp.lt.s32.totalorder %s11, 4
      // Predicated region
      $region21: #{extra_cnn_forward.4} parent=5 // pred_check
        %p145 = pneg %p144
      $region22: #{extra_cnn_forward.4} parent=5 // pred_check_branch
        %147 = sbr.rel (%p145) target = $region24
      $region23: #{extra_cnn_forward.4} parent=5 // pred_region
        // Predicated region
        $region25: #{extra_cnn_forward.4} parent=23 // pred_check
          %p148 = pneg %p31
        $region26: #{extra_cnn_forward.4} parent=23 // pred_check_branch
          %150 = sbr.rel (%p148) target = $region28
        $region27: #{extra_cnn_forward.4} parent=23 // pred_region
          %s151 = smul.u32 64, %s11
          %s152 = ssub.s32 225, %s151
          %p153 = scmp.lt.s32.totalorder %s152, 64
          %s154 = scalar_select %p153, %s152, 64
          %s155 = smul.u32 64, %s154
          %p156 = scmp.lt.s32.totalorder %s151, 224
          %s157 = scalar_select %p156, %s151, 224
          %s158 = smul.addr %s157, 4
          %s159 = scalar_lea.vmem %s0, %s158
          %s160 = smul.u32 64, %s11
          %s161 = ssub.s32 225, %s160
          %p162 = scmp.lt.s32.totalorder %s161, 64
          %s163 = scalar_select %p162, %s161, 64
          %s164 = smul.u32 64, %s163
        $region28: #{extra_cnn_forward.4} parent=23 // pred_fallthru
          _
      $region24: #{extra_cnn_forward.4} parent=5 // pred_fallthru
        _
      %p165 = scmp.le.s32.totalorder 1, %s11
      %p166 = scmp.lt.s32.totalorder %s11, 5
      %p167 = pnand %p165, %p166
      %p168 = pneg %p167
      // Predicated region
      $region29: #{extra_cnn_forward.4} parent=5 // pred_check
        _
      $region30: #{extra_cnn_forward.4} parent=5 // pred_check_branch
        %170 = sbr.rel (%p167) target = $region32
      $region31: #{extra_cnn_forward.4} parent=5 // pred_region
        %s171 = ssub.s32 %s11, 1
        // Predicated region
        $region33: #{extra_cnn_forward.4} parent=31 // pred_check
          %p172 = pneg %p58
        $region34: #{extra_cnn_forward.4} parent=31 // pred_check_branch
          %174 = sbr.rel (%p172) target = $region36
        $region35: #{extra_cnn_forward.4} parent=31 // pred_region
          %175 = dma.done [#allocation3], 128
        $region36: #{extra_cnn_forward.4} parent=31 // pred_fallthru
          _
        // Predicated region
        $region37: #{extra_cnn_forward.4} parent=31 // pred_check
          %p176 = pneg %p79
        $region38: #{extra_cnn_forward.4} parent=31 // pred_check_branch
          %178 = sbr.rel (%p176) target = $region40
        $region39: #{extra_cnn_forward.4} parent=31 // pred_region
          %179 = dma.done [#allocation5], 16
        $region40: #{extra_cnn_forward.4} parent=31 // pred_fallthru
          _
        %s180 = smul.u32 64, %s16
        %s181 = ssub.s32 225, %s180
        %p182 = scmp.lt.s32.totalorder %s181, 64
        %s183 = scalar_select %p182, %s181, 64
        %s184 = smul.u32 64, %s183
        %p185 = scmp.lt.s32.totalorder %s180, 224
        %s186 = scalar_select %p185, %s180, 224
        %s187 = smul.addr %s186, 4
        %s188 = scalar_lea.vmem %s0, %s187
        %p189 = pneg %p37
        %p190 = pneg %p34
        %p191 = pneg %p58
        %p192 = pneg %p55
        %p193 = pneg %p79
        %p194 = pneg %p76
        %p195 = pneg %p105
        %p196 = pneg %p102
        %s197 = sand.u32 %s92, 1
        %s198 = sand.u32 %s92, 1
        %s199 = smul.addr %s198, 256
        %s200 = scalar_lea.vmem [#allocation6], %s199
        %s201 = smul.u32 64, %s16
        %s202 = ssub.s32 225, %s201
        %p203 = scmp.lt.s32.totalorder %s202, 64
        %s204 = scalar_select %p203, %s202, 64
        %s205 = smul.u32 64, %s204
        %p206 = scmp.lt.s32.totalorder %s201, 224
        %s207 = scalar_select %p206, %s201, 224
        %s208 = smul.addr %s207, 4
        %s209 = scalar_lea.vmem %s0, %s208
        %s210 = smul.u32 64, %s16
        %s211 = ssub.s32 225, %s210
        %p212 = scmp.lt.s32.totalorder %s211, 64
        %s213 = scalar_select %p212, %s211, 64
        %s214 = smul.u32 64, %s213
        %s215 = smul.u32 64, %s16
        %s216 = ssub.s32 225, %s215
        %p217 = scmp.lt.s32.totalorder %s216, 64
        %s218 = scalar_select %p217, %s216, 64
        %s219 = smul.u32 64, %s218
        %v221 = vld [vmem:[%s209] sm:$0xf]
        %v222 = vld [vmem:[%s209 + $0x4] sm:$0xf]
        %v223 = vld [vmem:[%s209 + $0x8] sm:$0xf]
        %v224 = vld [vmem:[%s209 + $0xc] sm:$0xf]
        %v225 = vld [vmem:[%s209 + $0x10] sm:$0xf]
        %v226 = vld [vmem:[%s209 + $0x14] sm:$0xf]
        %v227 = vld [vmem:[%s209 + $0x18] sm:$0xf]
        %v228 = vld [vmem:[%s209 + $0x1c] sm:$0xf]
        %v229 = vld [vmem:[%s209 + $0x20] sm:$0xf]
        %v230 = vld [vmem:[%s209 + $0x24] sm:$0xf]
        %v231 = vld [vmem:[%s209 + $0x28] sm:$0xf]
        %v232 = vld [vmem:[%s209 + $0x2c] sm:$0xf]
        %v233 = vld [vmem:[%s209 + $0x30] sm:$0xf]
        %v234 = vld [vmem:[%s209 + $0x34] sm:$0xf]
        %v235 = vld [vmem:[%s209 + $0x38] sm:$0xf]
        %v236 = vld [vmem:[%s209 + $0x3c] sm:$0xf]
        %v237 = vld [vmem:[%s209 + $0x40] sm:$0xf]
        %v238 = vld [vmem:[%s209 + $0x44] sm:$0xf]
        %v239 = vld [vmem:[%s209 + $0x48] sm:$0xf]
        %v240 = vld [vmem:[%s209 + $0x4c] sm:$0xf]
        %v241 = vld [vmem:[%s209 + $0x50] sm:$0xf]
        %v242 = vld [vmem:[%s209 + $0x54] sm:$0xf]
        %v243 = vld [vmem:[%s209 + $0x58] sm:$0xf]
        %v244 = vld [vmem:[%s209 + $0x5c] sm:$0xf]
        %v245 = vld [vmem:[%s209 + $0x60] sm:$0xf]
        %v246 = vld [vmem:[%s209 + $0x64] sm:$0xf]
        %v247 = vld [vmem:[%s209 + $0x68] sm:$0xf]
        %v248 = vld [vmem:[%s209 + $0x6c] sm:$0xf]
        %v249 = vld [vmem:[%s209 + $0x70] sm:$0xf]
        %v250 = vld [vmem:[%s209 + $0x74] sm:$0xf]
        %v251 = vld [vmem:[%s209 + $0x78] sm:$0xf]
        %v252 = vld [vmem:[%s209 + $0x7c] sm:$0xf]
        %v253 = vld [vmem:[%s209 + $0x80] sm:$0xf]
        %v254 = vld [vmem:[%s209 + $0x84] sm:$0xf]
        %v255 = vld [vmem:[%s209 + $0x88] sm:$0xf]
        %v256 = vld [vmem:[%s209 + $0x8c] sm:$0xf]
        %v257 = vld [vmem:[%s209 + $0x90] sm:$0xf]
        %v258 = vld [vmem:[%s209 + $0x94] sm:$0xf]
        %v259 = vld [vmem:[%s209 + $0x98] sm:$0xf]
        %v260 = vld [vmem:[%s209 + $0x9c] sm:$0xf]
        %v261 = vld [vmem:[%s209 + $0xa0] sm:$0xf]
        %v262 = vld [vmem:[%s209 + $0xa4] sm:$0xf]
        %v263 = vld [vmem:[%s209 + $0xa8] sm:$0xf]
        %v264 = vld [vmem:[%s209 + $0xac] sm:$0xf]
        %v265 = vld [vmem:[%s209 + $0xb0] sm:$0xf]
        %v266 = vld [vmem:[%s209 + $0xb4] sm:$0xf]
        %v267 = vld [vmem:[%s209 + $0xb8] sm:$0xf]
        %v268 = vld [vmem:[%s209 + $0xbc] sm:$0xf]
        %v269 = vld [vmem:[%s209 + $0xc0] sm:$0xf]
        %v270 = vld [vmem:[%s209 + $0xc4] sm:$0xf]
        %v271 = vld [vmem:[%s209 + $0xc8] sm:$0xf]
        %v272 = vld [vmem:[%s209 + $0xcc] sm:$0xf]
        %v273 = vld [vmem:[%s209 + $0xd0] sm:$0xf]
        %v274 = vld [vmem:[%s209 + $0xd4] sm:$0xf]
        %v275 = vld [vmem:[%s209 + $0xd8] sm:$0xf]
        %v276 = vld [vmem:[%s209 + $0xdc] sm:$0xf]
        %v277 = vld [vmem:[%s209 + $0xe0] sm:$0xf]
        %v278 = vld [vmem:[%s209 + $0xe4] sm:$0xf]
        %v279 = vld [vmem:[%s209 + $0xe8] sm:$0xf]
        %v280 = vld [vmem:[%s209 + $0xec] sm:$0xf]
        %v281 = vld [vmem:[%s209 + $0xf0] sm:$0xf]
        %v282 = vld [vmem:[%s209 + $0xf4] sm:$0xf]
        %v283 = vld [vmem:[%s209 + $0xf8] sm:$0xf]
        %v284 = vld [vmem:[%s209 + $0xfc] sm:$0xf]
        %v285 = vld [vmem:[#allocation2] sm:$0xf]
        %v286 = vld [vmem:[#allocation2 + $0x4] sm:$0x1]
        %v287 = vld [vmem:[#allocation4] sm:$0x1]
        %v289 = vlaneseq
        %v290 = vshrl.u32 %v289, 7
        %v291 = vsub.s32 0, %v290
        %v292 = vrot.slane %v287, %v291
        %v358 = vunpack.c.l.b16 %v221
        %v359 = vunpack.c.l.b16 %v222
        %v360 = vunpack.c.l.b16 %v223
        %v361 = vunpack.c.l.b16 %v224
        %v362 = vunpack.c.l.b16 %v225
        %v363 = vunpack.c.l.b16 %v226
        %v364 = vunpack.c.l.b16 %v227
        %v365 = vunpack.c.l.b16 %v228
        %v366 = vunpack.c.l.b16 %v229
        %v367 = vunpack.c.l.b16 %v230
        %v368 = vunpack.c.l.b16 %v231
        %v369 = vunpack.c.l.b16 %v232
        %v370 = vunpack.c.l.b16 %v233
        %v371 = vunpack.c.l.b16 %v234
        %v372 = vunpack.c.l.b16 %v235
        %v373 = vunpack.c.l.b16 %v236
        %v374 = vunpack.c.l.b16 %v237
        %v375 = vunpack.c.l.b16 %v238
        %v376 = vunpack.c.l.b16 %v239
        %v377 = vunpack.c.l.b16 %v240
        %v378 = vunpack.c.l.b16 %v241
        %v379 = vunpack.c.l.b16 %v242
        %v380 = vunpack.c.l.b16 %v243
        %v381 = vunpack.c.l.b16 %v244
        %v382 = vunpack.c.l.b16 %v245
        %v383 = vunpack.c.l.b16 %v246
        %v384 = vunpack.c.l.b16 %v247
        %v385 = vunpack.c.l.b16 %v248
        %v386 = vunpack.c.l.b16 %v249
        %v387 = vunpack.c.l.b16 %v250
        %v388 = vunpack.c.l.b16 %v251
        %v389 = vunpack.c.l.b16 %v252
        %v390 = vunpack.c.l.b16 %v253
        %v391 = vunpack.c.l.b16 %v254
        %v392 = vunpack.c.l.b16 %v255
        %v393 = vunpack.c.l.b16 %v256
        %v394 = vunpack.c.l.b16 %v257
        %v395 = vunpack.c.l.b16 %v258
        %v396 = vunpack.c.l.b16 %v259
        %v397 = vunpack.c.l.b16 %v260
        %v398 = vunpack.c.l.b16 %v261
        %v399 = vunpack.c.l.b16 %v262
        %v400 = vunpack.c.l.b16 %v263
        %v401 = vunpack.c.l.b16 %v264
        %v402 = vunpack.c.l.b16 %v265
        %v403 = vunpack.c.l.b16 %v266
        %v404 = vunpack.c.l.b16 %v267
        %v405 = vunpack.c.l.b16 %v268
        %v406 = vunpack.c.l.b16 %v269
        %v407 = vunpack.c.l.b16 %v270
        %v408 = vunpack.c.l.b16 %v271
        %v409 = vunpack.c.l.b16 %v272
        %v410 = vunpack.c.l.b16 %v273
        %v411 = vunpack.c.l.b16 %v274
        %v412 = vunpack.c.l.b16 %v275
        %v413 = vunpack.c.l.b16 %v276
        %v414 = vunpack.c.l.b16 %v277
        %v415 = vunpack.c.l.b16 %v278
        %v416 = vunpack.c.l.b16 %v279
        %v417 = vunpack.c.l.b16 %v280
        %v418 = vunpack.c.l.b16 %v281
        %v419 = vunpack.c.l.b16 %v282
        %v420 = vunpack.c.l.b16 %v283
        %v421 = vunpack.c.l.b16 %v284
        %v422 = vpack.c.b16 %v359, %v358
        %v423 = vpack.c.b16 %v361, %v360
        %v424 = vpack.c.b16 %v363, %v362
        %v425 = vpack.c.b16 %v365, %v364
        %v426 = vpack.c.b16 %v367, %v366
        %v427 = vpack.c.b16 %v369, %v368
        %v428 = vpack.c.b16 %v371, %v370
        %v429 = vpack.c.b16 %v373, %v372
        %v430 = vpack.c.b16 %v375, %v374
        %v431 = vpack.c.b16 %v377, %v376
        %v432 = vpack.c.b16 %v379, %v378
        %v433 = vpack.c.b16 %v381, %v380
        %v434 = vpack.c.b16 %v383, %v382
        %v435 = vpack.c.b16 %v385, %v384
        %v436 = vpack.c.b16 %v387, %v386
        %v437 = vpack.c.b16 %v389, %v388
        %v438 = vpack.c.b16 %v391, %v390
        %v439 = vpack.c.b16 %v393, %v392
        %v440 = vpack.c.b16 %v395, %v394
        %v441 = vpack.c.b16 %v397, %v396
        %v442 = vpack.c.b16 %v399, %v398
        %v443 = vpack.c.b16 %v401, %v400
        %v444 = vpack.c.b16 %v403, %v402
        %v445 = vpack.c.b16 %v405, %v404
        %v446 = vpack.c.b16 %v407, %v406
        %v447 = vpack.c.b16 %v409, %v408
        %v448 = vpack.c.b16 %v411, %v410
        %v449 = vpack.c.b16 %v413, %v412
        %v450 = vpack.c.b16 %v415, %v414
        %v451 = vpack.c.b16 %v417, %v416
        %v452 = vpack.c.b16 %v419, %v418
        %v453 = vpack.c.b16 %v421, %v420
        %v456 = vunpack.c.l.b16 %v285
        %v457 = vunpack.c.l.b16 %v286
        %v458 = vpack.c.b16 %v457, %v456
        %vm459 = vcmask 72704
        %v461 = vsel %vm459, %v422, 0
        %v464 = vsel %vm459, %v423, 0
        %v467 = vsel %vm459, %v424, 0
        %v470 = vsel %vm459, %v425, 0
        %v473 = vsel %vm459, %v426, 0
        %v476 = vsel %vm459, %v427, 0
        %v479 = vsel %vm459, %v428, 0
        %v482 = vsel %vm459, %v429, 0
        %v485 = vsel %vm459, %v430, 0
        %v488 = vsel %vm459, %v431, 0
        %v491 = vsel %vm459, %v432, 0
        %v494 = vsel %vm459, %v433, 0
        %v497 = vsel %vm459, %v434, 0
        %v500 = vsel %vm459, %v435, 0
        %v503 = vsel %vm459, %v436, 0
        %v506 = vsel %vm459, %v437, 0
        %v509 = vsel %vm459, %v438, 0
        %v512 = vsel %vm459, %v439, 0
        %v515 = vsel %vm459, %v440, 0
        %v518 = vsel %vm459, %v441, 0
        %v521 = vsel %vm459, %v442, 0
        %v524 = vsel %vm459, %v443, 0
        %v527 = vsel %vm459, %v444, 0
        %v530 = vsel %vm459, %v445, 0
        %v533 = vsel %vm459, %v446, 0
        %v536 = vsel %vm459, %v447, 0
        %v539 = vsel %vm459, %v448, 0
        %v542 = vsel %vm459, %v449, 0
        %v545 = vsel %vm459, %v450, 0
        %v548 = vsel %vm459, %v451, 0
        %v551 = vsel %vm459, %v452, 0
        %v554 = vsel %vm459, %v453, 0
        %vm556 = vcmask 1043456
        %vm557 = vcmask 1044480
        %v558 = vsel %vm556, 4294967295, 65535
        %v559 = vsel %vm557, %v558, 0
        %v561 = vand.u32 %v458, %v559
        %563 = vmatprep.subr.bf16.mxu0 0
        %564 = vmatpush1.bf16.msra.mxu0 0
        %565 = vmatprep.subr.bf16.mxu0 0
        %566 = vmatpush1.bf16.msra.mxu0 0
        %567 = vmatprep.subr.bf16.mxu0 0
        %568 = vmatpush1.bf16.msra.mxu0 0
        %569 = vmatprep.subr.bf16.mxu0 0
        %570 = vmatpush1.bf16.msra.mxu0 0
        %571 = vmatprep.subr.bf16.mxu0 0
        %572 = vmatpush1.bf16.msra.mxu0 0
        %573 = vmatprep.subr.bf16.mxu0 0
        %574 = vmatpush1.bf16.msra.mxu0 0
        %575 = vmatprep.subr.bf16.mxu0 0
        %576 = vmatpush1.bf16.msra.mxu0 0
        %577 = vmatprep.subr.bf16.mxu0 0
        %578 = vmatpush1.bf16.msra.mxu0 %v561
        %579 = vmatprep.subr.bf16.mxu0 0
        %580 = vmatpush2.bf16.msra.mxu0 0
        %581 = vmatprep.subr.bf16.mxu0 0
        %582 = vmatpush2.bf16.msra.mxu0 0
        %583 = vmatprep.subr.bf16.mxu0 0
        %584 = vmatpush2.bf16.msra.mxu0 0
        %585 = vmatprep.subr.bf16.mxu0 0
        %586 = vmatpush2.bf16.msra.mxu0 0
        %587 = vmatprep.subr.bf16.mxu0 0
        %588 = vmatpush2.bf16.msra.mxu0 0
        %589 = vmatprep.subr.bf16.mxu0 0
        %590 = vmatpush2.bf16.msra.mxu0 0
        %591 = vmatprep.subr.bf16.mxu0 0
        %592 = vmatpush2.bf16.msra.mxu0 0
        %593 = vmatprep.subr.bf16.mxu0 0
        %594 = vmatpush2.bf16.msra.mxu0 0
        %595 = vmatprep.mubr.bf16.mxu0 0
        %596 = vmatmul.mubr.bf16.gmra.mxu0 %v461
        %v597 = vpop.f32.mrf.mxu0
        %v598 = vadd.f32 %v292, %v597
        %v599 = vpop.f32.mrf.mxu0
        %v600 = vpop.f32.mrf.mxu0
        %v601 = vadd.f32 %v292, %v600
        %v602 = vpop.f32.mrf.mxu0
        %603 = vmatprep.mubr.bf16.mxu0 0
        %604 = vmatmul.mubr.bf16.gmra.mxu0 %v464
        %v605 = vpop.f32.mrf.mxu0
        %v606 = vadd.f32 %v292, %v605
        %v607 = vpop.f32.mrf.mxu0
        %v608 = vpop.f32.mrf.mxu0
        %v609 = vadd.f32 %v292, %v608
        %v610 = vpop.f32.mrf.mxu0
        %611 = vmatprep.mubr.bf16.mxu0 0
        %612 = vmatmul.mubr.bf16.gmra.mxu0 %v467
        %v613 = vpop.f32.mrf.mxu0
        %v614 = vadd.f32 %v292, %v613
        %v615 = vpop.f32.mrf.mxu0
        %v616 = vpop.f32.mrf.mxu0
        %v617 = vadd.f32 %v292, %v616
        %v618 = vpop.f32.mrf.mxu0
        %619 = vmatprep.mubr.bf16.mxu0 0
        %620 = vmatmul.mubr.bf16.gmra.mxu0 %v470
        %v621 = vpop.f32.mrf.mxu0
        %v622 = vadd.f32 %v292, %v621
        %v623 = vpop.f32.mrf.mxu0
        %v624 = vpop.f32.mrf.mxu0
        %v625 = vadd.f32 %v292, %v624
        %v626 = vpop.f32.mrf.mxu0
        %627 = vmatprep.mubr.bf16.mxu0 0
        %628 = vmatmul.mubr.bf16.gmra.mxu0 %v473
        %v629 = vpop.f32.mrf.mxu0
        %v630 = vadd.f32 %v292, %v629
        %v631 = vpop.f32.mrf.mxu0
        %v632 = vpop.f32.mrf.mxu0
        %v633 = vadd.f32 %v292, %v632
        %v634 = vpop.f32.mrf.mxu0
        %635 = vmatprep.mubr.bf16.mxu0 0
        %636 = vmatmul.mubr.bf16.gmra.mxu0 %v476
        %v637 = vpop.f32.mrf.mxu0
        %v638 = vadd.f32 %v292, %v637
        %v639 = vpop.f32.mrf.mxu0
        %v640 = vpop.f32.mrf.mxu0
        %v641 = vadd.f32 %v292, %v640
        %v642 = vpop.f32.mrf.mxu0
        %643 = vmatprep.mubr.bf16.mxu0 0
        %644 = vmatmul.mubr.bf16.gmra.mxu0 %v479
        %v645 = vpop.f32.mrf.mxu0
        %v646 = vadd.f32 %v292, %v645
        %v647 = vpop.f32.mrf.mxu0
        %v648 = vpop.f32.mrf.mxu0
        %v649 = vadd.f32 %v292, %v648
        %v650 = vpop.f32.mrf.mxu0
        %651 = vmatprep.mubr.bf16.mxu0 0
        %652 = vmatmul.mubr.bf16.gmra.mxu0 %v482
        %v653 = vpop.f32.mrf.mxu0
        %v654 = vadd.f32 %v292, %v653
        %v655 = vpop.f32.mrf.mxu0
        %v656 = vpop.f32.mrf.mxu0
        %v657 = vadd.f32 %v292, %v656
        %v658 = vpop.f32.mrf.mxu0
        %659 = vmatprep.mubr.bf16.mxu0 0
        %660 = vmatmul.mubr.bf16.gmra.mxu0 %v485
        %v661 = vpop.f32.mrf.mxu0
        %v662 = vadd.f32 %v292, %v661
        %v663 = vpop.f32.mrf.mxu0
        %v664 = vpop.f32.mrf.mxu0
        %v665 = vadd.f32 %v292, %v664
        %v666 = vpop.f32.mrf.mxu0
        %667 = vmatprep.mubr.bf16.mxu0 0
        %668 = vmatmul.mubr.bf16.gmra.mxu0 %v488
        %v669 = vpop.f32.mrf.mxu0
        %v670 = vadd.f32 %v292, %v669
        %v671 = vpop.f32.mrf.mxu0
        %v672 = vpop.f32.mrf.mxu0
        %v673 = vadd.f32 %v292, %v672
        %v674 = vpop.f32.mrf.mxu0
        %675 = vmatprep.mubr.bf16.mxu0 0
        %676 = vmatmul.mubr.bf16.gmra.mxu0 %v491
        %v677 = vpop.f32.mrf.mxu0
        %v678 = vadd.f32 %v292, %v677
        %v679 = vpop.f32.mrf.mxu0
        %v680 = vpop.f32.mrf.mxu0
        %v681 = vadd.f32 %v292, %v680
        %v682 = vpop.f32.mrf.mxu0
        %683 = vmatprep.mubr.bf16.mxu0 0
        %684 = vmatmul.mubr.bf16.gmra.mxu0 %v494
        %v685 = vpop.f32.mrf.mxu0
        %v686 = vadd.f32 %v292, %v685
        %v687 = vpop.f32.mrf.mxu0
        %v688 = vpop.f32.mrf.mxu0
        %v689 = vadd.f32 %v292, %v688
        %v690 = vpop.f32.mrf.mxu0
        %691 = vmatprep.mubr.bf16.mxu0 0
        %692 = vmatmul.mubr.bf16.gmra.mxu0 %v497
        %v693 = vpop.f32.mrf.mxu0
        %v694 = vadd.f32 %v292, %v693
        %v695 = vpop.f32.mrf.mxu0
        %v696 = vpop.f32.mrf.mxu0
        %v697 = vadd.f32 %v292, %v696
        %v698 = vpop.f32.mrf.mxu0
        %699 = vmatprep.mubr.bf16.mxu0 0
        %700 = vmatmul.mubr.bf16.gmra.mxu0 %v500
        %v701 = vpop.f32.mrf.mxu0
        %v702 = vadd.f32 %v292, %v701
        %v703 = vpop.f32.mrf.mxu0
        %v704 = vpop.f32.mrf.mxu0
        %v705 = vadd.f32 %v292, %v704
        %v706 = vpop.f32.mrf.mxu0
        %707 = vmatprep.mubr.bf16.mxu0 0
        %708 = vmatmul.mubr.bf16.gmra.mxu0 %v503
        %v709 = vpop.f32.mrf.mxu0
        %v710 = vadd.f32 %v292, %v709
        %v711 = vpop.f32.mrf.mxu0
        %v712 = vpop.f32.mrf.mxu0
        %v713 = vadd.f32 %v292, %v712
        %v714 = vpop.f32.mrf.mxu0
        %715 = vmatprep.mubr.bf16.mxu0 0
        %716 = vmatmul.mubr.bf16.gmra.mxu0 %v506
        %v717 = vpop.f32.mrf.mxu0
        %v718 = vadd.f32 %v292, %v717
        %v719 = vpop.f32.mrf.mxu0
        %v720 = vpop.f32.mrf.mxu0
        %v721 = vadd.f32 %v292, %v720
        %v722 = vpop.f32.mrf.mxu0
        %723 = vmatprep.mubr.bf16.mxu0 0
        %724 = vmatmul.mubr.bf16.gmra.mxu0 %v509
        %v725 = vpop.f32.mrf.mxu0
        %v726 = vadd.f32 %v292, %v725
        %v727 = vpop.f32.mrf.mxu0
        %v728 = vpop.f32.mrf.mxu0
        %v729 = vadd.f32 %v292, %v728
        %v730 = vpop.f32.mrf.mxu0
        %731 = vmatprep.mubr.bf16.mxu0 0
        %732 = vmatmul.mubr.bf16.gmra.mxu0 %v512
        %v733 = vpop.f32.mrf.mxu0
        %v734 = vadd.f32 %v292, %v733
        %v735 = vpop.f32.mrf.mxu0
        %v736 = vpop.f32.mrf.mxu0
        %v737 = vadd.f32 %v292, %v736
        %v738 = vpop.f32.mrf.mxu0
        %739 = vmatprep.mubr.bf16.mxu0 0
        %740 = vmatmul.mubr.bf16.gmra.mxu0 %v515
        %v741 = vpop.f32.mrf.mxu0
        %v742 = vadd.f32 %v292, %v741
        %v743 = vpop.f32.mrf.mxu0
        %v744 = vpop.f32.mrf.mxu0
        %v745 = vadd.f32 %v292, %v744
        %v746 = vpop.f32.mrf.mxu0
        %747 = vmatprep.mubr.bf16.mxu0 0
        %748 = vmatmul.mubr.bf16.gmra.mxu0 %v518
        %v749 = vpop.f32.mrf.mxu0
        %v750 = vadd.f32 %v292, %v749
        %v751 = vpop.f32.mrf.mxu0
        %v752 = vpop.f32.mrf.mxu0
        %v753 = vadd.f32 %v292, %v752
        %v754 = vpop.f32.mrf.mxu0
        %755 = vmatprep.mubr.bf16.mxu0 0
        %756 = vmatmul.mubr.bf16.gmra.mxu0 %v521
        %v757 = vpop.f32.mrf.mxu0
        %v758 = vadd.f32 %v292, %v757
        %v759 = vpop.f32.mrf.mxu0
        %v760 = vpop.f32.mrf.mxu0
        %v761 = vadd.f32 %v292, %v760
        %v762 = vpop.f32.mrf.mxu0
        %763 = vmatprep.mubr.bf16.mxu0 0
        %764 = vmatmul.mubr.bf16.gmra.mxu0 %v524
        %v765 = vpop.f32.mrf.mxu0
        %v766 = vadd.f32 %v292, %v765
        %v767 = vpop.f32.mrf.mxu0
        %v768 = vpop.f32.mrf.mxu0
        %v769 = vadd.f32 %v292, %v768
        %v770 = vpop.f32.mrf.mxu0
        %771 = vmatprep.mubr.bf16.mxu0 0
        %772 = vmatmul.mubr.bf16.gmra.mxu0 %v527
        %v773 = vpop.f32.mrf.mxu0
        %v774 = vadd.f32 %v292, %v773
        %v775 = vpop.f32.mrf.mxu0
        %v776 = vpop.f32.mrf.mxu0
        %v777 = vadd.f32 %v292, %v776
        %v778 = vpop.f32.mrf.mxu0
        %779 = vmatprep.mubr.bf16.mxu0 0
        %780 = vmatmul.mubr.bf16.gmra.mxu0 %v530
        %v781 = vpop.f32.mrf.mxu0
        %v782 = vadd.f32 %v292, %v781
        %v783 = vpop.f32.mrf.mxu0
        %v784 = vpop.f32.mrf.mxu0
        %v785 = vadd.f32 %v292, %v784
        %v786 = vpop.f32.mrf.mxu0
        %787 = vmatprep.mubr.bf16.mxu0 0
        %788 = vmatmul.mubr.bf16.gmra.mxu0 %v533
        %v789 = vpop.f32.mrf.mxu0
        %v790 = vadd.f32 %v292, %v789
        %v791 = vpop.f32.mrf.mxu0
        %v792 = vpop.f32.mrf.mxu0
        %v793 = vadd.f32 %v292, %v792
        %v794 = vpop.f32.mrf.mxu0
        %795 = vmatprep.mubr.bf16.mxu0 0
        %796 = vmatmul.mubr.bf16.gmra.mxu0 %v536
        %v797 = vpop.f32.mrf.mxu0
        %v798 = vadd.f32 %v292, %v797
        %v799 = vpop.f32.mrf.mxu0
        %v800 = vpop.f32.mrf.mxu0
        %v801 = vadd.f32 %v292, %v800
        %v802 = vpop.f32.mrf.mxu0
        %803 = vmatprep.mubr.bf16.mxu0 0
        %804 = vmatmul.mubr.bf16.gmra.mxu0 %v539
        %v805 = vpop.f32.mrf.mxu0
        %v806 = vadd.f32 %v292, %v805
        %v807 = vpop.f32.mrf.mxu0
        %v808 = vpop.f32.mrf.mxu0
        %v809 = vadd.f32 %v292, %v808
        %v810 = vpop.f32.mrf.mxu0
        %811 = vmatprep.mubr.bf16.mxu0 0
        %812 = vmatmul.mubr.bf16.gmra.mxu0 %v542
        %v813 = vpop.f32.mrf.mxu0
        %v814 = vadd.f32 %v292, %v813
        %v815 = vpop.f32.mrf.mxu0
        %v816 = vpop.f32.mrf.mxu0
        %v817 = vadd.f32 %v292, %v816
        %v818 = vpop.f32.mrf.mxu0
        %819 = vmatprep.mubr.bf16.mxu0 0
        %820 = vmatmul.mubr.bf16.gmra.mxu0 %v545
        %v821 = vpop.f32.mrf.mxu0
        %v822 = vadd.f32 %v292, %v821
        %v823 = vpop.f32.mrf.mxu0
        %v824 = vpop.f32.mrf.mxu0
        %v825 = vadd.f32 %v292, %v824
        %v826 = vpop.f32.mrf.mxu0
        %827 = vmatprep.mubr.bf16.mxu0 0
        %828 = vmatmul.mubr.bf16.gmra.mxu0 %v548
        %v829 = vpop.f32.mrf.mxu0
        %v830 = vadd.f32 %v292, %v829
        %v831 = vpop.f32.mrf.mxu0
        %v832 = vpop.f32.mrf.mxu0
        %v833 = vadd.f32 %v292, %v832
        %v834 = vpop.f32.mrf.mxu0
        %835 = vmatprep.mubr.bf16.mxu0 0
        %836 = vmatmul.mubr.bf16.gmra.mxu0 %v551
        %v837 = vpop.f32.mrf.mxu0
        %v838 = vadd.f32 %v292, %v837
        %v839 = vpop.f32.mrf.mxu0
        %v840 = vpop.f32.mrf.mxu0
        %v841 = vadd.f32 %v292, %v840
        %v842 = vpop.f32.mrf.mxu0
        %843 = vmatprep.mubr.bf16.mxu0 0
        %844 = vmatmul.mubr.bf16.gmra.mxu0 %v554
        %v845 = vpop.f32.mrf.mxu0
        %v846 = vadd.f32 %v292, %v845
        %v847 = vpop.f32.mrf.mxu0
        %v848 = vpop.f32.mrf.mxu0
        %v849 = vadd.f32 %v292, %v848
        %v850 = vpop.f32.mrf.mxu0
        %851 = vdwg.mxu0
        %v852 = vmax.f32 %v598, 0.0
        %v853 = vmax.f32 %v601, 0.0
        %v854 = vmax.f32 %v606, 0.0
        %v855 = vmax.f32 %v609, 0.0
        %v856 = vmax.f32 %v614, 0.0
        %v857 = vmax.f32 %v617, 0.0
        %v858 = vmax.f32 %v622, 0.0
        %v859 = vmax.f32 %v625, 0.0
        %v860 = vmax.f32 %v630, 0.0
        %v861 = vmax.f32 %v633, 0.0
        %v862 = vmax.f32 %v638, 0.0
        %v863 = vmax.f32 %v641, 0.0
        %v864 = vmax.f32 %v646, 0.0
        %v865 = vmax.f32 %v649, 0.0
        %v866 = vmax.f32 %v654, 0.0
        %v867 = vmax.f32 %v657, 0.0
        %v868 = vmax.f32 %v662, 0.0
        %v869 = vmax.f32 %v665, 0.0
        %v870 = vmax.f32 %v670, 0.0
        %v871 = vmax.f32 %v673, 0.0
        %v872 = vmax.f32 %v678, 0.0
        %v873 = vmax.f32 %v681, 0.0
        %v874 = vmax.f32 %v686, 0.0
        %v875 = vmax.f32 %v689, 0.0
        %v876 = vmax.f32 %v694, 0.0
        %v877 = vmax.f32 %v697, 0.0
        %v878 = vmax.f32 %v702, 0.0
        %v879 = vmax.f32 %v705, 0.0
        %v880 = vmax.f32 %v710, 0.0
        %v881 = vmax.f32 %v713, 0.0
        %v882 = vmax.f32 %v718, 0.0
        %v883 = vmax.f32 %v721, 0.0
        %v884 = vmax.f32 %v726, 0.0
        %v885 = vmax.f32 %v729, 0.0
        %v886 = vmax.f32 %v734, 0.0
        %v887 = vmax.f32 %v737, 0.0
        %v888 = vmax.f32 %v742, 0.0
        %v889 = vmax.f32 %v745, 0.0
        %v890 = vmax.f32 %v750, 0.0
        %v891 = vmax.f32 %v753, 0.0
        %v892 = vmax.f32 %v758, 0.0
        %v893 = vmax.f32 %v761, 0.0
        %v894 = vmax.f32 %v766, 0.0
        %v895 = vmax.f32 %v769, 0.0
        %v896 = vmax.f32 %v774, 0.0
        %v897 = vmax.f32 %v777, 0.0
        %v898 = vmax.f32 %v782, 0.0
        %v899 = vmax.f32 %v785, 0.0
        %v900 = vmax.f32 %v790, 0.0
        %v901 = vmax.f32 %v793, 0.0
        %v902 = vmax.f32 %v798, 0.0
        %v903 = vmax.f32 %v801, 0.0
        %v904 = vmax.f32 %v806, 0.0
        %v905 = vmax.f32 %v809, 0.0
        %v906 = vmax.f32 %v814, 0.0
        %v907 = vmax.f32 %v817, 0.0
        %v908 = vmax.f32 %v822, 0.0
        %v909 = vmax.f32 %v825, 0.0
        %v910 = vmax.f32 %v830, 0.0
        %v911 = vmax.f32 %v833, 0.0
        %v912 = vmax.f32 %v838, 0.0
        %v913 = vmax.f32 %v841, 0.0
        %v914 = vmax.f32 %v846, 0.0
        %v915 = vmax.f32 %v849, 0.0
        %v916 = vpack.c.bf16 %v853, %v852
        %v917 = vpack.c.bf16 %v855, %v854
        %v918 = vpack.c.bf16 %v857, %v856
        %v919 = vpack.c.bf16 %v859, %v858
        %v920 = vpack.c.bf16 %v861, %v860
        %v921 = vpack.c.bf16 %v863, %v862
        %v922 = vpack.c.bf16 %v865, %v864
        %v923 = vpack.c.bf16 %v867, %v866
        %v924 = vpack.c.bf16 %v869, %v868
        %v925 = vpack.c.bf16 %v871, %v870
        %v926 = vpack.c.bf16 %v873, %v872
        %v927 = vpack.c.bf16 %v875, %v874
        %v928 = vpack.c.bf16 %v877, %v876
        %v929 = vpack.c.bf16 %v879, %v878
        %v930 = vpack.c.bf16 %v881, %v880
        %v931 = vpack.c.bf16 %v883, %v882
        %v932 = vpack.c.bf16 %v885, %v884
        %v933 = vpack.c.bf16 %v887, %v886
        %v934 = vpack.c.bf16 %v889, %v888
        %v935 = vpack.c.bf16 %v891, %v890
        %v936 = vpack.c.bf16 %v893, %v892
        %v937 = vpack.c.bf16 %v895, %v894
        %v938 = vpack.c.bf16 %v897, %v896
        %v939 = vpack.c.bf16 %v899, %v898
        %v940 = vpack.c.bf16 %v901, %v900
        %v941 = vpack.c.bf16 %v903, %v902
        %v942 = vpack.c.bf16 %v905, %v904
        %v943 = vpack.c.bf16 %v907, %v906
        %v944 = vpack.c.bf16 %v909, %v908
        %v945 = vpack.c.bf16 %v911, %v910
        %v946 = vpack.c.bf16 %v913, %v912
        %v947 = vpack.c.bf16 %v915, %v914
        %v980 = vunpack.c.l.b16 %v916
        %v981 = vunpack.c.h.b16 %v916
        %v982 = vunpack.c.l.b16 %v917
        %v983 = vunpack.c.h.b16 %v917
        %v984 = vunpack.c.l.b16 %v918
        %v985 = vunpack.c.h.b16 %v918
        %v986 = vunpack.c.l.b16 %v919
        %v987 = vunpack.c.h.b16 %v919
        %v988 = vunpack.c.l.b16 %v920
        %v989 = vunpack.c.h.b16 %v920
        %v990 = vunpack.c.l.b16 %v921
        %v991 = vunpack.c.h.b16 %v921
        %v992 = vunpack.c.l.b16 %v922
        %v993 = vunpack.c.h.b16 %v922
        %v994 = vunpack.c.l.b16 %v923
        %v995 = vunpack.c.h.b16 %v923
        %v996 = vunpack.c.l.b16 %v924
        %v997 = vunpack.c.h.b16 %v924
        %v998 = vunpack.c.l.b16 %v925
        %v999 = vunpack.c.h.b16 %v925
        %v1000 = vunpack.c.l.b16 %v926
        %v1001 = vunpack.c.h.b16 %v926
        %v1002 = vunpack.c.l.b16 %v927
        %v1003 = vunpack.c.h.b16 %v927
        %v1004 = vunpack.c.l.b16 %v928
        %v1005 = vunpack.c.h.b16 %v928
        %v1006 = vunpack.c.l.b16 %v929
        %v1007 = vunpack.c.h.b16 %v929
        %v1008 = vunpack.c.l.b16 %v930
        %v1009 = vunpack.c.h.b16 %v930
        %v1010 = vunpack.c.l.b16 %v931
        %v1011 = vunpack.c.h.b16 %v931
        %v1012 = vunpack.c.l.b16 %v932
        %v1013 = vunpack.c.h.b16 %v932
        %v1014 = vunpack.c.l.b16 %v933
        %v1015 = vunpack.c.h.b16 %v933
        %v1016 = vunpack.c.l.b16 %v934
        %v1017 = vunpack.c.h.b16 %v934
        %v1018 = vunpack.c.l.b16 %v935
        %v1019 = vunpack.c.h.b16 %v935
        %v1020 = vunpack.c.l.b16 %v936
        %v1021 = vunpack.c.h.b16 %v936
        %v1022 = vunpack.c.l.b16 %v937
        %v1023 = vunpack.c.h.b16 %v937
        %v1024 = vunpack.c.l.b16 %v938
        %v1025 = vunpack.c.h.b16 %v938
        %v1026 = vunpack.c.l.b16 %v939
        %v1027 = vunpack.c.h.b16 %v939
        %v1028 = vunpack.c.l.b16 %v940
        %v1029 = vunpack.c.h.b16 %v940
        %v1030 = vunpack.c.l.b16 %v941
        %v1031 = vunpack.c.h.b16 %v941
        %v1032 = vunpack.c.l.b16 %v942
        %v1033 = vunpack.c.h.b16 %v942
        %v1034 = vunpack.c.l.b16 %v943
        %v1035 = vunpack.c.h.b16 %v943
        %v1036 = vunpack.c.l.b16 %v944
        %v1037 = vunpack.c.h.b16 %v944
        %v1038 = vunpack.c.l.b16 %v945
        %v1039 = vunpack.c.h.b16 %v945
        %v1040 = vunpack.c.l.b16 %v946
        %v1041 = vunpack.c.h.b16 %v946
        %v1042 = vunpack.c.l.b16 %v947
        %v1043 = vunpack.c.h.b16 %v947
        %v1044 = vpack.c.b16 %v980, %v980
        %v1045 = vpack.c.b16 %v981, %v981
        %v1046 = vpack.c.b16 %v982, %v982
        %v1047 = vpack.c.b16 %v983, %v983
        %v1048 = vpack.c.b16 %v984, %v984
        %v1049 = vpack.c.b16 %v985, %v985
        %v1050 = vpack.c.b16 %v986, %v986
        %v1051 = vpack.c.b16 %v987, %v987
        %v1052 = vpack.c.b16 %v988, %v988
        %v1053 = vpack.c.b16 %v989, %v989
        %v1054 = vpack.c.b16 %v990, %v990
        %v1055 = vpack.c.b16 %v991, %v991
        %v1056 = vpack.c.b16 %v992, %v992
        %v1057 = vpack.c.b16 %v993, %v993
        %v1058 = vpack.c.b16 %v994, %v994
        %v1059 = vpack.c.b16 %v995, %v995
        %v1060 = vpack.c.b16 %v996, %v996
        %v1061 = vpack.c.b16 %v997, %v997
        %v1062 = vpack.c.b16 %v998, %v998
        %v1063 = vpack.c.b16 %v999, %v999
        %v1064 = vpack.c.b16 %v1000, %v1000
        %v1065 = vpack.c.b16 %v1001, %v1001
        %v1066 = vpack.c.b16 %v1002, %v1002
        %v1067 = vpack.c.b16 %v1003, %v1003
        %v1068 = vpack.c.b16 %v1004, %v1004
        %v1069 = vpack.c.b16 %v1005, %v1005
        %v1070 = vpack.c.b16 %v1006, %v1006
        %v1071 = vpack.c.b16 %v1007, %v1007
        %v1072 = vpack.c.b16 %v1008, %v1008
        %v1073 = vpack.c.b16 %v1009, %v1009
        %v1074 = vpack.c.b16 %v1010, %v1010
        %v1075 = vpack.c.b16 %v1011, %v1011
        %v1076 = vpack.c.b16 %v1012, %v1012
        %v1077 = vpack.c.b16 %v1013, %v1013
        %v1078 = vpack.c.b16 %v1014, %v1014
        %v1079 = vpack.c.b16 %v1015, %v1015
        %v1080 = vpack.c.b16 %v1016, %v1016
        %v1081 = vpack.c.b16 %v1017, %v1017
        %v1082 = vpack.c.b16 %v1018, %v1018
        %v1083 = vpack.c.b16 %v1019, %v1019
        %v1084 = vpack.c.b16 %v1020, %v1020
        %v1085 = vpack.c.b16 %v1021, %v1021
        %v1086 = vpack.c.b16 %v1022, %v1022
        %v1087 = vpack.c.b16 %v1023, %v1023
        %v1088 = vpack.c.b16 %v1024, %v1024
        %v1089 = vpack.c.b16 %v1025, %v1025
        %v1090 = vpack.c.b16 %v1026, %v1026
        %v1091 = vpack.c.b16 %v1027, %v1027
        %v1092 = vpack.c.b16 %v1028, %v1028
        %v1093 = vpack.c.b16 %v1029, %v1029
        %v1094 = vpack.c.b16 %v1030, %v1030
        %v1095 = vpack.c.b16 %v1031, %v1031
        %v1096 = vpack.c.b16 %v1032, %v1032
        %v1097 = vpack.c.b16 %v1033, %v1033
        %v1098 = vpack.c.b16 %v1034, %v1034
        %v1099 = vpack.c.b16 %v1035, %v1035
        %v1100 = vpack.c.b16 %v1036, %v1036
        %v1101 = vpack.c.b16 %v1037, %v1037
        %v1102 = vpack.c.b16 %v1038, %v1038
        %v1103 = vpack.c.b16 %v1039, %v1039
        %v1104 = vpack.c.b16 %v1040, %v1040
        %v1105 = vpack.c.b16 %v1041, %v1041
        %v1106 = vpack.c.b16 %v1042, %v1042
        %v1107 = vpack.c.b16 %v1043, %v1043
        %1172 = vst [vmem:[%s200] sm:$0xf] %v1044
        %1173 = vst [vmem:[%s200 + $0x4] sm:$0xf] %v1045
        %1174 = vst [vmem:[%s200 + $0x8] sm:$0xf] %v1046
        %1175 = vst [vmem:[%s200 + $0xc] sm:$0xf] %v1047
        %1176 = vst [vmem:[%s200 + $0x10] sm:$0xf] %v1048
        %1177 = vst [vmem:[%s200 + $0x14] sm:$0xf] %v1049
        %1178 = vst [vmem:[%s200 + $0x18] sm:$0xf] %v1050
        %1179 = vst [vmem:[%s200 + $0x1c] sm:$0xf] %v1051
        %1180 = vst [vmem:[%s200 + $0x20] sm:$0xf] %v1052
        %1181 = vst [vmem:[%s200 + $0x24] sm:$0xf] %v1053
        %1182 = vst [vmem:[%s200 + $0x28] sm:$0xf] %v1054
        %1183 = vst [vmem:[%s200 + $0x2c] sm:$0xf] %v1055
        %1184 = vst [vmem:[%s200 + $0x30] sm:$0xf] %v1056
        %1185 = vst [vmem:[%s200 + $0x34] sm:$0xf] %v1057
        %1186 = vst [vmem:[%s200 + $0x38] sm:$0xf] %v1058
        %1187 = vst [vmem:[%s200 + $0x3c] sm:$0xf] %v1059
        %1188 = vst [vmem:[%s200 + $0x40] sm:$0xf] %v1060
        %1189 = vst [vmem:[%s200 + $0x44] sm:$0xf] %v1061
        %1190 = vst [vmem:[%s200 + $0x48] sm:$0xf] %v1062
        %1191 = vst [vmem:[%s200 + $0x4c] sm:$0xf] %v1063
        %1192 = vst [vmem:[%s200 + $0x50] sm:$0xf] %v1064
        %1193 = vst [vmem:[%s200 + $0x54] sm:$0xf] %v1065
        %1194 = vst [vmem:[%s200 + $0x58] sm:$0xf] %v1066
        %1195 = vst [vmem:[%s200 + $0x5c] sm:$0xf] %v1067
        %1196 = vst [vmem:[%s200 + $0x60] sm:$0xf] %v1068
        %1197 = vst [vmem:[%s200 + $0x64] sm:$0xf] %v1069
        %1198 = vst [vmem:[%s200 + $0x68] sm:$0xf] %v1070
        %1199 = vst [vmem:[%s200 + $0x6c] sm:$0xf] %v1071
        %1200 = vst [vmem:[%s200 + $0x70] sm:$0xf] %v1072
        %1201 = vst [vmem:[%s200 + $0x74] sm:$0xf] %v1073
        %1202 = vst [vmem:[%s200 + $0x78] sm:$0xf] %v1074
        %1203 = vst [vmem:[%s200 + $0x7c] sm:$0xf] %v1075
        %1204 = vst [vmem:[%s200 + $0x80] sm:$0xf] %v1076
        %1205 = vst [vmem:[%s200 + $0x84] sm:$0xf] %v1077
        %1206 = vst [vmem:[%s200 + $0x88] sm:$0xf] %v1078
        %1207 = vst [vmem:[%s200 + $0x8c] sm:$0xf] %v1079
        %1208 = vst [vmem:[%s200 + $0x90] sm:$0xf] %v1080
        %1209 = vst [vmem:[%s200 + $0x94] sm:$0xf] %v1081
        %1210 = vst [vmem:[%s200 + $0x98] sm:$0xf] %v1082
        %1211 = vst [vmem:[%s200 + $0x9c] sm:$0xf] %v1083
        %1212 = vst [vmem:[%s200 + $0xa0] sm:$0xf] %v1084
        %1213 = vst [vmem:[%s200 + $0xa4] sm:$0xf] %v1085
        %1214 = vst [vmem:[%s200 + $0xa8] sm:$0xf] %v1086
        %1215 = vst [vmem:[%s200 + $0xac] sm:$0xf] %v1087
        %1216 = vst [vmem:[%s200 + $0xb0] sm:$0xf] %v1088
        %1217 = vst [vmem:[%s200 + $0xb4] sm:$0xf] %v1089
        %1218 = vst [vmem:[%s200 + $0xb8] sm:$0xf] %v1090
        %1219 = vst [vmem:[%s200 + $0xbc] sm:$0xf] %v1091
        %1220 = vst [vmem:[%s200 + $0xc0] sm:$0xf] %v1092
        %1221 = vst [vmem:[%s200 + $0xc4] sm:$0xf] %v1093
        %1222 = vst [vmem:[%s200 + $0xc8] sm:$0xf] %v1094
        %1223 = vst [vmem:[%s200 + $0xcc] sm:$0xf] %v1095
        %1224 = vst [vmem:[%s200 + $0xd0] sm:$0xf] %v1096
        %1225 = vst [vmem:[%s200 + $0xd4] sm:$0xf] %v1097
        %1226 = vst [vmem:[%s200 + $0xd8] sm:$0xf] %v1098
        %1227 = vst [vmem:[%s200 + $0xdc] sm:$0xf] %v1099
        %1228 = vst [vmem:[%s200 + $0xe0] sm:$0xf] %v1100
        %1229 = vst [vmem:[%s200 + $0xe4] sm:$0xf] %v1101
        %1230 = vst [vmem:[%s200 + $0xe8] sm:$0xf] %v1102
        %1231 = vst [vmem:[%s200 + $0xec] sm:$0xf] %v1103
        %1232 = vst [vmem:[%s200 + $0xf0] sm:$0xf] %v1104
        %1233 = vst [vmem:[%s200 + $0xf4] sm:$0xf] %v1105
        %1234 = vst [vmem:[%s200 + $0xf8] sm:$0xf] %v1106
        %1235 = vst [vmem:[%s200 + $0xfc] sm:$0xf] %v1107
        %s1236 = sand.u32 %s92, 1
        %s1237 = sand.u32 %s92, 1
        %s1238 = smul.addr %s1237, 256
        %s1239 = scalar_lea.vmem [#allocation6], %s1238
        // Predicated region
        $region41: #{extra_cnn_forward.4} parent=31 // pred_check
          %p1240 = pneg %p102
        $region42: #{extra_cnn_forward.4} parent=31 // pred_check_branch
          %1242 = sbr.rel (%p1240) target = $region44
        $region43: #{extra_cnn_forward.4} parent=31 // pred_region
          %s1243 = smul.u32 64, %s16
          %s1244 = ssub.s32 225, %s1243
          %p1245 = scmp.lt.s32.totalorder %s1244, 64
          %s1246 = scalar_select %p1245, %s1244, 64
          %s1247 = smul.u32 64, %s1246
          %p1248 = scmp.ne.s32.totalorder 0, %s1247
          %s1249 = smul.addr %s1243, 4
          %s1250 = scalar_lea.vmem %s3, %s1249
          // Predicated region
          $region45: #{extra_cnn_forward.4} parent=43 // pred_check
            %p1251 = pneg %p1248
          $region46: #{extra_cnn_forward.4} parent=43 // pred_check_branch
            %1253 = sbr.rel (%p1251) target = $region48
          $region47: #{extra_cnn_forward.4} parent=43 // pred_region
            // Predicated region
            $region49: #{extra_cnn_forward.4} parent=47 // pred_check
              _
            $region50: #{extra_cnn_forward.4} parent=47 // pred_check_branch
              %1255 = sbr.rel target = $region52
            $region51: #{extra_cnn_forward.4} parent=47 // pred_region
              // Predicated region
              $region71: #{extra_cnn_forward.4} parent=51 // pred_check
                _
              $region72: #{extra_cnn_forward.4} parent=51 // pred_check_branch
                %1431 = sbr.rel (0) target = $region74
              $region73: #{extra_cnn_forward.4} parent=51 // pred_region
                %s1433 = ssub.s32 16, 1
                %s1434 = sshrl.u32 %s1246, 6
                // While loop
                $region75: #{extra_cnn_forward.4} parent=73 // loop_pre_header
                  _
                $region76: #{extra_cnn_forward.4} parent=73 // loop_header
                  %s1436 = sphi 0, %s1438
                  %p1437 = scmp.ge.s32.totalorder %s1436, %s1434
                  %s1441 = sphi 0, %s1574
                  %s1442 = sphi %s1239, %s1577
                  %s1443 = sphi %s1250, %s1578
                $region77: #{extra_cnn_forward.4} parent=73 // loop_header_branch
                  %1440 = sbr.rel (%p1437) target = $region81
                $region78: #{extra_cnn_forward.4} parent=73 // loop_body
                  %v1444 = vld [vmem:[%s1442] sm:%s1433]
                  %1445 = vst [vmem:[%s1443] sm:%s1433] %v1444
                  %v1446 = vld [vmem:[%s1442 + $0x4] sm:%s1433]
                  %1447 = vst [vmem:[%s1443 + $0x4] sm:%s1433] %v1446
                  %v1448 = vld [vmem:[%s1442 + $0x8] sm:%s1433]
                  %1449 = vst [vmem:[%s1443 + $0x8] sm:%s1433] %v1448
                  %v1450 = vld [vmem:[%s1442 + $0xc] sm:%s1433]
                  %1451 = vst [vmem:[%s1443 + $0xc] sm:%s1433] %v1450
                  %v1452 = vld [vmem:[%s1442 + $0x10] sm:%s1433]
                  %1453 = vst [vmem:[%s1443 + $0x10] sm:%s1433] %v1452
                  %v1454 = vld [vmem:[%s1442 + $0x14] sm:%s1433]
                  %1455 = vst [vmem:[%s1443 + $0x14] sm:%s1433] %v1454
                  %v1456 = vld [vmem:[%s1442 + $0x18] sm:%s1433]
                  %1457 = vst [vmem:[%s1443 + $0x18] sm:%s1433] %v1456
                  %v1458 = vld [vmem:[%s1442 + $0x1c] sm:%s1433]
                  %1459 = vst [vmem:[%s1443 + $0x1c] sm:%s1433] %v1458
                  %v1460 = vld [vmem:[%s1442 + $0x20] sm:%s1433]
                  %1461 = vst [vmem:[%s1443 + $0x20] sm:%s1433] %v1460
                  %v1462 = vld [vmem:[%s1442 + $0x24] sm:%s1433]
                  %1463 = vst [vmem:[%s1443 + $0x24] sm:%s1433] %v1462
                  %v1464 = vld [vmem:[%s1442 + $0x28] sm:%s1433]
                  %1465 = vst [vmem:[%s1443 + $0x28] sm:%s1433] %v1464
                  %v1466 = vld [vmem:[%s1442 + $0x2c] sm:%s1433]
                  %1467 = vst [vmem:[%s1443 + $0x2c] sm:%s1433] %v1466
                  %v1468 = vld [vmem:[%s1442 + $0x30] sm:%s1433]
                  %1469 = vst [vmem:[%s1443 + $0x30] sm:%s1433] %v1468
                  %v1470 = vld [vmem:[%s1442 + $0x34] sm:%s1433]
                  %1471 = vst [vmem:[%s1443 + $0x34] sm:%s1433] %v1470
                  %v1472 = vld [vmem:[%s1442 + $0x38] sm:%s1433]
                  %1473 = vst [vmem:[%s1443 + $0x38] sm:%s1433] %v1472
                  %v1474 = vld [vmem:[%s1442 + $0x3c] sm:%s1433]
                  %1475 = vst [vmem:[%s1443 + $0x3c] sm:%s1433] %v1474
                  %v1476 = vld [vmem:[%s1442 + $0x40] sm:%s1433]
                  %1477 = vst [vmem:[%s1443 + $0x40] sm:%s1433] %v1476
                  %v1478 = vld [vmem:[%s1442 + $0x44] sm:%s1433]
                  %1479 = vst [vmem:[%s1443 + $0x44] sm:%s1433] %v1478
                  %v1480 = vld [vmem:[%s1442 + $0x48] sm:%s1433]
                  %1481 = vst [vmem:[%s1443 + $0x48] sm:%s1433] %v1480
                  %v1482 = vld [vmem:[%s1442 + $0x4c] sm:%s1433]
                  %1483 = vst [vmem:[%s1443 + $0x4c] sm:%s1433] %v1482
                  %v1484 = vld [vmem:[%s1442 + $0x50] sm:%s1433]
                  %1485 = vst [vmem:[%s1443 + $0x50] sm:%s1433] %v1484
                  %v1486 = vld [vmem:[%s1442 + $0x54] sm:%s1433]
                  %1487 = vst [vmem:[%s1443 + $0x54] sm:%s1433] %v1486
                  %v1488 = vld [vmem:[%s1442 + $0x58] sm:%s1433]
                  %1489 = vst [vmem:[%s1443 + $0x58] sm:%s1433] %v1488
                  %v1490 = vld [vmem:[%s1442 + $0x5c] sm:%s1433]
                  %1491 = vst [vmem:[%s1443 + $0x5c] sm:%s1433] %v1490
                  %v1492 = vld [vmem:[%s1442 + $0x60] sm:%s1433]
                  %1493 = vst [vmem:[%s1443 + $0x60] sm:%s1433] %v1492
                  %v1494 = vld [vmem:[%s1442 + $0x64] sm:%s1433]
                  %1495 = vst [vmem:[%s1443 + $0x64] sm:%s1433] %v1494
                  %v1496 = vld [vmem:[%s1442 + $0x68] sm:%s1433]
                  %1497 = vst [vmem:[%s1443 + $0x68] sm:%s1433] %v1496
                  %v1498 = vld [vmem:[%s1442 + $0x6c] sm:%s1433]
                  %1499 = vst [vmem:[%s1443 + $0x6c] sm:%s1433] %v1498
                  %v1500 = vld [vmem:[%s1442 + $0x70] sm:%s1433]
                  %1501 = vst [vmem:[%s1443 + $0x70] sm:%s1433] %v1500
                  %v1502 = vld [vmem:[%s1442 + $0x74] sm:%s1433]
                  %1503 = vst [vmem:[%s1443 + $0x74] sm:%s1433] %v1502
                  %v1504 = vld [vmem:[%s1442 + $0x78] sm:%s1433]
                  %1505 = vst [vmem:[%s1443 + $0x78] sm:%s1433] %v1504
                  %v1506 = vld [vmem:[%s1442 + $0x7c] sm:%s1433]
                  %1507 = vst [vmem:[%s1443 + $0x7c] sm:%s1433] %v1506
                  %v1508 = vld [vmem:[%s1442 + $0x80] sm:%s1433]
                  %1509 = vst [vmem:[%s1443 + $0x80] sm:%s1433] %v1508
                  %v1510 = vld [vmem:[%s1442 + $0x84] sm:%s1433]
                  %1511 = vst [vmem:[%s1443 + $0x84] sm:%s1433] %v1510
                  %v1512 = vld [vmem:[%s1442 + $0x88] sm:%s1433]
                  %1513 = vst [vmem:[%s1443 + $0x88] sm:%s1433] %v1512
                  %v1514 = vld [vmem:[%s1442 + $0x8c] sm:%s1433]
                  %1515 = vst [vmem:[%s1443 + $0x8c] sm:%s1433] %v1514
                  %v1516 = vld [vmem:[%s1442 + $0x90] sm:%s1433]
                  %1517 = vst [vmem:[%s1443 + $0x90] sm:%s1433] %v1516
                  %v1518 = vld [vmem:[%s1442 + $0x94] sm:%s1433]
                  %1519 = vst [vmem:[%s1443 + $0x94] sm:%s1433] %v1518
                  %v1520 = vld [vmem:[%s1442 + $0x98] sm:%s1433]
                  %1521 = vst [vmem:[%s1443 + $0x98] sm:%s1433] %v1520
                  %v1522 = vld [vmem:[%s1442 + $0x9c] sm:%s1433]
                  %1523 = vst [vmem:[%s1443 + $0x9c] sm:%s1433] %v1522
                  %v1524 = vld [vmem:[%s1442 + $0xa0] sm:%s1433]
                  %1525 = vst [vmem:[%s1443 + $0xa0] sm:%s1433] %v1524
                  %v1526 = vld [vmem:[%s1442 + $0xa4] sm:%s1433]
                  %1527 = vst [vmem:[%s1443 + $0xa4] sm:%s1433] %v1526
                  %v1528 = vld [vmem:[%s1442 + $0xa8] sm:%s1433]
                  %1529 = vst [vmem:[%s1443 + $0xa8] sm:%s1433] %v1528
                  %v1530 = vld [vmem:[%s1442 + $0xac] sm:%s1433]
                  %1531 = vst [vmem:[%s1443 + $0xac] sm:%s1433] %v1530
                  %v1532 = vld [vmem:[%s1442 + $0xb0] sm:%s1433]
                  %1533 = vst [vmem:[%s1443 + $0xb0] sm:%s1433] %v1532
                  %v1534 = vld [vmem:[%s1442 + $0xb4] sm:%s1433]
                  %1535 = vst [vmem:[%s1443 + $0xb4] sm:%s1433] %v1534
                  %v1536 = vld [vmem:[%s1442 + $0xb8] sm:%s1433]
                  %1537 = vst [vmem:[%s1443 + $0xb8] sm:%s1433] %v1536
                  %v1538 = vld [vmem:[%s1442 + $0xbc] sm:%s1433]
                  %1539 = vst [vmem:[%s1443 + $0xbc] sm:%s1433] %v1538
                  %v1540 = vld [vmem:[%s1442 + $0xc0] sm:%s1433]
                  %1541 = vst [vmem:[%s1443 + $0xc0] sm:%s1433] %v1540
                  %v1542 = vld [vmem:[%s1442 + $0xc4] sm:%s1433]
                  %1543 = vst [vmem:[%s1443 + $0xc4] sm:%s1433] %v1542
                  %v1544 = vld [vmem:[%s1442 + $0xc8] sm:%s1433]
                  %1545 = vst [vmem:[%s1443 + $0xc8] sm:%s1433] %v1544
                  %v1546 = vld [vmem:[%s1442 + $0xcc] sm:%s1433]
                  %1547 = vst [vmem:[%s1443 + $0xcc] sm:%s1433] %v1546
                  %v1548 = vld [vmem:[%s1442 + $0xd0] sm:%s1433]
                  %1549 = vst [vmem:[%s1443 + $0xd0] sm:%s1433] %v1548
                  %v1550 = vld [vmem:[%s1442 + $0xd4] sm:%s1433]
                  %1551 = vst [vmem:[%s1443 + $0xd4] sm:%s1433] %v1550
                  %v1552 = vld [vmem:[%s1442 + $0xd8] sm:%s1433]
                  %1553 = vst [vmem:[%s1443 + $0xd8] sm:%s1433] %v1552
                  %v1554 = vld [vmem:[%s1442 + $0xdc] sm:%s1433]
                  %1555 = vst [vmem:[%s1443 + $0xdc] sm:%s1433] %v1554
                  %v1556 = vld [vmem:[%s1442 + $0xe0] sm:%s1433]
                  %1557 = vst [vmem:[%s1443 + $0xe0] sm:%s1433] %v1556
                  %v1558 = vld [vmem:[%s1442 + $0xe4] sm:%s1433]
                  %1559 = vst [vmem:[%s1443 + $0xe4] sm:%s1433] %v1558
                  %v1560 = vld [vmem:[%s1442 + $0xe8] sm:%s1433]
                  %1561 = vst [vmem:[%s1443 + $0xe8] sm:%s1433] %v1560
                  %v1562 = vld [vmem:[%s1442 + $0xec] sm:%s1433]
                  %1563 = vst [vmem:[%s1443 + $0xec] sm:%s1433] %v1562
                  %v1564 = vld [vmem:[%s1442 + $0xf0] sm:%s1433]
                  %1565 = vst [vmem:[%s1443 + $0xf0] sm:%s1433] %v1564
                  %v1566 = vld [vmem:[%s1442 + $0xf4] sm:%s1433]
                  %1567 = vst [vmem:[%s1443 + $0xf4] sm:%s1433] %v1566
                  %v1568 = vld [vmem:[%s1442 + $0xf8] sm:%s1433]
                  %1569 = vst [vmem:[%s1443 + $0xf8] sm:%s1433] %v1568
                  %v1570 = vld [vmem:[%s1442 + $0xfc] sm:%s1433]
                  %1571 = vst [vmem:[%s1443 + $0xfc] sm:%s1433] %v1570
                  %s1572 = sadd.s32 1, %s1441
                  %p1573 = scmp.ge.s32.totalorder %s1572, %s1434
                  %s1574 = scalar_select %p1573, 0, %s1572
                  %s1575 = smul.u32 %s1574, 256
                  %s1576 = smul.u32 %s1574, 256
                  %s1577 = scalar_lea.vmem %s1239, %s1575 [#allocation6]
                  %s1578 = scalar_lea.vmem %s1250, %s1576
                $region79: #{extra_cnn_forward.4} parent=73 // loop_footer
                  %s1438 = sadd.s32 %s1436, 1
                $region80: #{extra_cnn_forward.4} parent=73 // loop_footer_branch
                  %1435 = sbr.rel target = $region76
                $region81: #{extra_cnn_forward.4} parent=73 // loop_exit
                  _
                %s1579 = sshrl.u32 %s1246, 6
                %s1580 = sand.u32 %s1246, 63
                %s1581 = smul.u32 %s1579, 64
                %s1582 = smul.u32 4, %s1581
                %s1583 = scalar_lea.vmem %s1239, %s1582 [#allocation6]
                %s1584 = smul.u32 4, %s1581
                %s1585 = scalar_lea.vmem %s1250, %s1584
                // While loop
                $region82: #{extra_cnn_forward.4} parent=73 // loop_pre_header
                  _
                $region83: #{extra_cnn_forward.4} parent=73 // loop_header
                  %s1587 = sphi 0, %s1589
                  %p1588 = scmp.ge.s32.totalorder %s1587, %s1580
                  %s1592 = sphi 0, %s1599
                  %s1593 = sphi %s1583, %s1602
                  %s1594 = sphi %s1585, %s1603
                $region84: #{extra_cnn_forward.4} parent=73 // loop_header_branch
                  %1591 = sbr.rel (%p1588) target = $region88
                $region85: #{extra_cnn_forward.4} parent=73 // loop_body
                  %v1595 = vld [vmem:[%s1593] sm:%s1433]
                  %1596 = vst [vmem:[%s1594] sm:%s1433] %v1595
                  %s1597 = sadd.s32 1, %s1592
                  %p1598 = scmp.ge.s32.totalorder %s1597, %s1580
                  %s1599 = scalar_select %p1598, 0, %s1597
                  %s1600 = smul.u32 %s1599, 4
                  %s1601 = smul.u32 %s1599, 4
                  %s1602 = scalar_lea.vmem %s1583, %s1600 [#allocation6]
                  %s1603 = scalar_lea.vmem %s1585, %s1601
                $region86: #{extra_cnn_forward.4} parent=73 // loop_footer
                  %s1589 = sadd.s32 %s1587, 1
                $region87: #{extra_cnn_forward.4} parent=73 // loop_footer_branch
                  %1586 = sbr.rel target = $region83
                $region88: #{extra_cnn_forward.4} parent=73 // loop_exit
                  _
              $region74: #{extra_cnn_forward.4} parent=51 // pred_fallthru
                _
            $region52: #{extra_cnn_forward.4} parent=47 // pred_fallthru
              _
            // Predicated region
            $region53: #{extra_cnn_forward.4} parent=47 // pred_check
              _
            $region54: #{extra_cnn_forward.4} parent=47 // pred_check_branch
              %1257 = sbr.rel (0) target = $region56
            $region55: #{extra_cnn_forward.4} parent=47 // pred_region
              %s1259 = ssub.s32 16, 1
              %s1260 = sshrl.u32 %s1246, 6
              // While loop
              $region57: #{extra_cnn_forward.4} parent=55 // loop_pre_header
                _
              $region58: #{extra_cnn_forward.4} parent=55 // loop_header
                %s1262 = sphi 0, %s1264
                %p1263 = scmp.ge.s32.totalorder %s1262, %s1260
                %s1267 = sphi 0, %s1400
                %s1268 = sphi %s1239, %s1403
                %s1269 = sphi %s1250, %s1404
              $region59: #{extra_cnn_forward.4} parent=55 // loop_header_branch
                %1266 = sbr.rel (%p1263) target = $region63
              $region60: #{extra_cnn_forward.4} parent=55 // loop_body
                %v1270 = vld [vmem:[%s1268] sm:%s1259]
                %1271 = vst [vmem:[%s1269] sm:%s1259] %v1270
                %v1272 = vld [vmem:[%s1268 + $0x4] sm:%s1259]
                %1273 = vst [vmem:[%s1269 + $0x4] sm:%s1259] %v1272
                %v1274 = vld [vmem:[%s1268 + $0x8] sm:%s1259]
                %1275 = vst [vmem:[%s1269 + $0x8] sm:%s1259] %v1274
                %v1276 = vld [vmem:[%s1268 + $0xc] sm:%s1259]
                %1277 = vst [vmem:[%s1269 + $0xc] sm:%s1259] %v1276
                %v1278 = vld [vmem:[%s1268 + $0x10] sm:%s1259]
                %1279 = vst [vmem:[%s1269 + $0x10] sm:%s1259] %v1278
                %v1280 = vld [vmem:[%s1268 + $0x14] sm:%s1259]
                %1281 = vst [vmem:[%s1269 + $0x14] sm:%s1259] %v1280
                %v1282 = vld [vmem:[%s1268 + $0x18] sm:%s1259]
                %1283 = vst [vmem:[%s1269 + $0x18] sm:%s1259] %v1282
                %v1284 = vld [vmem:[%s1268 + $0x1c] sm:%s1259]
                %1285 = vst [vmem:[%s1269 + $0x1c] sm:%s1259] %v1284
                %v1286 = vld [vmem:[%s1268 + $0x20] sm:%s1259]
                %1287 = vst [vmem:[%s1269 + $0x20] sm:%s1259] %v1286
                %v1288 = vld [vmem:[%s1268 + $0x24] sm:%s1259]
                %1289 = vst [vmem:[%s1269 + $0x24] sm:%s1259] %v1288
                %v1290 = vld [vmem:[%s1268 + $0x28] sm:%s1259]
                %1291 = vst [vmem:[%s1269 + $0x28] sm:%s1259] %v1290
                %v1292 = vld [vmem:[%s1268 + $0x2c] sm:%s1259]
                %1293 = vst [vmem:[%s1269 + $0x2c] sm:%s1259] %v1292
                %v1294 = vld [vmem:[%s1268 + $0x30] sm:%s1259]
                %1295 = vst [vmem:[%s1269 + $0x30] sm:%s1259] %v1294
                %v1296 = vld [vmem:[%s1268 + $0x34] sm:%s1259]
                %1297 = vst [vmem:[%s1269 + $0x34] sm:%s1259] %v1296
                %v1298 = vld [vmem:[%s1268 + $0x38] sm:%s1259]
                %1299 = vst [vmem:[%s1269 + $0x38] sm:%s1259] %v1298
                %v1300 = vld [vmem:[%s1268 + $0x3c] sm:%s1259]
                %1301 = vst [vmem:[%s1269 + $0x3c] sm:%s1259] %v1300
                %v1302 = vld [vmem:[%s1268 + $0x40] sm:%s1259]
                %1303 = vst [vmem:[%s1269 + $0x40] sm:%s1259] %v1302
                %v1304 = vld [vmem:[%s1268 + $0x44] sm:%s1259]
                %1305 = vst [vmem:[%s1269 + $0x44] sm:%s1259] %v1304
                %v1306 = vld [vmem:[%s1268 + $0x48] sm:%s1259]
                %1307 = vst [vmem:[%s1269 + $0x48] sm:%s1259] %v1306
                %v1308 = vld [vmem:[%s1268 + $0x4c] sm:%s1259]
                %1309 = vst [vmem:[%s1269 + $0x4c] sm:%s1259] %v1308
                %v1310 = vld [vmem:[%s1268 + $0x50] sm:%s1259]
                %1311 = vst [vmem:[%s1269 + $0x50] sm:%s1259] %v1310
                %v1312 = vld [vmem:[%s1268 + $0x54] sm:%s1259]
                %1313 = vst [vmem:[%s1269 + $0x54] sm:%s1259] %v1312
                %v1314 = vld [vmem:[%s1268 + $0x58] sm:%s1259]
                %1315 = vst [vmem:[%s1269 + $0x58] sm:%s1259] %v1314
                %v1316 = vld [vmem:[%s1268 + $0x5c] sm:%s1259]
                %1317 = vst [vmem:[%s1269 + $0x5c] sm:%s1259] %v1316
                %v1318 = vld [vmem:[%s1268 + $0x60] sm:%s1259]
                %1319 = vst [vmem:[%s1269 + $0x60] sm:%s1259] %v1318
                %v1320 = vld [vmem:[%s1268 + $0x64] sm:%s1259]
                %1321 = vst [vmem:[%s1269 + $0x64] sm:%s1259] %v1320
                %v1322 = vld [vmem:[%s1268 + $0x68] sm:%s1259]
                %1323 = vst [vmem:[%s1269 + $0x68] sm:%s1259] %v1322
                %v1324 = vld [vmem:[%s1268 + $0x6c] sm:%s1259]
                %1325 = vst [vmem:[%s1269 + $0x6c] sm:%s1259] %v1324
                %v1326 = vld [vmem:[%s1268 + $0x70] sm:%s1259]
                %1327 = vst [vmem:[%s1269 + $0x70] sm:%s1259] %v1326
                %v1328 = vld [vmem:[%s1268 + $0x74] sm:%s1259]
                %1329 = vst [vmem:[%s1269 + $0x74] sm:%s1259] %v1328
                %v1330 = vld [vmem:[%s1268 + $0x78] sm:%s1259]
                %1331 = vst [vmem:[%s1269 + $0x78] sm:%s1259] %v1330
                %v1332 = vld [vmem:[%s1268 + $0x7c] sm:%s1259]
                %1333 = vst [vmem:[%s1269 + $0x7c] sm:%s1259] %v1332
                %v1334 = vld [vmem:[%s1268 + $0x80] sm:%s1259]
                %1335 = vst [vmem:[%s1269 + $0x80] sm:%s1259] %v1334
                %v1336 = vld [vmem:[%s1268 + $0x84] sm:%s1259]
                %1337 = vst [vmem:[%s1269 + $0x84] sm:%s1259] %v1336
                %v1338 = vld [vmem:[%s1268 + $0x88] sm:%s1259]
                %1339 = vst [vmem:[%s1269 + $0x88] sm:%s1259] %v1338
                %v1340 = vld [vmem:[%s1268 + $0x8c] sm:%s1259]
                %1341 = vst [vmem:[%s1269 + $0x8c] sm:%s1259] %v1340
                %v1342 = vld [vmem:[%s1268 + $0x90] sm:%s1259]
                %1343 = vst [vmem:[%s1269 + $0x90] sm:%s1259] %v1342
                %v1344 = vld [vmem:[%s1268 + $0x94] sm:%s1259]
                %1345 = vst [vmem:[%s1269 + $0x94] sm:%s1259] %v1344
                %v1346 = vld [vmem:[%s1268 + $0x98] sm:%s1259]
                %1347 = vst [vmem:[%s1269 + $0x98] sm:%s1259] %v1346
                %v1348 = vld [vmem:[%s1268 + $0x9c] sm:%s1259]
                %1349 = vst [vmem:[%s1269 + $0x9c] sm:%s1259] %v1348
                %v1350 = vld [vmem:[%s1268 + $0xa0] sm:%s1259]
                %1351 = vst [vmem:[%s1269 + $0xa0] sm:%s1259] %v1350
                %v1352 = vld [vmem:[%s1268 + $0xa4] sm:%s1259]
                %1353 = vst [vmem:[%s1269 + $0xa4] sm:%s1259] %v1352
                %v1354 = vld [vmem:[%s1268 + $0xa8] sm:%s1259]
                %1355 = vst [vmem:[%s1269 + $0xa8] sm:%s1259] %v1354
                %v1356 = vld [vmem:[%s1268 + $0xac] sm:%s1259]
                %1357 = vst [vmem:[%s1269 + $0xac] sm:%s1259] %v1356
                %v1358 = vld [vmem:[%s1268 + $0xb0] sm:%s1259]
                %1359 = vst [vmem:[%s1269 + $0xb0] sm:%s1259] %v1358
                %v1360 = vld [vmem:[%s1268 + $0xb4] sm:%s1259]
                %1361 = vst [vmem:[%s1269 + $0xb4] sm:%s1259] %v1360
                %v1362 = vld [vmem:[%s1268 + $0xb8] sm:%s1259]
                %1363 = vst [vmem:[%s1269 + $0xb8] sm:%s1259] %v1362
                %v1364 = vld [vmem:[%s1268 + $0xbc] sm:%s1259]
                %1365 = vst [vmem:[%s1269 + $0xbc] sm:%s1259] %v1364
                %v1366 = vld [vmem:[%s1268 + $0xc0] sm:%s1259]
                %1367 = vst [vmem:[%s1269 + $0xc0] sm:%s1259] %v1366
                %v1368 = vld [vmem:[%s1268 + $0xc4] sm:%s1259]
                %1369 = vst [vmem:[%s1269 + $0xc4] sm:%s1259] %v1368
                %v1370 = vld [vmem:[%s1268 + $0xc8] sm:%s1259]
                %1371 = vst [vmem:[%s1269 + $0xc8] sm:%s1259] %v1370
                %v1372 = vld [vmem:[%s1268 + $0xcc] sm:%s1259]
                %1373 = vst [vmem:[%s1269 + $0xcc] sm:%s1259] %v1372
                %v1374 = vld [vmem:[%s1268 + $0xd0] sm:%s1259]
                %1375 = vst [vmem:[%s1269 + $0xd0] sm:%s1259] %v1374
                %v1376 = vld [vmem:[%s1268 + $0xd4] sm:%s1259]
                %1377 = vst [vmem:[%s1269 + $0xd4] sm:%s1259] %v1376
                %v1378 = vld [vmem:[%s1268 + $0xd8] sm:%s1259]
                %1379 = vst [vmem:[%s1269 + $0xd8] sm:%s1259] %v1378
                %v1380 = vld [vmem:[%s1268 + $0xdc] sm:%s1259]
                %1381 = vst [vmem:[%s1269 + $0xdc] sm:%s1259] %v1380
                %v1382 = vld [vmem:[%s1268 + $0xe0] sm:%s1259]
                %1383 = vst [vmem:[%s1269 + $0xe0] sm:%s1259] %v1382
                %v1384 = vld [vmem:[%s1268 + $0xe4] sm:%s1259]
                %1385 = vst [vmem:[%s1269 + $0xe4] sm:%s1259] %v1384
                %v1386 = vld [vmem:[%s1268 + $0xe8] sm:%s1259]
                %1387 = vst [vmem:[%s1269 + $0xe8] sm:%s1259] %v1386
                %v1388 = vld [vmem:[%s1268 + $0xec] sm:%s1259]
                %1389 = vst [vmem:[%s1269 + $0xec] sm:%s1259] %v1388
                %v1390 = vld [vmem:[%s1268 + $0xf0] sm:%s1259]
                %1391 = vst [vmem:[%s1269 + $0xf0] sm:%s1259] %v1390
                %v1392 = vld [vmem:[%s1268 + $0xf4] sm:%s1259]
                %1393 = vst [vmem:[%s1269 + $0xf4] sm:%s1259] %v1392
                %v1394 = vld [vmem:[%s1268 + $0xf8] sm:%s1259]
                %1395 = vst [vmem:[%s1269 + $0xf8] sm:%s1259] %v1394
                %v1396 = vld [vmem:[%s1268 + $0xfc] sm:%s1259]
                %1397 = vst [vmem:[%s1269 + $0xfc] sm:%s1259] %v1396
                %s1398 = sadd.s32 1, %s1267
                %p1399 = scmp.ge.s32.totalorder %s1398, %s1260
                %s1400 = scalar_select %p1399, 0, %s1398
                %s1401 = smul.u32 %s1400, 256
                %s1402 = smul.u32 %s1400, 256
                %s1403 = scalar_lea.vmem %s1239, %s1401 [#allocation6]
                %s1404 = scalar_lea.vmem %s1250, %s1402
              $region61: #{extra_cnn_forward.4} parent=55 // loop_footer
                %s1264 = sadd.s32 %s1262, 1
              $region62: #{extra_cnn_forward.4} parent=55 // loop_footer_branch
                %1261 = sbr.rel target = $region58
              $region63: #{extra_cnn_forward.4} parent=55 // loop_exit
                _
              %s1405 = sshrl.u32 %s1246, 6
              %s1406 = sand.u32 %s1246, 63
              %s1407 = smul.u32 %s1405, 64
              %s1408 = smul.u32 4, %s1407
              %s1409 = scalar_lea.vmem %s1239, %s1408 [#allocation6]
              %s1410 = smul.u32 4, %s1407
              %s1411 = scalar_lea.vmem %s1250, %s1410
              // While loop
              $region64: #{extra_cnn_forward.4} parent=55 // loop_pre_header
                _
              $region65: #{extra_cnn_forward.4} parent=55 // loop_header
                %s1413 = sphi 0, %s1415
                %p1414 = scmp.ge.s32.totalorder %s1413, %s1406
                %s1418 = sphi 0, %s1425
                %s1419 = sphi %s1409, %s1428
                %s1420 = sphi %s1411, %s1429
              $region66: #{extra_cnn_forward.4} parent=55 // loop_header_branch
                %1417 = sbr.rel (%p1414) target = $region70
              $region67: #{extra_cnn_forward.4} parent=55 // loop_body
                %v1421 = vld [vmem:[%s1419] sm:%s1259]
                %1422 = vst [vmem:[%s1420] sm:%s1259] %v1421
                %s1423 = sadd.s32 1, %s1418
                %p1424 = scmp.ge.s32.totalorder %s1423, %s1406
                %s1425 = scalar_select %p1424, 0, %s1423
                %s1426 = smul.u32 %s1425, 4
                %s1427 = smul.u32 %s1425, 4
                %s1428 = scalar_lea.vmem %s1409, %s1426 [#allocation6]
                %s1429 = scalar_lea.vmem %s1411, %s1427
              $region68: #{extra_cnn_forward.4} parent=55 // loop_footer
                %s1415 = sadd.s32 %s1413, 1
              $region69: #{extra_cnn_forward.4} parent=55 // loop_footer_branch
                %1412 = sbr.rel target = $region65
              $region70: #{extra_cnn_forward.4} parent=55 // loop_exit
                _
            $region56: #{extra_cnn_forward.4} parent=47 // pred_fallthru
              _
          $region48: #{extra_cnn_forward.4} parent=43 // pred_fallthru
            _
          %1604 = vnop
        $region44: #{extra_cnn_forward.4} parent=31 // pred_fallthru
          _
      $region32: #{extra_cnn_forward.4} parent=5 // pred_fallthru
        _
      %p1605 = scmp.le.s32.totalorder 2, %s11
      // Predicated region
      $region89: #{extra_cnn_forward.4} parent=5 // pred_check
        %p1606 = pneg %p1605
      $region90: #{extra_cnn_forward.4} parent=5 // pred_check_branch
        %1608 = sbr.rel (%p1606) target = $region92
      $region91: #{extra_cnn_forward.4} parent=5 // pred_region
        %s1609 = ssub.s32 %s11, 2
        // Predicated region
        $region93: #{extra_cnn_forward.4} parent=91 // pred_check
          %p1610 = pneg %p108
        $region94: #{extra_cnn_forward.4} parent=91 // pred_check_branch
          %1612 = sbr.rel (%p1610) target = $region96
        $region95: #{extra_cnn_forward.4} parent=91 // pred_region
          %s1613 = sand.u32 %s93, 1
          %s1614 = sand.u32 %s93, 1
          %s1615 = smul.addr %s1614, 256
          %s1616 = scalar_lea.vmem [#allocation6], %s1615
        $region96: #{extra_cnn_forward.4} parent=91 // pred_fallthru
          _
      $region92: #{extra_cnn_forward.4} parent=5 // pred_fallthru
        _
    $region6: #{extra_cnn_forward.4} parent=1 // loop_footer
      %s15 = sadd.s32 1, %s11
    $region7: #{extra_cnn_forward.4} parent=1 // loop_footer_branch
      %10 = sbr.rel target = $region3
    $region8: #{extra_cnn_forward.4} parent=1 // loop_exit
      _
    %1617 = vsyncpa [#allocation3], 1
    %s1618 = scalar_lea.sflag [#allocation3], 1
    %1619 = vsyncpa %s1618, 1
    %1620 = vsyncpa [#allocation5], 1

// kernel: extra_cnn_forward.5
$region0: #{extra_cnn_forward.5}
  #allocation0 [shape = 'u32[]', space=smem, size = 0x4, offset = 0x4, fixed_abs, tag = 'smem constant byte address 0x4 - core index']
  #allocation1 [shape = 'u32[144,128]{1,0:T(1,128)}', space=vmem, size = 0x12000, scoped, tag = 'internal scratch']
  %s0 = inlined_call_operand.vmem [shape: bf16[512,360], index: 0, kind: input, shape index: {}]
  %s1 = inlined_call_operand.vmem [shape: bf16[360,128], index: 1, kind: input, shape index: {}]
  %s2 = inlined_call_operand.vmem [shape: f32[1,128], index: 2, kind: input, shape index: {}]
  %s3 = inlined_call_operand.vmem [shape: bf16[512,128], index: 3, kind: output, shape index: {}]
  %s4 = sld [smem:[#allocation0]]
  $region45: #{extra_cnn_forward.5} parent=0
    _
  %s6 = ssub.s32 1, %s4
  %s7 = scalar_select 0, %s6, %s4
  loop: start=0, step=1, limit=4
  $region2: #{extra_cnn_forward.5} parent=0 // loop_pre_header
    _
  $region3: #{extra_cnn_forward.5} parent=0 // loop_header
    %s9 = sphi 0, %s13
    %p10 = scmp.ge.s32.totalorder %s9, 4
    %s19 = sphi 0, %s21
    %s22 = sphi 0, %s19
    %s23 = sphi 0, %s22
    %s39 = sphi 0, %s23
    %s43 = sphi 0, %s43
    %s45 = sphi 0, %s43
    %s46 = sphi 0, %s45
    %s60 = sphi 0, %s46
    %s64 = sphi 0, %s64
    %s66 = sphi 0, %s64
    %s67 = sphi 0, %s66
    %s81 = sphi 0, %s67
    %s87 = sphi 0, %s89
    %s90 = sphi 0, %s87
    %s91 = sphi 0, %s90
    %s107 = sphi 0, %s91
  $region4: #{extra_cnn_forward.5} parent=0 // loop_header_branch
    %12 = sbr.rel (%p10) target = $region8
  $region5: #{extra_cnn_forward.5} parent=0 // loop_body
    %s14 = ssub.s32 %s9, 1
    %s15 = ssub.s32 %s9, 2
    %s16 = sadd.s32 %s9, 1
    %s17 = ssub.s32 %s9, %s16
    %p18 = scmp.eq.s32.totalorder %s17, 0
    %s20 = sadd.s32 %s19, 1
    %s21 = scalar_select %p18, %s19, %s20
    %p24 = pneg %p18
    %p25 = scmp.eq.s32.totalorder %s9, 1
    %p26 = por %p24, %p25
    %p27 = scmp.ne.s32.totalorder %s19, %s22
    %p28 = scmp.eq.s32.totalorder %s9, 0
    %p29 = por %p27, %p28
    %p30 = scmp.ne.s32.totalorder %s19, %s22
    %p31 = scmp.eq.s32.totalorder %s14, 1
    %p32 = por %p30, %p31
    %p33 = scmp.ne.s32.totalorder %s22, %s23
    %p34 = scmp.eq.s32.totalorder %s14, 0
    %p35 = por %p33, %p34
    %p36 = scmp.ne.s32.totalorder %s22, %s23
    %p37 = scmp.eq.s32.totalorder %s15, 1
    %p38 = por %p36, %p37
    %p40 = scmp.ne.s32.totalorder %s23, %s39
    %p41 = scmp.eq.s32.totalorder %s15, 0
    %p42 = por %p40, %p41
    %s44 = sadd.s32 %s43, 1
    %p47 = scmp.eq.s32.totalorder %s9, 1
    %p48 = scmp.ne.s32.totalorder %s43, %s45
    %p49 = scmp.eq.s32.totalorder %s9, 0
    %p50 = por %p48, %p49
    %p51 = scmp.ne.s32.totalorder %s43, %s45
    %p52 = scmp.eq.s32.totalorder %s14, 1
    %p53 = por %p51, %p52
    %p54 = scmp.ne.s32.totalorder %s45, %s46
    %p55 = scmp.eq.s32.totalorder %s14, 0
    %p56 = por %p54, %p55
    %p57 = scmp.ne.s32.totalorder %s45, %s46
    %p58 = scmp.eq.s32.totalorder %s15, 1
    %p59 = por %p57, %p58
    %p61 = scmp.ne.s32.totalorder %s46, %s60
    %p62 = scmp.eq.s32.totalorder %s15, 0
    %p63 = por %p61, %p62
    %s65 = sadd.s32 %s64, 1
    %p68 = scmp.eq.s32.totalorder %s9, 1
    %p69 = scmp.ne.s32.totalorder %s64, %s66
    %p70 = scmp.eq.s32.totalorder %s9, 0
    %p71 = por %p69, %p70
    %p72 = scmp.ne.s32.totalorder %s64, %s66
    %p73 = scmp.eq.s32.totalorder %s14, 1
    %p74 = por %p72, %p73
    %p75 = scmp.ne.s32.totalorder %s66, %s67
    %p76 = scmp.eq.s32.totalorder %s14, 0
    %p77 = por %p75, %p76
    %p78 = scmp.ne.s32.totalorder %s66, %s67
    %p79 = scmp.eq.s32.totalorder %s15, 1
    %p80 = por %p78, %p79
    %p82 = scmp.ne.s32.totalorder %s67, %s81
    %p83 = scmp.eq.s32.totalorder %s15, 0
    %p84 = por %p82, %p83
    %s85 = ssub.s32 %s9, %s16
    %p86 = scmp.eq.s32.totalorder %s85, 0
    %s88 = sadd.s32 %s87, 1
    %s89 = scalar_select %p86, %s87, %s88
    %p92 = pneg %p86
    %p93 = scmp.eq.s32.totalorder %s9, 1
    %p94 = por %p92, %p93
    %p95 = scmp.ne.s32.totalorder %s87, %s90
    %p96 = scmp.eq.s32.totalorder %s9, 0
    %p97 = por %p95, %p96
    %p98 = scmp.ne.s32.totalorder %s87, %s90
    %p99 = scmp.eq.s32.totalorder %s14, 1
    %p100 = por %p98, %p99
    %p101 = scmp.ne.s32.totalorder %s90, %s91
    %p102 = scmp.eq.s32.totalorder %s14, 0
    %p103 = por %p101, %p102
    %p104 = scmp.ne.s32.totalorder %s90, %s91
    %p105 = scmp.eq.s32.totalorder %s15, 1
    %p106 = por %p104, %p105
    %p108 = scmp.ne.s32.totalorder %s91, %s107
    %p109 = scmp.eq.s32.totalorder %s15, 0
    %p110 = por %p108, %p109
    %p111 = scmp.le.s32.totalorder 1, %s9
    %p112 = scmp.lt.s32.totalorder %s9, 3
    %p113 = pnand %p111, %p112
    %p114 = pneg %p113
    // Predicated region
    $region9: #{extra_cnn_forward.5} parent=5 // pred_check
      _
    $region10: #{extra_cnn_forward.5} parent=5 // pred_check_branch
      %116 = sbr.rel (%p113) target = $region12
    $region11: #{extra_cnn_forward.5} parent=5 // pred_region
      %s117 = ssub.s32 %s9, 1
      // Predicated region
      $region13: #{extra_cnn_forward.5} parent=11 // pred_check
        %p118 = pneg %p56
      $region14: #{extra_cnn_forward.5} parent=11 // pred_check_branch
        %120 = sbr.rel (%p118) target = $region16
      $region15: #{extra_cnn_forward.5} parent=11 // pred_region
        _
      $region16: #{extra_cnn_forward.5} parent=11 // pred_fallthru
        _
      // Predicated region
      $region17: #{extra_cnn_forward.5} parent=11 // pred_check
        %p121 = pneg %p77
      $region18: #{extra_cnn_forward.5} parent=11 // pred_check_branch
        %123 = sbr.rel (%p121) target = $region20
      $region19: #{extra_cnn_forward.5} parent=11 // pred_region
        _
      $region20: #{extra_cnn_forward.5} parent=11 // pred_fallthru
        _
    $region12: #{extra_cnn_forward.5} parent=5 // pred_fallthru
      _
    %p124 = scmp.lt.s32.totalorder %s9, 2
    // Predicated region
    $region21: #{extra_cnn_forward.5} parent=5 // pred_check
      %p125 = pneg %p124
    $region22: #{extra_cnn_forward.5} parent=5 // pred_check_branch
      %127 = sbr.rel (%p125) target = $region24
    $region23: #{extra_cnn_forward.5} parent=5 // pred_region
      // Predicated region
      $region25: #{extra_cnn_forward.5} parent=23 // pred_check
        %p128 = pneg %p29
      $region26: #{extra_cnn_forward.5} parent=23 // pred_check_branch
        %130 = sbr.rel (%p128) target = $region28
      $region27: #{extra_cnn_forward.5} parent=23 // pred_region
        %s131 = smul.u32 32, %s9
        %p132 = scmp.lt.s32.totalorder %s131, 63
        %s133 = scalar_select %p132, %s131, 63
        %s134 = smul.addr %s133, 3
        %s135 = smul.addr %s134, 4
        %s136 = scalar_lea.vmem %s0, %s135
        %s137 = smul.u32 32, %s9
      $region28: #{extra_cnn_forward.5} parent=23 // pred_fallthru
        _
    $region24: #{extra_cnn_forward.5} parent=5 // pred_fallthru
      _
    %p138 = scmp.le.s32.totalorder 1, %s9
    %p139 = scmp.lt.s32.totalorder %s9, 3
    %p140 = pnand %p138, %p139
    %p141 = pneg %p140
    // Predicated region
    $region29: #{extra_cnn_forward.5} parent=5 // pred_check
      _
    $region30: #{extra_cnn_forward.5} parent=5 // pred_check_branch
      %143 = sbr.rel (%p140) target = $region32
    $region31: #{extra_cnn_forward.5} parent=5 // pred_region
      %s144 = ssub.s32 %s9, 1
      %s145 = smul.u32 32, %s14
      %p146 = scmp.lt.s32.totalorder %s145, 63
      %s147 = scalar_select %p146, %s145, 63
      %s148 = smul.addr %s147, 3
      %s149 = smul.addr %s148, 4
      %s150 = scalar_lea.vmem %s0, %s149
      %p151 = pneg %p35
      %p152 = pneg %p32
      %p153 = pneg %p56
      %p154 = pneg %p53
      %p155 = pneg %p77
      %p156 = pneg %p74
      %p157 = pneg %p103
      %p158 = pneg %p100
      %s159 = smul.u32 32, %s14
      %p160 = scmp.lt.s32.totalorder %s159, 63
      %s161 = scalar_select %p160, %s159, 63
      %s162 = smul.addr %s161, 4
      %s163 = scalar_lea.vmem %s3, %s162
      %s164 = smul.u32 32, %s14
      %p165 = scmp.lt.s32.totalorder %s164, 63
      %s166 = scalar_select %p165, %s164, 63
      %s167 = smul.addr %s166, 3
      %s168 = smul.addr %s167, 4
      %s169 = scalar_lea.vmem %s0, %s168
      %s170 = smul.u32 32, %s14
      %s171 = smul.u32 32, %s14
      %p172 = scmp.lt.s32.totalorder %s171, 63
      %s173 = scalar_select %p172, %s171, 63
      %s174 = smul.addr %s173, 4
      %s175 = scalar_lea.vmem %s3, %s174
      %s176 = smul.u32 32, %s14
      %v178 = vld [vmem:[%s169] sm:$0xff]
      %v179 = vld [vmem:[%s169 + $0x8] sm:$0xf]
      %v180 = vld [vmem:[%s169 + $0xc] sm:$0xff]
      %v181 = vld [vmem:[%s169 + $0x14] sm:$0xf]
      %v182 = vld [vmem:[%s169 + $0x18] sm:$0xff]
      %v183 = vld [vmem:[%s169 + $0x20] sm:$0xf]
      %v184 = vld [vmem:[%s169 + $0x24] sm:$0xff]
      %v185 = vld [vmem:[%s169 + $0x2c] sm:$0xf]
      %v186 = vld [vmem:[%s169 + $0x30] sm:$0xff]
      %v187 = vld [vmem:[%s169 + $0x38] sm:$0xf]
      %v188 = vld [vmem:[%s169 + $0x3c] sm:$0xff]
      %v189 = vld [vmem:[%s169 + $0x44] sm:$0xf]
      %v190 = vld [vmem:[%s169 + $0x48] sm:$0xff]
      %v191 = vld [vmem:[%s169 + $0x50] sm:$0xf]
      %v192 = vld [vmem:[%s169 + $0x54] sm:$0xff]
      %v193 = vld [vmem:[%s169 + $0x5c] sm:$0xf]
      %v194 = vld [vmem:[%s169 + $0x60] sm:$0xff]
      %v195 = vld [vmem:[%s169 + $0x68] sm:$0xf]
      %v196 = vld [vmem:[%s169 + $0x6c] sm:$0xff]
      %v197 = vld [vmem:[%s169 + $0x74] sm:$0xf]
      %v198 = vld [vmem:[%s169 + $0x78] sm:$0xff]
      %v199 = vld [vmem:[%s169 + $0x80] sm:$0xf]
      %v200 = vld [vmem:[%s169 + $0x84] sm:$0xff]
      %v201 = vld [vmem:[%s169 + $0x8c] sm:$0xf]
      %v202 = vld [vmem:[%s169 + $0x90] sm:$0xff]
      %v203 = vld [vmem:[%s169 + $0x98] sm:$0xf]
      %v204 = vld [vmem:[%s169 + $0x9c] sm:$0xff]
      %v205 = vld [vmem:[%s169 + $0xa4] sm:$0xf]
      %v206 = vld [vmem:[%s169 + $0xa8] sm:$0xff]
      %v207 = vld [vmem:[%s169 + $0xb0] sm:$0xf]
      %v208 = vld [vmem:[%s169 + $0xb4] sm:$0xff]
      %v209 = vld [vmem:[%s169 + $0xbc] sm:$0xf]
      %v210 = vld [vmem:[%s169 + $0xc0] sm:$0xff]
      %v211 = vld [vmem:[%s169 + $0xc8] sm:$0xf]
      %v212 = vld [vmem:[%s169 + $0xcc] sm:$0xff]
      %v213 = vld [vmem:[%s169 + $0xd4] sm:$0xf]
      %v214 = vld [vmem:[%s169 + $0xd8] sm:$0xff]
      %v215 = vld [vmem:[%s169 + $0xe0] sm:$0xf]
      %v216 = vld [vmem:[%s169 + $0xe4] sm:$0xff]
      %v217 = vld [vmem:[%s169 + $0xec] sm:$0xf]
      %v218 = vld [vmem:[%s169 + $0xf0] sm:$0xff]
      %v219 = vld [vmem:[%s169 + $0xf8] sm:$0xf]
      %v220 = vld [vmem:[%s169 + $0xfc] sm:$0xff]
      %v221 = vld [vmem:[%s169 + $0x104] sm:$0xf]
      %v222 = vld [vmem:[%s169 + $0x108] sm:$0xff]
      %v223 = vld [vmem:[%s169 + $0x110] sm:$0xf]
      %v224 = vld [vmem:[%s169 + $0x114] sm:$0xff]
      %v225 = vld [vmem:[%s169 + $0x11c] sm:$0xf]
      %v226 = vld [vmem:[%s169 + $0x120] sm:$0xff]
      %v227 = vld [vmem:[%s169 + $0x128] sm:$0xf]
      %v228 = vld [vmem:[%s169 + $0x12c] sm:$0xff]
      %v229 = vld [vmem:[%s169 + $0x134] sm:$0xf]
      %v230 = vld [vmem:[%s169 + $0x138] sm:$0xff]
      %v231 = vld [vmem:[%s169 + $0x140] sm:$0xf]
      %v232 = vld [vmem:[%s169 + $0x144] sm:$0xff]
      %v233 = vld [vmem:[%s169 + $0x14c] sm:$0xf]
      %v234 = vld [vmem:[%s169 + $0x150] sm:$0xff]
      %v235 = vld [vmem:[%s169 + $0x158] sm:$0xf]
      %v236 = vld [vmem:[%s169 + $0x15c] sm:$0xff]
      %v237 = vld [vmem:[%s169 + $0x164] sm:$0xf]
      %v238 = vld [vmem:[%s169 + $0x168] sm:$0xff]
      %v239 = vld [vmem:[%s169 + $0x170] sm:$0xf]
      %v240 = vld [vmem:[%s169 + $0x174] sm:$0xff]
      %v241 = vld [vmem:[%s169 + $0x17c] sm:$0xf]
      %v242 = vld [vmem:[%s1] sm:$0xf]
      %v243 = vld [vmem:[%s1 + $0x4] sm:$0xf]
      %v244 = vld [vmem:[%s1 + $0x8] sm:$0xf]
      %v245 = vld [vmem:[%s1 + $0xc] sm:$0xf]
      %v246 = vld [vmem:[%s1 + $0x10] sm:$0xf]
      %v247 = vld [vmem:[%s1 + $0x14] sm:$0xf]
      %v248 = vld [vmem:[%s1 + $0x18] sm:$0xf]
      %v249 = vld [vmem:[%s1 + $0x1c] sm:$0xf]
      %v250 = vld [vmem:[%s1 + $0x20] sm:$0xf]
      %v251 = vld [vmem:[%s1 + $0x24] sm:$0xf]
      %v252 = vld [vmem:[%s1 + $0x28] sm:$0xf]
      %v253 = vld [vmem:[%s1 + $0x2c] sm:$0xf]
      %v254 = vld [vmem:[%s1 + $0x30] sm:$0xf]
      %v255 = vld [vmem:[%s1 + $0x34] sm:$0xf]
      %v256 = vld [vmem:[%s1 + $0x38] sm:$0xf]
      %v257 = vld [vmem:[%s1 + $0x3c] sm:$0xf]
      %v258 = vld [vmem:[%s1 + $0x40] sm:$0xf]
      %v259 = vld [vmem:[%s1 + $0x44] sm:$0xf]
      %v260 = vld [vmem:[%s1 + $0x48] sm:$0xf]
      %v261 = vld [vmem:[%s1 + $0x4c] sm:$0xf]
      %v262 = vld [vmem:[%s1 + $0x50] sm:$0xf]
      %v263 = vld [vmem:[%s1 + $0x54] sm:$0xf]
      %v264 = vld [vmem:[%s1 + $0x58] sm:$0xf]
      %v265 = vld [vmem:[%s1 + $0x5c] sm:$0xf]
      %v266 = vld [vmem:[%s1 + $0x60] sm:$0xf]
      %v267 = vld [vmem:[%s1 + $0x64] sm:$0xf]
      %v268 = vld [vmem:[%s1 + $0x68] sm:$0xf]
      %v269 = vld [vmem:[%s1 + $0x6c] sm:$0xf]
      %v270 = vld [vmem:[%s1 + $0x70] sm:$0xf]
      %v271 = vld [vmem:[%s1 + $0x74] sm:$0xf]
      %v272 = vld [vmem:[%s1 + $0x78] sm:$0xf]
      %v273 = vld [vmem:[%s1 + $0x7c] sm:$0xf]
      %v274 = vld [vmem:[%s1 + $0x80] sm:$0xf]
      %v275 = vld [vmem:[%s1 + $0x84] sm:$0xf]
      %v276 = vld [vmem:[%s1 + $0x88] sm:$0xf]
      %v277 = vld [vmem:[%s1 + $0x8c] sm:$0xf]
      %v278 = vld [vmem:[%s1 + $0x90] sm:$0xf]
      %v279 = vld [vmem:[%s1 + $0x94] sm:$0xf]
      %v280 = vld [vmem:[%s1 + $0x98] sm:$0xf]
      %v281 = vld [vmem:[%s1 + $0x9c] sm:$0xf]
      %v282 = vld [vmem:[%s1 + $0xa0] sm:$0xf]
      %v283 = vld [vmem:[%s1 + $0xa4] sm:$0xf]
      %v284 = vld [vmem:[%s1 + $0xa8] sm:$0xf]
      %v285 = vld [vmem:[%s1 + $0xac] sm:$0xf]
      %v286 = vld [vmem:[%s1 + $0xb0] sm:$0xf]
      %v287 = vld [vmem:[%s2] sm:$0x1]
      %v289 = vlaneseq
      %v290 = vshrl.u32 %v289, 7
      %v291 = vsub.s32 0, %v290
      %v292 = vrot.slane %v287, %v291
      %v358 = vunpack.c.l.b16 %v178
      %v359 = vunpack.c.h.b16 %v178
      %v360 = vunpack.c.l.b16 %v179
      %v361 = vunpack.c.l.b16 %v180
      %v362 = vunpack.c.h.b16 %v180
      %v363 = vunpack.c.l.b16 %v181
      %v364 = vunpack.c.l.b16 %v182
      %v365 = vunpack.c.h.b16 %v182
      %v366 = vunpack.c.l.b16 %v183
      %v367 = vunpack.c.l.b16 %v184
      %v368 = vunpack.c.h.b16 %v184
      %v369 = vunpack.c.l.b16 %v185
      %v370 = vunpack.c.l.b16 %v186
      %v371 = vunpack.c.h.b16 %v186
      %v372 = vunpack.c.l.b16 %v187
      %v373 = vunpack.c.l.b16 %v188
      %v374 = vunpack.c.h.b16 %v188
      %v375 = vunpack.c.l.b16 %v189
      %v376 = vunpack.c.l.b16 %v190
      %v377 = vunpack.c.h.b16 %v190
      %v378 = vunpack.c.l.b16 %v191
      %v379 = vunpack.c.l.b16 %v192
      %v380 = vunpack.c.h.b16 %v192
      %v381 = vunpack.c.l.b16 %v193
      %v382 = vunpack.c.l.b16 %v194
      %v383 = vunpack.c.h.b16 %v194
      %v384 = vunpack.c.l.b16 %v195
      %v385 = vunpack.c.l.b16 %v196
      %v386 = vunpack.c.h.b16 %v196
      %v387 = vunpack.c.l.b16 %v197
      %v388 = vunpack.c.l.b16 %v198
      %v389 = vunpack.c.h.b16 %v198
      %v390 = vunpack.c.l.b16 %v199
      %v391 = vunpack.c.l.b16 %v200
      %v392 = vunpack.c.h.b16 %v200
      %v393 = vunpack.c.l.b16 %v201
      %v394 = vunpack.c.l.b16 %v202
      %v395 = vunpack.c.h.b16 %v202
      %v396 = vunpack.c.l.b16 %v203
      %v397 = vunpack.c.l.b16 %v204
      %v398 = vunpack.c.h.b16 %v204
      %v399 = vunpack.c.l.b16 %v205
      %v400 = vunpack.c.l.b16 %v206
      %v401 = vunpack.c.h.b16 %v206
      %v402 = vunpack.c.l.b16 %v207
      %v403 = vunpack.c.l.b16 %v208
      %v404 = vunpack.c.h.b16 %v208
      %v405 = vunpack.c.l.b16 %v209
      %v406 = vunpack.c.l.b16 %v210
      %v407 = vunpack.c.h.b16 %v210
      %v408 = vunpack.c.l.b16 %v211
      %v409 = vunpack.c.l.b16 %v212
      %v410 = vunpack.c.h.b16 %v212
      %v411 = vunpack.c.l.b16 %v213
      %v412 = vunpack.c.l.b16 %v214
      %v413 = vunpack.c.h.b16 %v214
      %v414 = vunpack.c.l.b16 %v215
      %v415 = vunpack.c.l.b16 %v216
      %v416 = vunpack.c.h.b16 %v216
      %v417 = vunpack.c.l.b16 %v217
      %v418 = vunpack.c.l.b16 %v218
      %v419 = vunpack.c.h.b16 %v218
      %v420 = vunpack.c.l.b16 %v219
      %v421 = vunpack.c.l.b16 %v220
      %v422 = vunpack.c.h.b16 %v220
      %v423 = vunpack.c.l.b16 %v221
      %v424 = vunpack.c.l.b16 %v222
      %v425 = vunpack.c.h.b16 %v222
      %v426 = vunpack.c.l.b16 %v223
      %v427 = vunpack.c.l.b16 %v224
      %v428 = vunpack.c.h.b16 %v224
      %v429 = vunpack.c.l.b16 %v225
      %v430 = vunpack.c.l.b16 %v226
      %v431 = vunpack.c.h.b16 %v226
      %v432 = vunpack.c.l.b16 %v227
      %v433 = vunpack.c.l.b16 %v228
      %v434 = vunpack.c.h.b16 %v228
      %v435 = vunpack.c.l.b16 %v229
      %v436 = vunpack.c.l.b16 %v230
      %v437 = vunpack.c.h.b16 %v230
      %v438 = vunpack.c.l.b16 %v231
      %v439 = vunpack.c.l.b16 %v232
      %v440 = vunpack.c.h.b16 %v232
      %v441 = vunpack.c.l.b16 %v233
      %v442 = vunpack.c.l.b16 %v234
      %v443 = vunpack.c.h.b16 %v234
      %v444 = vunpack.c.l.b16 %v235
      %v445 = vunpack.c.l.b16 %v236
      %v446 = vunpack.c.h.b16 %v236
      %v447 = vunpack.c.l.b16 %v237
      %v448 = vunpack.c.l.b16 %v238
      %v449 = vunpack.c.h.b16 %v238
      %v450 = vunpack.c.l.b16 %v239
      %v451 = vunpack.c.l.b16 %v240
      %v452 = vunpack.c.h.b16 %v240
      %v453 = vunpack.c.l.b16 %v241
      %v454 = vpack.c.b16 %v361, %v358
      %v455 = vpack.c.b16 %v362, %v359
      %v456 = vpack.c.b16 %v363, %v360
      %v457 = vpack.c.b16 %v367, %v364
      %v458 = vpack.c.b16 %v368, %v365
      %v459 = vpack.c.b16 %v369, %v366
      %v460 = vpack.c.b16 %v373, %v370
      %v461 = vpack.c.b16 %v374, %v371
      %v462 = vpack.c.b16 %v375, %v372
      %v463 = vpack.c.b16 %v379, %v376
      %v464 = vpack.c.b16 %v380, %v377
      %v465 = vpack.c.b16 %v381, %v378
      %v466 = vpack.c.b16 %v385, %v382
      %v467 = vpack.c.b16 %v386, %v383
      %v468 = vpack.c.b16 %v387, %v384
      %v469 = vpack.c.b16 %v391, %v388
      %v470 = vpack.c.b16 %v392, %v389
      %v471 = vpack.c.b16 %v393, %v390
      %v472 = vpack.c.b16 %v397, %v394
      %v473 = vpack.c.b16 %v398, %v395
      %v474 = vpack.c.b16 %v399, %v396
      %v475 = vpack.c.b16 %v403, %v400
      %v476 = vpack.c.b16 %v404, %v401
      %v477 = vpack.c.b16 %v405, %v402
      %v478 = vpack.c.b16 %v409, %v406
      %v479 = vpack.c.b16 %v410, %v407
      %v480 = vpack.c.b16 %v411, %v408
      %v481 = vpack.c.b16 %v415, %v412
      %v482 = vpack.c.b16 %v416, %v413
      %v483 = vpack.c.b16 %v417, %v414
      %v484 = vpack.c.b16 %v421, %v418
      %v485 = vpack.c.b16 %v422, %v419
      %v486 = vpack.c.b16 %v423, %v420
      %v487 = vpack.c.b16 %v427, %v424
      %v488 = vpack.c.b16 %v428, %v425
      %v489 = vpack.c.b16 %v429, %v426
      %v490 = vpack.c.b16 %v433, %v430
      %v491 = vpack.c.b16 %v434, %v431
      %v492 = vpack.c.b16 %v435, %v432
      %v493 = vpack.c.b16 %v439, %v436
      %v494 = vpack.c.b16 %v440, %v437
      %v495 = vpack.c.b16 %v441, %v438
      %v496 = vpack.c.b16 %v445, %v442
      %v497 = vpack.c.b16 %v446, %v443
      %v498 = vpack.c.b16 %v447, %v444
      %v499 = vpack.c.b16 %v451, %v448
      %v500 = vpack.c.b16 %v452, %v449
      %v501 = vpack.c.b16 %v453, %v450
      %v579 = vunpack.c.l.b16 %v242
      %v580 = vunpack.c.l.b16 %v243
      %v581 = vunpack.c.l.b16 %v244
      %v582 = vunpack.c.l.b16 %v245
      %v583 = vunpack.c.l.b16 %v246
      %v584 = vunpack.c.l.b16 %v247
      %v585 = vunpack.c.l.b16 %v248
      %v586 = vunpack.c.l.b16 %v249
      %v587 = vunpack.c.l.b16 %v250
      %v588 = vunpack.c.l.b16 %v251
      %v589 = vunpack.c.l.b16 %v252
      %v590 = vunpack.c.l.b16 %v253
      %v591 = vunpack.c.l.b16 %v254
      %v592 = vunpack.c.l.b16 %v255
      %v593 = vunpack.c.l.b16 %v256
      %v594 = vunpack.c.l.b16 %v257
      %v595 = vunpack.c.l.b16 %v258
      %v596 = vunpack.c.l.b16 %v259
      %v597 = vunpack.c.l.b16 %v260
      %v598 = vunpack.c.l.b16 %v261
      %v599 = vunpack.c.l.b16 %v262
      %v600 = vunpack.c.l.b16 %v263
      %v601 = vunpack.c.l.b16 %v264
      %v602 = vunpack.c.l.b16 %v265
      %v603 = vunpack.c.l.b16 %v266
      %v604 = vunpack.c.l.b16 %v267
      %v605 = vunpack.c.l.b16 %v268
      %v606 = vunpack.c.l.b16 %v269
      %v607 = vunpack.c.l.b16 %v270
      %v608 = vunpack.c.l.b16 %v271
      %v609 = vunpack.c.l.b16 %v272
      %v610 = vunpack.c.l.b16 %v273
      %v611 = vunpack.c.l.b16 %v274
      %v612 = vunpack.c.l.b16 %v275
      %v613 = vunpack.c.l.b16 %v276
      %v614 = vunpack.c.l.b16 %v277
      %v615 = vunpack.c.l.b16 %v278
      %v616 = vunpack.c.l.b16 %v279
      %v617 = vunpack.c.l.b16 %v280
      %v618 = vunpack.c.l.b16 %v281
      %v619 = vunpack.c.l.b16 %v282
      %v620 = vunpack.c.l.b16 %v283
      %v621 = vunpack.c.l.b16 %v284
      %v622 = vunpack.c.l.b16 %v285
      %v623 = vunpack.c.l.b16 %v286
      %v624 = vpack.c.b16 %v580, %v579
      %v625 = vpack.c.b16 %v582, %v581
      %v626 = vpack.c.b16 %v584, %v583
      %v627 = vpack.c.b16 %v586, %v585
      %v628 = vpack.c.b16 %v588, %v587
      %v629 = vpack.c.b16 %v590, %v589
      %v630 = vpack.c.b16 %v592, %v591
      %v631 = vpack.c.b16 %v594, %v593
      %v632 = vpack.c.b16 %v596, %v595
      %v633 = vpack.c.b16 %v598, %v597
      %v634 = vpack.c.b16 %v600, %v599
      %v635 = vpack.c.b16 %v602, %v601
      %v636 = vpack.c.b16 %v604, %v603
      %v637 = vpack.c.b16 %v606, %v605
      %v638 = vpack.c.b16 %v608, %v607
      %v639 = vpack.c.b16 %v610, %v609
      %v640 = vpack.c.b16 %v612, %v611
      %v641 = vpack.c.b16 %v614, %v613
      %v642 = vpack.c.b16 %v616, %v615
      %v643 = vpack.c.b16 %v618, %v617
      %v644 = vpack.c.b16 %v620, %v619
      %v645 = vpack.c.b16 %v622, %v621
      %v646 = vpack.c.b16 %v623, %v623
      %vm669 = vcmask 850944
      %v671 = vsel %vm669, %v456, 0
      %v674 = vsel %vm669, %v459, 0
      %v677 = vsel %vm669, %v462, 0
      %v680 = vsel %vm669, %v465, 0
      %v683 = vsel %vm669, %v468, 0
      %v686 = vsel %vm669, %v471, 0
      %v689 = vsel %vm669, %v474, 0
      %v692 = vsel %vm669, %v477, 0
      %v695 = vsel %vm669, %v480, 0
      %v698 = vsel %vm669, %v483, 0
      %v701 = vsel %vm669, %v486, 0
      %v704 = vsel %vm669, %v489, 0
      %v707 = vsel %vm669, %v492, 0
      %v710 = vsel %vm669, %v495, 0
      %v713 = vsel %vm669, %v498, 0
      %v716 = vsel %vm669, %v501, 0
      %vm718 = vcmask 1043456
      %v720 = vsel %vm718, %v646, 0
      %722 = vmatprep.subr.bf16.mxu0 0
      %723 = vmatpush1.bf16.msra.mxu0 %v631
      %724 = vmatprep.subr.bf16.mxu0 0
      %725 = vmatpush1.bf16.msra.mxu0 %v630
      %726 = vmatprep.subr.bf16.mxu0 0
      %727 = vmatpush1.bf16.msra.mxu0 %v629
      %728 = vmatprep.subr.bf16.mxu0 0
      %729 = vmatpush1.bf16.msra.mxu0 %v628
      %730 = vmatprep.subr.bf16.mxu0 0
      %731 = vmatpush1.bf16.msra.mxu0 %v627
      %732 = vmatprep.subr.bf16.mxu0 0
      %733 = vmatpush1.bf16.msra.mxu0 %v626
      %734 = vmatprep.subr.bf16.mxu0 0
      %735 = vmatpush1.bf16.msra.mxu0 %v625
      %736 = vmatprep.subr.bf16.mxu0 0
      %737 = vmatpush1.bf16.msra.mxu0 %v624
      %738 = vmatprep.subr.bf16.mxu0 0
      %739 = vmatpush2.bf16.msra.mxu0 %v639
      %740 = vmatprep.subr.bf16.mxu0 0
      %741 = vmatpush2.bf16.msra.mxu0 %v638
      %742 = vmatprep.subr.bf16.mxu0 0
      %743 = vmatpush2.bf16.msra.mxu0 %v637
      %744 = vmatprep.subr.bf16.mxu0 0
      %745 = vmatpush2.bf16.msra.mxu0 %v636
      %746 = vmatprep.subr.bf16.mxu0 0
      %747 = vmatpush2.bf16.msra.mxu0 %v635
      %748 = vmatprep.subr.bf16.mxu0 0
      %749 = vmatpush2.bf16.msra.mxu0 %v634
      %750 = vmatprep.subr.bf16.mxu0 0
      %751 = vmatpush2.bf16.msra.mxu0 %v633
      %752 = vmatprep.subr.bf16.mxu0 0
      %753 = vmatpush2.bf16.msra.mxu0 %v632
      %754 = vmatprep.mubr.bf16.mxu0 %v455
      %755 = vmatmul.mubr.bf16.gmra.mxu0 %v454
      %v756 = vpop.f32.mrf.mxu0
      %v757 = vadd.f32 %v292, %v756
      %v758 = vpop.f32.mrf.mxu0
      %v759 = vpop.f32.mrf.mxu0
      %v760 = vadd.f32 %v292, %v759
      %v761 = vpop.f32.mrf.mxu0
      %762 = vmatprep.mubr.bf16.mxu0 %v458
      %763 = vmatmul.mubr.bf16.gmra.mxu0 %v457
      %v764 = vpop.f32.mrf.mxu0
      %v765 = vadd.f32 %v292, %v764
      %v766 = vpop.f32.mrf.mxu0
      %v767 = vpop.f32.mrf.mxu0
      %v768 = vadd.f32 %v292, %v767
      %v769 = vpop.f32.mrf.mxu0
      %770 = vmatprep.mubr.bf16.mxu0 %v461
      %771 = vmatmul.mubr.bf16.gmra.mxu0 %v460
      %v772 = vpop.f32.mrf.mxu0
      %v773 = vadd.f32 %v292, %v772
      %v774 = vpop.f32.mrf.mxu0
      %v775 = vpop.f32.mrf.mxu0
      %v776 = vadd.f32 %v292, %v775
      %v777 = vpop.f32.mrf.mxu0
      %778 = vmatprep.mubr.bf16.mxu0 %v464
      %779 = vmatmul.mubr.bf16.gmra.mxu0 %v463
      %v780 = vpop.f32.mrf.mxu0
      %v781 = vadd.f32 %v292, %v780
      %v782 = vpop.f32.mrf.mxu0
      %v783 = vpop.f32.mrf.mxu0
      %v784 = vadd.f32 %v292, %v783
      %v785 = vpop.f32.mrf.mxu0
      %786 = vmatprep.mubr.bf16.mxu0 %v467
      %787 = vmatmul.mubr.bf16.gmra.mxu0 %v466
      %v788 = vpop.f32.mrf.mxu0
      %v789 = vadd.f32 %v292, %v788
      %v790 = vpop.f32.mrf.mxu0
      %v791 = vpop.f32.mrf.mxu0
      %v792 = vadd.f32 %v292, %v791
      %v793 = vpop.f32.mrf.mxu0
      %794 = vmatprep.mubr.bf16.mxu0 %v470
      %795 = vmatmul.mubr.bf16.gmra.mxu0 %v469
      %v796 = vpop.f32.mrf.mxu0
      %v797 = vadd.f32 %v292, %v796
      %v798 = vpop.f32.mrf.mxu0
      %v799 = vpop.f32.mrf.mxu0
      %v800 = vadd.f32 %v292, %v799
      %v801 = vpop.f32.mrf.mxu0
      %802 = vmatprep.mubr.bf16.mxu0 %v473
      %803 = vmatmul.mubr.bf16.gmra.mxu0 %v472
      %v804 = vpop.f32.mrf.mxu0
      %v805 = vadd.f32 %v292, %v804
      %v806 = vpop.f32.mrf.mxu0
      %v807 = vpop.f32.mrf.mxu0
      %v808 = vadd.f32 %v292, %v807
      %v809 = vpop.f32.mrf.mxu0
      %810 = vmatprep.mubr.bf16.mxu0 %v476
      %811 = vmatmul.mubr.bf16.gmra.mxu0 %v475
      %v812 = vpop.f32.mrf.mxu0
      %v813 = vadd.f32 %v292, %v812
      %v814 = vpop.f32.mrf.mxu0
      %v815 = vpop.f32.mrf.mxu0
      %v816 = vadd.f32 %v292, %v815
      %v817 = vpop.f32.mrf.mxu0
      %818 = vmatprep.mubr.bf16.mxu0 %v479
      %819 = vmatmul.mubr.bf16.gmra.mxu0 %v478
      %v820 = vpop.f32.mrf.mxu0
      %v821 = vadd.f32 %v292, %v820
      %v822 = vpop.f32.mrf.mxu0
      %v823 = vpop.f32.mrf.mxu0
      %v824 = vadd.f32 %v292, %v823
      %v825 = vpop.f32.mrf.mxu0
      %826 = vmatprep.mubr.bf16.mxu0 %v482
      %827 = vmatmul.mubr.bf16.gmra.mxu0 %v481
      %v828 = vpop.f32.mrf.mxu0
      %v829 = vadd.f32 %v292, %v828
      %v830 = vpop.f32.mrf.mxu0
      %v831 = vpop.f32.mrf.mxu0
      %v832 = vadd.f32 %v292, %v831
      %v833 = vpop.f32.mrf.mxu0
      %834 = vmatprep.mubr.bf16.mxu0 %v485
      %835 = vmatmul.mubr.bf16.gmra.mxu0 %v484
      %v836 = vpop.f32.mrf.mxu0
      %v837 = vadd.f32 %v292, %v836
      %v838 = vpop.f32.mrf.mxu0
      %v839 = vpop.f32.mrf.mxu0
      %v840 = vadd.f32 %v292, %v839
      %v841 = vpop.f32.mrf.mxu0
      %842 = vmatprep.mubr.bf16.mxu0 %v488
      %843 = vmatmul.mubr.bf16.gmra.mxu0 %v487
      %v844 = vpop.f32.mrf.mxu0
      %v845 = vadd.f32 %v292, %v844
      %v846 = vpop.f32.mrf.mxu0
      %v847 = vpop.f32.mrf.mxu0
      %v848 = vadd.f32 %v292, %v847
      %v849 = vpop.f32.mrf.mxu0
      %850 = vmatprep.mubr.bf16.mxu0 %v491
      %851 = vmatmul.mubr.bf16.gmra.mxu0 %v490
      %v852 = vpop.f32.mrf.mxu0
      %v853 = vadd.f32 %v292, %v852
      %v854 = vpop.f32.mrf.mxu0
      %v855 = vpop.f32.mrf.mxu0
      %v856 = vadd.f32 %v292, %v855
      %v857 = vpop.f32.mrf.mxu0
      %858 = vmatprep.mubr.bf16.mxu0 %v494
      %859 = vmatmul.mubr.bf16.gmra.mxu0 %v493
      %v860 = vpop.f32.mrf.mxu0
      %v861 = vadd.f32 %v292, %v860
      %v862 = vpop.f32.mrf.mxu0
      %v863 = vpop.f32.mrf.mxu0
      %v864 = vadd.f32 %v292, %v863
      %v865 = vpop.f32.mrf.mxu0
      %866 = vmatprep.mubr.bf16.mxu0 %v497
      %867 = vmatmul.mubr.bf16.gmra.mxu0 %v496
      %v868 = vpop.f32.mrf.mxu0
      %v869 = vadd.f32 %v292, %v868
      %v870 = vpop.f32.mrf.mxu0
      %v871 = vpop.f32.mrf.mxu0
      %v872 = vadd.f32 %v292, %v871
      %v873 = vpop.f32.mrf.mxu0
      %874 = vmatprep.mubr.bf16.mxu0 %v500
      %875 = vmatmul.mubr.bf16.gmra.mxu0 %v499
      %v876 = vpop.f32.mrf.mxu0
      %v877 = vadd.f32 %v292, %v876
      %v878 = vpop.f32.mrf.mxu0
      %v879 = vpop.f32.mrf.mxu0
      %v880 = vadd.f32 %v292, %v879
      %v881 = vpop.f32.mrf.mxu0
      %882 = vdwg.mxu0
      %883 = vmatprep.subr.bf16.mxu0 0
      %884 = vmatpush1.bf16.msra.mxu0 0
      %885 = vmatprep.subr.bf16.mxu0 0
      %886 = vmatpush1.bf16.msra.mxu0 %v720
      %887 = vmatprep.subr.bf16.mxu0 0
      %888 = vmatpush1.bf16.msra.mxu0 %v645
      %889 = vmatprep.subr.bf16.mxu0 0
      %890 = vmatpush1.bf16.msra.mxu0 %v644
      %891 = vmatprep.subr.bf16.mxu0 0
      %892 = vmatpush1.bf16.msra.mxu0 %v643
      %893 = vmatprep.subr.bf16.mxu0 0
      %894 = vmatpush1.bf16.msra.mxu0 %v642
      %895 = vmatprep.subr.bf16.mxu0 0
      %896 = vmatpush1.bf16.msra.mxu0 %v641
      %897 = vmatprep.subr.bf16.mxu0 0
      %898 = vmatpush1.bf16.msra.mxu0 %v640
      %899 = vmatprep.subr.bf16.mxu0 0
      %900 = vmatpush2.bf16.msra.mxu0 0
      %901 = vmatprep.subr.bf16.mxu0 0
      %902 = vmatpush2.bf16.msra.mxu0 0
      %903 = vmatprep.subr.bf16.mxu0 0
      %904 = vmatpush2.bf16.msra.mxu0 0
      %905 = vmatprep.subr.bf16.mxu0 0
      %906 = vmatpush2.bf16.msra.mxu0 0
      %907 = vmatprep.subr.bf16.mxu0 0
      %908 = vmatpush2.bf16.msra.mxu0 0
      %909 = vmatprep.subr.bf16.mxu0 0
      %910 = vmatpush2.bf16.msra.mxu0 0
      %911 = vmatprep.subr.bf16.mxu0 0
      %912 = vmatpush2.bf16.msra.mxu0 0
      %913 = vmatprep.subr.bf16.mxu0 0
      %914 = vmatpush2.bf16.msra.mxu0 0
      %915 = vmatprep.mubr.bf16.mxu0 0
      %916 = vmatmul.mubr.bf16.gmra.mxu0 %v671
      %v917 = vpop.f32.mrf.mxu0
      %v918 = vadd.f32 %v757, %v917
      %v919 = vpop.f32.mrf.mxu0
      %v920 = vpop.f32.mrf.mxu0
      %v921 = vadd.f32 %v760, %v920
      %v922 = vpop.f32.mrf.mxu0
      %923 = vmatprep.mubr.bf16.mxu0 0
      %924 = vmatmul.mubr.bf16.gmra.mxu0 %v674
      %v925 = vpop.f32.mrf.mxu0
      %v926 = vadd.f32 %v765, %v925
      %v927 = vpop.f32.mrf.mxu0
      %v928 = vpop.f32.mrf.mxu0
      %v929 = vadd.f32 %v768, %v928
      %v930 = vpop.f32.mrf.mxu0
      %931 = vmatprep.mubr.bf16.mxu0 0
      %932 = vmatmul.mubr.bf16.gmra.mxu0 %v677
      %v933 = vpop.f32.mrf.mxu0
      %v934 = vadd.f32 %v773, %v933
      %v935 = vpop.f32.mrf.mxu0
      %v936 = vpop.f32.mrf.mxu0
      %v937 = vadd.f32 %v776, %v936
      %v938 = vpop.f32.mrf.mxu0
      %939 = vmatprep.mubr.bf16.mxu0 0
      %940 = vmatmul.mubr.bf16.gmra.mxu0 %v680
      %v941 = vpop.f32.mrf.mxu0
      %v942 = vadd.f32 %v781, %v941
      %v943 = vpop.f32.mrf.mxu0
      %v944 = vpop.f32.mrf.mxu0
      %v945 = vadd.f32 %v784, %v944
      %v946 = vpop.f32.mrf.mxu0
      %947 = vmatprep.mubr.bf16.mxu0 0
      %948 = vmatmul.mubr.bf16.gmra.mxu0 %v683
      %v949 = vpop.f32.mrf.mxu0
      %v950 = vadd.f32 %v789, %v949
      %v951 = vpop.f32.mrf.mxu0
      %v952 = vpop.f32.mrf.mxu0
      %v953 = vadd.f32 %v792, %v952
      %v954 = vpop.f32.mrf.mxu0
      %955 = vmatprep.mubr.bf16.mxu0 0
      %956 = vmatmul.mubr.bf16.gmra.mxu0 %v686
      %v957 = vpop.f32.mrf.mxu0
      %v958 = vadd.f32 %v797, %v957
      %v959 = vpop.f32.mrf.mxu0
      %v960 = vpop.f32.mrf.mxu0
      %v961 = vadd.f32 %v800, %v960
      %v962 = vpop.f32.mrf.mxu0
      %963 = vmatprep.mubr.bf16.mxu0 0
      %964 = vmatmul.mubr.bf16.gmra.mxu0 %v689
      %v965 = vpop.f32.mrf.mxu0
      %v966 = vadd.f32 %v805, %v965
      %v967 = vpop.f32.mrf.mxu0
      %v968 = vpop.f32.mrf.mxu0
      %v969 = vadd.f32 %v808, %v968
      %v970 = vpop.f32.mrf.mxu0
      %971 = vmatprep.mubr.bf16.mxu0 0
      %972 = vmatmul.mubr.bf16.gmra.mxu0 %v692
      %v973 = vpop.f32.mrf.mxu0
      %v974 = vadd.f32 %v813, %v973
      %v975 = vpop.f32.mrf.mxu0
      %v976 = vpop.f32.mrf.mxu0
      %v977 = vadd.f32 %v816, %v976
      %v978 = vpop.f32.mrf.mxu0
      %979 = vmatprep.mubr.bf16.mxu0 0
      %980 = vmatmul.mubr.bf16.gmra.mxu0 %v695
      %v981 = vpop.f32.mrf.mxu0
      %v982 = vadd.f32 %v821, %v981
      %v983 = vpop.f32.mrf.mxu0
      %v984 = vpop.f32.mrf.mxu0
      %v985 = vadd.f32 %v824, %v984
      %v986 = vpop.f32.mrf.mxu0
      %987 = vmatprep.mubr.bf16.mxu0 0
      %988 = vmatmul.mubr.bf16.gmra.mxu0 %v698
      %v989 = vpop.f32.mrf.mxu0
      %v990 = vadd.f32 %v829, %v989
      %v991 = vpop.f32.mrf.mxu0
      %v992 = vpop.f32.mrf.mxu0
      %v993 = vadd.f32 %v832, %v992
      %v994 = vpop.f32.mrf.mxu0
      %995 = vmatprep.mubr.bf16.mxu0 0
      %996 = vmatmul.mubr.bf16.gmra.mxu0 %v701
      %v997 = vpop.f32.mrf.mxu0
      %v998 = vadd.f32 %v837, %v997
      %v999 = vpop.f32.mrf.mxu0
      %v1000 = vpop.f32.mrf.mxu0
      %v1001 = vadd.f32 %v840, %v1000
      %v1002 = vpop.f32.mrf.mxu0
      %1003 = vmatprep.mubr.bf16.mxu0 0
      %1004 = vmatmul.mubr.bf16.gmra.mxu0 %v704
      %v1005 = vpop.f32.mrf.mxu0
      %v1006 = vadd.f32 %v845, %v1005
      %v1007 = vpop.f32.mrf.mxu0
      %v1008 = vpop.f32.mrf.mxu0
      %v1009 = vadd.f32 %v848, %v1008
      %v1010 = vpop.f32.mrf.mxu0
      %1011 = vmatprep.mubr.bf16.mxu0 0
      %1012 = vmatmul.mubr.bf16.gmra.mxu0 %v707
      %v1013 = vpop.f32.mrf.mxu0
      %v1014 = vadd.f32 %v853, %v1013
      %v1015 = vpop.f32.mrf.mxu0
      %v1016 = vpop.f32.mrf.mxu0
      %v1017 = vadd.f32 %v856, %v1016
      %v1018 = vpop.f32.mrf.mxu0
      %1019 = vmatprep.mubr.bf16.mxu0 0
      %1020 = vmatmul.mubr.bf16.gmra.mxu0 %v710
      %v1021 = vpop.f32.mrf.mxu0
      %v1022 = vadd.f32 %v861, %v1021
      %v1023 = vpop.f32.mrf.mxu0
      %v1024 = vpop.f32.mrf.mxu0
      %v1025 = vadd.f32 %v864, %v1024
      %v1026 = vpop.f32.mrf.mxu0
      %1027 = vmatprep.mubr.bf16.mxu0 0
      %1028 = vmatmul.mubr.bf16.gmra.mxu0 %v713
      %v1029 = vpop.f32.mrf.mxu0
      %v1030 = vadd.f32 %v869, %v1029
      %v1031 = vpop.f32.mrf.mxu0
      %v1032 = vpop.f32.mrf.mxu0
      %v1033 = vadd.f32 %v872, %v1032
      %v1034 = vpop.f32.mrf.mxu0
      %1035 = vmatprep.mubr.bf16.mxu0 0
      %1036 = vmatmul.mubr.bf16.gmra.mxu0 %v716
      %v1037 = vpop.f32.mrf.mxu0
      %v1038 = vadd.f32 %v877, %v1037
      %v1039 = vpop.f32.mrf.mxu0
      %v1040 = vpop.f32.mrf.mxu0
      %v1041 = vadd.f32 %v880, %v1040
      %v1042 = vpop.f32.mrf.mxu0
      %1043 = vdwg.mxu0
      %v1044 = vmax.f32 %v918, 0.0
      %v1045 = vmax.f32 %v921, 0.0
      %v1046 = vmax.f32 %v926, 0.0
      %v1047 = vmax.f32 %v929, 0.0
      %v1048 = vmax.f32 %v934, 0.0
      %v1049 = vmax.f32 %v937, 0.0
      %v1050 = vmax.f32 %v942, 0.0
      %v1051 = vmax.f32 %v945, 0.0
      %v1052 = vmax.f32 %v950, 0.0
      %v1053 = vmax.f32 %v953, 0.0
      %v1054 = vmax.f32 %v958, 0.0
      %v1055 = vmax.f32 %v961, 0.0
      %v1056 = vmax.f32 %v966, 0.0
      %v1057 = vmax.f32 %v969, 0.0
      %v1058 = vmax.f32 %v974, 0.0
      %v1059 = vmax.f32 %v977, 0.0
      %v1060 = vmax.f32 %v982, 0.0
      %v1061 = vmax.f32 %v985, 0.0
      %v1062 = vmax.f32 %v990, 0.0
      %v1063 = vmax.f32 %v993, 0.0
      %v1064 = vmax.f32 %v998, 0.0
      %v1065 = vmax.f32 %v1001, 0.0
      %v1066 = vmax.f32 %v1006, 0.0
      %v1067 = vmax.f32 %v1009, 0.0
      %v1068 = vmax.f32 %v1014, 0.0
      %v1069 = vmax.f32 %v1017, 0.0
      %v1070 = vmax.f32 %v1022, 0.0
      %v1071 = vmax.f32 %v1025, 0.0
      %v1072 = vmax.f32 %v1030, 0.0
      %v1073 = vmax.f32 %v1033, 0.0
      %v1074 = vmax.f32 %v1038, 0.0
      %v1075 = vmax.f32 %v1041, 0.0
      %v1076 = vpack.c.bf16 %v1045, %v1044
      %v1077 = vpack.c.bf16 %v1047, %v1046
      %v1078 = vpack.c.bf16 %v1049, %v1048
      %v1079 = vpack.c.bf16 %v1051, %v1050
      %v1080 = vpack.c.bf16 %v1053, %v1052
      %v1081 = vpack.c.bf16 %v1055, %v1054
      %v1082 = vpack.c.bf16 %v1057, %v1056
      %v1083 = vpack.c.bf16 %v1059, %v1058
      %v1084 = vpack.c.bf16 %v1061, %v1060
      %v1085 = vpack.c.bf16 %v1063, %v1062
      %v1086 = vpack.c.bf16 %v1065, %v1064
      %v1087 = vpack.c.bf16 %v1067, %v1066
      %v1088 = vpack.c.bf16 %v1069, %v1068
      %v1089 = vpack.c.bf16 %v1071, %v1070
      %v1090 = vpack.c.bf16 %v1073, %v1072
      %v1091 = vpack.c.bf16 %v1075, %v1074
      %v1108 = vunpack.c.l.b16 %v1076
      %v1109 = vunpack.c.h.b16 %v1076
      %v1110 = vunpack.c.l.b16 %v1077
      %v1111 = vunpack.c.h.b16 %v1077
      %v1112 = vunpack.c.l.b16 %v1078
      %v1113 = vunpack.c.h.b16 %v1078
      %v1114 = vunpack.c.l.b16 %v1079
      %v1115 = vunpack.c.h.b16 %v1079
      %v1116 = vunpack.c.l.b16 %v1080
      %v1117 = vunpack.c.h.b16 %v1080
      %v1118 = vunpack.c.l.b16 %v1081
      %v1119 = vunpack.c.h.b16 %v1081
      %v1120 = vunpack.c.l.b16 %v1082
      %v1121 = vunpack.c.h.b16 %v1082
      %v1122 = vunpack.c.l.b16 %v1083
      %v1123 = vunpack.c.h.b16 %v1083
      %v1124 = vunpack.c.l.b16 %v1084
      %v1125 = vunpack.c.h.b16 %v1084
      %v1126 = vunpack.c.l.b16 %v1085
      %v1127 = vunpack.c.h.b16 %v1085
      %v1128 = vunpack.c.l.b16 %v1086
      %v1129 = vunpack.c.h.b16 %v1086
      %v1130 = vunpack.c.l.b16 %v1087
      %v1131 = vunpack.c.h.b16 %v1087
      %v1132 = vunpack.c.l.b16 %v1088
      %v1133 = vunpack.c.h.b16 %v1088
      %v1134 = vunpack.c.l.b16 %v1089
      %v1135 = vunpack.c.h.b16 %v1089
      %v1136 = vunpack.c.l.b16 %v1090
      %v1137 = vunpack.c.h.b16 %v1090
      %v1138 = vunpack.c.l.b16 %v1091
      %v1139 = vunpack.c.h.b16 %v1091
      %v1140 = vpack.c.b16 %v1108, %v1108
      %v1141 = vpack.c.b16 %v1109, %v1109
      %v1142 = vpack.c.b16 %v1110, %v1110
      %v1143 = vpack.c.b16 %v1111, %v1111
      %v1144 = vpack.c.b16 %v1112, %v1112
      %v1145 = vpack.c.b16 %v1113, %v1113
      %v1146 = vpack.c.b16 %v1114, %v1114
      %v1147 = vpack.c.b16 %v1115, %v1115
      %v1148 = vpack.c.b16 %v1116, %v1116
      %v1149 = vpack.c.b16 %v1117, %v1117
      %v1150 = vpack.c.b16 %v1118, %v1118
      %v1151 = vpack.c.b16 %v1119, %v1119
      %v1152 = vpack.c.b16 %v1120, %v1120
      %v1153 = vpack.c.b16 %v1121, %v1121
      %v1154 = vpack.c.b16 %v1122, %v1122
      %v1155 = vpack.c.b16 %v1123, %v1123
      %v1156 = vpack.c.b16 %v1124, %v1124
      %v1157 = vpack.c.b16 %v1125, %v1125
      %v1158 = vpack.c.b16 %v1126, %v1126
      %v1159 = vpack.c.b16 %v1127, %v1127
      %v1160 = vpack.c.b16 %v1128, %v1128
      %v1161 = vpack.c.b16 %v1129, %v1129
      %v1162 = vpack.c.b16 %v1130, %v1130
      %v1163 = vpack.c.b16 %v1131, %v1131
      %v1164 = vpack.c.b16 %v1132, %v1132
      %v1165 = vpack.c.b16 %v1133, %v1133
      %v1166 = vpack.c.b16 %v1134, %v1134
      %v1167 = vpack.c.b16 %v1135, %v1135
      %v1168 = vpack.c.b16 %v1136, %v1136
      %v1169 = vpack.c.b16 %v1137, %v1137
      %v1170 = vpack.c.b16 %v1138, %v1138
      %v1171 = vpack.c.b16 %v1139, %v1139
      %1204 = vst [vmem:[%s175] sm:$0xf] %v1140
      %1205 = vst [vmem:[%s175 + $0x4] sm:$0xf] %v1141
      %1206 = vst [vmem:[%s175 + $0x8] sm:$0xf] %v1142
      %1207 = vst [vmem:[%s175 + $0xc] sm:$0xf] %v1143
      %1208 = vst [vmem:[%s175 + $0x10] sm:$0xf] %v1144
      %1209 = vst [vmem:[%s175 + $0x14] sm:$0xf] %v1145
      %1210 = vst [vmem:[%s175 + $0x18] sm:$0xf] %v1146
      %1211 = vst [vmem:[%s175 + $0x1c] sm:$0xf] %v1147
      %1212 = vst [vmem:[%s175 + $0x20] sm:$0xf] %v1148
      %1213 = vst [vmem:[%s175 + $0x24] sm:$0xf] %v1149
      %1214 = vst [vmem:[%s175 + $0x28] sm:$0xf] %v1150
      %1215 = vst [vmem:[%s175 + $0x2c] sm:$0xf] %v1151
      %1216 = vst [vmem:[%s175 + $0x30] sm:$0xf] %v1152
      %1217 = vst [vmem:[%s175 + $0x34] sm:$0xf] %v1153
      %1218 = vst [vmem:[%s175 + $0x38] sm:$0xf] %v1154
      %1219 = vst [vmem:[%s175 + $0x3c] sm:$0xf] %v1155
      %1220 = vst [vmem:[%s175 + $0x40] sm:$0xf] %v1156
      %1221 = vst [vmem:[%s175 + $0x44] sm:$0xf] %v1157
      %1222 = vst [vmem:[%s175 + $0x48] sm:$0xf] %v1158
      %1223 = vst [vmem:[%s175 + $0x4c] sm:$0xf] %v1159
      %1224 = vst [vmem:[%s175 + $0x50] sm:$0xf] %v1160
      %1225 = vst [vmem:[%s175 + $0x54] sm:$0xf] %v1161
      %1226 = vst [vmem:[%s175 + $0x58] sm:$0xf] %v1162
      %1227 = vst [vmem:[%s175 + $0x5c] sm:$0xf] %v1163
      %1228 = vst [vmem:[%s175 + $0x60] sm:$0xf] %v1164
      %1229 = vst [vmem:[%s175 + $0x64] sm:$0xf] %v1165
      %1230 = vst [vmem:[%s175 + $0x68] sm:$0xf] %v1166
      %1231 = vst [vmem:[%s175 + $0x6c] sm:$0xf] %v1167
      %1232 = vst [vmem:[%s175 + $0x70] sm:$0xf] %v1168
      %1233 = vst [vmem:[%s175 + $0x74] sm:$0xf] %v1169
      %1234 = vst [vmem:[%s175 + $0x78] sm:$0xf] %v1170
      %1235 = vst [vmem:[%s175 + $0x7c] sm:$0xf] %v1171
      %s1236 = smul.u32 32, %s14
      %p1237 = scmp.lt.s32.totalorder %s1236, 63
      %s1238 = scalar_select %p1237, %s1236, 63
      %s1239 = smul.addr %s1238, 4
      %s1240 = scalar_lea.vmem %s3, %s1239
      // Predicated region
      $region33: #{extra_cnn_forward.5} parent=31 // pred_check
        %p1241 = pneg %p100
      $region34: #{extra_cnn_forward.5} parent=31 // pred_check_branch
        %1243 = sbr.rel (%p1241) target = $region36
      $region35: #{extra_cnn_forward.5} parent=31 // pred_region
        %s1244 = smul.u32 32, %s14
      $region36: #{extra_cnn_forward.5} parent=31 // pred_fallthru
        _
    $region32: #{extra_cnn_forward.5} parent=5 // pred_fallthru
      _
    %p1245 = scmp.le.s32.totalorder 2, %s9
    // Predicated region
    $region37: #{extra_cnn_forward.5} parent=5 // pred_check
      %p1246 = pneg %p1245
    $region38: #{extra_cnn_forward.5} parent=5 // pred_check_branch
      %1248 = sbr.rel (%p1246) target = $region40
    $region39: #{extra_cnn_forward.5} parent=5 // pred_region
      %s1249 = ssub.s32 %s9, 2
      // Predicated region
      $region41: #{extra_cnn_forward.5} parent=39 // pred_check
        %p1250 = pneg %p106
      $region42: #{extra_cnn_forward.5} parent=39 // pred_check_branch
        %1252 = sbr.rel (%p1250) target = $region44
      $region43: #{extra_cnn_forward.5} parent=39 // pred_region
        %s1253 = smul.u32 32, %s15
        %p1254 = scmp.lt.s32.totalorder %s1253, 63
        %s1255 = scalar_select %p1254, %s1253, 63
        %s1256 = smul.addr %s1255, 4
        %s1257 = scalar_lea.vmem %s3, %s1256
      $region44: #{extra_cnn_forward.5} parent=39 // pred_fallthru
        _
    $region40: #{extra_cnn_forward.5} parent=5 // pred_fallthru
      _
  $region6: #{extra_cnn_forward.5} parent=0 // loop_footer
    %s13 = sadd.s32 1, %s9
  $region7: #{extra_cnn_forward.5} parent=0 // loop_footer_branch
    %8 = sbr.rel target = $region3
  $region8: #{extra_cnn_forward.5} parent=0 // loop_exit
    _

// kernel: extra_cnn_forward.6
$region0: #{extra_cnn_forward.6}
  #allocation0 [shape = 'u32[]', space=smem, size = 0x4, offset = 0x4, fixed_abs, tag = 'smem constant byte address 0x4 - core index']
  #allocation1 [shape = 'u32[144,128]{1,0:T(1,128)}', space=vmem, size = 0x12000, scoped, tag = 'internal scratch']
  %s0 = inlined_call_operand.vmem [shape: bf16[72,1500], index: 0, kind: input, shape index: {}]
  %s1 = inlined_call_operand.vmem [shape: bf16[1500,128], index: 1, kind: input, shape index: {}]
  %s2 = inlined_call_operand.vmem [shape: f32[1,128], index: 2, kind: input, shape index: {}]
  %s3 = inlined_call_operand.vmem [shape: bf16[72,128], index: 3, kind: output, shape index: {}]
  %s4 = sld [smem:[#allocation0]]
  $region89: #{extra_cnn_forward.6} parent=0
    _
  %s6 = ssub.s32 1, %s4
  %s7 = scalar_select 0, %s6, %s4
  $region1: #{extra_cnn_forward.6} parent=0
    #allocation2 [shape = 'u8[20480]{0}', space=vmem, size = 0x5000, scoped, tag = 'output window, operand 0']
    loop: start=0, step=1, limit=4
    $region2: #{extra_cnn_forward.6} parent=1 // loop_pre_header
      _
    $region3: #{extra_cnn_forward.6} parent=1 // loop_header
      %s9 = sphi 0, %s13
      %p10 = scmp.ge.s32.totalorder %s9, 4
      %s19 = sphi 0, %s21
      %s22 = sphi 0, %s19
      %s23 = sphi 0, %s22
      %s39 = sphi 0, %s23
      %s43 = sphi 0, %s43
      %s45 = sphi 0, %s43
      %s46 = sphi 0, %s45
      %s60 = sphi 0, %s46
      %s64 = sphi 0, %s64
      %s66 = sphi 0, %s64
      %s67 = sphi 0, %s66
      %s81 = sphi 0, %s67
      %s87 = sphi 0, %s89
      %s90 = sphi 0, %s87
      %s91 = sphi 0, %s90
      %s107 = sphi 0, %s91
    $region4: #{extra_cnn_forward.6} parent=1 // loop_header_branch
      %12 = sbr.rel (%p10) target = $region8
    $region5: #{extra_cnn_forward.6} parent=1 // loop_body
      %s14 = ssub.s32 %s9, 1
      %s15 = ssub.s32 %s9, 2
      %s16 = sadd.s32 %s9, 1
      %s17 = ssub.s32 %s9, %s16
      %p18 = scmp.eq.s32.totalorder %s17, 0
      %s20 = sadd.s32 %s19, 1
      %s21 = scalar_select %p18, %s19, %s20
      %p24 = pneg %p18
      %p25 = scmp.eq.s32.totalorder %s9, 1
      %p26 = por %p24, %p25
      %p27 = scmp.ne.s32.totalorder %s19, %s22
      %p28 = scmp.eq.s32.totalorder %s9, 0
      %p29 = por %p27, %p28
      %p30 = scmp.ne.s32.totalorder %s19, %s22
      %p31 = scmp.eq.s32.totalorder %s14, 1
      %p32 = por %p30, %p31
      %p33 = scmp.ne.s32.totalorder %s22, %s23
      %p34 = scmp.eq.s32.totalorder %s14, 0
      %p35 = por %p33, %p34
      %p36 = scmp.ne.s32.totalorder %s22, %s23
      %p37 = scmp.eq.s32.totalorder %s15, 1
      %p38 = por %p36, %p37
      %p40 = scmp.ne.s32.totalorder %s23, %s39
      %p41 = scmp.eq.s32.totalorder %s15, 0
      %p42 = por %p40, %p41
      %s44 = sadd.s32 %s43, 1
      %p47 = scmp.eq.s32.totalorder %s9, 1
      %p48 = scmp.ne.s32.totalorder %s43, %s45
      %p49 = scmp.eq.s32.totalorder %s9, 0
      %p50 = por %p48, %p49
      %p51 = scmp.ne.s32.totalorder %s43, %s45
      %p52 = scmp.eq.s32.totalorder %s14, 1
      %p53 = por %p51, %p52
      %p54 = scmp.ne.s32.totalorder %s45, %s46
      %p55 = scmp.eq.s32.totalorder %s14, 0
      %p56 = por %p54, %p55
      %p57 = scmp.ne.s32.totalorder %s45, %s46
      %p58 = scmp.eq.s32.totalorder %s15, 1
      %p59 = por %p57, %p58
      %p61 = scmp.ne.s32.totalorder %s46, %s60
      %p62 = scmp.eq.s32.totalorder %s15, 0
      %p63 = por %p61, %p62
      %s65 = sadd.s32 %s64, 1
      %p68 = scmp.eq.s32.totalorder %s9, 1
      %p69 = scmp.ne.s32.totalorder %s64, %s66
      %p70 = scmp.eq.s32.totalorder %s9, 0
      %p71 = por %p69, %p70
      %p72 = scmp.ne.s32.totalorder %s64, %s66
      %p73 = scmp.eq.s32.totalorder %s14, 1
      %p74 = por %p72, %p73
      %p75 = scmp.ne.s32.totalorder %s66, %s67
      %p76 = scmp.eq.s32.totalorder %s14, 0
      %p77 = por %p75, %p76
      %p78 = scmp.ne.s32.totalorder %s66, %s67
      %p79 = scmp.eq.s32.totalorder %s15, 1
      %p80 = por %p78, %p79
      %p82 = scmp.ne.s32.totalorder %s67, %s81
      %p83 = scmp.eq.s32.totalorder %s15, 0
      %p84 = por %p82, %p83
      %s85 = ssub.s32 %s9, %s16
      %p86 = scmp.eq.s32.totalorder %s85, 0
      %s88 = sadd.s32 %s87, 1
      %s89 = scalar_select %p86, %s87, %s88
      %p92 = pneg %p86
      %p93 = scmp.eq.s32.totalorder %s9, 1
      %p94 = por %p92, %p93
      %p95 = scmp.ne.s32.totalorder %s87, %s90
      %p96 = scmp.eq.s32.totalorder %s9, 0
      %p97 = por %p95, %p96
      %p98 = scmp.ne.s32.totalorder %s87, %s90
      %p99 = scmp.eq.s32.totalorder %s14, 1
      %p100 = por %p98, %p99
      %p101 = scmp.ne.s32.totalorder %s90, %s91
      %p102 = scmp.eq.s32.totalorder %s14, 0
      %p103 = por %p101, %p102
      %p104 = scmp.ne.s32.totalorder %s90, %s91
      %p105 = scmp.eq.s32.totalorder %s15, 1
      %p106 = por %p104, %p105
      %p108 = scmp.ne.s32.totalorder %s91, %s107
      %p109 = scmp.eq.s32.totalorder %s15, 0
      %p110 = por %p108, %p109
      %p111 = scmp.le.s32.totalorder 1, %s9
      %p112 = scmp.lt.s32.totalorder %s9, 3
      %p113 = pnand %p111, %p112
      %p114 = pneg %p113
      // Predicated region
      $region9: #{extra_cnn_forward.6} parent=5 // pred_check
        _
      $region10: #{extra_cnn_forward.6} parent=5 // pred_check_branch
        %116 = sbr.rel (%p113) target = $region12
      $region11: #{extra_cnn_forward.6} parent=5 // pred_region
        %s117 = ssub.s32 %s9, 1
        // Predicated region
        $region13: #{extra_cnn_forward.6} parent=11 // pred_check
          %p118 = pneg %p56
        $region14: #{extra_cnn_forward.6} parent=11 // pred_check_branch
          %120 = sbr.rel (%p118) target = $region16
        $region15: #{extra_cnn_forward.6} parent=11 // pred_region
          _
        $region16: #{extra_cnn_forward.6} parent=11 // pred_fallthru
          _
        // Predicated region
        $region17: #{extra_cnn_forward.6} parent=11 // pred_check
          %p121 = pneg %p77
        $region18: #{extra_cnn_forward.6} parent=11 // pred_check_branch
          %123 = sbr.rel (%p121) target = $region20
        $region19: #{extra_cnn_forward.6} parent=11 // pred_region
          _
        $region20: #{extra_cnn_forward.6} parent=11 // pred_fallthru
          _
      $region12: #{extra_cnn_forward.6} parent=5 // pred_fallthru
        _
      %p124 = scmp.lt.s32.totalorder %s9, 2
      // Predicated region
      $region21: #{extra_cnn_forward.6} parent=5 // pred_check
        %p125 = pneg %p124
      $region22: #{extra_cnn_forward.6} parent=5 // pred_check_branch
        %127 = sbr.rel (%p125) target = $region24
      $region23: #{extra_cnn_forward.6} parent=5 // pred_region
        // Predicated region
        $region25: #{extra_cnn_forward.6} parent=23 // pred_check
          %p128 = pneg %p29
        $region26: #{extra_cnn_forward.6} parent=23 // pred_check_branch
          %130 = sbr.rel (%p128) target = $region28
        $region27: #{extra_cnn_forward.6} parent=23 // pred_region
          %s131 = smul.u32 5, %s9
          %s132 = ssub.s32 9, %s131
          %p133 = scmp.lt.s32.totalorder %s132, 5
          %s134 = scalar_select %p133, %s132, 5
          %s135 = smul.u32 64, %s134
          %s136 = smul.u32 %s135, 12
          %p137 = scmp.lt.s32.totalorder %s131, 8
          %s138 = scalar_select %p137, %s131, 8
          %s139 = smul.addr %s138, 12
          %s140 = smul.addr %s139, 4
          %s141 = scalar_lea.vmem %s0, %s140
          %s142 = smul.u32 5, %s9
          %s143 = ssub.s32 9, %s142
          %p144 = scmp.lt.s32.totalorder %s143, 5
          %s145 = scalar_select %p144, %s143, 5
          %s146 = smul.u32 64, %s145
          %s147 = smul.u32 %s146, 12
        $region28: #{extra_cnn_forward.6} parent=23 // pred_fallthru
          _
      $region24: #{extra_cnn_forward.6} parent=5 // pred_fallthru
        _
      %p148 = scmp.le.s32.totalorder 1, %s9
      %p149 = scmp.lt.s32.totalorder %s9, 3
      %p150 = pnand %p148, %p149
      %p151 = pneg %p150
      // Predicated region
      $region29: #{extra_cnn_forward.6} parent=5 // pred_check
        _
      $region30: #{extra_cnn_forward.6} parent=5 // pred_check_branch
        %153 = sbr.rel (%p150) target = $region32
      $region31: #{extra_cnn_forward.6} parent=5 // pred_region
        %s154 = ssub.s32 %s9, 1
        %s155 = smul.u32 5, %s14
        %s156 = ssub.s32 9, %s155
        %p157 = scmp.lt.s32.totalorder %s156, 5
        %s158 = scalar_select %p157, %s156, 5
        %s159 = smul.u32 64, %s158
        %s160 = smul.u32 %s159, 12
        %p161 = scmp.lt.s32.totalorder %s155, 8
        %s162 = scalar_select %p161, %s155, 8
        %s163 = smul.addr %s162, 12
        %s164 = smul.addr %s163, 4
        %s165 = scalar_lea.vmem %s0, %s164
        %p166 = pneg %p35
        %p167 = pneg %p32
        %p168 = pneg %p56
        %p169 = pneg %p53
        %p170 = pneg %p77
        %p171 = pneg %p74
        %p172 = pneg %p103
        %p173 = pneg %p100
        %s174 = sand.u32 %s90, 1
        %s175 = sand.u32 %s90, 1
        %s176 = smul.addr %s175, 20
        %s177 = scalar_lea.vmem [#allocation2], %s176
        %s178 = smul.u32 5, %s14
        %s179 = ssub.s32 9, %s178
        %p180 = scmp.lt.s32.totalorder %s179, 5
        %s181 = scalar_select %p180, %s179, 5
        %s182 = smul.u32 64, %s181
        %s183 = smul.u32 %s182, 12
        %p184 = scmp.lt.s32.totalorder %s178, 8
        %s185 = scalar_select %p184, %s178, 8
        %s186 = smul.addr %s185, 12
        %s187 = smul.addr %s186, 4
        %s188 = scalar_lea.vmem %s0, %s187
        %s189 = smul.u32 5, %s14
        %s190 = ssub.s32 9, %s189
        %p191 = scmp.lt.s32.totalorder %s190, 5
        %s192 = scalar_select %p191, %s190, 5
        %s193 = smul.u32 64, %s192
        %s194 = smul.u32 %s193, 12
        %s195 = smul.u32 5, %s14
        %s196 = ssub.s32 9, %s195
        %p197 = scmp.lt.s32.totalorder %s196, 5
        %s198 = scalar_select %p197, %s196, 5
        %s199 = smul.u32 64, %s198
        %v201 = vld [vmem:[%s188] sm:$0xff]
        %v202 = vld [vmem:[%s188 + $0x8] sm:$0xff]
        %v203 = vld [vmem:[%s188 + $0x10] sm:$0xff]
        %v204 = vld [vmem:[%s188 + $0x18] sm:$0xff]
        %v205 = vld [vmem:[%s188 + $0x20] sm:$0xff]
        %v206 = vld [vmem:[%s188 + $0x28] sm:$0xff]
        %v207 = vld [vmem:[%s188 + $0x30] sm:$0xff]
        %v208 = vld [vmem:[%s188 + $0x38] sm:$0xff]
        %v209 = vld [vmem:[%s188 + $0x40] sm:$0xff]
        %v210 = vld [vmem:[%s188 + $0x48] sm:$0xff]
        %v211 = vld [vmem:[%s188 + $0x50] sm:$0xff]
        %v212 = vld [vmem:[%s188 + $0x58] sm:$0xff]
        %v213 = vld [vmem:[%s188 + $0x60] sm:$0xff]
        %v214 = vld [vmem:[%s188 + $0x68] sm:$0xff]
        %v215 = vld [vmem:[%s188 + $0x70] sm:$0xff]
        %v216 = vld [vmem:[%s188 + $0x78] sm:$0xff]
        %v217 = vld [vmem:[%s188 + $0x80] sm:$0xff]
        %v218 = vld [vmem:[%s188 + $0x88] sm:$0xff]
        %v219 = vld [vmem:[%s188 + $0x90] sm:$0xff]
        %v220 = vld [vmem:[%s188 + $0x98] sm:$0xff]
        %v221 = vld [vmem:[%s188 + $0xa0] sm:$0xff]
        %v222 = vld [vmem:[%s188 + $0xa8] sm:$0xff]
        %v223 = vld [vmem:[%s188 + $0xb0] sm:$0xff]
        %v224 = vld [vmem:[%s188 + $0xb8] sm:$0xff]
        %v225 = vld [vmem:[%s188 + $0xc0] sm:$0xff]
        %v226 = vld [vmem:[%s188 + $0xc8] sm:$0xff]
        %v227 = vld [vmem:[%s188 + $0xd0] sm:$0xff]
        %v228 = vld [vmem:[%s188 + $0xd8] sm:$0xff]
        %v229 = vld [vmem:[%s188 + $0xe0] sm:$0xff]
        %v230 = vld [vmem:[%s188 + $0xe8] sm:$0xff]
        %v231 = vld [vmem:[%s1] sm:$0xf]
        %v232 = vld [vmem:[%s1 + $0x4] sm:$0xf]
        %v233 = vld [vmem:[%s1 + $0x8] sm:$0xf]
        %v234 = vld [vmem:[%s1 + $0xc] sm:$0xf]
        %v235 = vld [vmem:[%s1 + $0x10] sm:$0xf]
        %v236 = vld [vmem:[%s1 + $0x14] sm:$0xf]
        %v237 = vld [vmem:[%s1 + $0x18] sm:$0xf]
        %v238 = vld [vmem:[%s1 + $0x1c] sm:$0xf]
        %v239 = vld [vmem:[%s1 + $0x20] sm:$0xf]
        %v240 = vld [vmem:[%s1 + $0x24] sm:$0xf]
        %v241 = vld [vmem:[%s1 + $0x28] sm:$0xf]
        %v242 = vld [vmem:[%s1 + $0x2c] sm:$0xf]
        %v243 = vld [vmem:[%s1 + $0x30] sm:$0xf]
        %v244 = vld [vmem:[%s1 + $0x34] sm:$0xf]
        %v245 = vld [vmem:[%s1 + $0x38] sm:$0xf]
        %v246 = vld [vmem:[%s1 + $0x3c] sm:$0xf]
        %v247 = vld [vmem:[%s1 + $0x40] sm:$0xf]
        %v248 = vld [vmem:[%s1 + $0x44] sm:$0xf]
        %v249 = vld [vmem:[%s1 + $0x48] sm:$0xf]
        %v250 = vld [vmem:[%s1 + $0x4c] sm:$0xf]
        %v251 = vld [vmem:[%s1 + $0x50] sm:$0xf]
        %v252 = vld [vmem:[%s1 + $0x54] sm:$0xf]
        %v253 = vld [vmem:[%s1 + $0x58] sm:$0xf]
        %v254 = vld [vmem:[%s1 + $0x5c] sm:$0xf]
        %v255 = vld [vmem:[%s1 + $0x60] sm:$0xf]
        %v256 = vld [vmem:[%s1 + $0x64] sm:$0xf]
        %v257 = vld [vmem:[%s1 + $0x68] sm:$0xf]
        %v258 = vld [vmem:[%s1 + $0x6c] sm:$0xf]
        %v259 = vld [vmem:[%s1 + $0x70] sm:$0xf]
        %v260 = vld [vmem:[%s1 + $0x74] sm:$0xf]
        %v261 = vld [vmem:[%s1 + $0x78] sm:$0xf]
        %v262 = vld [vmem:[%s1 + $0x7c] sm:$0xf]
        %v263 = vld [vmem:[%s1 + $0x80] sm:$0xf]
        %v264 = vld [vmem:[%s1 + $0x84] sm:$0xf]
        %v265 = vld [vmem:[%s1 + $0x88] sm:$0xf]
        %v266 = vld [vmem:[%s1 + $0x8c] sm:$0xf]
        %v267 = vld [vmem:[%s1 + $0x90] sm:$0xf]
        %v268 = vld [vmem:[%s1 + $0x94] sm:$0xf]
        %v269 = vld [vmem:[%s1 + $0x98] sm:$0xf]
        %v270 = vld [vmem:[%s1 + $0x9c] sm:$0xf]
        %v271 = vld [vmem:[%s1 + $0xa0] sm:$0xf]
        %v272 = vld [vmem:[%s1 + $0xa4] sm:$0xf]
        %v273 = vld [vmem:[%s1 + $0xa8] sm:$0xf]
        %v274 = vld [vmem:[%s1 + $0xac] sm:$0xf]
        %v275 = vld [vmem:[%s1 + $0xb0] sm:$0xf]
        %v276 = vld [vmem:[%s1 + $0xb4] sm:$0xf]
        %v277 = vld [vmem:[%s1 + $0xb8] sm:$0xf]
        %v278 = vld [vmem:[%s1 + $0xbc] sm:$0xf]
        %v279 = vld [vmem:[%s1 + $0xc0] sm:$0xf]
        %v280 = vld [vmem:[%s1 + $0xc4] sm:$0xf]
        %v281 = vld [vmem:[%s1 + $0xc8] sm:$0xf]
        %v282 = vld [vmem:[%s1 + $0xcc] sm:$0xf]
        %v283 = vld [vmem:[%s1 + $0xd0] sm:$0xf]
        %v284 = vld [vmem:[%s1 + $0xd4] sm:$0xf]
        %v285 = vld [vmem:[%s1 + $0xd8] sm:$0xf]
        %v286 = vld [vmem:[%s1 + $0xdc] sm:$0xf]
        %v287 = vld [vmem:[%s1 + $0xe0] sm:$0xf]
        %v288 = vld [vmem:[%s1 + $0xe4] sm:$0xf]
        %v289 = vld [vmem:[%s1 + $0xe8] sm:$0xf]
        %v290 = vld [vmem:[%s1 + $0xec] sm:$0xf]
        %v291 = vld [vmem:[%s1 + $0xf0] sm:$0xf]
        %v292 = vld [vmem:[%s1 + $0xf4] sm:$0xf]
        %v293 = vld [vmem:[%s1 + $0xf8] sm:$0xf]
        %v294 = vld [vmem:[%s1 + $0xfc] sm:$0xf]
        %v295 = vld [vmem:[%s1 + $0x100] sm:$0xf]
        %v296 = vld [vmem:[%s1 + $0x104] sm:$0xf]
        %v297 = vld [vmem:[%s1 + $0x108] sm:$0xf]
        %v298 = vld [vmem:[%s1 + $0x10c] sm:$0xf]
        %v299 = vld [vmem:[%s1 + $0x110] sm:$0xf]
        %v300 = vld [vmem:[%s1 + $0x114] sm:$0xf]
        %v301 = vld [vmem:[%s1 + $0x118] sm:$0xf]
        %v302 = vld [vmem:[%s1 + $0x11c] sm:$0xf]
        %v303 = vld [vmem:[%s1 + $0x120] sm:$0xf]
        %v304 = vld [vmem:[%s1 + $0x124] sm:$0xf]
        %v305 = vld [vmem:[%s1 + $0x128] sm:$0xf]
        %v306 = vld [vmem:[%s1 + $0x12c] sm:$0xf]
        %v307 = vld [vmem:[%s1 + $0x130] sm:$0xf]
        %v308 = vld [vmem:[%s1 + $0x134] sm:$0xf]
        %v309 = vld [vmem:[%s1 + $0x138] sm:$0xf]
        %v310 = vld [vmem:[%s1 + $0x13c] sm:$0xf]
        %v311 = vld [vmem:[%s1 + $0x140] sm:$0xf]
        %v312 = vld [vmem:[%s1 + $0x144] sm:$0xf]
        %v313 = vld [vmem:[%s1 + $0x148] sm:$0xf]
        %v314 = vld [vmem:[%s1 + $0x14c] sm:$0xf]
        %v315 = vld [vmem:[%s1 + $0x150] sm:$0xf]
        %v316 = vld [vmem:[%s1 + $0x154] sm:$0xf]
        %v317 = vld [vmem:[%s1 + $0x158] sm:$0xf]
        %v318 = vld [vmem:[%s1 + $0x15c] sm:$0xf]
        %v319 = vld [vmem:[%s1 + $0x160] sm:$0xf]
        %v320 = vld [vmem:[%s1 + $0x164] sm:$0xf]
        %v321 = vld [vmem:[%s1 + $0x168] sm:$0xf]
        %v322 = vld [vmem:[%s1 + $0x16c] sm:$0xf]
        %v323 = vld [vmem:[%s1 + $0x170] sm:$0xf]
        %v324 = vld [vmem:[%s1 + $0x174] sm:$0xf]
        %v325 = vld [vmem:[%s1 + $0x178] sm:$0xf]
        %v326 = vld [vmem:[%s1 + $0x17c] sm:$0xf]
        %v327 = vld [vmem:[%s1 + $0x180] sm:$0xf]
        %v328 = vld [vmem:[%s1 + $0x184] sm:$0xf]
        %v329 = vld [vmem:[%s1 + $0x188] sm:$0xf]
        %v330 = vld [vmem:[%s1 + $0x18c] sm:$0xf]
        %v331 = vld [vmem:[%s1 + $0x190] sm:$0xf]
        %v332 = vld [vmem:[%s1 + $0x194] sm:$0xf]
        %v333 = vld [vmem:[%s1 + $0x198] sm:$0xf]
        %v334 = vld [vmem:[%s1 + $0x19c] sm:$0xf]
        %v335 = vld [vmem:[%s1 + $0x1a0] sm:$0xf]
        %v336 = vld [vmem:[%s1 + $0x1a4] sm:$0xf]
        %v337 = vld [vmem:[%s1 + $0x1a8] sm:$0xf]
        %v338 = vld [vmem:[%s1 + $0x1ac] sm:$0xf]
        %v339 = vld [vmem:[%s1 + $0x1b0] sm:$0xf]
        %v340 = vld [vmem:[%s1 + $0x1b4] sm:$0xf]
        %v341 = vld [vmem:[%s1 + $0x1b8] sm:$0xf]
        %v342 = vld [vmem:[%s1 + $0x1bc] sm:$0xf]
        %v343 = vld [vmem:[%s1 + $0x1c0] sm:$0xf]
        %v344 = vld [vmem:[%s1 + $0x1c4] sm:$0xf]
        %v345 = vld [vmem:[%s1 + $0x1c8] sm:$0xf]
        %v346 = vld [vmem:[%s1 + $0x1cc] sm:$0xf]
        %v347 = vld [vmem:[%s1 + $0x1d0] sm:$0xf]
        %v348 = vld [vmem:[%s1 + $0x1d4] sm:$0xf]
        %v349 = vld [vmem:[%s1 + $0x1d8] sm:$0xf]
        %v350 = vld [vmem:[%s1 + $0x1dc] sm:$0xf]
        %v351 = vld [vmem:[%s1 + $0x1e0] sm:$0xf]
        %v352 = vld [vmem:[%s1 + $0x1e4] sm:$0xf]
        %v353 = vld [vmem:[%s1 + $0x1e8] sm:$0xf]
        %v354 = vld [vmem:[%s1 + $0x1ec] sm:$0xf]
        %v355 = vld [vmem:[%s1 + $0x1f0] sm:$0xf]
        %v356 = vld [vmem:[%s1 + $0x1f4] sm:$0xf]
        %v357 = vld [vmem:[%s1 + $0x1f8] sm:$0xf]
        %v358 = vld [vmem:[%s1 + $0x1fc] sm:$0xf]
        %v359 = vld [vmem:[%s1 + $0x200] sm:$0xf]
        %v360 = vld [vmem:[%s1 + $0x204] sm:$0xf]
        %v361 = vld [vmem:[%s1 + $0x208] sm:$0xf]
        %v362 = vld [vmem:[%s1 + $0x20c] sm:$0xf]
        %v363 = vld [vmem:[%s1 + $0x210] sm:$0xf]
        %v364 = vld [vmem:[%s1 + $0x214] sm:$0xf]
        %v365 = vld [vmem:[%s1 + $0x218] sm:$0xf]
        %v366 = vld [vmem:[%s1 + $0x21c] sm:$0xf]
        %v367 = vld [vmem:[%s1 + $0x220] sm:$0xf]
        %v368 = vld [vmem:[%s1 + $0x224] sm:$0xf]
        %v369 = vld [vmem:[%s1 + $0x228] sm:$0xf]
        %v370 = vld [vmem:[%s1 + $0x22c] sm:$0xf]
        %v371 = vld [vmem:[%s1 + $0x230] sm:$0xf]
        %v372 = vld [vmem:[%s1 + $0x234] sm:$0xf]
        %v373 = vld [vmem:[%s1 + $0x238] sm:$0xf]
        %v374 = vld [vmem:[%s1 + $0x23c] sm:$0xf]
        %v375 = vld [vmem:[%s1 + $0x240] sm:$0xf]
        %v376 = vld [vmem:[%s1 + $0x244] sm:$0xf]
        %v377 = vld [vmem:[%s1 + $0x248] sm:$0xf]
        %v378 = vld [vmem:[%s1 + $0x24c] sm:$0xf]
        %v379 = vld [vmem:[%s1 + $0x250] sm:$0xf]
        %v380 = vld [vmem:[%s1 + $0x254] sm:$0xf]
        %v381 = vld [vmem:[%s1 + $0x258] sm:$0xf]
        %v382 = vld [vmem:[%s1 + $0x25c] sm:$0xf]
        %v383 = vld [vmem:[%s1 + $0x260] sm:$0xf]
        %v384 = vld [vmem:[%s1 + $0x264] sm:$0xf]
        %v385 = vld [vmem:[%s1 + $0x268] sm:$0xf]
        %v386 = vld [vmem:[%s1 + $0x26c] sm:$0xf]
        %v387 = vld [vmem:[%s1 + $0x270] sm:$0xf]
        %v388 = vld [vmem:[%s1 + $0x274] sm:$0xf]
        %v389 = vld [vmem:[%s1 + $0x278] sm:$0xf]
        %v390 = vld [vmem:[%s1 + $0x27c] sm:$0xf]
        %v391 = vld [vmem:[%s1 + $0x280] sm:$0xf]
        %v392 = vld [vmem:[%s1 + $0x284] sm:$0xf]
        %v393 = vld [vmem:[%s1 + $0x288] sm:$0xf]
        %v394 = vld [vmem:[%s1 + $0x28c] sm:$0xf]
        %v395 = vld [vmem:[%s1 + $0x290] sm:$0xf]
        %v396 = vld [vmem:[%s1 + $0x294] sm:$0xf]
        %v397 = vld [vmem:[%s1 + $0x298] sm:$0xf]
        %v398 = vld [vmem:[%s1 + $0x29c] sm:$0xf]
        %v399 = vld [vmem:[%s1 + $0x2a0] sm:$0xf]
        %v400 = vld [vmem:[%s1 + $0x2a4] sm:$0xf]
        %v401 = vld [vmem:[%s1 + $0x2a8] sm:$0xf]
        %v402 = vld [vmem:[%s1 + $0x2ac] sm:$0xf]
        %v403 = vld [vmem:[%s1 + $0x2b0] sm:$0xf]
        %v404 = vld [vmem:[%s1 + $0x2b4] sm:$0xf]
        %v405 = vld [vmem:[%s1 + $0x2b8] sm:$0xf]
        %v406 = vld [vmem:[%s1 + $0x2bc] sm:$0xf]
        %v407 = vld [vmem:[%s1 + $0x2c0] sm:$0xf]
        %v408 = vld [vmem:[%s1 + $0x2c4] sm:$0xf]
        %v409 = vld [vmem:[%s1 + $0x2c8] sm:$0xf]
        %v410 = vld [vmem:[%s1 + $0x2cc] sm:$0xf]
        %v411 = vld [vmem:[%s1 + $0x2d0] sm:$0xf]
        %v412 = vld [vmem:[%s1 + $0x2d4] sm:$0xf]
        %v413 = vld [vmem:[%s1 + $0x2d8] sm:$0xf]
        %v414 = vld [vmem:[%s1 + $0x2dc] sm:$0xf]
        %v415 = vld [vmem:[%s1 + $0x2e0] sm:$0xf]
        %v416 = vld [vmem:[%s1 + $0x2e4] sm:$0xf]
        %v417 = vld [vmem:[%s1 + $0x2e8] sm:$0xf]
        %v418 = vld [vmem:[%s1 + $0x2ec] sm:$0x3]
        %v419 = vld [vmem:[%s2] sm:$0x1]
        %v421 = vlaneseq
        %v422 = vshrl.u32 %v421, 7
        %v423 = vsub.s32 0, %v422
        %v424 = vrot.slane %v419, %v423
        %v456 = vunpack.c.l.b16 %v201
        %v457 = vunpack.c.h.b16 %v201
        %v458 = vunpack.c.l.b16 %v202
        %v459 = vunpack.c.h.b16 %v202
        %v460 = vunpack.c.l.b16 %v203
        %v461 = vunpack.c.h.b16 %v203
        %v462 = vunpack.c.l.b16 %v204
        %v463 = vunpack.c.h.b16 %v204
        %v464 = vunpack.c.l.b16 %v205
        %v465 = vunpack.c.h.b16 %v205
        %v466 = vunpack.c.l.b16 %v206
        %v467 = vunpack.c.h.b16 %v206
        %v468 = vunpack.c.l.b16 %v207
        %v469 = vunpack.c.h.b16 %v207
        %v470 = vunpack.c.l.b16 %v208
        %v471 = vunpack.c.h.b16 %v208
        %v472 = vunpack.c.l.b16 %v209
        %v473 = vunpack.c.h.b16 %v209
        %v474 = vunpack.c.l.b16 %v210
        %v475 = vunpack.c.h.b16 %v210
        %v476 = vunpack.c.l.b16 %v211
        %v477 = vunpack.c.h.b16 %v211
        %v478 = vunpack.c.l.b16 %v212
        %v479 = vunpack.c.h.b16 %v212
        %v480 = vunpack.c.l.b16 %v213
        %v481 = vunpack.c.h.b16 %v213
        %v482 = vunpack.c.l.b16 %v214
        %v483 = vunpack.c.h.b16 %v214
        %v484 = vunpack.c.l.b16 %v215
        %v485 = vunpack.c.h.b16 %v215
        %v486 = vunpack.c.l.b16 %v216
        %v487 = vunpack.c.h.b16 %v216
        %v488 = vunpack.c.l.b16 %v217
        %v489 = vunpack.c.h.b16 %v217
        %v490 = vunpack.c.l.b16 %v218
        %v491 = vunpack.c.h.b16 %v218
        %v492 = vunpack.c.l.b16 %v219
        %v493 = vunpack.c.h.b16 %v219
        %v494 = vunpack.c.l.b16 %v220
        %v495 = vunpack.c.h.b16 %v220
        %v496 = vunpack.c.l.b16 %v221
        %v497 = vunpack.c.h.b16 %v221
        %v498 = vunpack.c.l.b16 %v222
        %v499 = vunpack.c.h.b16 %v222
        %v500 = vunpack.c.l.b16 %v223
        %v501 = vunpack.c.h.b16 %v223
        %v502 = vunpack.c.l.b16 %v224
        %v503 = vunpack.c.h.b16 %v224
        %v504 = vunpack.c.l.b16 %v225
        %v505 = vunpack.c.h.b16 %v225
        %v506 = vunpack.c.l.b16 %v226
        %v507 = vunpack.c.h.b16 %v226
        %v508 = vunpack.c.l.b16 %v227
        %v509 = vunpack.c.h.b16 %v227
        %v510 = vunpack.c.l.b16 %v228
        %v511 = vunpack.c.h.b16 %v228
        %v512 = vunpack.c.l.b16 %v229
        %v513 = vunpack.c.h.b16 %v229
        %v514 = vunpack.c.l.b16 %v230
        %v515 = vunpack.c.h.b16 %v230
        %v516 = vpack.c.b16 %v468, %v456
        %v517 = vpack.c.b16 %v469, %v457
        %v518 = vpack.c.b16 %v470, %v458
        %v519 = vpack.c.b16 %v471, %v459
        %v520 = vpack.c.b16 %v472, %v460
        %v521 = vpack.c.b16 %v473, %v461
        %v522 = vpack.c.b16 %v474, %v462
        %v523 = vpack.c.b16 %v475, %v463
        %v524 = vpack.c.b16 %v476, %v464
        %v525 = vpack.c.b16 %v477, %v465
        %v526 = vpack.c.b16 %v478, %v466
        %v527 = vpack.c.b16 %v479, %v467
        %v528 = vpack.c.b16 %v492, %v480
        %v529 = vpack.c.b16 %v493, %v481
        %v530 = vpack.c.b16 %v494, %v482
        %v531 = vpack.c.b16 %v495, %v483
        %v532 = vpack.c.b16 %v496, %v484
        %v533 = vpack.c.b16 %v497, %v485
        %v534 = vpack.c.b16 %v498, %v486
        %v535 = vpack.c.b16 %v499, %v487
        %v536 = vpack.c.b16 %v500, %v488
        %v537 = vpack.c.b16 %v501, %v489
        %v538 = vpack.c.b16 %v502, %v490
        %v539 = vpack.c.b16 %v503, %v491
        %v540 = vpack.c.b16 %v504, %v504
        %v541 = vpack.c.b16 %v505, %v505
        %v542 = vpack.c.b16 %v506, %v506
        %v543 = vpack.c.b16 %v507, %v507
        %v544 = vpack.c.b16 %v508, %v508
        %v545 = vpack.c.b16 %v509, %v509
        %v546 = vpack.c.b16 %v510, %v510
        %v547 = vpack.c.b16 %v511, %v511
        %v548 = vpack.c.b16 %v512, %v512
        %v549 = vpack.c.b16 %v513, %v513
        %v550 = vpack.c.b16 %v514, %v514
        %v551 = vpack.c.b16 %v515, %v515
        %v773 = vunpack.c.l.b16 %v231
        %v774 = vunpack.c.l.b16 %v232
        %v775 = vunpack.c.l.b16 %v233
        %v776 = vunpack.c.l.b16 %v234
        %v777 = vunpack.c.l.b16 %v235
        %v778 = vunpack.c.l.b16 %v236
        %v779 = vunpack.c.l.b16 %v237
        %v780 = vunpack.c.l.b16 %v238
        %v781 = vunpack.c.l.b16 %v239
        %v782 = vunpack.c.l.b16 %v240
        %v783 = vunpack.c.l.b16 %v241
        %v784 = vunpack.c.l.b16 %v242
        %v785 = vunpack.c.l.b16 %v243
        %v786 = vunpack.c.l.b16 %v244
        %v787 = vunpack.c.l.b16 %v245
        %v788 = vunpack.c.l.b16 %v246
        %v789 = vunpack.c.l.b16 %v247
        %v790 = vunpack.c.l.b16 %v248
        %v791 = vunpack.c.l.b16 %v249
        %v792 = vunpack.c.l.b16 %v250
        %v793 = vunpack.c.l.b16 %v251
        %v794 = vunpack.c.l.b16 %v252
        %v795 = vunpack.c.l.b16 %v253
        %v796 = vunpack.c.l.b16 %v254
        %v797 = vunpack.c.l.b16 %v255
        %v798 = vunpack.c.l.b16 %v256
        %v799 = vunpack.c.l.b16 %v257
        %v800 = vunpack.c.l.b16 %v258
        %v801 = vunpack.c.l.b16 %v259
        %v802 = vunpack.c.l.b16 %v260
        %v803 = vunpack.c.l.b16 %v261
        %v804 = vunpack.c.l.b16 %v262
        %v805 = vunpack.c.l.b16 %v263
        %v806 = vunpack.c.l.b16 %v264
        %v807 = vunpack.c.l.b16 %v265
        %v808 = vunpack.c.l.b16 %v266
        %v809 = vunpack.c.l.b16 %v267
        %v810 = vunpack.c.l.b16 %v268
        %v811 = vunpack.c.l.b16 %v269
        %v812 = vunpack.c.l.b16 %v270
        %v813 = vunpack.c.l.b16 %v271
        %v814 = vunpack.c.l.b16 %v272
        %v815 = vunpack.c.l.b16 %v273
        %v816 = vunpack.c.l.b16 %v274
        %v817 = vunpack.c.l.b16 %v275
        %v818 = vunpack.c.l.b16 %v276
        %v819 = vunpack.c.l.b16 %v277
        %v820 = vunpack.c.l.b16 %v278
        %v821 = vunpack.c.l.b16 %v279
        %v822 = vunpack.c.l.b16 %v280
        %v823 = vunpack.c.l.b16 %v281
        %v824 = vunpack.c.l.b16 %v282
        %v825 = vunpack.c.l.b16 %v283
        %v826 = vunpack.c.l.b16 %v284
        %v827 = vunpack.c.l.b16 %v285
        %v828 = vunpack.c.l.b16 %v286
        %v829 = vunpack.c.l.b16 %v287
        %v830 = vunpack.c.l.b16 %v288
        %v831 = vunpack.c.l.b16 %v289
        %v832 = vunpack.c.l.b16 %v290
        %v833 = vunpack.c.l.b16 %v291
        %v834 = vunpack.c.l.b16 %v292
        %v835 = vunpack.c.l.b16 %v293
        %v836 = vunpack.c.l.b16 %v294
        %v837 = vunpack.c.l.b16 %v295
        %v838 = vunpack.c.l.b16 %v296
        %v839 = vunpack.c.l.b16 %v297
        %v840 = vunpack.c.l.b16 %v298
        %v841 = vunpack.c.l.b16 %v299
        %v842 = vunpack.c.l.b16 %v300
        %v843 = vunpack.c.l.b16 %v301
        %v844 = vunpack.c.l.b16 %v302
        %v845 = vunpack.c.l.b16 %v303
        %v846 = vunpack.c.l.b16 %v304
        %v847 = vunpack.c.l.b16 %v305
        %v848 = vunpack.c.l.b16 %v306
        %v849 = vunpack.c.l.b16 %v307
        %v850 = vunpack.c.l.b16 %v308
        %v851 = vunpack.c.l.b16 %v309
        %v852 = vunpack.c.l.b16 %v310
        %v853 = vunpack.c.l.b16 %v311
        %v854 = vunpack.c.l.b16 %v312
        %v855 = vunpack.c.l.b16 %v313
        %v856 = vunpack.c.l.b16 %v314
        %v857 = vunpack.c.l.b16 %v315
        %v858 = vunpack.c.l.b16 %v316
        %v859 = vunpack.c.l.b16 %v317
        %v860 = vunpack.c.l.b16 %v318
        %v861 = vunpack.c.l.b16 %v319
        %v862 = vunpack.c.l.b16 %v320
        %v863 = vunpack.c.l.b16 %v321
        %v864 = vunpack.c.l.b16 %v322
        %v865 = vunpack.c.l.b16 %v323
        %v866 = vunpack.c.l.b16 %v324
        %v867 = vunpack.c.l.b16 %v325
        %v868 = vunpack.c.l.b16 %v326
        %v869 = vunpack.c.l.b16 %v327
        %v870 = vunpack.c.l.b16 %v328
        %v871 = vunpack.c.l.b16 %v329
        %v872 = vunpack.c.l.b16 %v330
        %v873 = vunpack.c.l.b16 %v331
        %v874 = vunpack.c.l.b16 %v332
        %v875 = vunpack.c.l.b16 %v333
        %v876 = vunpack.c.l.b16 %v334
        %v877 = vunpack.c.l.b16 %v335
        %v878 = vunpack.c.l.b16 %v336
        %v879 = vunpack.c.l.b16 %v337
        %v880 = vunpack.c.l.b16 %v338
        %v881 = vunpack.c.l.b16 %v339
        %v882 = vunpack.c.l.b16 %v340
        %v883 = vunpack.c.l.b16 %v341
        %v884 = vunpack.c.l.b16 %v342
        %v885 = vunpack.c.l.b16 %v343
        %v886 = vunpack.c.l.b16 %v344
        %v887 = vunpack.c.l.b16 %v345
        %v888 = vunpack.c.l.b16 %v346
        %v889 = vunpack.c.l.b16 %v347
        %v890 = vunpack.c.l.b16 %v348
        %v891 = vunpack.c.l.b16 %v349
        %v892 = vunpack.c.l.b16 %v350
        %v893 = vunpack.c.l.b16 %v351
        %v894 = vunpack.c.l.b16 %v352
        %v895 = vunpack.c.l.b16 %v353
        %v896 = vunpack.c.l.b16 %v354
        %v897 = vunpack.c.l.b16 %v355
        %v898 = vunpack.c.l.b16 %v356
        %v899 = vunpack.c.l.b16 %v357
        %v900 = vunpack.c.l.b16 %v358
        %v901 = vunpack.c.l.b16 %v359
        %v902 = vunpack.c.l.b16 %v360
        %v903 = vunpack.c.l.b16 %v361
        %v904 = vunpack.c.l.b16 %v362
        %v905 = vunpack.c.l.b16 %v363
        %v906 = vunpack.c.l.b16 %v364
        %v907 = vunpack.c.l.b16 %v365
        %v908 = vunpack.c.l.b16 %v366
        %v909 = vunpack.c.l.b16 %v367
        %v910 = vunpack.c.l.b16 %v368
        %v911 = vunpack.c.l.b16 %v369
        %v912 = vunpack.c.l.b16 %v370
        %v913 = vunpack.c.l.b16 %v371
        %v914 = vunpack.c.l.b16 %v372
        %v915 = vunpack.c.l.b16 %v373
        %v916 = vunpack.c.l.b16 %v374
        %v917 = vunpack.c.l.b16 %v375
        %v918 = vunpack.c.l.b16 %v376
        %v919 = vunpack.c.l.b16 %v377
        %v920 = vunpack.c.l.b16 %v378
        %v921 = vunpack.c.l.b16 %v379
        %v922 = vunpack.c.l.b16 %v380
        %v923 = vunpack.c.l.b16 %v381
        %v924 = vunpack.c.l.b16 %v382
        %v925 = vunpack.c.l.b16 %v383
        %v926 = vunpack.c.l.b16 %v384
        %v927 = vunpack.c.l.b16 %v385
        %v928 = vunpack.c.l.b16 %v386
        %v929 = vunpack.c.l.b16 %v387
        %v930 = vunpack.c.l.b16 %v388
        %v931 = vunpack.c.l.b16 %v389
        %v932 = vunpack.c.l.b16 %v390
        %v933 = vunpack.c.l.b16 %v391
        %v934 = vunpack.c.l.b16 %v392
        %v935 = vunpack.c.l.b16 %v393
        %v936 = vunpack.c.l.b16 %v394
        %v937 = vunpack.c.l.b16 %v395
        %v938 = vunpack.c.l.b16 %v396
        %v939 = vunpack.c.l.b16 %v397
        %v940 = vunpack.c.l.b16 %v398
        %v941 = vunpack.c.l.b16 %v399
        %v942 = vunpack.c.l.b16 %v400
        %v943 = vunpack.c.l.b16 %v401
        %v944 = vunpack.c.l.b16 %v402
        %v945 = vunpack.c.l.b16 %v403
        %v946 = vunpack.c.l.b16 %v404
        %v947 = vunpack.c.l.b16 %v405
        %v948 = vunpack.c.l.b16 %v406
        %v949 = vunpack.c.l.b16 %v407
        %v950 = vunpack.c.l.b16 %v408
        %v951 = vunpack.c.l.b16 %v409
        %v952 = vunpack.c.l.b16 %v410
        %v953 = vunpack.c.l.b16 %v411
        %v954 = vunpack.c.l.b16 %v412
        %v955 = vunpack.c.l.b16 %v413
        %v956 = vunpack.c.l.b16 %v414
        %v957 = vunpack.c.l.b16 %v415
        %v958 = vunpack.c.l.b16 %v416
        %v959 = vunpack.c.l.b16 %v417
        %v960 = vunpack.c.l.b16 %v418
        %v961 = vpack.c.b16 %v774, %v773
        %v962 = vpack.c.b16 %v776, %v775
        %v963 = vpack.c.b16 %v778, %v777
        %v964 = vpack.c.b16 %v780, %v779
        %v965 = vpack.c.b16 %v782, %v781
        %v966 = vpack.c.b16 %v784, %v783
        %v967 = vpack.c.b16 %v786, %v785
        %v968 = vpack.c.b16 %v788, %v787
        %v969 = vpack.c.b16 %v790, %v789
        %v970 = vpack.c.b16 %v792, %v791
        %v971 = vpack.c.b16 %v794, %v793
        %v972 = vpack.c.b16 %v796, %v795
        %v973 = vpack.c.b16 %v798, %v797
        %v974 = vpack.c.b16 %v800, %v799
        %v975 = vpack.c.b16 %v802, %v801
        %v976 = vpack.c.b16 %v804, %v803
        %v977 = vpack.c.b16 %v806, %v805
        %v978 = vpack.c.b16 %v808, %v807
        %v979 = vpack.c.b16 %v810, %v809
        %v980 = vpack.c.b16 %v812, %v811
        %v981 = vpack.c.b16 %v814, %v813
        %v982 = vpack.c.b16 %v816, %v815
        %v983 = vpack.c.b16 %v818, %v817
        %v984 = vpack.c.b16 %v820, %v819
        %v985 = vpack.c.b16 %v822, %v821
        %v986 = vpack.c.b16 %v824, %v823
        %v987 = vpack.c.b16 %v826, %v825
        %v988 = vpack.c.b16 %v828, %v827
        %v989 = vpack.c.b16 %v830, %v829
        %v990 = vpack.c.b16 %v832, %v831
        %v991 = vpack.c.b16 %v834, %v833
        %v992 = vpack.c.b16 %v836, %v835
        %v993 = vpack.c.b16 %v838, %v837
        %v994 = vpack.c.b16 %v840, %v839
        %v995 = vpack.c.b16 %v842, %v841
        %v996 = vpack.c.b16 %v844, %v843
        %v997 = vpack.c.b16 %v846, %v845
        %v998 = vpack.c.b16 %v848, %v847
        %v999 = vpack.c.b16 %v850, %v849
        %v1000 = vpack.c.b16 %v852, %v851
        %v1001 = vpack.c.b16 %v854, %v853
        %v1002 = vpack.c.b16 %v856, %v855
        %v1003 = vpack.c.b16 %v858, %v857
        %v1004 = vpack.c.b16 %v860, %v859
        %v1005 = vpack.c.b16 %v862, %v861
        %v1006 = vpack.c.b16 %v864, %v863
        %v1007 = vpack.c.b16 %v866, %v865
        %v1008 = vpack.c.b16 %v868, %v867
        %v1009 = vpack.c.b16 %v870, %v869
        %v1010 = vpack.c.b16 %v872, %v871
        %v1011 = vpack.c.b16 %v874, %v873
        %v1012 = vpack.c.b16 %v876, %v875
        %v1013 = vpack.c.b16 %v878, %v877
        %v1014 = vpack.c.b16 %v880, %v879
        %v1015 = vpack.c.b16 %v882, %v881
        %v1016 = vpack.c.b16 %v884, %v883
        %v1017 = vpack.c.b16 %v886, %v885
        %v1018 = vpack.c.b16 %v888, %v887
        %v1019 = vpack.c.b16 %v890, %v889
        %v1020 = vpack.c.b16 %v892, %v891
        %v1021 = vpack.c.b16 %v894, %v893
        %v1022 = vpack.c.b16 %v896, %v895
        %v1023 = vpack.c.b16 %v898, %v897
        %v1024 = vpack.c.b16 %v900, %v899
        %v1025 = vpack.c.b16 %v902, %v901
        %v1026 = vpack.c.b16 %v904, %v903
        %v1027 = vpack.c.b16 %v906, %v905
        %v1028 = vpack.c.b16 %v908, %v907
        %v1029 = vpack.c.b16 %v910, %v909
        %v1030 = vpack.c.b16 %v912, %v911
        %v1031 = vpack.c.b16 %v914, %v913
        %v1032 = vpack.c.b16 %v916, %v915
        %v1033 = vpack.c.b16 %v918, %v917
        %v1034 = vpack.c.b16 %v920, %v919
        %v1035 = vpack.c.b16 %v922, %v921
        %v1036 = vpack.c.b16 %v924, %v923
        %v1037 = vpack.c.b16 %v926, %v925
        %v1038 = vpack.c.b16 %v928, %v927
        %v1039 = vpack.c.b16 %v930, %v929
        %v1040 = vpack.c.b16 %v932, %v931
        %v1041 = vpack.c.b16 %v934, %v933
        %v1042 = vpack.c.b16 %v936, %v935
        %v1043 = vpack.c.b16 %v938, %v937
        %v1044 = vpack.c.b16 %v940, %v939
        %v1045 = vpack.c.b16 %v942, %v941
        %v1046 = vpack.c.b16 %v944, %v943
        %v1047 = vpack.c.b16 %v946, %v945
        %v1048 = vpack.c.b16 %v948, %v947
        %v1049 = vpack.c.b16 %v950, %v949
        %v1050 = vpack.c.b16 %v952, %v951
        %v1051 = vpack.c.b16 %v954, %v953
        %v1052 = vpack.c.b16 %v956, %v955
        %v1053 = vpack.c.b16 %v958, %v957
        %v1054 = vpack.c.b16 %v960, %v959
        %vm1148 = vcmask 752640
        %v1150 = vsel %vm1148, %v527, 0
        %v1153 = vsel %vm1148, %v539, 0
        %v1156 = vsel %vm1148, %v551, 0
        %vm1158 = vcmask 1045504
        %v1160 = vsel %vm1158, %v1054, 0
        %1162 = vmatprep.subr.bf16.mxu0 0
        %1163 = vmatpush1.bf16.msra.mxu0 %v968
        %1164 = vmatprep.subr.bf16.mxu0 0
        %1165 = vmatpush1.bf16.msra.mxu0 %v967
        %1166 = vmatprep.subr.bf16.mxu0 0
        %1167 = vmatpush1.bf16.msra.mxu0 %v966
        %1168 = vmatprep.subr.bf16.mxu0 0
        %1169 = vmatpush1.bf16.msra.mxu0 %v965
        %1170 = vmatprep.subr.bf16.mxu0 0
        %1171 = vmatpush1.bf16.msra.mxu0 %v964
        %1172 = vmatprep.subr.bf16.mxu0 0
        %1173 = vmatpush1.bf16.msra.mxu0 %v963
        %1174 = vmatprep.subr.bf16.mxu0 0
        %1175 = vmatpush1.bf16.msra.mxu0 %v962
        %1176 = vmatprep.subr.bf16.mxu0 0
        %1177 = vmatpush1.bf16.msra.mxu0 %v961
        %1178 = vmatprep.subr.bf16.mxu0 0
        %1179 = vmatpush2.bf16.msra.mxu0 %v976
        %1180 = vmatprep.subr.bf16.mxu0 0
        %1181 = vmatpush2.bf16.msra.mxu0 %v975
        %1182 = vmatprep.subr.bf16.mxu0 0
        %1183 = vmatpush2.bf16.msra.mxu0 %v974
        %1184 = vmatprep.subr.bf16.mxu0 0
        %1185 = vmatpush2.bf16.msra.mxu0 %v973
        %1186 = vmatprep.subr.bf16.mxu0 0
        %1187 = vmatpush2.bf16.msra.mxu0 %v972
        %1188 = vmatprep.subr.bf16.mxu0 0
        %1189 = vmatpush2.bf16.msra.mxu0 %v971
        %1190 = vmatprep.subr.bf16.mxu0 0
        %1191 = vmatpush2.bf16.msra.mxu0 %v970
        %1192 = vmatprep.subr.bf16.mxu0 0
        %1193 = vmatpush2.bf16.msra.mxu0 %v969
        %1194 = vmatprep.mubr.bf16.mxu0 %v517
        %1195 = vmatmul.mubr.bf16.gmra.mxu0 %v516
        %v1196 = vpop.f32.mrf.mxu0
        %v1197 = vadd.f32 %v424, %v1196
        %v1198 = vpop.f32.mrf.mxu0
        %v1199 = vpop.f32.mrf.mxu0
        %v1200 = vadd.f32 %v424, %v1199
        %v1201 = vpop.f32.mrf.mxu0
        %1202 = vmatprep.mubr.bf16.mxu0 %v529
        %1203 = vmatmul.mubr.bf16.gmra.mxu0 %v528
        %v1204 = vpop.f32.mrf.mxu0
        %v1205 = vadd.f32 %v424, %v1204
        %v1206 = vpop.f32.mrf.mxu0
        %v1207 = vpop.f32.mrf.mxu0
        %v1208 = vadd.f32 %v424, %v1207
        %v1209 = vpop.f32.mrf.mxu0
        %1210 = vmatprep.mubr.bf16.mxu0 %v541
        %1211 = vmatmul.mubr.bf16.gmra.mxu0 %v540
        %v1212 = vpop.f32.mrf.mxu0
        %v1213 = vadd.f32 %v424, %v1212
        %v1214 = vpop.f32.mrf.mxu0
        %v1215 = vpop.f32.mrf.mxu0
        %v1216 = vpop.f32.mrf.mxu0
        %1217 = vdwg.mxu0
        %1218 = vmatprep.subr.bf16.mxu0 0
        %1219 = vmatpush1.bf16.msra.mxu0 %v984
        %1220 = vmatprep.subr.bf16.mxu0 0
        %1221 = vmatpush1.bf16.msra.mxu0 %v983
        %1222 = vmatprep.subr.bf16.mxu0 0
        %1223 = vmatpush1.bf16.msra.mxu0 %v982
        %1224 = vmatprep.subr.bf16.mxu0 0
        %1225 = vmatpush1.bf16.msra.mxu0 %v981
        %1226 = vmatprep.subr.bf16.mxu0 0
        %1227 = vmatpush1.bf16.msra.mxu0 %v980
        %1228 = vmatprep.subr.bf16.mxu0 0
        %1229 = vmatpush1.bf16.msra.mxu0 %v979
        %1230 = vmatprep.subr.bf16.mxu0 0
        %1231 = vmatpush1.bf16.msra.mxu0 %v978
        %1232 = vmatprep.subr.bf16.mxu0 0
        %1233 = vmatpush1.bf16.msra.mxu0 %v977
        %1234 = vmatprep.subr.bf16.mxu0 0
        %1235 = vmatpush2.bf16.msra.mxu0 %v992
        %1236 = vmatprep.subr.bf16.mxu0 0
        %1237 = vmatpush2.bf16.msra.mxu0 %v991
        %1238 = vmatprep.subr.bf16.mxu0 0
        %1239 = vmatpush2.bf16.msra.mxu0 %v990
        %1240 = vmatprep.subr.bf16.mxu0 0
        %1241 = vmatpush2.bf16.msra.mxu0 %v989
        %1242 = vmatprep.subr.bf16.mxu0 0
        %1243 = vmatpush2.bf16.msra.mxu0 %v988
        %1244 = vmatprep.subr.bf16.mxu0 0
        %1245 = vmatpush2.bf16.msra.mxu0 %v987
        %1246 = vmatprep.subr.bf16.mxu0 0
        %1247 = vmatpush2.bf16.msra.mxu0 %v986
        %1248 = vmatprep.subr.bf16.mxu0 0
        %1249 = vmatpush2.bf16.msra.mxu0 %v985
        %1250 = vmatprep.mubr.bf16.mxu0 %v519
        %1251 = vmatmul.mubr.bf16.gmra.mxu0 %v518
        %v1252 = vpop.f32.mrf.mxu0
        %v1253 = vadd.f32 %v1197, %v1252
        %v1254 = vpop.f32.mrf.mxu0
        %v1255 = vpop.f32.mrf.mxu0
        %v1256 = vadd.f32 %v1200, %v1255
        %v1257 = vpop.f32.mrf.mxu0
        %1258 = vmatprep.mubr.bf16.mxu0 %v531
        %1259 = vmatmul.mubr.bf16.gmra.mxu0 %v530
        %v1260 = vpop.f32.mrf.mxu0
        %v1261 = vadd.f32 %v1205, %v1260
        %v1262 = vpop.f32.mrf.mxu0
        %v1263 = vpop.f32.mrf.mxu0
        %v1264 = vadd.f32 %v1208, %v1263
        %v1265 = vpop.f32.mrf.mxu0
        %1266 = vmatprep.mubr.bf16.mxu0 %v543
        %1267 = vmatmul.mubr.bf16.gmra.mxu0 %v542
        %v1268 = vpop.f32.mrf.mxu0
        %v1269 = vadd.f32 %v1213, %v1268
        %v1270 = vpop.f32.mrf.mxu0
        %v1271 = vpop.f32.mrf.mxu0
        %v1272 = vpop.f32.mrf.mxu0
        %1273 = vdwg.mxu0
        %1274 = vmatprep.subr.bf16.mxu0 0
        %1275 = vmatpush1.bf16.msra.mxu0 %v1000
        %1276 = vmatprep.subr.bf16.mxu0 0
        %1277 = vmatpush1.bf16.msra.mxu0 %v999
        %1278 = vmatprep.subr.bf16.mxu0 0
        %1279 = vmatpush1.bf16.msra.mxu0 %v998
        %1280 = vmatprep.subr.bf16.mxu0 0
        %1281 = vmatpush1.bf16.msra.mxu0 %v997
        %1282 = vmatprep.subr.bf16.mxu0 0
        %1283 = vmatpush1.bf16.msra.mxu0 %v996
        %1284 = vmatprep.subr.bf16.mxu0 0
        %1285 = vmatpush1.bf16.msra.mxu0 %v995
        %1286 = vmatprep.subr.bf16.mxu0 0
        %1287 = vmatpush1.bf16.msra.mxu0 %v994
        %1288 = vmatprep.subr.bf16.mxu0 0
        %1289 = vmatpush1.bf16.msra.mxu0 %v993
        %1290 = vmatprep.subr.bf16.mxu0 0
        %1291 = vmatpush2.bf16.msra.mxu0 %v1008
        %1292 = vmatprep.subr.bf16.mxu0 0
        %1293 = vmatpush2.bf16.msra.mxu0 %v1007
        %1294 = vmatprep.subr.bf16.mxu0 0
        %1295 = vmatpush2.bf16.msra.mxu0 %v1006
        %1296 = vmatprep.subr.bf16.mxu0 0
        %1297 = vmatpush2.bf16.msra.mxu0 %v1005
        %1298 = vmatprep.subr.bf16.mxu0 0
        %1299 = vmatpush2.bf16.msra.mxu0 %v1004
        %1300 = vmatprep.subr.bf16.mxu0 0
        %1301 = vmatpush2.bf16.msra.mxu0 %v1003
        %1302 = vmatprep.subr.bf16.mxu0 0
        %1303 = vmatpush2.bf16.msra.mxu0 %v1002
        %1304 = vmatprep.subr.bf16.mxu0 0
        %1305 = vmatpush2.bf16.msra.mxu0 %v1001
        %1306 = vmatprep.mubr.bf16.mxu0 %v521
        %1307 = vmatmul.mubr.bf16.gmra.mxu0 %v520
        %v1308 = vpop.f32.mrf.mxu0
        %v1309 = vadd.f32 %v1253, %v1308
        %v1310 = vpop.f32.mrf.mxu0
        %v1311 = vpop.f32.mrf.mxu0
        %v1312 = vadd.f32 %v1256, %v1311
        %v1313 = vpop.f32.mrf.mxu0
        %1314 = vmatprep.mubr.bf16.mxu0 %v533
        %1315 = vmatmul.mubr.bf16.gmra.mxu0 %v532
        %v1316 = vpop.f32.mrf.mxu0
        %v1317 = vadd.f32 %v1261, %v1316
        %v1318 = vpop.f32.mrf.mxu0
        %v1319 = vpop.f32.mrf.mxu0
        %v1320 = vadd.f32 %v1264, %v1319
        %v1321 = vpop.f32.mrf.mxu0
        %1322 = vmatprep.mubr.bf16.mxu0 %v545
        %1323 = vmatmul.mubr.bf16.gmra.mxu0 %v544
        %v1324 = vpop.f32.mrf.mxu0
        %v1325 = vadd.f32 %v1269, %v1324
        %v1326 = vpop.f32.mrf.mxu0
        %v1327 = vpop.f32.mrf.mxu0
        %v1328 = vpop.f32.mrf.mxu0
        %1329 = vdwg.mxu0
        %1330 = vmatprep.subr.bf16.mxu0 0
        %1331 = vmatpush1.bf16.msra.mxu0 %v1016
        %1332 = vmatprep.subr.bf16.mxu0 0
        %1333 = vmatpush1.bf16.msra.mxu0 %v1015
        %1334 = vmatprep.subr.bf16.mxu0 0
        %1335 = vmatpush1.bf16.msra.mxu0 %v1014
        %1336 = vmatprep.subr.bf16.mxu0 0
        %1337 = vmatpush1.bf16.msra.mxu0 %v1013
        %1338 = vmatprep.subr.bf16.mxu0 0
        %1339 = vmatpush1.bf16.msra.mxu0 %v1012
        %1340 = vmatprep.subr.bf16.mxu0 0
        %1341 = vmatpush1.bf16.msra.mxu0 %v1011
        %1342 = vmatprep.subr.bf16.mxu0 0
        %1343 = vmatpush1.bf16.msra.mxu0 %v1010
        %1344 = vmatprep.subr.bf16.mxu0 0
        %1345 = vmatpush1.bf16.msra.mxu0 %v1009
        %1346 = vmatprep.subr.bf16.mxu0 0
        %1347 = vmatpush2.bf16.msra.mxu0 %v1024
        %1348 = vmatprep.subr.bf16.mxu0 0
        %1349 = vmatpush2.bf16.msra.mxu0 %v1023
        %1350 = vmatprep.subr.bf16.mxu0 0
        %1351 = vmatpush2.bf16.msra.mxu0 %v1022
        %1352 = vmatprep.subr.bf16.mxu0 0
        %1353 = vmatpush2.bf16.msra.mxu0 %v1021
        %1354 = vmatprep.subr.bf16.mxu0 0
        %1355 = vmatpush2.bf16.msra.mxu0 %v1020
        %1356 = vmatprep.subr.bf16.mxu0 0
        %1357 = vmatpush2.bf16.msra.mxu0 %v1019
        %1358 = vmatprep.subr.bf16.mxu0 0
        %1359 = vmatpush2.bf16.msra.mxu0 %v1018
        %1360 = vmatprep.subr.bf16.mxu0 0
        %1361 = vmatpush2.bf16.msra.mxu0 %v1017
        %1362 = vmatprep.mubr.bf16.mxu0 %v523
        %1363 = vmatmul.mubr.bf16.gmra.mxu0 %v522
        %v1364 = vpop.f32.mrf.mxu0
        %v1365 = vadd.f32 %v1309, %v1364
        %v1366 = vpop.f32.mrf.mxu0
        %v1367 = vpop.f32.mrf.mxu0
        %v1368 = vadd.f32 %v1312, %v1367
        %v1369 = vpop.f32.mrf.mxu0
        %1370 = vmatprep.mubr.bf16.mxu0 %v535
        %1371 = vmatmul.mubr.bf16.gmra.mxu0 %v534
        %v1372 = vpop.f32.mrf.mxu0
        %v1373 = vadd.f32 %v1317, %v1372
        %v1374 = vpop.f32.mrf.mxu0
        %v1375 = vpop.f32.mrf.mxu0
        %v1376 = vadd.f32 %v1320, %v1375
        %v1377 = vpop.f32.mrf.mxu0
        %1378 = vmatprep.mubr.bf16.mxu0 %v547
        %1379 = vmatmul.mubr.bf16.gmra.mxu0 %v546
        %v1380 = vpop.f32.mrf.mxu0
        %v1381 = vadd.f32 %v1325, %v1380
        %v1382 = vpop.f32.mrf.mxu0
        %v1383 = vpop.f32.mrf.mxu0
        %v1384 = vpop.f32.mrf.mxu0
        %1385 = vdwg.mxu0
        %1386 = vmatprep.subr.bf16.mxu0 0
        %1387 = vmatpush1.bf16.msra.mxu0 %v1032
        %1388 = vmatprep.subr.bf16.mxu0 0
        %1389 = vmatpush1.bf16.msra.mxu0 %v1031
        %1390 = vmatprep.subr.bf16.mxu0 0
        %1391 = vmatpush1.bf16.msra.mxu0 %v1030
        %1392 = vmatprep.subr.bf16.mxu0 0
        %1393 = vmatpush1.bf16.msra.mxu0 %v1029
        %1394 = vmatprep.subr.bf16.mxu0 0
        %1395 = vmatpush1.bf16.msra.mxu0 %v1028
        %1396 = vmatprep.subr.bf16.mxu0 0
        %1397 = vmatpush1.bf16.msra.mxu0 %v1027
        %1398 = vmatprep.subr.bf16.mxu0 0
        %1399 = vmatpush1.bf16.msra.mxu0 %v1026
        %1400 = vmatprep.subr.bf16.mxu0 0
        %1401 = vmatpush1.bf16.msra.mxu0 %v1025
        %1402 = vmatprep.subr.bf16.mxu0 0
        %1403 = vmatpush2.bf16.msra.mxu0 %v1040
        %1404 = vmatprep.subr.bf16.mxu0 0
        %1405 = vmatpush2.bf16.msra.mxu0 %v1039
        %1406 = vmatprep.subr.bf16.mxu0 0
        %1407 = vmatpush2.bf16.msra.mxu0 %v1038
        %1408 = vmatprep.subr.bf16.mxu0 0
        %1409 = vmatpush2.bf16.msra.mxu0 %v1037
        %1410 = vmatprep.subr.bf16.mxu0 0
        %1411 = vmatpush2.bf16.msra.mxu0 %v1036
        %1412 = vmatprep.subr.bf16.mxu0 0
        %1413 = vmatpush2.bf16.msra.mxu0 %v1035
        %1414 = vmatprep.subr.bf16.mxu0 0
        %1415 = vmatpush2.bf16.msra.mxu0 %v1034
        %1416 = vmatprep.subr.bf16.mxu0 0
        %1417 = vmatpush2.bf16.msra.mxu0 %v1033
        %1418 = vmatprep.mubr.bf16.mxu0 %v525
        %1419 = vmatmul.mubr.bf16.gmra.mxu0 %v524
        %v1420 = vpop.f32.mrf.mxu0
        %v1421 = vadd.f32 %v1365, %v1420
        %v1422 = vpop.f32.mrf.mxu0
        %v1423 = vpop.f32.mrf.mxu0
        %v1424 = vadd.f32 %v1368, %v1423
        %v1425 = vpop.f32.mrf.mxu0
        %1426 = vmatprep.mubr.bf16.mxu0 %v537
        %1427 = vmatmul.mubr.bf16.gmra.mxu0 %v536
        %v1428 = vpop.f32.mrf.mxu0
        %v1429 = vadd.f32 %v1373, %v1428
        %v1430 = vpop.f32.mrf.mxu0
        %v1431 = vpop.f32.mrf.mxu0
        %v1432 = vadd.f32 %v1376, %v1431
        %v1433 = vpop.f32.mrf.mxu0
        %1434 = vmatprep.mubr.bf16.mxu0 %v549
        %1435 = vmatmul.mubr.bf16.gmra.mxu0 %v548
        %v1436 = vpop.f32.mrf.mxu0
        %v1437 = vadd.f32 %v1381, %v1436
        %v1438 = vpop.f32.mrf.mxu0
        %v1439 = vpop.f32.mrf.mxu0
        %v1440 = vpop.f32.mrf.mxu0
        %1441 = vdwg.mxu0
        %1442 = vmatprep.subr.bf16.mxu0 0
        %1443 = vmatpush1.bf16.msra.mxu0 %v1048
        %1444 = vmatprep.subr.bf16.mxu0 0
        %1445 = vmatpush1.bf16.msra.mxu0 %v1047
        %1446 = vmatprep.subr.bf16.mxu0 0
        %1447 = vmatpush1.bf16.msra.mxu0 %v1046
        %1448 = vmatprep.subr.bf16.mxu0 0
        %1449 = vmatpush1.bf16.msra.mxu0 %v1045
        %1450 = vmatprep.subr.bf16.mxu0 0
        %1451 = vmatpush1.bf16.msra.mxu0 %v1044
        %1452 = vmatprep.subr.bf16.mxu0 0
        %1453 = vmatpush1.bf16.msra.mxu0 %v1043
        %1454 = vmatprep.subr.bf16.mxu0 0
        %1455 = vmatpush1.bf16.msra.mxu0 %v1042
        %1456 = vmatprep.subr.bf16.mxu0 0
        %1457 = vmatpush1.bf16.msra.mxu0 %v1041
        %1458 = vmatprep.subr.bf16.mxu0 0
        %1459 = vmatpush2.bf16.msra.mxu0 0
        %1460 = vmatprep.subr.bf16.mxu0 0
        %1461 = vmatpush2.bf16.msra.mxu0 0
        %1462 = vmatprep.subr.bf16.mxu0 0
        %1463 = vmatpush2.bf16.msra.mxu0 %v1160
        %1464 = vmatprep.subr.bf16.mxu0 0
        %1465 = vmatpush2.bf16.msra.mxu0 %v1053
        %1466 = vmatprep.subr.bf16.mxu0 0
        %1467 = vmatpush2.bf16.msra.mxu0 %v1052
        %1468 = vmatprep.subr.bf16.mxu0 0
        %1469 = vmatpush2.bf16.msra.mxu0 %v1051
        %1470 = vmatprep.subr.bf16.mxu0 0
        %1471 = vmatpush2.bf16.msra.mxu0 %v1050
        %1472 = vmatprep.subr.bf16.mxu0 0
        %1473 = vmatpush2.bf16.msra.mxu0 %v1049
        %1474 = vmatprep.mubr.bf16.mxu0 %v1150
        %1475 = vmatmul.mubr.bf16.gmra.mxu0 %v526
        %v1476 = vpop.f32.mrf.mxu0
        %v1477 = vadd.f32 %v1421, %v1476
        %v1478 = vpop.f32.mrf.mxu0
        %v1479 = vpop.f32.mrf.mxu0
        %v1480 = vadd.f32 %v1424, %v1479
        %v1481 = vpop.f32.mrf.mxu0
        %1482 = vmatprep.mubr.bf16.mxu0 %v1153
        %1483 = vmatmul.mubr.bf16.gmra.mxu0 %v538
        %v1484 = vpop.f32.mrf.mxu0
        %v1485 = vadd.f32 %v1429, %v1484
        %v1486 = vpop.f32.mrf.mxu0
        %v1487 = vpop.f32.mrf.mxu0
        %v1488 = vadd.f32 %v1432, %v1487
        %v1489 = vpop.f32.mrf.mxu0
        %1490 = vmatprep.mubr.bf16.mxu0 %v1156
        %1491 = vmatmul.mubr.bf16.gmra.mxu0 %v550
        %v1492 = vpop.f32.mrf.mxu0
        %v1493 = vadd.f32 %v1437, %v1492
        %v1494 = vpop.f32.mrf.mxu0
        %v1495 = vpop.f32.mrf.mxu0
        %v1496 = vpop.f32.mrf.mxu0
        %1497 = vdwg.mxu0
        %v1498 = vmax.f32 %v1477, 0.0
        %v1499 = vmax.f32 %v1480, 0.0
        %v1500 = vmax.f32 %v1485, 0.0
        %v1501 = vmax.f32 %v1488, 0.0
        %v1502 = vmax.f32 %v1493, 0.0
        %v1503 = vpack.c.bf16 %v1499, %v1498
        %v1504 = vpack.c.bf16 %v1501, %v1500
        %v1505 = vpack.c.bf16 %v1502, %v1502
        %v1509 = vunpack.c.l.b16 %v1503
        %v1510 = vunpack.c.h.b16 %v1503
        %v1511 = vunpack.c.l.b16 %v1504
        %v1512 = vunpack.c.h.b16 %v1504
        %v1513 = vunpack.c.l.b16 %v1505
        %v1514 = vpack.c.b16 %v1509, %v1509
        %v1515 = vpack.c.b16 %v1510, %v1510
        %v1516 = vpack.c.b16 %v1511, %v1511
        %v1517 = vpack.c.b16 %v1512, %v1512
        %v1518 = vpack.c.b16 %v1513, %v1513
        %1524 = vst [vmem:[%s177] sm:$0xf] %v1514
        %1525 = vst [vmem:[%s177 + $0x4] sm:$0xf] %v1515
        %1526 = vst [vmem:[%s177 + $0x8] sm:$0xf] %v1516
        %1527 = vst [vmem:[%s177 + $0xc] sm:$0xf] %v1517
        %1528 = vst [vmem:[%s177 + $0x10] sm:$0xf] %v1518
        %s1529 = sand.u32 %s90, 1
        %s1530 = sand.u32 %s90, 1
        %s1531 = smul.addr %s1530, 20
        %s1532 = scalar_lea.vmem [#allocation2], %s1531
        // Predicated region
        $region33: #{extra_cnn_forward.6} parent=31 // pred_check
          %p1533 = pneg %p100
        $region34: #{extra_cnn_forward.6} parent=31 // pred_check_branch
          %1535 = sbr.rel (%p1533) target = $region36
        $region35: #{extra_cnn_forward.6} parent=31 // pred_region
          %s1536 = smul.u32 5, %s14
          %s1537 = ssub.s32 9, %s1536
          %p1538 = scmp.lt.s32.totalorder %s1537, 5
          %s1539 = scalar_select %p1538, %s1537, 5
          %s1540 = smul.u32 64, %s1539
          %p1541 = scmp.ne.s32.totalorder 0, %s1540
          %s1542 = smul.addr %s1536, 4
          %s1543 = scalar_lea.vmem %s3, %s1542
          // Predicated region
          $region37: #{extra_cnn_forward.6} parent=35 // pred_check
            %p1544 = pneg %p1541
          $region38: #{extra_cnn_forward.6} parent=35 // pred_check_branch
            %1546 = sbr.rel (%p1544) target = $region40
          $region39: #{extra_cnn_forward.6} parent=35 // pred_region
            // Predicated region
            $region41: #{extra_cnn_forward.6} parent=39 // pred_check
              _
            $region42: #{extra_cnn_forward.6} parent=39 // pred_check_branch
              %1548 = sbr.rel target = $region44
            $region43: #{extra_cnn_forward.6} parent=39 // pred_region
              // Predicated region
              $region63: #{extra_cnn_forward.6} parent=43 // pred_check
                _
              $region64: #{extra_cnn_forward.6} parent=43 // pred_check_branch
                %1607 = sbr.rel (0) target = $region66
              $region65: #{extra_cnn_forward.6} parent=43 // pred_region
                %s1609 = ssub.s32 16, 1
                %s1610 = sdiv.u32.pop %s1539, 5
                %s1611 = srem.u32.pop %s1539, 5
                // While loop
                $region67: #{extra_cnn_forward.6} parent=65 // loop_pre_header
                  _
                $region68: #{extra_cnn_forward.6} parent=65 // loop_header
                  %s1613 = sphi 0, %s1615
                  %p1614 = scmp.ge.s32.totalorder %s1613, %s1610
                  %s1618 = sphi 0, %s1633
                  %s1619 = sphi %s1532, %s1636
                  %s1620 = sphi %s1543, %s1637
                $region69: #{extra_cnn_forward.6} parent=65 // loop_header_branch
                  %1617 = sbr.rel (%p1614) target = $region73
                $region70: #{extra_cnn_forward.6} parent=65 // loop_body
                  %v1621 = vld [vmem:[%s1619] sm:%s1609]
                  %1622 = vst [vmem:[%s1620] sm:%s1609] %v1621
                  %v1623 = vld [vmem:[%s1619 + $0x4] sm:%s1609]
                  %1624 = vst [vmem:[%s1620 + $0x4] sm:%s1609] %v1623
                  %v1625 = vld [vmem:[%s1619 + $0x8] sm:%s1609]
                  %1626 = vst [vmem:[%s1620 + $0x8] sm:%s1609] %v1625
                  %v1627 = vld [vmem:[%s1619 + $0xc] sm:%s1609]
                  %1628 = vst [vmem:[%s1620 + $0xc] sm:%s1609] %v1627
                  %v1629 = vld [vmem:[%s1619 + $0x10] sm:%s1609]
                  %1630 = vst [vmem:[%s1620 + $0x10] sm:%s1609] %v1629
                  %s1631 = sadd.s32 1, %s1618
                  %p1632 = scmp.ge.s32.totalorder %s1631, %s1610
                  %s1633 = scalar_select %p1632, 0, %s1631
                  %s1634 = smul.u32 %s1633, 20
                  %s1635 = smul.u32 %s1633, 20
                  %s1636 = scalar_lea.vmem %s1532, %s1634 [#allocation2]
                  %s1637 = scalar_lea.vmem %s1543, %s1635
                $region71: #{extra_cnn_forward.6} parent=65 // loop_footer
                  %s1615 = sadd.s32 %s1613, 1
                $region72: #{extra_cnn_forward.6} parent=65 // loop_footer_branch
                  %1612 = sbr.rel target = $region68
                $region73: #{extra_cnn_forward.6} parent=65 // loop_exit
                  _
                %s1638 = sdiv.u32.pop %s1539, 5
                %s1639 = srem.u32.pop %s1539, 5
                %s1640 = smul.u32 %s1638, 5
                %s1641 = smul.u32 4, %s1640
                %s1642 = scalar_lea.vmem %s1532, %s1641 [#allocation2]
                %s1643 = smul.u32 4, %s1640
                %s1644 = scalar_lea.vmem %s1543, %s1643
                // While loop
                $region74: #{extra_cnn_forward.6} parent=65 // loop_pre_header
                  _
                $region75: #{extra_cnn_forward.6} parent=65 // loop_header
                  %s1646 = sphi 0, %s1648
                  %p1647 = scmp.ge.s32.totalorder %s1646, %s1639
                  %s1651 = sphi 0, %s1658
                  %s1652 = sphi %s1642, %s1661
                  %s1653 = sphi %s1644, %s1662
                $region76: #{extra_cnn_forward.6} parent=65 // loop_header_branch
                  %1650 = sbr.rel (%p1647) target = $region80
                $region77: #{extra_cnn_forward.6} parent=65 // loop_body
                  %v1654 = vld [vmem:[%s1652] sm:%s1609]
                  %1655 = vst [vmem:[%s1653] sm:%s1609] %v1654
                  %s1656 = sadd.s32 1, %s1651
                  %p1657 = scmp.ge.s32.totalorder %s1656, %s1639
                  %s1658 = scalar_select %p1657, 0, %s1656
                  %s1659 = smul.u32 %s1658, 4
                  %s1660 = smul.u32 %s1658, 4
                  %s1661 = scalar_lea.vmem %s1642, %s1659 [#allocation2]
                  %s1662 = scalar_lea.vmem %s1644, %s1660
                $region78: #{extra_cnn_forward.6} parent=65 // loop_footer
                  %s1648 = sadd.s32 %s1646, 1
                $region79: #{extra_cnn_forward.6} parent=65 // loop_footer_branch
                  %1645 = sbr.rel target = $region75
                $region80: #{extra_cnn_forward.6} parent=65 // loop_exit
                  _
              $region66: #{extra_cnn_forward.6} parent=43 // pred_fallthru
                _
            $region44: #{extra_cnn_forward.6} parent=39 // pred_fallthru
              _
            // Predicated region
            $region45: #{extra_cnn_forward.6} parent=39 // pred_check
              _
            $region46: #{extra_cnn_forward.6} parent=39 // pred_check_branch
              %1550 = sbr.rel (0) target = $region48
            $region47: #{extra_cnn_forward.6} parent=39 // pred_region
              %s1552 = ssub.s32 16, 1
              %s1553 = sdiv.u32.pop %s1539, 5
              %s1554 = srem.u32.pop %s1539, 5
              // While loop
              $region49: #{extra_cnn_forward.6} parent=47 // loop_pre_header
                _
              $region50: #{extra_cnn_forward.6} parent=47 // loop_header
                %s1556 = sphi 0, %s1558
                %p1557 = scmp.ge.s32.totalorder %s1556, %s1553
                %s1561 = sphi 0, %s1576
                %s1562 = sphi %s1532, %s1579
                %s1563 = sphi %s1543, %s1580
              $region51: #{extra_cnn_forward.6} parent=47 // loop_header_branch
                %1560 = sbr.rel (%p1557) target = $region55
              $region52: #{extra_cnn_forward.6} parent=47 // loop_body
                %v1564 = vld [vmem:[%s1562] sm:%s1552]
                %1565 = vst [vmem:[%s1563] sm:%s1552] %v1564
                %v1566 = vld [vmem:[%s1562 + $0x4] sm:%s1552]
                %1567 = vst [vmem:[%s1563 + $0x4] sm:%s1552] %v1566
                %v1568 = vld [vmem:[%s1562 + $0x8] sm:%s1552]
                %1569 = vst [vmem:[%s1563 + $0x8] sm:%s1552] %v1568
                %v1570 = vld [vmem:[%s1562 + $0xc] sm:%s1552]
                %1571 = vst [vmem:[%s1563 + $0xc] sm:%s1552] %v1570
                %v1572 = vld [vmem:[%s1562 + $0x10] sm:%s1552]
                %1573 = vst [vmem:[%s1563 + $0x10] sm:%s1552] %v1572
                %s1574 = sadd.s32 1, %s1561
                %p1575 = scmp.ge.s32.totalorder %s1574, %s1553
                %s1576 = scalar_select %p1575, 0, %s1574
                %s1577 = smul.u32 %s1576, 20
                %s1578 = smul.u32 %s1576, 20
                %s1579 = scalar_lea.vmem %s1532, %s1577 [#allocation2]
                %s1580 = scalar_lea.vmem %s1543, %s1578
              $region53: #{extra_cnn_forward.6} parent=47 // loop_footer
                %s1558 = sadd.s32 %s1556, 1
              $region54: #{extra_cnn_forward.6} parent=47 // loop_footer_branch
                %1555 = sbr.rel target = $region50
              $region55: #{extra_cnn_forward.6} parent=47 // loop_exit
                _
              %s1581 = sdiv.u32.pop %s1539, 5
              %s1582 = srem.u32.pop %s1539, 5
              %s1583 = smul.u32 %s1581, 5
              %s1584 = smul.u32 4, %s1583
              %s1585 = scalar_lea.vmem %s1532, %s1584 [#allocation2]
              %s1586 = smul.u32 4, %s1583
              %s1587 = scalar_lea.vmem %s1543, %s1586
              // While loop
              $region56: #{extra_cnn_forward.6} parent=47 // loop_pre_header
                _
              $region57: #{extra_cnn_forward.6} parent=47 // loop_header
                %s1589 = sphi 0, %s1591
                %p1590 = scmp.ge.s32.totalorder %s1589, %s1582
                %s1594 = sphi 0, %s1601
                %s1595 = sphi %s1585, %s1604
                %s1596 = sphi %s1587, %s1605
              $region58: #{extra_cnn_forward.6} parent=47 // loop_header_branch
                %1593 = sbr.rel (%p1590) target = $region62
              $region59: #{extra_cnn_forward.6} parent=47 // loop_body
                %v1597 = vld [vmem:[%s1595] sm:%s1552]
                %1598 = vst [vmem:[%s1596] sm:%s1552] %v1597
                %s1599 = sadd.s32 1, %s1594
                %p1600 = scmp.ge.s32.totalorder %s1599, %s1582
                %s1601 = scalar_select %p1600, 0, %s1599
                %s1602 = smul.u32 %s1601, 4
                %s1603 = smul.u32 %s1601, 4
                %s1604 = scalar_lea.vmem %s1585, %s1602 [#allocation2]
                %s1605 = scalar_lea.vmem %s1587, %s1603
              $region60: #{extra_cnn_forward.6} parent=47 // loop_footer
                %s1591 = sadd.s32 %s1589, 1
              $region61: #{extra_cnn_forward.6} parent=47 // loop_footer_branch
                %1588 = sbr.rel target = $region57
              $region62: #{extra_cnn_forward.6} parent=47 // loop_exit
                _
            $region48: #{extra_cnn_forward.6} parent=39 // pred_fallthru
              _
          $region40: #{extra_cnn_forward.6} parent=35 // pred_fallthru
            _
          %1663 = vnop
        $region36: #{extra_cnn_forward.6} parent=31 // pred_fallthru
          _
      $region32: #{extra_cnn_forward.6} parent=5 // pred_fallthru
        _
      %p1664 = scmp.le.s32.totalorder 2, %s9
      // Predicated region
      $region81: #{extra_cnn_forward.6} parent=5 // pred_check
        %p1665 = pneg %p1664
      $region82: #{extra_cnn_forward.6} parent=5 // pred_check_branch
        %1667 = sbr.rel (%p1665) target = $region84
      $region83: #{extra_cnn_forward.6} parent=5 // pred_region
        %s1668 = ssub.s32 %s9, 2
        // Predicated region
        $region85: #{extra_cnn_forward.6} parent=83 // pred_check
          %p1669 = pneg %p106
        $region86: #{extra_cnn_forward.6} parent=83 // pred_check_branch
          %1671 = sbr.rel (%p1669) target = $region88
        $region87: #{extra_cnn_forward.6} parent=83 // pred_region
          %s1672 = sand.u32 %s91, 1
          %s1673 = sand.u32 %s91, 1
          %s1674 = smul.addr %s1673, 20
          %s1675 = scalar_lea.vmem [#allocation2], %s1674
        $region88: #{extra_cnn_forward.6} parent=83 // pred_fallthru
          _
      $region84: #{extra_cnn_forward.6} parent=5 // pred_fallthru
        _
    $region6: #{extra_cnn_forward.6} parent=1 // loop_footer
      %s13 = sadd.s32 1, %s9
    $region7: #{extra_cnn_forward.6} parent=1 // loop_footer_branch
      %8 = sbr.rel target = $region3
    $region8: #{extra_cnn_forward.6} parent=1 // loop_exit
      _

// kernel: extra_cnn_forward.7
$region0: #{extra_cnn_forward.7}
  #allocation0 [shape = 'u32[]', space=smem, size = 0x4, offset = 0x4, fixed_abs, tag = 'smem constant byte address 0x4 - core index']
  #allocation1 [shape = 'u32[144,128]{1,0:T(1,128)}', space=vmem, size = 0x12000, scoped, tag = 'internal scratch']
  %s0 = inlined_call_operand.vmem [shape: bf16[2,2880], index: 0, kind: input, shape index: {}]
  %s1 = inlined_call_operand.vmem [shape: bf16[2880,256], index: 1, kind: input, shape index: {}]
  %s2 = inlined_call_operand.vmem [shape: f32[1,256], index: 2, kind: input, shape index: {}]
  %s3 = inlined_call_operand.vmem [shape: bf16[256,128], index: 3, kind: input, shape index: {}]
  %s4 = inlined_call_operand.vmem [shape: f32[1,128], index: 4, kind: input, shape index: {}]
  %s5 = inlined_call_operand.hbm [shape: f32[2,128], index: 5, kind: output, shape index: {}]
  %s6 = sld [smem:[#allocation0]]
  $region30: #{extra_cnn_forward.7} parent=0
    _
  %s8 = ssub.s32 1, %s6
  %s9 = scalar_select 0, %s8, %s6
  $region1: #{extra_cnn_forward.7} parent=0
    #allocation2 [shape = 'u8[1024]{0}', space=vmem, size = 0x400, scoped, tag = 'output window, operand 0, single buffered']
    #allocation3 [shape = 's32[1]{0}', space=sflag, size = 0x4, scoped, tag = 'scoped memory for extra_cnn_forward.7']
    %10 = vsyncpa [#allocation3], 0
    // Predicated region
    $region2: #{extra_cnn_forward.7} parent=1 // pred_check
      _
    $region3: #{extra_cnn_forward.7} parent=1 // pred_check_branch
      %12 = sbr.rel (0) target = $region5
    $region4: #{extra_cnn_forward.7} parent=1 // pred_region
      _
    $region5: #{extra_cnn_forward.7} parent=1 // pred_fallthru
      _
    // Predicated region
    $region6: #{extra_cnn_forward.7} parent=1 // pred_check
      _
    $region7: #{extra_cnn_forward.7} parent=1 // pred_check_branch
      %14 = sbr.rel (0) target = $region9
    $region8: #{extra_cnn_forward.7} parent=1 // pred_region
      _
    $region9: #{extra_cnn_forward.7} parent=1 // pred_fallthru
      _
    // Predicated region
    $region10: #{extra_cnn_forward.7} parent=1 // pred_check
      _
    $region11: #{extra_cnn_forward.7} parent=1 // pred_check_branch
      %16 = sbr.rel (0) target = $region13
    $region12: #{extra_cnn_forward.7} parent=1 // pred_region
      _
    $region13: #{extra_cnn_forward.7} parent=1 // pred_fallthru
      _
    // Predicated region
    $region14: #{extra_cnn_forward.7} parent=1 // pred_check
      _
    $region15: #{extra_cnn_forward.7} parent=1 // pred_check_branch
      %18 = sbr.rel (0) target = $region17
    $region16: #{extra_cnn_forward.7} parent=1 // pred_region
      _
    $region17: #{extra_cnn_forward.7} parent=1 // pred_fallthru
      _
    // Predicated region
    $region18: #{extra_cnn_forward.7} parent=1 // pred_check
      _
    $region19: #{extra_cnn_forward.7} parent=1 // pred_check_branch
      %20 = sbr.rel (0) target = $region21
    $region20: #{extra_cnn_forward.7} parent=1 // pred_region
      _
    $region21: #{extra_cnn_forward.7} parent=1 // pred_fallthru
      _
    %v22 = vld [vmem:[%s0] sm:$0xff]
    %v23 = vld [vmem:[%s0 + $0x8] sm:$0xff]
    %v24 = vld [vmem:[%s0 + $0x10] sm:$0x7f]
    %v25 = vld [vmem:[%s1] sm:$0xff]
    %v26 = vld [vmem:[%s1 + $0x8] sm:$0xff]
    %v27 = vld [vmem:[%s1 + $0x10] sm:$0xff]
    %v28 = vld [vmem:[%s1 + $0x18] sm:$0xff]
    %v29 = vld [vmem:[%s1 + $0x20] sm:$0xff]
    %v30 = vld [vmem:[%s1 + $0x28] sm:$0xff]
    %v31 = vld [vmem:[%s1 + $0x30] sm:$0xff]
    %v32 = vld [vmem:[%s1 + $0x38] sm:$0xff]
    %v33 = vld [vmem:[%s1 + $0x40] sm:$0xff]
    %v34 = vld [vmem:[%s1 + $0x48] sm:$0xff]
    %v35 = vld [vmem:[%s1 + $0x50] sm:$0xff]
    %v36 = vld [vmem:[%s1 + $0x58] sm:$0xff]
    %v37 = vld [vmem:[%s1 + $0x60] sm:$0xff]
    %v38 = vld [vmem:[%s1 + $0x68] sm:$0xff]
    %v39 = vld [vmem:[%s1 + $0x70] sm:$0xff]
    %v40 = vld [vmem:[%s1 + $0x78] sm:$0xff]
    %v41 = vld [vmem:[%s1 + $0x80] sm:$0xff]
    %v42 = vld [vmem:[%s1 + $0x88] sm:$0xff]
    %v43 = vld [vmem:[%s1 + $0x90] sm:$0xff]
    %v44 = vld [vmem:[%s1 + $0x98] sm:$0xff]
    %v45 = vld [vmem:[%s1 + $0xa0] sm:$0xff]
    %v46 = vld [vmem:[%s1 + $0xa8] sm:$0xff]
    %v47 = vld [vmem:[%s1 + $0xb0] sm:$0xff]
    %v48 = vld [vmem:[%s1 + $0xb8] sm:$0xff]
    %v49 = vld [vmem:[%s1 + $0xc0] sm:$0xff]
    %v50 = vld [vmem:[%s1 + $0xc8] sm:$0xff]
    %v51 = vld [vmem:[%s1 + $0xd0] sm:$0xff]
    %v52 = vld [vmem:[%s1 + $0xd8] sm:$0xff]
    %v53 = vld [vmem:[%s1 + $0xe0] sm:$0xff]
    %v54 = vld [vmem:[%s1 + $0xe8] sm:$0xff]
    %v55 = vld [vmem:[%s1 + $0xf0] sm:$0xff]
    %v56 = vld [vmem:[%s1 + $0xf8] sm:$0xff]
    %v57 = vld [vmem:[%s1 + $0x100] sm:$0xff]
    %v58 = vld [vmem:[%s1 + $0x108] sm:$0xff]
    %v59 = vld [vmem:[%s1 + $0x110] sm:$0xff]
    %v60 = vld [vmem:[%s1 + $0x118] sm:$0xff]
    %v61 = vld [vmem:[%s1 + $0x120] sm:$0xff]
    %v62 = vld [vmem:[%s1 + $0x128] sm:$0xff]
    %v63 = vld [vmem:[%s1 + $0x130] sm:$0xff]
    %v64 = vld [vmem:[%s1 + $0x138] sm:$0xff]
    %v65 = vld [vmem:[%s1 + $0x140] sm:$0xff]
    %v66 = vld [vmem:[%s1 + $0x148] sm:$0xff]
    %v67 = vld [vmem:[%s1 + $0x150] sm:$0xff]
    %v68 = vld [vmem:[%s1 + $0x158] sm:$0xff]
    %v69 = vld [vmem:[%s1 + $0x160] sm:$0xff]
    %v70 = vld [vmem:[%s1 + $0x168] sm:$0xff]
    %v71 = vld [vmem:[%s1 + $0x170] sm:$0xff]
    %v72 = vld [vmem:[%s1 + $0x178] sm:$0xff]
    %v73 = vld [vmem:[%s1 + $0x180] sm:$0xff]
    %v74 = vld [vmem:[%s1 + $0x188] sm:$0xff]
    %v75 = vld [vmem:[%s1 + $0x190] sm:$0xff]
    %v76 = vld [vmem:[%s1 + $0x198] sm:$0xff]
    %v77 = vld [vmem:[%s1 + $0x1a0] sm:$0xff]
    %v78 = vld [vmem:[%s1 + $0x1a8] sm:$0xff]
    %v79 = vld [vmem:[%s1 + $0x1b0] sm:$0xff]
    %v80 = vld [vmem:[%s1 + $0x1b8] sm:$0xff]
    %v81 = vld [vmem:[%s1 + $0x1c0] sm:$0xff]
    %v82 = vld [vmem:[%s1 + $0x1c8] sm:$0xff]
    %v83 = vld [vmem:[%s1 + $0x1d0] sm:$0xff]
    %v84 = vld [vmem:[%s1 + $0x1d8] sm:$0xff]
    %v85 = vld [vmem:[%s1 + $0x1e0] sm:$0xff]
    %v86 = vld [vmem:[%s1 + $0x1e8] sm:$0xff]
    %v87 = vld [vmem:[%s1 + $0x1f0] sm:$0xff]
    %v88 = vld [vmem:[%s1 + $0x1f8] sm:$0xff]
    %v89 = vld [vmem:[%s1 + $0x200] sm:$0xff]
    %v90 = vld [vmem:[%s1 + $0x208] sm:$0xff]
    %v91 = vld [vmem:[%s1 + $0x210] sm:$0xff]
    %v92 = vld [vmem:[%s1 + $0x218] sm:$0xff]
    %v93 = vld [vmem:[%s1 + $0x220] sm:$0xff]
    %v94 = vld [vmem:[%s1 + $0x228] sm:$0xff]
    %v95 = vld [vmem:[%s1 + $0x230] sm:$0xff]
    %v96 = vld [vmem:[%s1 + $0x238] sm:$0xff]
    %v97 = vld [vmem:[%s1 + $0x240] sm:$0xff]
    %v98 = vld [vmem:[%s1 + $0x248] sm:$0xff]
    %v99 = vld [vmem:[%s1 + $0x250] sm:$0xff]
    %v100 = vld [vmem:[%s1 + $0x258] sm:$0xff]
    %v101 = vld [vmem:[%s1 + $0x260] sm:$0xff]
    %v102 = vld [vmem:[%s1 + $0x268] sm:$0xff]
    %v103 = vld [vmem:[%s1 + $0x270] sm:$0xff]
    %v104 = vld [vmem:[%s1 + $0x278] sm:$0xff]
    %v105 = vld [vmem:[%s1 + $0x280] sm:$0xff]
    %v106 = vld [vmem:[%s1 + $0x288] sm:$0xff]
    %v107 = vld [vmem:[%s1 + $0x290] sm:$0xff]
    %v108 = vld [vmem:[%s1 + $0x298] sm:$0xff]
    %v109 = vld [vmem:[%s1 + $0x2a0] sm:$0xff]
    %v110 = vld [vmem:[%s1 + $0x2a8] sm:$0xff]
    %v111 = vld [vmem:[%s1 + $0x2b0] sm:$0xff]
    %v112 = vld [vmem:[%s1 + $0x2b8] sm:$0xff]
    %v113 = vld [vmem:[%s1 + $0x2c0] sm:$0xff]
    %v114 = vld [vmem:[%s1 + $0x2c8] sm:$0xff]
    %v115 = vld [vmem:[%s1 + $0x2d0] sm:$0xff]
    %v116 = vld [vmem:[%s1 + $0x2d8] sm:$0xff]
    %v117 = vld [vmem:[%s1 + $0x2e0] sm:$0xff]
    %v118 = vld [vmem:[%s1 + $0x2e8] sm:$0xff]
    %v119 = vld [vmem:[%s1 + $0x2f0] sm:$0xff]
    %v120 = vld [vmem:[%s1 + $0x2f8] sm:$0xff]
    %v121 = vld [vmem:[%s1 + $0x300] sm:$0xff]
    %v122 = vld [vmem:[%s1 + $0x308] sm:$0xff]
    %v123 = vld [vmem:[%s1 + $0x310] sm:$0xff]
    %v124 = vld [vmem:[%s1 + $0x318] sm:$0xff]
    %v125 = vld [vmem:[%s1 + $0x320] sm:$0xff]
    %v126 = vld [vmem:[%s1 + $0x328] sm:$0xff]
    %v127 = vld [vmem:[%s1 + $0x330] sm:$0xff]
    %v128 = vld [vmem:[%s1 + $0x338] sm:$0xff]
    %v129 = vld [vmem:[%s1 + $0x340] sm:$0xff]
    %v130 = vld [vmem:[%s1 + $0x348] sm:$0xff]
    %v131 = vld [vmem:[%s1 + $0x350] sm:$0xff]
    %v132 = vld [vmem:[%s1 + $0x358] sm:$0xff]
    %v133 = vld [vmem:[%s1 + $0x360] sm:$0xff]
    %v134 = vld [vmem:[%s1 + $0x368] sm:$0xff]
    %v135 = vld [vmem:[%s1 + $0x370] sm:$0xff]
    %v136 = vld [vmem:[%s1 + $0x378] sm:$0xff]
    %v137 = vld [vmem:[%s1 + $0x380] sm:$0xff]
    %v138 = vld [vmem:[%s1 + $0x388] sm:$0xff]
    %v139 = vld [vmem:[%s1 + $0x390] sm:$0xff]
    %v140 = vld [vmem:[%s1 + $0x398] sm:$0xff]
    %v141 = vld [vmem:[%s1 + $0x3a0] sm:$0xff]
    %v142 = vld [vmem:[%s1 + $0x3a8] sm:$0xff]
    %v143 = vld [vmem:[%s1 + $0x3b0] sm:$0xff]
    %v144 = vld [vmem:[%s1 + $0x3b8] sm:$0xff]
    %v145 = vld [vmem:[%s1 + $0x3c0] sm:$0xff]
    %v146 = vld [vmem:[%s1 + $0x3c8] sm:$0xff]
    %v147 = vld [vmem:[%s1 + $0x3d0] sm:$0xff]
    %v148 = vld [vmem:[%s1 + $0x3d8] sm:$0xff]
    %v149 = vld [vmem:[%s1 + $0x3e0] sm:$0xff]
    %v150 = vld [vmem:[%s1 + $0x3e8] sm:$0xff]
    %v151 = vld [vmem:[%s1 + $0x3f0] sm:$0xff]
    %v152 = vld [vmem:[%s1 + $0x3f8] sm:$0xff]
    %v153 = vld [vmem:[%s1 + $0x400] sm:$0xff]
    %v154 = vld [vmem:[%s1 + $0x408] sm:$0xff]
    %v155 = vld [vmem:[%s1 + $0x410] sm:$0xff]
    %v156 = vld [vmem:[%s1 + $0x418] sm:$0xff]
    %v157 = vld [vmem:[%s1 + $0x420] sm:$0xff]
    %v158 = vld [vmem:[%s1 + $0x428] sm:$0xff]
    %v159 = vld [vmem:[%s1 + $0x430] sm:$0xff]
    %v160 = vld [vmem:[%s1 + $0x438] sm:$0xff]
    %v161 = vld [vmem:[%s1 + $0x440] sm:$0xff]
    %v162 = vld [vmem:[%s1 + $0x448] sm:$0xff]
    %v163 = vld [vmem:[%s1 + $0x450] sm:$0xff]
    %v164 = vld [vmem:[%s1 + $0x458] sm:$0xff]
    %v165 = vld [vmem:[%s1 + $0x460] sm:$0xff]
    %v166 = vld [vmem:[%s1 + $0x468] sm:$0xff]
    %v167 = vld [vmem:[%s1 + $0x470] sm:$0xff]
    %v168 = vld [vmem:[%s1 + $0x478] sm:$0xff]
    %v169 = vld [vmem:[%s1 + $0x480] sm:$0xff]
    %v170 = vld [vmem:[%s1 + $0x488] sm:$0xff]
    %v171 = vld [vmem:[%s1 + $0x490] sm:$0xff]
    %v172 = vld [vmem:[%s1 + $0x498] sm:$0xff]
    %v173 = vld [vmem:[%s1 + $0x4a0] sm:$0xff]
    %v174 = vld [vmem:[%s1 + $0x4a8] sm:$0xff]
    %v175 = vld [vmem:[%s1 + $0x4b0] sm:$0xff]
    %v176 = vld [vmem:[%s1 + $0x4b8] sm:$0xff]
    %v177 = vld [vmem:[%s1 + $0x4c0] sm:$0xff]
    %v178 = vld [vmem:[%s1 + $0x4c8] sm:$0xff]
    %v179 = vld [vmem:[%s1 + $0x4d0] sm:$0xff]
    %v180 = vld [vmem:[%s1 + $0x4d8] sm:$0xff]
    %v181 = vld [vmem:[%s1 + $0x4e0] sm:$0xff]
    %v182 = vld [vmem:[%s1 + $0x4e8] sm:$0xff]
    %v183 = vld [vmem:[%s1 + $0x4f0] sm:$0xff]
    %v184 = vld [vmem:[%s1 + $0x4f8] sm:$0xff]
    %v185 = vld [vmem:[%s1 + $0x500] sm:$0xff]
    %v186 = vld [vmem:[%s1 + $0x508] sm:$0xff]
    %v187 = vld [vmem:[%s1 + $0x510] sm:$0xff]
    %v188 = vld [vmem:[%s1 + $0x518] sm:$0xff]
    %v189 = vld [vmem:[%s1 + $0x520] sm:$0xff]
    %v190 = vld [vmem:[%s1 + $0x528] sm:$0xff]
    %v191 = vld [vmem:[%s1 + $0x530] sm:$0xff]
    %v192 = vld [vmem:[%s1 + $0x538] sm:$0xff]
    %v193 = vld [vmem:[%s1 + $0x540] sm:$0xff]
    %v194 = vld [vmem:[%s1 + $0x548] sm:$0xff]
    %v195 = vld [vmem:[%s1 + $0x550] sm:$0xff]
    %v196 = vld [vmem:[%s1 + $0x558] sm:$0xff]
    %v197 = vld [vmem:[%s1 + $0x560] sm:$0xff]
    %v198 = vld [vmem:[%s1 + $0x568] sm:$0xff]
    %v199 = vld [vmem:[%s1 + $0x570] sm:$0xff]
    %v200 = vld [vmem:[%s1 + $0x578] sm:$0xff]
    %v201 = vld [vmem:[%s1 + $0x580] sm:$0xff]
    %v202 = vld [vmem:[%s1 + $0x588] sm:$0xff]
    %v203 = vld [vmem:[%s1 + $0x590] sm:$0xff]
    %v204 = vld [vmem:[%s1 + $0x598] sm:$0xff]
    %v205 = vld [vmem:[%s1 + $0x5a0] sm:$0xff]
    %v206 = vld [vmem:[%s1 + $0x5a8] sm:$0xff]
    %v207 = vld [vmem:[%s1 + $0x5b0] sm:$0xff]
    %v208 = vld [vmem:[%s1 + $0x5b8] sm:$0xff]
    %v209 = vld [vmem:[%s1 + $0x5c0] sm:$0xff]
    %v210 = vld [vmem:[%s1 + $0x5c8] sm:$0xff]
    %v211 = vld [vmem:[%s1 + $0x5d0] sm:$0xff]
    %v212 = vld [vmem:[%s1 + $0x5d8] sm:$0xff]
    %v213 = vld [vmem:[%s1 + $0x5e0] sm:$0xff]
    %v214 = vld [vmem:[%s1 + $0x5e8] sm:$0xff]
    %v215 = vld [vmem:[%s1 + $0x5f0] sm:$0xff]
    %v216 = vld [vmem:[%s1 + $0x5f8] sm:$0xff]
    %v217 = vld [vmem:[%s1 + $0x600] sm:$0xff]
    %v218 = vld [vmem:[%s1 + $0x608] sm:$0xff]
    %v219 = vld [vmem:[%s1 + $0x610] sm:$0xff]
    %v220 = vld [vmem:[%s1 + $0x618] sm:$0xff]
    %v221 = vld [vmem:[%s1 + $0x620] sm:$0xff]
    %v222 = vld [vmem:[%s1 + $0x628] sm:$0xff]
    %v223 = vld [vmem:[%s1 + $0x630] sm:$0xff]
    %v224 = vld [vmem:[%s1 + $0x638] sm:$0xff]
    %v225 = vld [vmem:[%s1 + $0x640] sm:$0xff]
    %v226 = vld [vmem:[%s1 + $0x648] sm:$0xff]
    %v227 = vld [vmem:[%s1 + $0x650] sm:$0xff]
    %v228 = vld [vmem:[%s1 + $0x658] sm:$0xff]
    %v229 = vld [vmem:[%s1 + $0x660] sm:$0xff]
    %v230 = vld [vmem:[%s1 + $0x668] sm:$0xff]
    %v231 = vld [vmem:[%s1 + $0x670] sm:$0xff]
    %v232 = vld [vmem:[%s1 + $0x678] sm:$0xff]
    %v233 = vld [vmem:[%s1 + $0x680] sm:$0xff]
    %v234 = vld [vmem:[%s1 + $0x688] sm:$0xff]
    %v235 = vld [vmem:[%s1 + $0x690] sm:$0xff]
    %v236 = vld [vmem:[%s1 + $0x698] sm:$0xff]
    %v237 = vld [vmem:[%s1 + $0x6a0] sm:$0xff]
    %v238 = vld [vmem:[%s1 + $0x6a8] sm:$0xff]
    %v239 = vld [vmem:[%s1 + $0x6b0] sm:$0xff]
    %v240 = vld [vmem:[%s1 + $0x6b8] sm:$0xff]
    %v241 = vld [vmem:[%s1 + $0x6c0] sm:$0xff]
    %v242 = vld [vmem:[%s1 + $0x6c8] sm:$0xff]
    %v243 = vld [vmem:[%s1 + $0x6d0] sm:$0xff]
    %v244 = vld [vmem:[%s1 + $0x6d8] sm:$0xff]
    %v245 = vld [vmem:[%s1 + $0x6e0] sm:$0xff]
    %v246 = vld [vmem:[%s1 + $0x6e8] sm:$0xff]
    %v247 = vld [vmem:[%s1 + $0x6f0] sm:$0xff]
    %v248 = vld [vmem:[%s1 + $0x6f8] sm:$0xff]
    %v249 = vld [vmem:[%s1 + $0x700] sm:$0xff]
    %v250 = vld [vmem:[%s1 + $0x708] sm:$0xff]
    %v251 = vld [vmem:[%s1 + $0x710] sm:$0xff]
    %v252 = vld [vmem:[%s1 + $0x718] sm:$0xff]
    %v253 = vld [vmem:[%s1 + $0x720] sm:$0xff]
    %v254 = vld [vmem:[%s1 + $0x728] sm:$0xff]
    %v255 = vld [vmem:[%s1 + $0x730] sm:$0xff]
    %v256 = vld [vmem:[%s1 + $0x738] sm:$0xff]
    %v257 = vld [vmem:[%s1 + $0x740] sm:$0xff]
    %v258 = vld [vmem:[%s1 + $0x748] sm:$0xff]
    %v259 = vld [vmem:[%s1 + $0x750] sm:$0xff]
    %v260 = vld [vmem:[%s1 + $0x758] sm:$0xff]
    %v261 = vld [vmem:[%s1 + $0x760] sm:$0xff]
    %v262 = vld [vmem:[%s1 + $0x768] sm:$0xff]
    %v263 = vld [vmem:[%s1 + $0x770] sm:$0xff]
    %v264 = vld [vmem:[%s1 + $0x778] sm:$0xff]
    %v265 = vld [vmem:[%s1 + $0x780] sm:$0xff]
    %v266 = vld [vmem:[%s1 + $0x788] sm:$0xff]
    %v267 = vld [vmem:[%s1 + $0x790] sm:$0xff]
    %v268 = vld [vmem:[%s1 + $0x798] sm:$0xff]
    %v269 = vld [vmem:[%s1 + $0x7a0] sm:$0xff]
    %v270 = vld [vmem:[%s1 + $0x7a8] sm:$0xff]
    %v271 = vld [vmem:[%s1 + $0x7b0] sm:$0xff]
    %v272 = vld [vmem:[%s1 + $0x7b8] sm:$0xff]
    %v273 = vld [vmem:[%s1 + $0x7c0] sm:$0xff]
    %v274 = vld [vmem:[%s1 + $0x7c8] sm:$0xff]
    %v275 = vld [vmem:[%s1 + $0x7d0] sm:$0xff]
    %v276 = vld [vmem:[%s1 + $0x7d8] sm:$0xff]
    %v277 = vld [vmem:[%s1 + $0x7e0] sm:$0xff]
    %v278 = vld [vmem:[%s1 + $0x7e8] sm:$0xff]
    %v279 = vld [vmem:[%s1 + $0x7f0] sm:$0xff]
    %v280 = vld [vmem:[%s1 + $0x7f8] sm:$0xff]
    %v281 = vld [vmem:[%s1 + $0x800] sm:$0xff]
    %v282 = vld [vmem:[%s1 + $0x808] sm:$0xff]
    %v283 = vld [vmem:[%s1 + $0x810] sm:$0xff]
    %v284 = vld [vmem:[%s1 + $0x818] sm:$0xff]
    %v285 = vld [vmem:[%s1 + $0x820] sm:$0xff]
    %v286 = vld [vmem:[%s1 + $0x828] sm:$0xff]
    %v287 = vld [vmem:[%s1 + $0x830] sm:$0xff]
    %v288 = vld [vmem:[%s1 + $0x838] sm:$0xff]
    %v289 = vld [vmem:[%s1 + $0x840] sm:$0xff]
    %v290 = vld [vmem:[%s1 + $0x848] sm:$0xff]
    %v291 = vld [vmem:[%s1 + $0x850] sm:$0xff]
    %v292 = vld [vmem:[%s1 + $0x858] sm:$0xff]
    %v293 = vld [vmem:[%s1 + $0x860] sm:$0xff]
    %v294 = vld [vmem:[%s1 + $0x868] sm:$0xff]
    %v295 = vld [vmem:[%s1 + $0x870] sm:$0xff]
    %v296 = vld [vmem:[%s1 + $0x878] sm:$0xff]
    %v297 = vld [vmem:[%s1 + $0x880] sm:$0xff]
    %v298 = vld [vmem:[%s1 + $0x888] sm:$0xff]
    %v299 = vld [vmem:[%s1 + $0x890] sm:$0xff]
    %v300 = vld [vmem:[%s1 + $0x898] sm:$0xff]
    %v301 = vld [vmem:[%s1 + $0x8a0] sm:$0xff]
    %v302 = vld [vmem:[%s1 + $0x8a8] sm:$0xff]
    %v303 = vld [vmem:[%s1 + $0x8b0] sm:$0xff]
    %v304 = vld [vmem:[%s1 + $0x8b8] sm:$0xff]
    %v305 = vld [vmem:[%s1 + $0x8c0] sm:$0xff]
    %v306 = vld [vmem:[%s1 + $0x8c8] sm:$0xff]
    %v307 = vld [vmem:[%s1 + $0x8d0] sm:$0xff]
    %v308 = vld [vmem:[%s1 + $0x8d8] sm:$0xff]
    %v309 = vld [vmem:[%s1 + $0x8e0] sm:$0xff]
    %v310 = vld [vmem:[%s1 + $0x8e8] sm:$0xff]
    %v311 = vld [vmem:[%s1 + $0x8f0] sm:$0xff]
    %v312 = vld [vmem:[%s1 + $0x8f8] sm:$0xff]
    %v313 = vld [vmem:[%s1 + $0x900] sm:$0xff]
    %v314 = vld [vmem:[%s1 + $0x908] sm:$0xff]
    %v315 = vld [vmem:[%s1 + $0x910] sm:$0xff]
    %v316 = vld [vmem:[%s1 + $0x918] sm:$0xff]
    %v317 = vld [vmem:[%s1 + $0x920] sm:$0xff]
    %v318 = vld [vmem:[%s1 + $0x928] sm:$0xff]
    %v319 = vld [vmem:[%s1 + $0x930] sm:$0xff]
    %v320 = vld [vmem:[%s1 + $0x938] sm:$0xff]
    %v321 = vld [vmem:[%s1 + $0x940] sm:$0xff]
    %v322 = vld [vmem:[%s1 + $0x948] sm:$0xff]
    %v323 = vld [vmem:[%s1 + $0x950] sm:$0xff]
    %v324 = vld [vmem:[%s1 + $0x958] sm:$0xff]
    %v325 = vld [vmem:[%s1 + $0x960] sm:$0xff]
    %v326 = vld [vmem:[%s1 + $0x968] sm:$0xff]
    %v327 = vld [vmem:[%s1 + $0x970] sm:$0xff]
    %v328 = vld [vmem:[%s1 + $0x978] sm:$0xff]
    %v329 = vld [vmem:[%s1 + $0x980] sm:$0xff]
    %v330 = vld [vmem:[%s1 + $0x988] sm:$0xff]
    %v331 = vld [vmem:[%s1 + $0x990] sm:$0xff]
    %v332 = vld [vmem:[%s1 + $0x998] sm:$0xff]
    %v333 = vld [vmem:[%s1 + $0x9a0] sm:$0xff]
    %v334 = vld [vmem:[%s1 + $0x9a8] sm:$0xff]
    %v335 = vld [vmem:[%s1 + $0x9b0] sm:$0xff]
    %v336 = vld [vmem:[%s1 + $0x9b8] sm:$0xff]
    %v337 = vld [vmem:[%s1 + $0x9c0] sm:$0xff]
    %v338 = vld [vmem:[%s1 + $0x9c8] sm:$0xff]
    %v339 = vld [vmem:[%s1 + $0x9d0] sm:$0xff]
    %v340 = vld [vmem:[%s1 + $0x9d8] sm:$0xff]
    %v341 = vld [vmem:[%s1 + $0x9e0] sm:$0xff]
    %v342 = vld [vmem:[%s1 + $0x9e8] sm:$0xff]
    %v343 = vld [vmem:[%s1 + $0x9f0] sm:$0xff]
    %v344 = vld [vmem:[%s1 + $0x9f8] sm:$0xff]
    %v345 = vld [vmem:[%s1 + $0xa00] sm:$0xff]
    %v346 = vld [vmem:[%s1 + $0xa08] sm:$0xff]
    %v347 = vld [vmem:[%s1 + $0xa10] sm:$0xff]
    %v348 = vld [vmem:[%s1 + $0xa18] sm:$0xff]
    %v349 = vld [vmem:[%s1 + $0xa20] sm:$0xff]
    %v350 = vld [vmem:[%s1 + $0xa28] sm:$0xff]
    %v351 = vld [vmem:[%s1 + $0xa30] sm:$0xff]
    %v352 = vld [vmem:[%s1 + $0xa38] sm:$0xff]
    %v353 = vld [vmem:[%s1 + $0xa40] sm:$0xff]
    %v354 = vld [vmem:[%s1 + $0xa48] sm:$0xff]
    %v355 = vld [vmem:[%s1 + $0xa50] sm:$0xff]
    %v356 = vld [vmem:[%s1 + $0xa58] sm:$0xff]
    %v357 = vld [vmem:[%s1 + $0xa60] sm:$0xff]
    %v358 = vld [vmem:[%s1 + $0xa68] sm:$0xff]
    %v359 = vld [vmem:[%s1 + $0xa70] sm:$0xff]
    %v360 = vld [vmem:[%s1 + $0xa78] sm:$0xff]
    %v361 = vld [vmem:[%s1 + $0xa80] sm:$0xff]
    %v362 = vld [vmem:[%s1 + $0xa88] sm:$0xff]
    %v363 = vld [vmem:[%s1 + $0xa90] sm:$0xff]
    %v364 = vld [vmem:[%s1 + $0xa98] sm:$0xff]
    %v365 = vld [vmem:[%s1 + $0xaa0] sm:$0xff]
    %v366 = vld [vmem:[%s1 + $0xaa8] sm:$0xff]
    %v367 = vld [vmem:[%s1 + $0xab0] sm:$0xff]
    %v368 = vld [vmem:[%s1 + $0xab8] sm:$0xff]
    %v369 = vld [vmem:[%s1 + $0xac0] sm:$0xff]
    %v370 = vld [vmem:[%s1 + $0xac8] sm:$0xff]
    %v371 = vld [vmem:[%s1 + $0xad0] sm:$0xff]
    %v372 = vld [vmem:[%s1 + $0xad8] sm:$0xff]
    %v373 = vld [vmem:[%s1 + $0xae0] sm:$0xff]
    %v374 = vld [vmem:[%s1 + $0xae8] sm:$0xff]
    %v375 = vld [vmem:[%s1 + $0xaf0] sm:$0xff]
    %v376 = vld [vmem:[%s1 + $0xaf8] sm:$0xff]
    %v377 = vld [vmem:[%s1 + $0xb00] sm:$0xff]
    %v378 = vld [vmem:[%s1 + $0xb08] sm:$0xff]
    %v379 = vld [vmem:[%s1 + $0xb10] sm:$0xff]
    %v380 = vld [vmem:[%s1 + $0xb18] sm:$0xff]
    %v381 = vld [vmem:[%s1 + $0xb20] sm:$0xff]
    %v382 = vld [vmem:[%s1 + $0xb28] sm:$0xff]
    %v383 = vld [vmem:[%s1 + $0xb30] sm:$0xff]
    %v384 = vld [vmem:[%s1 + $0xb38] sm:$0xff]
    %v385 = vld [vmem:[%s2] sm:$0x3]
    %v387 = vlaneseq
    %v388 = vshrl.u32 %v387, 7
    %v389 = vsub.s32 0, %v388
    %v390 = vrot.slane %v385, %v389
    %v391 = vlaneseq
    %v392 = vshrl.u32 %v391, 7
    %v393 = vsub.s32 1, %v392
    %v394 = vrot.slane %v385, %v393
    %v400 = vcombine.high %v22, %v22
    %v402 = vunpack.c.l.s4 1966171168
    %v403 = vunpack.c.0.s8 %v402
    %v404 = vlaneseq
    %v405 = vshrl.u32 %v404, 7
    %v406 = vsub.s32 %v403, %v405
    %v407 = vrot.slane %v22, %v406
    %v409 = vunpack.c.l.s4 1966171168
    %v410 = vunpack.c.0.s8 %v409
    %v411 = vlaneseq
    %v412 = vshrl.u32 %v411, 7
    %v413 = vsub.s32 %v410, %v412
    %v414 = vrot.slane %v400, %v413
    %v415 = vcombine.high %v407, %v407
    %v416 = vcombine.high %v414, %v414
    %v418 = vunpack.c.l.s4 1966171168
    %v419 = vunpack.c.0.s8 %v418
    %v420 = vlaneseq
    %v421 = vshrl.u32 %v420, 7
    %v422 = vsub.s32 %v419, %v421
    %v423 = vrot.slane %v407, %v422
    %v425 = vunpack.c.l.s4 1966171168
    %v426 = vunpack.c.0.s8 %v425
    %v427 = vlaneseq
    %v428 = vshrl.u32 %v427, 7
    %v429 = vsub.s32 %v426, %v428
    %v430 = vrot.slane %v414, %v429
    %v432 = vunpack.c.l.s4 1966171168
    %v433 = vunpack.c.0.s8 %v432
    %v434 = vlaneseq
    %v435 = vshrl.u32 %v434, 7
    %v436 = vsub.s32 %v433, %v435
    %v437 = vrot.slane %v415, %v436
    %v439 = vunpack.c.l.s4 1966171168
    %v440 = vunpack.c.0.s8 %v439
    %v441 = vlaneseq
    %v442 = vshrl.u32 %v441, 7
    %v443 = vsub.s32 %v440, %v442
    %v444 = vrot.slane %v416, %v443
    %v445 = vcombine.high %v423, %v423
    %v446 = vcombine.high %v430, %v430
    %v447 = vcombine.high %v437, %v437
    %v448 = vcombine.high %v444, %v444
    %v449 = vcombine.high %v23, %v23
    %v451 = vunpack.c.l.s4 1966171168
    %v452 = vunpack.c.0.s8 %v451
    %v453 = vlaneseq
    %v454 = vshrl.u32 %v453, 7
    %v455 = vsub.s32 %v452, %v454
    %v456 = vrot.slane %v23, %v455
    %v458 = vunpack.c.l.s4 1966171168
    %v459 = vunpack.c.0.s8 %v458
    %v460 = vlaneseq
    %v461 = vshrl.u32 %v460, 7
    %v462 = vsub.s32 %v459, %v461
    %v463 = vrot.slane %v449, %v462
    %v464 = vcombine.high %v456, %v456
    %v465 = vcombine.high %v463, %v463
    %v467 = vunpack.c.l.s4 1966171168
    %v468 = vunpack.c.0.s8 %v467
    %v469 = vlaneseq
    %v470 = vshrl.u32 %v469, 7
    %v471 = vsub.s32 %v468, %v470
    %v472 = vrot.slane %v456, %v471
    %v474 = vunpack.c.l.s4 1966171168
    %v475 = vunpack.c.0.s8 %v474
    %v476 = vlaneseq
    %v477 = vshrl.u32 %v476, 7
    %v478 = vsub.s32 %v475, %v477
    %v479 = vrot.slane %v463, %v478
    %v481 = vunpack.c.l.s4 1966171168
    %v482 = vunpack.c.0.s8 %v481
    %v483 = vlaneseq
    %v484 = vshrl.u32 %v483, 7
    %v485 = vsub.s32 %v482, %v484
    %v486 = vrot.slane %v464, %v485
    %v488 = vunpack.c.l.s4 1966171168
    %v489 = vunpack.c.0.s8 %v488
    %v490 = vlaneseq
    %v491 = vshrl.u32 %v490, 7
    %v492 = vsub.s32 %v489, %v491
    %v493 = vrot.slane %v465, %v492
    %v494 = vcombine.high %v472, %v472
    %v495 = vcombine.high %v479, %v479
    %v496 = vcombine.high %v486, %v486
    %v497 = vcombine.high %v493, %v493
    %v498 = vcombine.high %v24, %v24
    %v500 = vunpack.c.l.s4 1966171168
    %v501 = vunpack.c.0.s8 %v500
    %v502 = vlaneseq
    %v503 = vshrl.u32 %v502, 7
    %v504 = vsub.s32 %v501, %v503
    %v505 = vrot.slane %v24, %v504
    %v507 = vunpack.c.l.s4 1966171168
    %v508 = vunpack.c.0.s8 %v507
    %v509 = vlaneseq
    %v510 = vshrl.u32 %v509, 7
    %v511 = vsub.s32 %v508, %v510
    %v512 = vrot.slane %v498, %v511
    %v513 = vcombine.high %v505, %v505
    %v514 = vcombine.high %v512, %v512
    %v516 = vunpack.c.l.s4 1966171168
    %v517 = vunpack.c.0.s8 %v516
    %v518 = vlaneseq
    %v519 = vshrl.u32 %v518, 7
    %v520 = vsub.s32 %v517, %v519
    %v521 = vrot.slane %v505, %v520
    %v523 = vunpack.c.l.s4 1966171168
    %v524 = vunpack.c.0.s8 %v523
    %v525 = vlaneseq
    %v526 = vshrl.u32 %v525, 7
    %v527 = vsub.s32 %v524, %v526
    %v528 = vrot.slane %v512, %v527
    %v530 = vunpack.c.l.s4 1966171168
    %v531 = vunpack.c.0.s8 %v530
    %v532 = vlaneseq
    %v533 = vshrl.u32 %v532, 7
    %v534 = vsub.s32 %v531, %v533
    %v535 = vrot.slane %v513, %v534
    %v537 = vunpack.c.l.s4 1966171168
    %v538 = vunpack.c.0.s8 %v537
    %v539 = vlaneseq
    %v540 = vshrl.u32 %v539, 7
    %v541 = vsub.s32 %v538, %v540
    %v542 = vrot.slane %v514, %v541
    %v543 = vcombine.high %v521, %v521
    %v544 = vcombine.high %v528, %v528
    %v545 = vcombine.high %v535, %v535
    %v928 = vunpack.c.l.b16 %v25
    %v929 = vunpack.c.h.b16 %v25
    %v930 = vunpack.c.l.b16 %v26
    %v931 = vunpack.c.h.b16 %v26
    %v932 = vunpack.c.l.b16 %v27
    %v933 = vunpack.c.h.b16 %v27
    %v934 = vunpack.c.l.b16 %v28
    %v935 = vunpack.c.h.b16 %v28
    %v936 = vunpack.c.l.b16 %v29
    %v937 = vunpack.c.h.b16 %v29
    %v938 = vunpack.c.l.b16 %v30
    %v939 = vunpack.c.h.b16 %v30
    %v940 = vunpack.c.l.b16 %v31
    %v941 = vunpack.c.h.b16 %v31
    %v942 = vunpack.c.l.b16 %v32
    %v943 = vunpack.c.h.b16 %v32
    %v944 = vunpack.c.l.b16 %v33
    %v945 = vunpack.c.h.b16 %v33
    %v946 = vunpack.c.l.b16 %v34
    %v947 = vunpack.c.h.b16 %v34
    %v948 = vunpack.c.l.b16 %v35
    %v949 = vunpack.c.h.b16 %v35
    %v950 = vunpack.c.l.b16 %v36
    %v951 = vunpack.c.h.b16 %v36
    %v952 = vunpack.c.l.b16 %v37
    %v953 = vunpack.c.h.b16 %v37
    %v954 = vunpack.c.l.b16 %v38
    %v955 = vunpack.c.h.b16 %v38
    %v956 = vunpack.c.l.b16 %v39
    %v957 = vunpack.c.h.b16 %v39
    %v958 = vunpack.c.l.b16 %v40
    %v959 = vunpack.c.h.b16 %v40
    %v960 = vunpack.c.l.b16 %v41
    %v961 = vunpack.c.h.b16 %v41
    %v962 = vunpack.c.l.b16 %v42
    %v963 = vunpack.c.h.b16 %v42
    %v964 = vunpack.c.l.b16 %v43
    %v965 = vunpack.c.h.b16 %v43
    %v966 = vunpack.c.l.b16 %v44
    %v967 = vunpack.c.h.b16 %v44
    %v968 = vunpack.c.l.b16 %v45
    %v969 = vunpack.c.h.b16 %v45
    %v970 = vunpack.c.l.b16 %v46
    %v971 = vunpack.c.h.b16 %v46
    %v972 = vunpack.c.l.b16 %v47
    %v973 = vunpack.c.h.b16 %v47
    %v974 = vunpack.c.l.b16 %v48
    %v975 = vunpack.c.h.b16 %v48
    %v976 = vunpack.c.l.b16 %v49
    %v977 = vunpack.c.h.b16 %v49
    %v978 = vunpack.c.l.b16 %v50
    %v979 = vunpack.c.h.b16 %v50
    %v980 = vunpack.c.l.b16 %v51
    %v981 = vunpack.c.h.b16 %v51
    %v982 = vunpack.c.l.b16 %v52
    %v983 = vunpack.c.h.b16 %v52
    %v984 = vunpack.c.l.b16 %v53
    %v985 = vunpack.c.h.b16 %v53
    %v986 = vunpack.c.l.b16 %v54
    %v987 = vunpack.c.h.b16 %v54
    %v988 = vunpack.c.l.b16 %v55
    %v989 = vunpack.c.h.b16 %v55
    %v990 = vunpack.c.l.b16 %v56
    %v991 = vunpack.c.h.b16 %v56
    %v992 = vunpack.c.l.b16 %v57
    %v993 = vunpack.c.h.b16 %v57
    %v994 = vunpack.c.l.b16 %v58
    %v995 = vunpack.c.h.b16 %v58
    %v996 = vunpack.c.l.b16 %v59
    %v997 = vunpack.c.h.b16 %v59
    %v998 = vunpack.c.l.b16 %v60
    %v999 = vunpack.c.h.b16 %v60
    %v1000 = vunpack.c.l.b16 %v61
    %v1001 = vunpack.c.h.b16 %v61
    %v1002 = vunpack.c.l.b16 %v62
    %v1003 = vunpack.c.h.b16 %v62
    %v1004 = vunpack.c.l.b16 %v63
    %v1005 = vunpack.c.h.b16 %v63
    %v1006 = vunpack.c.l.b16 %v64
    %v1007 = vunpack.c.h.b16 %v64
    %v1008 = vunpack.c.l.b16 %v65
    %v1009 = vunpack.c.h.b16 %v65
    %v1010 = vunpack.c.l.b16 %v66
    %v1011 = vunpack.c.h.b16 %v66
    %v1012 = vunpack.c.l.b16 %v67
    %v1013 = vunpack.c.h.b16 %v67
    %v1014 = vunpack.c.l.b16 %v68
    %v1015 = vunpack.c.h.b16 %v68
    %v1016 = vunpack.c.l.b16 %v69
    %v1017 = vunpack.c.h.b16 %v69
    %v1018 = vunpack.c.l.b16 %v70
    %v1019 = vunpack.c.h.b16 %v70
    %v1020 = vunpack.c.l.b16 %v71
    %v1021 = vunpack.c.h.b16 %v71
    %v1022 = vunpack.c.l.b16 %v72
    %v1023 = vunpack.c.h.b16 %v72
    %v1024 = vunpack.c.l.b16 %v73
    %v1025 = vunpack.c.h.b16 %v73
    %v1026 = vunpack.c.l.b16 %v74
    %v1027 = vunpack.c.h.b16 %v74
    %v1028 = vunpack.c.l.b16 %v75
    %v1029 = vunpack.c.h.b16 %v75
    %v1030 = vunpack.c.l.b16 %v76
    %v1031 = vunpack.c.h.b16 %v76
    %v1032 = vunpack.c.l.b16 %v77
    %v1033 = vunpack.c.h.b16 %v77
    %v1034 = vunpack.c.l.b16 %v78
    %v1035 = vunpack.c.h.b16 %v78
    %v1036 = vunpack.c.l.b16 %v79
    %v1037 = vunpack.c.h.b16 %v79
    %v1038 = vunpack.c.l.b16 %v80
    %v1039 = vunpack.c.h.b16 %v80
    %v1040 = vunpack.c.l.b16 %v81
    %v1041 = vunpack.c.h.b16 %v81
    %v1042 = vunpack.c.l.b16 %v82
    %v1043 = vunpack.c.h.b16 %v82
    %v1044 = vunpack.c.l.b16 %v83
    %v1045 = vunpack.c.h.b16 %v83
    %v1046 = vunpack.c.l.b16 %v84
    %v1047 = vunpack.c.h.b16 %v84
    %v1048 = vunpack.c.l.b16 %v85
    %v1049 = vunpack.c.h.b16 %v85
    %v1050 = vunpack.c.l.b16 %v86
    %v1051 = vunpack.c.h.b16 %v86
    %v1052 = vunpack.c.l.b16 %v87
    %v1053 = vunpack.c.h.b16 %v87
    %v1054 = vunpack.c.l.b16 %v88
    %v1055 = vunpack.c.h.b16 %v88
    %v1056 = vunpack.c.l.b16 %v89
    %v1057 = vunpack.c.h.b16 %v89
    %v1058 = vunpack.c.l.b16 %v90
    %v1059 = vunpack.c.h.b16 %v90
    %v1060 = vunpack.c.l.b16 %v91
    %v1061 = vunpack.c.h.b16 %v91
    %v1062 = vunpack.c.l.b16 %v92
    %v1063 = vunpack.c.h.b16 %v92
    %v1064 = vunpack.c.l.b16 %v93
    %v1065 = vunpack.c.h.b16 %v93
    %v1066 = vunpack.c.l.b16 %v94
    %v1067 = vunpack.c.h.b16 %v94
    %v1068 = vunpack.c.l.b16 %v95
    %v1069 = vunpack.c.h.b16 %v95
    %v1070 = vunpack.c.l.b16 %v96
    %v1071 = vunpack.c.h.b16 %v96
    %v1072 = vunpack.c.l.b16 %v97
    %v1073 = vunpack.c.h.b16 %v97
    %v1074 = vunpack.c.l.b16 %v98
    %v1075 = vunpack.c.h.b16 %v98
    %v1076 = vunpack.c.l.b16 %v99
    %v1077 = vunpack.c.h.b16 %v99
    %v1078 = vunpack.c.l.b16 %v100
    %v1079 = vunpack.c.h.b16 %v100
    %v1080 = vunpack.c.l.b16 %v101
    %v1081 = vunpack.c.h.b16 %v101
    %v1082 = vunpack.c.l.b16 %v102
    %v1083 = vunpack.c.h.b16 %v102
    %v1084 = vunpack.c.l.b16 %v103
    %v1085 = vunpack.c.h.b16 %v103
    %v1086 = vunpack.c.l.b16 %v104
    %v1087 = vunpack.c.h.b16 %v104
    %v1088 = vunpack.c.l.b16 %v105
    %v1089 = vunpack.c.h.b16 %v105
    %v1090 = vunpack.c.l.b16 %v106
    %v1091 = vunpack.c.h.b16 %v106
    %v1092 = vunpack.c.l.b16 %v107
    %v1093 = vunpack.c.h.b16 %v107
    %v1094 = vunpack.c.l.b16 %v108
    %v1095 = vunpack.c.h.b16 %v108
    %v1096 = vunpack.c.l.b16 %v109
    %v1097 = vunpack.c.h.b16 %v109
    %v1098 = vunpack.c.l.b16 %v110
    %v1099 = vunpack.c.h.b16 %v110
    %v1100 = vunpack.c.l.b16 %v111
    %v1101 = vunpack.c.h.b16 %v111
    %v1102 = vunpack.c.l.b16 %v112
    %v1103 = vunpack.c.h.b16 %v112
    %v1104 = vunpack.c.l.b16 %v113
    %v1105 = vunpack.c.h.b16 %v113
    %v1106 = vunpack.c.l.b16 %v114
    %v1107 = vunpack.c.h.b16 %v114
    %v1108 = vunpack.c.l.b16 %v115
    %v1109 = vunpack.c.h.b16 %v115
    %v1110 = vunpack.c.l.b16 %v116
    %v1111 = vunpack.c.h.b16 %v116
    %v1112 = vunpack.c.l.b16 %v117
    %v1113 = vunpack.c.h.b16 %v117
    %v1114 = vunpack.c.l.b16 %v118
    %v1115 = vunpack.c.h.b16 %v118
    %v1116 = vunpack.c.l.b16 %v119
    %v1117 = vunpack.c.h.b16 %v119
    %v1118 = vunpack.c.l.b16 %v120
    %v1119 = vunpack.c.h.b16 %v120
    %v1120 = vunpack.c.l.b16 %v121
    %v1121 = vunpack.c.h.b16 %v121
    %v1122 = vunpack.c.l.b16 %v122
    %v1123 = vunpack.c.h.b16 %v122
    %v1124 = vunpack.c.l.b16 %v123
    %v1125 = vunpack.c.h.b16 %v123
    %v1126 = vunpack.c.l.b16 %v124
    %v1127 = vunpack.c.h.b16 %v124
    %v1128 = vunpack.c.l.b16 %v125
    %v1129 = vunpack.c.h.b16 %v125
    %v1130 = vunpack.c.l.b16 %v126
    %v1131 = vunpack.c.h.b16 %v126
    %v1132 = vunpack.c.l.b16 %v127
    %v1133 = vunpack.c.h.b16 %v127
    %v1134 = vunpack.c.l.b16 %v128
    %v1135 = vunpack.c.h.b16 %v128
    %v1136 = vunpack.c.l.b16 %v129
    %v1137 = vunpack.c.h.b16 %v129
    %v1138 = vunpack.c.l.b16 %v130
    %v1139 = vunpack.c.h.b16 %v130
    %v1140 = vunpack.c.l.b16 %v131
    %v1141 = vunpack.c.h.b16 %v131
    %v1142 = vunpack.c.l.b16 %v132
    %v1143 = vunpack.c.h.b16 %v132
    %v1144 = vunpack.c.l.b16 %v133
    %v1145 = vunpack.c.h.b16 %v133
    %v1146 = vunpack.c.l.b16 %v134
    %v1147 = vunpack.c.h.b16 %v134
    %v1148 = vunpack.c.l.b16 %v135
    %v1149 = vunpack.c.h.b16 %v135
    %v1150 = vunpack.c.l.b16 %v136
    %v1151 = vunpack.c.h.b16 %v136
    %v1152 = vunpack.c.l.b16 %v137
    %v1153 = vunpack.c.h.b16 %v137
    %v1154 = vunpack.c.l.b16 %v138
    %v1155 = vunpack.c.h.b16 %v138
    %v1156 = vunpack.c.l.b16 %v139
    %v1157 = vunpack.c.h.b16 %v139
    %v1158 = vunpack.c.l.b16 %v140
    %v1159 = vunpack.c.h.b16 %v140
    %v1160 = vunpack.c.l.b16 %v141
    %v1161 = vunpack.c.h.b16 %v141
    %v1162 = vunpack.c.l.b16 %v142
    %v1163 = vunpack.c.h.b16 %v142
    %v1164 = vunpack.c.l.b16 %v143
    %v1165 = vunpack.c.h.b16 %v143
    %v1166 = vunpack.c.l.b16 %v144
    %v1167 = vunpack.c.h.b16 %v144
    %v1168 = vunpack.c.l.b16 %v145
    %v1169 = vunpack.c.h.b16 %v145
    %v1170 = vunpack.c.l.b16 %v146
    %v1171 = vunpack.c.h.b16 %v146
    %v1172 = vunpack.c.l.b16 %v147
    %v1173 = vunpack.c.h.b16 %v147
    %v1174 = vunpack.c.l.b16 %v148
    %v1175 = vunpack.c.h.b16 %v148
    %v1176 = vunpack.c.l.b16 %v149
    %v1177 = vunpack.c.h.b16 %v149
    %v1178 = vunpack.c.l.b16 %v150
    %v1179 = vunpack.c.h.b16 %v150
    %v1180 = vunpack.c.l.b16 %v151
    %v1181 = vunpack.c.h.b16 %v151
    %v1182 = vunpack.c.l.b16 %v152
    %v1183 = vunpack.c.h.b16 %v152
    %v1184 = vunpack.c.l.b16 %v153
    %v1185 = vunpack.c.h.b16 %v153
    %v1186 = vunpack.c.l.b16 %v154
    %v1187 = vunpack.c.h.b16 %v154
    %v1188 = vunpack.c.l.b16 %v155
    %v1189 = vunpack.c.h.b16 %v155
    %v1190 = vunpack.c.l.b16 %v156
    %v1191 = vunpack.c.h.b16 %v156
    %v1192 = vunpack.c.l.b16 %v157
    %v1193 = vunpack.c.h.b16 %v157
    %v1194 = vunpack.c.l.b16 %v158
    %v1195 = vunpack.c.h.b16 %v158
    %v1196 = vunpack.c.l.b16 %v159
    %v1197 = vunpack.c.h.b16 %v159
    %v1198 = vunpack.c.l.b16 %v160
    %v1199 = vunpack.c.h.b16 %v160
    %v1200 = vunpack.c.l.b16 %v161
    %v1201 = vunpack.c.h.b16 %v161
    %v1202 = vunpack.c.l.b16 %v162
    %v1203 = vunpack.c.h.b16 %v162
    %v1204 = vunpack.c.l.b16 %v163
    %v1205 = vunpack.c.h.b16 %v163
    %v1206 = vunpack.c.l.b16 %v164
    %v1207 = vunpack.c.h.b16 %v164
    %v1208 = vunpack.c.l.b16 %v165
    %v1209 = vunpack.c.h.b16 %v165
    %v1210 = vunpack.c.l.b16 %v166
    %v1211 = vunpack.c.h.b16 %v166
    %v1212 = vunpack.c.l.b16 %v167
    %v1213 = vunpack.c.h.b16 %v167
    %v1214 = vunpack.c.l.b16 %v168
    %v1215 = vunpack.c.h.b16 %v168
    %v1216 = vunpack.c.l.b16 %v169
    %v1217 = vunpack.c.h.b16 %v169
    %v1218 = vunpack.c.l.b16 %v170
    %v1219 = vunpack.c.h.b16 %v170
    %v1220 = vunpack.c.l.b16 %v171
    %v1221 = vunpack.c.h.b16 %v171
    %v1222 = vunpack.c.l.b16 %v172
    %v1223 = vunpack.c.h.b16 %v172
    %v1224 = vunpack.c.l.b16 %v173
    %v1225 = vunpack.c.h.b16 %v173
    %v1226 = vunpack.c.l.b16 %v174
    %v1227 = vunpack.c.h.b16 %v174
    %v1228 = vunpack.c.l.b16 %v175
    %v1229 = vunpack.c.h.b16 %v175
    %v1230 = vunpack.c.l.b16 %v176
    %v1231 = vunpack.c.h.b16 %v176
    %v1232 = vunpack.c.l.b16 %v177
    %v1233 = vunpack.c.h.b16 %v177
    %v1234 = vunpack.c.l.b16 %v178
    %v1235 = vunpack.c.h.b16 %v178
    %v1236 = vunpack.c.l.b16 %v179
    %v1237 = vunpack.c.h.b16 %v179
    %v1238 = vunpack.c.l.b16 %v180
    %v1239 = vunpack.c.h.b16 %v180
    %v1240 = vunpack.c.l.b16 %v181
    %v1241 = vunpack.c.h.b16 %v181
    %v1242 = vunpack.c.l.b16 %v182
    %v1243 = vunpack.c.h.b16 %v182
    %v1244 = vunpack.c.l.b16 %v183
    %v1245 = vunpack.c.h.b16 %v183
    %v1246 = vunpack.c.l.b16 %v184
    %v1247 = vunpack.c.h.b16 %v184
    %v1248 = vunpack.c.l.b16 %v185
    %v1249 = vunpack.c.h.b16 %v185
    %v1250 = vunpack.c.l.b16 %v186
    %v1251 = vunpack.c.h.b16 %v186
    %v1252 = vunpack.c.l.b16 %v187
    %v1253 = vunpack.c.h.b16 %v187
    %v1254 = vunpack.c.l.b16 %v188
    %v1255 = vunpack.c.h.b16 %v188
    %v1256 = vunpack.c.l.b16 %v189
    %v1257 = vunpack.c.h.b16 %v189
    %v1258 = vunpack.c.l.b16 %v190
    %v1259 = vunpack.c.h.b16 %v190
    %v1260 = vunpack.c.l.b16 %v191
    %v1261 = vunpack.c.h.b16 %v191
    %v1262 = vunpack.c.l.b16 %v192
    %v1263 = vunpack.c.h.b16 %v192
    %v1264 = vunpack.c.l.b16 %v193
    %v1265 = vunpack.c.h.b16 %v193
    %v1266 = vunpack.c.l.b16 %v194
    %v1267 = vunpack.c.h.b16 %v194
    %v1268 = vunpack.c.l.b16 %v195
    %v1269 = vunpack.c.h.b16 %v195
    %v1270 = vunpack.c.l.b16 %v196
    %v1271 = vunpack.c.h.b16 %v196
    %v1272 = vunpack.c.l.b16 %v197
    %v1273 = vunpack.c.h.b16 %v197
    %v1274 = vunpack.c.l.b16 %v198
    %v1275 = vunpack.c.h.b16 %v198
    %v1276 = vunpack.c.l.b16 %v199
    %v1277 = vunpack.c.h.b16 %v199
    %v1278 = vunpack.c.l.b16 %v200
    %v1279 = vunpack.c.h.b16 %v200
    %v1280 = vunpack.c.l.b16 %v201
    %v1281 = vunpack.c.h.b16 %v201
    %v1282 = vunpack.c.l.b16 %v202
    %v1283 = vunpack.c.h.b16 %v202
    %v1284 = vunpack.c.l.b16 %v203
    %v1285 = vunpack.c.h.b16 %v203
    %v1286 = vunpack.c.l.b16 %v204
    %v1287 = vunpack.c.h.b16 %v204
    %v1288 = vunpack.c.l.b16 %v205
    %v1289 = vunpack.c.h.b16 %v205
    %v1290 = vunpack.c.l.b16 %v206
    %v1291 = vunpack.c.h.b16 %v206
    %v1292 = vunpack.c.l.b16 %v207
    %v1293 = vunpack.c.h.b16 %v207
    %v1294 = vunpack.c.l.b16 %v208
    %v1295 = vunpack.c.h.b16 %v208
    %v1296 = vunpack.c.l.b16 %v209
    %v1297 = vunpack.c.h.b16 %v209
    %v1298 = vunpack.c.l.b16 %v210
    %v1299 = vunpack.c.h.b16 %v210
    %v1300 = vunpack.c.l.b16 %v211
    %v1301 = vunpack.c.h.b16 %v211
    %v1302 = vunpack.c.l.b16 %v212
    %v1303 = vunpack.c.h.b16 %v212
    %v1304 = vunpack.c.l.b16 %v213
    %v1305 = vunpack.c.h.b16 %v213
    %v1306 = vunpack.c.l.b16 %v214
    %v1307 = vunpack.c.h.b16 %v214
    %v1308 = vunpack.c.l.b16 %v215
    %v1309 = vunpack.c.h.b16 %v215
    %v1310 = vunpack.c.l.b16 %v216
    %v1311 = vunpack.c.h.b16 %v216
    %v1312 = vunpack.c.l.b16 %v217
    %v1313 = vunpack.c.h.b16 %v217
    %v1314 = vunpack.c.l.b16 %v218
    %v1315 = vunpack.c.h.b16 %v218
    %v1316 = vunpack.c.l.b16 %v219
    %v1317 = vunpack.c.h.b16 %v219
    %v1318 = vunpack.c.l.b16 %v220
    %v1319 = vunpack.c.h.b16 %v220
    %v1320 = vunpack.c.l.b16 %v221
    %v1321 = vunpack.c.h.b16 %v221
    %v1322 = vunpack.c.l.b16 %v222
    %v1323 = vunpack.c.h.b16 %v222
    %v1324 = vunpack.c.l.b16 %v223
    %v1325 = vunpack.c.h.b16 %v223
    %v1326 = vunpack.c.l.b16 %v224
    %v1327 = vunpack.c.h.b16 %v224
    %v1328 = vunpack.c.l.b16 %v225
    %v1329 = vunpack.c.h.b16 %v225
    %v1330 = vunpack.c.l.b16 %v226
    %v1331 = vunpack.c.h.b16 %v226
    %v1332 = vunpack.c.l.b16 %v227
    %v1333 = vunpack.c.h.b16 %v227
    %v1334 = vunpack.c.l.b16 %v228
    %v1335 = vunpack.c.h.b16 %v228
    %v1336 = vunpack.c.l.b16 %v229
    %v1337 = vunpack.c.h.b16 %v229
    %v1338 = vunpack.c.l.b16 %v230
    %v1339 = vunpack.c.h.b16 %v230
    %v1340 = vunpack.c.l.b16 %v231
    %v1341 = vunpack.c.h.b16 %v231
    %v1342 = vunpack.c.l.b16 %v232
    %v1343 = vunpack.c.h.b16 %v232
    %v1344 = vunpack.c.l.b16 %v233
    %v1345 = vunpack.c.h.b16 %v233
    %v1346 = vunpack.c.l.b16 %v234
    %v1347 = vunpack.c.h.b16 %v234
    %v1348 = vunpack.c.l.b16 %v235
    %v1349 = vunpack.c.h.b16 %v235
    %v1350 = vunpack.c.l.b16 %v236
    %v1351 = vunpack.c.h.b16 %v236
    %v1352 = vunpack.c.l.b16 %v237
    %v1353 = vunpack.c.h.b16 %v237
    %v1354 = vunpack.c.l.b16 %v238
    %v1355 = vunpack.c.h.b16 %v238
    %v1356 = vunpack.c.l.b16 %v239
    %v1357 = vunpack.c.h.b16 %v239
    %v1358 = vunpack.c.l.b16 %v240
    %v1359 = vunpack.c.h.b16 %v240
    %v1360 = vunpack.c.l.b16 %v241
    %v1361 = vunpack.c.h.b16 %v241
    %v1362 = vunpack.c.l.b16 %v242
    %v1363 = vunpack.c.h.b16 %v242
    %v1364 = vunpack.c.l.b16 %v243
    %v1365 = vunpack.c.h.b16 %v243
    %v1366 = vunpack.c.l.b16 %v244
    %v1367 = vunpack.c.h.b16 %v244
    %v1368 = vunpack.c.l.b16 %v245
    %v1369 = vunpack.c.h.b16 %v245
    %v1370 = vunpack.c.l.b16 %v246
    %v1371 = vunpack.c.h.b16 %v246
    %v1372 = vunpack.c.l.b16 %v247
    %v1373 = vunpack.c.h.b16 %v247
    %v1374 = vunpack.c.l.b16 %v248
    %v1375 = vunpack.c.h.b16 %v248
    %v1376 = vunpack.c.l.b16 %v249
    %v1377 = vunpack.c.h.b16 %v249
    %v1378 = vunpack.c.l.b16 %v250
    %v1379 = vunpack.c.h.b16 %v250
    %v1380 = vunpack.c.l.b16 %v251
    %v1381 = vunpack.c.h.b16 %v251
    %v1382 = vunpack.c.l.b16 %v252
    %v1383 = vunpack.c.h.b16 %v252
    %v1384 = vunpack.c.l.b16 %v253
    %v1385 = vunpack.c.h.b16 %v253
    %v1386 = vunpack.c.l.b16 %v254
    %v1387 = vunpack.c.h.b16 %v254
    %v1388 = vunpack.c.l.b16 %v255
    %v1389 = vunpack.c.h.b16 %v255
    %v1390 = vunpack.c.l.b16 %v256
    %v1391 = vunpack.c.h.b16 %v256
    %v1392 = vunpack.c.l.b16 %v257
    %v1393 = vunpack.c.h.b16 %v257
    %v1394 = vunpack.c.l.b16 %v258
    %v1395 = vunpack.c.h.b16 %v258
    %v1396 = vunpack.c.l.b16 %v259
    %v1397 = vunpack.c.h.b16 %v259
    %v1398 = vunpack.c.l.b16 %v260
    %v1399 = vunpack.c.h.b16 %v260
    %v1400 = vunpack.c.l.b16 %v261
    %v1401 = vunpack.c.h.b16 %v261
    %v1402 = vunpack.c.l.b16 %v262
    %v1403 = vunpack.c.h.b16 %v262
    %v1404 = vunpack.c.l.b16 %v263
    %v1405 = vunpack.c.h.b16 %v263
    %v1406 = vunpack.c.l.b16 %v264
    %v1407 = vunpack.c.h.b16 %v264
    %v1408 = vunpack.c.l.b16 %v265
    %v1409 = vunpack.c.h.b16 %v265
    %v1410 = vunpack.c.l.b16 %v266
    %v1411 = vunpack.c.h.b16 %v266
    %v1412 = vunpack.c.l.b16 %v267
    %v1413 = vunpack.c.h.b16 %v267
    %v1414 = vunpack.c.l.b16 %v268
    %v1415 = vunpack.c.h.b16 %v268
    %v1416 = vunpack.c.l.b16 %v269
    %v1417 = vunpack.c.h.b16 %v269
    %v1418 = vunpack.c.l.b16 %v270
    %v1419 = vunpack.c.h.b16 %v270
    %v1420 = vunpack.c.l.b16 %v271
    %v1421 = vunpack.c.h.b16 %v271
    %v1422 = vunpack.c.l.b16 %v272
    %v1423 = vunpack.c.h.b16 %v272
    %v1424 = vunpack.c.l.b16 %v273
    %v1425 = vunpack.c.h.b16 %v273
    %v1426 = vunpack.c.l.b16 %v274
    %v1427 = vunpack.c.h.b16 %v274
    %v1428 = vunpack.c.l.b16 %v275
    %v1429 = vunpack.c.h.b16 %v275
    %v1430 = vunpack.c.l.b16 %v276
    %v1431 = vunpack.c.h.b16 %v276
    %v1432 = vunpack.c.l.b16 %v277
    %v1433 = vunpack.c.h.b16 %v277
    %v1434 = vunpack.c.l.b16 %v278
    %v1435 = vunpack.c.h.b16 %v278
    %v1436 = vunpack.c.l.b16 %v279
    %v1437 = vunpack.c.h.b16 %v279
    %v1438 = vunpack.c.l.b16 %v280
    %v1439 = vunpack.c.h.b16 %v280
    %v1440 = vunpack.c.l.b16 %v281
    %v1441 = vunpack.c.h.b16 %v281
    %v1442 = vunpack.c.l.b16 %v282
    %v1443 = vunpack.c.h.b16 %v282
    %v1444 = vunpack.c.l.b16 %v283
    %v1445 = vunpack.c.h.b16 %v283
    %v1446 = vunpack.c.l.b16 %v284
    %v1447 = vunpack.c.h.b16 %v284
    %v1448 = vunpack.c.l.b16 %v285
    %v1449 = vunpack.c.h.b16 %v285
    %v1450 = vunpack.c.l.b16 %v286
    %v1451 = vunpack.c.h.b16 %v286
    %v1452 = vunpack.c.l.b16 %v287
    %v1453 = vunpack.c.h.b16 %v287
    %v1454 = vunpack.c.l.b16 %v288
    %v1455 = vunpack.c.h.b16 %v288
    %v1456 = vunpack.c.l.b16 %v289
    %v1457 = vunpack.c.h.b16 %v289
    %v1458 = vunpack.c.l.b16 %v290
    %v1459 = vunpack.c.h.b16 %v290
    %v1460 = vunpack.c.l.b16 %v291
    %v1461 = vunpack.c.h.b16 %v291
    %v1462 = vunpack.c.l.b16 %v292
    %v1463 = vunpack.c.h.b16 %v292
    %v1464 = vunpack.c.l.b16 %v293
    %v1465 = vunpack.c.h.b16 %v293
    %v1466 = vunpack.c.l.b16 %v294
    %v1467 = vunpack.c.h.b16 %v294
    %v1468 = vunpack.c.l.b16 %v295
    %v1469 = vunpack.c.h.b16 %v295
    %v1470 = vunpack.c.l.b16 %v296
    %v1471 = vunpack.c.h.b16 %v296
    %v1472 = vunpack.c.l.b16 %v297
    %v1473 = vunpack.c.h.b16 %v297
    %v1474 = vunpack.c.l.b16 %v298
    %v1475 = vunpack.c.h.b16 %v298
    %v1476 = vunpack.c.l.b16 %v299
    %v1477 = vunpack.c.h.b16 %v299
    %v1478 = vunpack.c.l.b16 %v300
    %v1479 = vunpack.c.h.b16 %v300
    %v1480 = vunpack.c.l.b16 %v301
    %v1481 = vunpack.c.h.b16 %v301
    %v1482 = vunpack.c.l.b16 %v302
    %v1483 = vunpack.c.h.b16 %v302
    %v1484 = vunpack.c.l.b16 %v303
    %v1485 = vunpack.c.h.b16 %v303
    %v1486 = vunpack.c.l.b16 %v304
    %v1487 = vunpack.c.h.b16 %v304
    %v1488 = vunpack.c.l.b16 %v305
    %v1489 = vunpack.c.h.b16 %v305
    %v1490 = vunpack.c.l.b16 %v306
    %v1491 = vunpack.c.h.b16 %v306
    %v1492 = vunpack.c.l.b16 %v307
    %v1493 = vunpack.c.h.b16 %v307
    %v1494 = vunpack.c.l.b16 %v308
    %v1495 = vunpack.c.h.b16 %v308
    %v1496 = vunpack.c.l.b16 %v309
    %v1497 = vunpack.c.h.b16 %v309
    %v1498 = vunpack.c.l.b16 %v310
    %v1499 = vunpack.c.h.b16 %v310
    %v1500 = vunpack.c.l.b16 %v311
    %v1501 = vunpack.c.h.b16 %v311
    %v1502 = vunpack.c.l.b16 %v312
    %v1503 = vunpack.c.h.b16 %v312
    %v1504 = vunpack.c.l.b16 %v313
    %v1505 = vunpack.c.h.b16 %v313
    %v1506 = vunpack.c.l.b16 %v314
    %v1507 = vunpack.c.h.b16 %v314
    %v1508 = vunpack.c.l.b16 %v315
    %v1509 = vunpack.c.h.b16 %v315
    %v1510 = vunpack.c.l.b16 %v316
    %v1511 = vunpack.c.h.b16 %v316
    %v1512 = vunpack.c.l.b16 %v317
    %v1513 = vunpack.c.h.b16 %v317
    %v1514 = vunpack.c.l.b16 %v318
    %v1515 = vunpack.c.h.b16 %v318
    %v1516 = vunpack.c.l.b16 %v319
    %v1517 = vunpack.c.h.b16 %v319
    %v1518 = vunpack.c.l.b16 %v320
    %v1519 = vunpack.c.h.b16 %v320
    %v1520 = vunpack.c.l.b16 %v321
    %v1521 = vunpack.c.h.b16 %v321
    %v1522 = vunpack.c.l.b16 %v322
    %v1523 = vunpack.c.h.b16 %v322
    %v1524 = vunpack.c.l.b16 %v323
    %v1525 = vunpack.c.h.b16 %v323
    %v1526 = vunpack.c.l.b16 %v324
    %v1527 = vunpack.c.h.b16 %v324
    %v1528 = vunpack.c.l.b16 %v325
    %v1529 = vunpack.c.h.b16 %v325
    %v1530 = vunpack.c.l.b16 %v326
    %v1531 = vunpack.c.h.b16 %v326
    %v1532 = vunpack.c.l.b16 %v327
    %v1533 = vunpack.c.h.b16 %v327
    %v1534 = vunpack.c.l.b16 %v328
    %v1535 = vunpack.c.h.b16 %v328
    %v1536 = vunpack.c.l.b16 %v329
    %v1537 = vunpack.c.h.b16 %v329
    %v1538 = vunpack.c.l.b16 %v330
    %v1539 = vunpack.c.h.b16 %v330
    %v1540 = vunpack.c.l.b16 %v331
    %v1541 = vunpack.c.h.b16 %v331
    %v1542 = vunpack.c.l.b16 %v332
    %v1543 = vunpack.c.h.b16 %v332
    %v1544 = vunpack.c.l.b16 %v333
    %v1545 = vunpack.c.h.b16 %v333
    %v1546 = vunpack.c.l.b16 %v334
    %v1547 = vunpack.c.h.b16 %v334
    %v1548 = vunpack.c.l.b16 %v335
    %v1549 = vunpack.c.h.b16 %v335
    %v1550 = vunpack.c.l.b16 %v336
    %v1551 = vunpack.c.h.b16 %v336
    %v1552 = vunpack.c.l.b16 %v337
    %v1553 = vunpack.c.h.b16 %v337
    %v1554 = vunpack.c.l.b16 %v338
    %v1555 = vunpack.c.h.b16 %v338
    %v1556 = vunpack.c.l.b16 %v339
    %v1557 = vunpack.c.h.b16 %v339
    %v1558 = vunpack.c.l.b16 %v340
    %v1559 = vunpack.c.h.b16 %v340
    %v1560 = vunpack.c.l.b16 %v341
    %v1561 = vunpack.c.h.b16 %v341
    %v1562 = vunpack.c.l.b16 %v342
    %v1563 = vunpack.c.h.b16 %v342
    %v1564 = vunpack.c.l.b16 %v343
    %v1565 = vunpack.c.h.b16 %v343
    %v1566 = vunpack.c.l.b16 %v344
    %v1567 = vunpack.c.h.b16 %v344
    %v1568 = vunpack.c.l.b16 %v345
    %v1569 = vunpack.c.h.b16 %v345
    %v1570 = vunpack.c.l.b16 %v346
    %v1571 = vunpack.c.h.b16 %v346
    %v1572 = vunpack.c.l.b16 %v347
    %v1573 = vunpack.c.h.b16 %v347
    %v1574 = vunpack.c.l.b16 %v348
    %v1575 = vunpack.c.h.b16 %v348
    %v1576 = vunpack.c.l.b16 %v349
    %v1577 = vunpack.c.h.b16 %v349
    %v1578 = vunpack.c.l.b16 %v350
    %v1579 = vunpack.c.h.b16 %v350
    %v1580 = vunpack.c.l.b16 %v351
    %v1581 = vunpack.c.h.b16 %v351
    %v1582 = vunpack.c.l.b16 %v352
    %v1583 = vunpack.c.h.b16 %v352
    %v1584 = vunpack.c.l.b16 %v353
    %v1585 = vunpack.c.h.b16 %v353
    %v1586 = vunpack.c.l.b16 %v354
    %v1587 = vunpack.c.h.b16 %v354
    %v1588 = vunpack.c.l.b16 %v355
    %v1589 = vunpack.c.h.b16 %v355
    %v1590 = vunpack.c.l.b16 %v356
    %v1591 = vunpack.c.h.b16 %v356
    %v1592 = vunpack.c.l.b16 %v357
    %v1593 = vunpack.c.h.b16 %v357
    %v1594 = vunpack.c.l.b16 %v358
    %v1595 = vunpack.c.h.b16 %v358
    %v1596 = vunpack.c.l.b16 %v359
    %v1597 = vunpack.c.h.b16 %v359
    %v1598 = vunpack.c.l.b16 %v360
    %v1599 = vunpack.c.h.b16 %v360
    %v1600 = vunpack.c.l.b16 %v361
    %v1601 = vunpack.c.h.b16 %v361
    %v1602 = vunpack.c.l.b16 %v362
    %v1603 = vunpack.c.h.b16 %v362
    %v1604 = vunpack.c.l.b16 %v363
    %v1605 = vunpack.c.h.b16 %v363
    %v1606 = vunpack.c.l.b16 %v364
    %v1607 = vunpack.c.h.b16 %v364
    %v1608 = vunpack.c.l.b16 %v365
    %v1609 = vunpack.c.h.b16 %v365
    %v1610 = vunpack.c.l.b16 %v366
    %v1611 = vunpack.c.h.b16 %v366
    %v1612 = vunpack.c.l.b16 %v367
    %v1613 = vunpack.c.h.b16 %v367
    %v1614 = vunpack.c.l.b16 %v368
    %v1615 = vunpack.c.h.b16 %v368
    %v1616 = vunpack.c.l.b16 %v369
    %v1617 = vunpack.c.h.b16 %v369
    %v1618 = vunpack.c.l.b16 %v370
    %v1619 = vunpack.c.h.b16 %v370
    %v1620 = vunpack.c.l.b16 %v371
    %v1621 = vunpack.c.h.b16 %v371
    %v1622 = vunpack.c.l.b16 %v372
    %v1623 = vunpack.c.h.b16 %v372
    %v1624 = vunpack.c.l.b16 %v373
    %v1625 = vunpack.c.h.b16 %v373
    %v1626 = vunpack.c.l.b16 %v374
    %v1627 = vunpack.c.h.b16 %v374
    %v1628 = vunpack.c.l.b16 %v375
    %v1629 = vunpack.c.h.b16 %v375
    %v1630 = vunpack.c.l.b16 %v376
    %v1631 = vunpack.c.h.b16 %v376
    %v1632 = vunpack.c.l.b16 %v377
    %v1633 = vunpack.c.h.b16 %v377
    %v1634 = vunpack.c.l.b16 %v378
    %v1635 = vunpack.c.h.b16 %v378
    %v1636 = vunpack.c.l.b16 %v379
    %v1637 = vunpack.c.h.b16 %v379
    %v1638 = vunpack.c.l.b16 %v380
    %v1639 = vunpack.c.h.b16 %v380
    %v1640 = vunpack.c.l.b16 %v381
    %v1641 = vunpack.c.h.b16 %v381
    %v1642 = vunpack.c.l.b16 %v382
    %v1643 = vunpack.c.h.b16 %v382
    %v1644 = vunpack.c.l.b16 %v383
    %v1645 = vunpack.c.h.b16 %v383
    %v1646 = vunpack.c.l.b16 %v384
    %v1647 = vunpack.c.h.b16 %v384
    %v1648 = vpack.c.b16 %v930, %v928
    %v1649 = vpack.c.b16 %v931, %v929
    %v1650 = vpack.c.b16 %v934, %v932
    %v1651 = vpack.c.b16 %v935, %v933
    %v1652 = vpack.c.b16 %v938, %v936
    %v1653 = vpack.c.b16 %v939, %v937
    %v1654 = vpack.c.b16 %v942, %v940
    %v1655 = vpack.c.b16 %v943, %v941
    %v1656 = vpack.c.b16 %v946, %v944
    %v1657 = vpack.c.b16 %v947, %v945
    %v1658 = vpack.c.b16 %v950, %v948
    %v1659 = vpack.c.b16 %v951, %v949
    %v1660 = vpack.c.b16 %v954, %v952
    %v1661 = vpack.c.b16 %v955, %v953
    %v1662 = vpack.c.b16 %v958, %v956
    %v1663 = vpack.c.b16 %v959, %v957
    %v1664 = vpack.c.b16 %v962, %v960
    %v1665 = vpack.c.b16 %v963, %v961
    %v1666 = vpack.c.b16 %v966, %v964
    %v1667 = vpack.c.b16 %v967, %v965
    %v1668 = vpack.c.b16 %v970, %v968
    %v1669 = vpack.c.b16 %v971, %v969
    %v1670 = vpack.c.b16 %v974, %v972
    %v1671 = vpack.c.b16 %v975, %v973
    %v1672 = vpack.c.b16 %v978, %v976
    %v1673 = vpack.c.b16 %v979, %v977
    %v1674 = vpack.c.b16 %v982, %v980
    %v1675 = vpack.c.b16 %v983, %v981
    %v1676 = vpack.c.b16 %v986, %v984
    %v1677 = vpack.c.b16 %v987, %v985
    %v1678 = vpack.c.b16 %v990, %v988
    %v1679 = vpack.c.b16 %v991, %v989
    %v1680 = vpack.c.b16 %v994, %v992
    %v1681 = vpack.c.b16 %v995, %v993
    %v1682 = vpack.c.b16 %v998, %v996
    %v1683 = vpack.c.b16 %v999, %v997
    %v1684 = vpack.c.b16 %v1002, %v1000
    %v1685 = vpack.c.b16 %v1003, %v1001
    %v1686 = vpack.c.b16 %v1006, %v1004
    %v1687 = vpack.c.b16 %v1007, %v1005
    %v1688 = vpack.c.b16 %v1010, %v1008
    %v1689 = vpack.c.b16 %v1011, %v1009
    %v1690 = vpack.c.b16 %v1014, %v1012
    %v1691 = vpack.c.b16 %v1015, %v1013
    %v1692 = vpack.c.b16 %v1018, %v1016
    %v1693 = vpack.c.b16 %v1019, %v1017
    %v1694 = vpack.c.b16 %v1022, %v1020
    %v1695 = vpack.c.b16 %v1023, %v1021
    %v1696 = vpack.c.b16 %v1026, %v1024
    %v1697 = vpack.c.b16 %v1027, %v1025
    %v1698 = vpack.c.b16 %v1030, %v1028
    %v1699 = vpack.c.b16 %v1031, %v1029
    %v1700 = vpack.c.b16 %v1034, %v1032
    %v1701 = vpack.c.b16 %v1035, %v1033
    %v1702 = vpack.c.b16 %v1038, %v1036
    %v1703 = vpack.c.b16 %v1039, %v1037
    %v1704 = vpack.c.b16 %v1042, %v1040
    %v1705 = vpack.c.b16 %v1043, %v1041
    %v1706 = vpack.c.b16 %v1046, %v1044
    %v1707 = vpack.c.b16 %v1047, %v1045
    %v1708 = vpack.c.b16 %v1050, %v1048
    %v1709 = vpack.c.b16 %v1051, %v1049
    %v1710 = vpack.c.b16 %v1054, %v1052
    %v1711 = vpack.c.b16 %v1055, %v1053
    %v1712 = vpack.c.b16 %v1058, %v1056
    %v1713 = vpack.c.b16 %v1059, %v1057
    %v1714 = vpack.c.b16 %v1062, %v1060
    %v1715 = vpack.c.b16 %v1063, %v1061
    %v1716 = vpack.c.b16 %v1066, %v1064
    %v1717 = vpack.c.b16 %v1067, %v1065
    %v1718 = vpack.c.b16 %v1070, %v1068
    %v1719 = vpack.c.b16 %v1071, %v1069
    %v1720 = vpack.c.b16 %v1074, %v1072
    %v1721 = vpack.c.b16 %v1075, %v1073
    %v1722 = vpack.c.b16 %v1078, %v1076
    %v1723 = vpack.c.b16 %v1079, %v1077
    %v1724 = vpack.c.b16 %v1082, %v1080
    %v1725 = vpack.c.b16 %v1083, %v1081
    %v1726 = vpack.c.b16 %v1086, %v1084
    %v1727 = vpack.c.b16 %v1087, %v1085
    %v1728 = vpack.c.b16 %v1090, %v1088
    %v1729 = vpack.c.b16 %v1091, %v1089
    %v1730 = vpack.c.b16 %v1094, %v1092
    %v1731 = vpack.c.b16 %v1095, %v1093
    %v1732 = vpack.c.b16 %v1098, %v1096
    %v1733 = vpack.c.b16 %v1099, %v1097
    %v1734 = vpack.c.b16 %v1102, %v1100
    %v1735 = vpack.c.b16 %v1103, %v1101
    %v1736 = vpack.c.b16 %v1106, %v1104
    %v1737 = vpack.c.b16 %v1107, %v1105
    %v1738 = vpack.c.b16 %v1110, %v1108
    %v1739 = vpack.c.b16 %v1111, %v1109
    %v1740 = vpack.c.b16 %v1114, %v1112
    %v1741 = vpack.c.b16 %v1115, %v1113
    %v1742 = vpack.c.b16 %v1118, %v1116
    %v1743 = vpack.c.b16 %v1119, %v1117
    %v1744 = vpack.c.b16 %v1122, %v1120
    %v1745 = vpack.c.b16 %v1123, %v1121
    %v1746 = vpack.c.b16 %v1126, %v1124
    %v1747 = vpack.c.b16 %v1127, %v1125
    %v1748 = vpack.c.b16 %v1130, %v1128
    %v1749 = vpack.c.b16 %v1131, %v1129
    %v1750 = vpack.c.b16 %v1134, %v1132
    %v1751 = vpack.c.b16 %v1135, %v1133
    %v1752 = vpack.c.b16 %v1138, %v1136
    %v1753 = vpack.c.b16 %v1139, %v1137
    %v1754 = vpack.c.b16 %v1142, %v1140
    %v1755 = vpack.c.b16 %v1143, %v1141
    %v1756 = vpack.c.b16 %v1146, %v1144
    %v1757 = vpack.c.b16 %v1147, %v1145
    %v1758 = vpack.c.b16 %v1150, %v1148
    %v1759 = vpack.c.b16 %v1151, %v1149
    %v1760 = vpack.c.b16 %v1154, %v1152
    %v1761 = vpack.c.b16 %v1155, %v1153
    %v1762 = vpack.c.b16 %v1158, %v1156
    %v1763 = vpack.c.b16 %v1159, %v1157
    %v1764 = vpack.c.b16 %v1162, %v1160
    %v1765 = vpack.c.b16 %v1163, %v1161
    %v1766 = vpack.c.b16 %v1166, %v1164
    %v1767 = vpack.c.b16 %v1167, %v1165
    %v1768 = vpack.c.b16 %v1170, %v1168
    %v1769 = vpack.c.b16 %v1171, %v1169
    %v1770 = vpack.c.b16 %v1174, %v1172
    %v1771 = vpack.c.b16 %v1175, %v1173
    %v1772 = vpack.c.b16 %v1178, %v1176
    %v1773 = vpack.c.b16 %v1179, %v1177
    %v1774 = vpack.c.b16 %v1182, %v1180
    %v1775 = vpack.c.b16 %v1183, %v1181
    %v1776 = vpack.c.b16 %v1186, %v1184
    %v1777 = vpack.c.b16 %v1187, %v1185
    %v1778 = vpack.c.b16 %v1190, %v1188
    %v1779 = vpack.c.b16 %v1191, %v1189
    %v1780 = vpack.c.b16 %v1194, %v1192
    %v1781 = vpack.c.b16 %v1195, %v1193
    %v1782 = vpack.c.b16 %v1198, %v1196
    %v1783 = vpack.c.b16 %v1199, %v1197
    %v1784 = vpack.c.b16 %v1202, %v1200
    %v1785 = vpack.c.b16 %v1203, %v1201
    %v1786 = vpack.c.b16 %v1206, %v1204
    %v1787 = vpack.c.b16 %v1207, %v1205
    %v1788 = vpack.c.b16 %v1210, %v1208
    %v1789 = vpack.c.b16 %v1211, %v1209
    %v1790 = vpack.c.b16 %v1214, %v1212
    %v1791 = vpack.c.b16 %v1215, %v1213
    %v1792 = vpack.c.b16 %v1218, %v1216
    %v1793 = vpack.c.b16 %v1219, %v1217
    %v1794 = vpack.c.b16 %v1222, %v1220
    %v1795 = vpack.c.b16 %v1223, %v1221
    %v1796 = vpack.c.b16 %v1226, %v1224
    %v1797 = vpack.c.b16 %v1227, %v1225
    %v1798 = vpack.c.b16 %v1230, %v1228
    %v1799 = vpack.c.b16 %v1231, %v1229
    %v1800 = vpack.c.b16 %v1234, %v1232
    %v1801 = vpack.c.b16 %v1235, %v1233
    %v1802 = vpack.c.b16 %v1238, %v1236
    %v1803 = vpack.c.b16 %v1239, %v1237
    %v1804 = vpack.c.b16 %v1242, %v1240
    %v1805 = vpack.c.b16 %v1243, %v1241
    %v1806 = vpack.c.b16 %v1246, %v1244
    %v1807 = vpack.c.b16 %v1247, %v1245
    %v1808 = vpack.c.b16 %v1250, %v1248
    %v1809 = vpack.c.b16 %v1251, %v1249
    %v1810 = vpack.c.b16 %v1254, %v1252
    %v1811 = vpack.c.b16 %v1255, %v1253
    %v1812 = vpack.c.b16 %v1258, %v1256
    %v1813 = vpack.c.b16 %v1259, %v1257
    %v1814 = vpack.c.b16 %v1262, %v1260
    %v1815 = vpack.c.b16 %v1263, %v1261
    %v1816 = vpack.c.b16 %v1266, %v1264
    %v1817 = vpack.c.b16 %v1267, %v1265
    %v1818 = vpack.c.b16 %v1270, %v1268
    %v1819 = vpack.c.b16 %v1271, %v1269
    %v1820 = vpack.c.b16 %v1274, %v1272
    %v1821 = vpack.c.b16 %v1275, %v1273
    %v1822 = vpack.c.b16 %v1278, %v1276
    %v1823 = vpack.c.b16 %v1279, %v1277
    %v1824 = vpack.c.b16 %v1282, %v1280
    %v1825 = vpack.c.b16 %v1283, %v1281
    %v1826 = vpack.c.b16 %v1286, %v1284
    %v1827 = vpack.c.b16 %v1287, %v1285
    %v1828 = vpack.c.b16 %v1290, %v1288
    %v1829 = vpack.c.b16 %v1291, %v1289
    %v1830 = vpack.c.b16 %v1294, %v1292
    %v1831 = vpack.c.b16 %v1295, %v1293
    %v1832 = vpack.c.b16 %v1298, %v1296
    %v1833 = vpack.c.b16 %v1299, %v1297
    %v1834 = vpack.c.b16 %v1302, %v1300
    %v1835 = vpack.c.b16 %v1303, %v1301
    %v1836 = vpack.c.b16 %v1306, %v1304
    %v1837 = vpack.c.b16 %v1307, %v1305
    %v1838 = vpack.c.b16 %v1310, %v1308
    %v1839 = vpack.c.b16 %v1311, %v1309
    %v1840 = vpack.c.b16 %v1314, %v1312
    %v1841 = vpack.c.b16 %v1315, %v1313
    %v1842 = vpack.c.b16 %v1318, %v1316
    %v1843 = vpack.c.b16 %v1319, %v1317
    %v1844 = vpack.c.b16 %v1322, %v1320
    %v1845 = vpack.c.b16 %v1323, %v1321
    %v1846 = vpack.c.b16 %v1326, %v1324
    %v1847 = vpack.c.b16 %v1327, %v1325
    %v1848 = vpack.c.b16 %v1330, %v1328
    %v1849 = vpack.c.b16 %v1331, %v1329
    %v1850 = vpack.c.b16 %v1334, %v1332
    %v1851 = vpack.c.b16 %v1335, %v1333
    %v1852 = vpack.c.b16 %v1338, %v1336
    %v1853 = vpack.c.b16 %v1339, %v1337
    %v1854 = vpack.c.b16 %v1342, %v1340
    %v1855 = vpack.c.b16 %v1343, %v1341
    %v1856 = vpack.c.b16 %v1346, %v1344
    %v1857 = vpack.c.b16 %v1347, %v1345
    %v1858 = vpack.c.b16 %v1350, %v1348
    %v1859 = vpack.c.b16 %v1351, %v1349
    %v1860 = vpack.c.b16 %v1354, %v1352
    %v1861 = vpack.c.b16 %v1355, %v1353
    %v1862 = vpack.c.b16 %v1358, %v1356
    %v1863 = vpack.c.b16 %v1359, %v1357
    %v1864 = vpack.c.b16 %v1362, %v1360
    %v1865 = vpack.c.b16 %v1363, %v1361
    %v1866 = vpack.c.b16 %v1366, %v1364
    %v1867 = vpack.c.b16 %v1367, %v1365
    %v1868 = vpack.c.b16 %v1370, %v1368
    %v1869 = vpack.c.b16 %v1371, %v1369
    %v1870 = vpack.c.b16 %v1374, %v1372
    %v1871 = vpack.c.b16 %v1375, %v1373
    %v1872 = vpack.c.b16 %v1378, %v1376
    %v1873 = vpack.c.b16 %v1379, %v1377
    %v1874 = vpack.c.b16 %v1382, %v1380
    %v1875 = vpack.c.b16 %v1383, %v1381
    %v1876 = vpack.c.b16 %v1386, %v1384
    %v1877 = vpack.c.b16 %v1387, %v1385
    %v1878 = vpack.c.b16 %v1390, %v1388
    %v1879 = vpack.c.b16 %v1391, %v1389
    %v1880 = vpack.c.b16 %v1394, %v1392
    %v1881 = vpack.c.b16 %v1395, %v1393
    %v1882 = vpack.c.b16 %v1398, %v1396
    %v1883 = vpack.c.b16 %v1399, %v1397
    %v1884 = vpack.c.b16 %v1402, %v1400
    %v1885 = vpack.c.b16 %v1403, %v1401
    %v1886 = vpack.c.b16 %v1406, %v1404
    %v1887 = vpack.c.b16 %v1407, %v1405
    %v1888 = vpack.c.b16 %v1410, %v1408
    %v1889 = vpack.c.b16 %v1411, %v1409
    %v1890 = vpack.c.b16 %v1414, %v1412
    %v1891 = vpack.c.b16 %v1415, %v1413
    %v1892 = vpack.c.b16 %v1418, %v1416
    %v1893 = vpack.c.b16 %v1419, %v1417
    %v1894 = vpack.c.b16 %v1422, %v1420
    %v1895 = vpack.c.b16 %v1423, %v1421
    %v1896 = vpack.c.b16 %v1426, %v1424
    %v1897 = vpack.c.b16 %v1427, %v1425
    %v1898 = vpack.c.b16 %v1430, %v1428
    %v1899 = vpack.c.b16 %v1431, %v1429
    %v1900 = vpack.c.b16 %v1434, %v1432
    %v1901 = vpack.c.b16 %v1435, %v1433
    %v1902 = vpack.c.b16 %v1438, %v1436
    %v1903 = vpack.c.b16 %v1439, %v1437
    %v1904 = vpack.c.b16 %v1442, %v1440
    %v1905 = vpack.c.b16 %v1443, %v1441
    %v1906 = vpack.c.b16 %v1446, %v1444
    %v1907 = vpack.c.b16 %v1447, %v1445
    %v1908 = vpack.c.b16 %v1450, %v1448
    %v1909 = vpack.c.b16 %v1451, %v1449
    %v1910 = vpack.c.b16 %v1454, %v1452
    %v1911 = vpack.c.b16 %v1455, %v1453
    %v1912 = vpack.c.b16 %v1458, %v1456
    %v1913 = vpack.c.b16 %v1459, %v1457
    %v1914 = vpack.c.b16 %v1462, %v1460
    %v1915 = vpack.c.b16 %v1463, %v1461
    %v1916 = vpack.c.b16 %v1466, %v1464
    %v1917 = vpack.c.b16 %v1467, %v1465
    %v1918 = vpack.c.b16 %v1470, %v1468
    %v1919 = vpack.c.b16 %v1471, %v1469
    %v1920 = vpack.c.b16 %v1474, %v1472
    %v1921 = vpack.c.b16 %v1475, %v1473
    %v1922 = vpack.c.b16 %v1478, %v1476
    %v1923 = vpack.c.b16 %v1479, %v1477
    %v1924 = vpack.c.b16 %v1482, %v1480
    %v1925 = vpack.c.b16 %v1483, %v1481
    %v1926 = vpack.c.b16 %v1486, %v1484
    %v1927 = vpack.c.b16 %v1487, %v1485
    %v1928 = vpack.c.b16 %v1490, %v1488
    %v1929 = vpack.c.b16 %v1491, %v1489
    %v1930 = vpack.c.b16 %v1494, %v1492
    %v1931 = vpack.c.b16 %v1495, %v1493
    %v1932 = vpack.c.b16 %v1498, %v1496
    %v1933 = vpack.c.b16 %v1499, %v1497
    %v1934 = vpack.c.b16 %v1502, %v1500
    %v1935 = vpack.c.b16 %v1503, %v1501
    %v1936 = vpack.c.b16 %v1506, %v1504
    %v1937 = vpack.c.b16 %v1507, %v1505
    %v1938 = vpack.c.b16 %v1510, %v1508
    %v1939 = vpack.c.b16 %v1511, %v1509
    %v1940 = vpack.c.b16 %v1514, %v1512
    %v1941 = vpack.c.b16 %v1515, %v1513
    %v1942 = vpack.c.b16 %v1518, %v1516
    %v1943 = vpack.c.b16 %v1519, %v1517
    %v1944 = vpack.c.b16 %v1522, %v1520
    %v1945 = vpack.c.b16 %v1523, %v1521
    %v1946 = vpack.c.b16 %v1526, %v1524
    %v1947 = vpack.c.b16 %v1527, %v1525
    %v1948 = vpack.c.b16 %v1530, %v1528
    %v1949 = vpack.c.b16 %v1531, %v1529
    %v1950 = vpack.c.b16 %v1534, %v1532
    %v1951 = vpack.c.b16 %v1535, %v1533
    %v1952 = vpack.c.b16 %v1538, %v1536
    %v1953 = vpack.c.b16 %v1539, %v1537
    %v1954 = vpack.c.b16 %v1542, %v1540
    %v1955 = vpack.c.b16 %v1543, %v1541
    %v1956 = vpack.c.b16 %v1546, %v1544
    %v1957 = vpack.c.b16 %v1547, %v1545
    %v1958 = vpack.c.b16 %v1550, %v1548
    %v1959 = vpack.c.b16 %v1551, %v1549
    %v1960 = vpack.c.b16 %v1554, %v1552
    %v1961 = vpack.c.b16 %v1555, %v1553
    %v1962 = vpack.c.b16 %v1558, %v1556
    %v1963 = vpack.c.b16 %v1559, %v1557
    %v1964 = vpack.c.b16 %v1562, %v1560
    %v1965 = vpack.c.b16 %v1563, %v1561
    %v1966 = vpack.c.b16 %v1566, %v1564
    %v1967 = vpack.c.b16 %v1567, %v1565
    %v1968 = vpack.c.b16 %v1570, %v1568
    %v1969 = vpack.c.b16 %v1571, %v1569
    %v1970 = vpack.c.b16 %v1574, %v1572
    %v1971 = vpack.c.b16 %v1575, %v1573
    %v1972 = vpack.c.b16 %v1578, %v1576
    %v1973 = vpack.c.b16 %v1579, %v1577
    %v1974 = vpack.c.b16 %v1582, %v1580
    %v1975 = vpack.c.b16 %v1583, %v1581
    %v1976 = vpack.c.b16 %v1586, %v1584
    %v1977 = vpack.c.b16 %v1587, %v1585
    %v1978 = vpack.c.b16 %v1590, %v1588
    %v1979 = vpack.c.b16 %v1591, %v1589
    %v1980 = vpack.c.b16 %v1594, %v1592
    %v1981 = vpack.c.b16 %v1595, %v1593
    %v1982 = vpack.c.b16 %v1598, %v1596
    %v1983 = vpack.c.b16 %v1599, %v1597
    %v1984 = vpack.c.b16 %v1602, %v1600
    %v1985 = vpack.c.b16 %v1603, %v1601
    %v1986 = vpack.c.b16 %v1606, %v1604
    %v1987 = vpack.c.b16 %v1607, %v1605
    %v1988 = vpack.c.b16 %v1610, %v1608
    %v1989 = vpack.c.b16 %v1611, %v1609
    %v1990 = vpack.c.b16 %v1614, %v1612
    %v1991 = vpack.c.b16 %v1615, %v1613
    %v1992 = vpack.c.b16 %v1618, %v1616
    %v1993 = vpack.c.b16 %v1619, %v1617
    %v1994 = vpack.c.b16 %v1622, %v1620
    %v1995 = vpack.c.b16 %v1623, %v1621
    %v1996 = vpack.c.b16 %v1626, %v1624
    %v1997 = vpack.c.b16 %v1627, %v1625
    %v1998 = vpack.c.b16 %v1630, %v1628
    %v1999 = vpack.c.b16 %v1631, %v1629
    %v2000 = vpack.c.b16 %v1634, %v1632
    %v2001 = vpack.c.b16 %v1635, %v1633
    %v2002 = vpack.c.b16 %v1638, %v1636
    %v2003 = vpack.c.b16 %v1639, %v1637
    %v2004 = vpack.c.b16 %v1642, %v1640
    %v2005 = vpack.c.b16 %v1643, %v1641
    %v2006 = vpack.c.b16 %v1646, %v1644
    %v2007 = vpack.c.b16 %v1647, %v1645
    %vm2368 = vcmask 523264
    %v2370 = vsel %vm2368, %v544, 0
    %2372 = vmatprep.subr.bf16.mxu0 %v1663
    %2373 = vmatpush1.bf16.msra.mxu0 %v1662
    %2374 = vmatprep.subr.bf16.mxu0 %v1661
    %2375 = vmatpush1.bf16.msra.mxu0 %v1660
    %2376 = vmatprep.subr.bf16.mxu0 %v1659
    %2377 = vmatpush1.bf16.msra.mxu0 %v1658
    %2378 = vmatprep.subr.bf16.mxu0 %v1657
    %2379 = vmatpush1.bf16.msra.mxu0 %v1656
    %2380 = vmatprep.subr.bf16.mxu0 %v1655
    %2381 = vmatpush1.bf16.msra.mxu0 %v1654
    %2382 = vmatprep.subr.bf16.mxu0 %v1653
    %2383 = vmatpush1.bf16.msra.mxu0 %v1652
    %2384 = vmatprep.subr.bf16.mxu0 %v1651
    %2385 = vmatpush1.bf16.msra.mxu0 %v1650
    %2386 = vmatprep.subr.bf16.mxu0 %v1649
    %2387 = vmatpush1.bf16.msra.mxu0 %v1648
    %2388 = vmatprep.subr.bf16.mxu0 %v1679
    %2389 = vmatpush2.bf16.msra.mxu0 %v1678
    %2390 = vmatprep.subr.bf16.mxu0 %v1677
    %2391 = vmatpush2.bf16.msra.mxu0 %v1676
    %2392 = vmatprep.subr.bf16.mxu0 %v1675
    %2393 = vmatpush2.bf16.msra.mxu0 %v1674
    %2394 = vmatprep.subr.bf16.mxu0 %v1673
    %2395 = vmatpush2.bf16.msra.mxu0 %v1672
    %2396 = vmatprep.subr.bf16.mxu0 %v1671
    %2397 = vmatpush2.bf16.msra.mxu0 %v1670
    %2398 = vmatprep.subr.bf16.mxu0 %v1669
    %2399 = vmatpush2.bf16.msra.mxu0 %v1668
    %2400 = vmatprep.subr.bf16.mxu0 %v1667
    %2401 = vmatpush2.bf16.msra.mxu0 %v1666
    %2402 = vmatprep.subr.bf16.mxu0 %v1665
    %2403 = vmatpush2.bf16.msra.mxu0 %v1664
    %2404 = vmatprep.mubr.bf16.mxu0 %v437
    %2405 = vmatmul.mubr.bf16.gmra.mxu0 %v423
    %v2406 = vpop.f32.mrf.mxu0
    %v2407 = vadd.f32 %v390, %v2406
    %v2408 = vpop.f32.mrf.mxu0
    %v2409 = vadd.f32 %v394, %v2408
    %v2410 = vpop.f32.mrf.mxu0
    %v2411 = vpop.f32.mrf.mxu0
    %2412 = vdwg.mxu0
    %2413 = vmatprep.subr.bf16.mxu0 %v1695
    %2414 = vmatpush1.bf16.msra.mxu0 %v1694
    %2415 = vmatprep.subr.bf16.mxu0 %v1693
    %2416 = vmatpush1.bf16.msra.mxu0 %v1692
    %2417 = vmatprep.subr.bf16.mxu0 %v1691
    %2418 = vmatpush1.bf16.msra.mxu0 %v1690
    %2419 = vmatprep.subr.bf16.mxu0 %v1689
    %2420 = vmatpush1.bf16.msra.mxu0 %v1688
    %2421 = vmatprep.subr.bf16.mxu0 %v1687
    %2422 = vmatpush1.bf16.msra.mxu0 %v1686
    %2423 = vmatprep.subr.bf16.mxu0 %v1685
    %2424 = vmatpush1.bf16.msra.mxu0 %v1684
    %2425 = vmatprep.subr.bf16.mxu0 %v1683
    %2426 = vmatpush1.bf16.msra.mxu0 %v1682
    %2427 = vmatprep.subr.bf16.mxu0 %v1681
    %2428 = vmatpush1.bf16.msra.mxu0 %v1680
    %2429 = vmatprep.subr.bf16.mxu0 %v1711
    %2430 = vmatpush2.bf16.msra.mxu0 %v1710
    %2431 = vmatprep.subr.bf16.mxu0 %v1709
    %2432 = vmatpush2.bf16.msra.mxu0 %v1708
    %2433 = vmatprep.subr.bf16.mxu0 %v1707
    %2434 = vmatpush2.bf16.msra.mxu0 %v1706
    %2435 = vmatprep.subr.bf16.mxu0 %v1705
    %2436 = vmatpush2.bf16.msra.mxu0 %v1704
    %2437 = vmatprep.subr.bf16.mxu0 %v1703
    %2438 = vmatpush2.bf16.msra.mxu0 %v1702
    %2439 = vmatprep.subr.bf16.mxu0 %v1701
    %2440 = vmatpush2.bf16.msra.mxu0 %v1700
    %2441 = vmatprep.subr.bf16.mxu0 %v1699
    %2442 = vmatpush2.bf16.msra.mxu0 %v1698
    %2443 = vmatprep.subr.bf16.mxu0 %v1697
    %2444 = vmatpush2.bf16.msra.mxu0 %v1696
    %2445 = vmatprep.mubr.bf16.mxu0 %v447
    %2446 = vmatmul.mubr.bf16.gmra.mxu0 %v445
    %v2447 = vpop.f32.mrf.mxu0
    %v2448 = vadd.f32 %v2407, %v2447
    %v2449 = vpop.f32.mrf.mxu0
    %v2450 = vadd.f32 %v2409, %v2449
    %v2451 = vpop.f32.mrf.mxu0
    %v2452 = vpop.f32.mrf.mxu0
    %2453 = vdwg.mxu0
    %2454 = vmatprep.subr.bf16.mxu0 %v1727
    %2455 = vmatpush1.bf16.msra.mxu0 %v1726
    %2456 = vmatprep.subr.bf16.mxu0 %v1725
    %2457 = vmatpush1.bf16.msra.mxu0 %v1724
    %2458 = vmatprep.subr.bf16.mxu0 %v1723
    %2459 = vmatpush1.bf16.msra.mxu0 %v1722
    %2460 = vmatprep.subr.bf16.mxu0 %v1721
    %2461 = vmatpush1.bf16.msra.mxu0 %v1720
    %2462 = vmatprep.subr.bf16.mxu0 %v1719
    %2463 = vmatpush1.bf16.msra.mxu0 %v1718
    %2464 = vmatprep.subr.bf16.mxu0 %v1717
    %2465 = vmatpush1.bf16.msra.mxu0 %v1716
    %2466 = vmatprep.subr.bf16.mxu0 %v1715
    %2467 = vmatpush1.bf16.msra.mxu0 %v1714
    %2468 = vmatprep.subr.bf16.mxu0 %v1713
    %2469 = vmatpush1.bf16.msra.mxu0 %v1712
    %2470 = vmatprep.subr.bf16.mxu0 %v1743
    %2471 = vmatpush2.bf16.msra.mxu0 %v1742
    %2472 = vmatprep.subr.bf16.mxu0 %v1741
    %2473 = vmatpush2.bf16.msra.mxu0 %v1740
    %2474 = vmatprep.subr.bf16.mxu0 %v1739
    %2475 = vmatpush2.bf16.msra.mxu0 %v1738
    %2476 = vmatprep.subr.bf16.mxu0 %v1737
    %2477 = vmatpush2.bf16.msra.mxu0 %v1736
    %2478 = vmatprep.subr.bf16.mxu0 %v1735
    %2479 = vmatpush2.bf16.msra.mxu0 %v1734
    %2480 = vmatprep.subr.bf16.mxu0 %v1733
    %2481 = vmatpush2.bf16.msra.mxu0 %v1732
    %2482 = vmatprep.subr.bf16.mxu0 %v1731
    %2483 = vmatpush2.bf16.msra.mxu0 %v1730
    %2484 = vmatprep.subr.bf16.mxu0 %v1729
    %2485 = vmatpush2.bf16.msra.mxu0 %v1728
    %2486 = vmatprep.mubr.bf16.mxu0 %v444
    %2487 = vmatmul.mubr.bf16.gmra.mxu0 %v430
    %v2488 = vpop.f32.mrf.mxu0
    %v2489 = vadd.f32 %v2448, %v2488
    %v2490 = vpop.f32.mrf.mxu0
    %v2491 = vadd.f32 %v2450, %v2490
    %v2492 = vpop.f32.mrf.mxu0
    %v2493 = vpop.f32.mrf.mxu0
    %2494 = vdwg.mxu0
    %2495 = vmatprep.subr.bf16.mxu0 %v1759
    %2496 = vmatpush1.bf16.msra.mxu0 %v1758
    %2497 = vmatprep.subr.bf16.mxu0 %v1757
    %2498 = vmatpush1.bf16.msra.mxu0 %v1756
    %2499 = vmatprep.subr.bf16.mxu0 %v1755
    %2500 = vmatpush1.bf16.msra.mxu0 %v1754
    %2501 = vmatprep.subr.bf16.mxu0 %v1753
    %2502 = vmatpush1.bf16.msra.mxu0 %v1752
    %2503 = vmatprep.subr.bf16.mxu0 %v1751
    %2504 = vmatpush1.bf16.msra.mxu0 %v1750
    %2505 = vmatprep.subr.bf16.mxu0 %v1749
    %2506 = vmatpush1.bf16.msra.mxu0 %v1748
    %2507 = vmatprep.subr.bf16.mxu0 %v1747
    %2508 = vmatpush1.bf16.msra.mxu0 %v1746
    %2509 = vmatprep.subr.bf16.mxu0 %v1745
    %2510 = vmatpush1.bf16.msra.mxu0 %v1744
    %2511 = vmatprep.subr.bf16.mxu0 %v1775
    %2512 = vmatpush2.bf16.msra.mxu0 %v1774
    %2513 = vmatprep.subr.bf16.mxu0 %v1773
    %2514 = vmatpush2.bf16.msra.mxu0 %v1772
    %2515 = vmatprep.subr.bf16.mxu0 %v1771
    %2516 = vmatpush2.bf16.msra.mxu0 %v1770
    %2517 = vmatprep.subr.bf16.mxu0 %v1769
    %2518 = vmatpush2.bf16.msra.mxu0 %v1768
    %2519 = vmatprep.subr.bf16.mxu0 %v1767
    %2520 = vmatpush2.bf16.msra.mxu0 %v1766
    %2521 = vmatprep.subr.bf16.mxu0 %v1765
    %2522 = vmatpush2.bf16.msra.mxu0 %v1764
    %2523 = vmatprep.subr.bf16.mxu0 %v1763
    %2524 = vmatpush2.bf16.msra.mxu0 %v1762
    %2525 = vmatprep.subr.bf16.mxu0 %v1761
    %2526 = vmatpush2.bf16.msra.mxu0 %v1760
    %2527 = vmatprep.mubr.bf16.mxu0 %v448
    %2528 = vmatmul.mubr.bf16.gmra.mxu0 %v446
    %v2529 = vpop.f32.mrf.mxu0
    %v2530 = vadd.f32 %v2489, %v2529
    %v2531 = vpop.f32.mrf.mxu0
    %v2532 = vadd.f32 %v2491, %v2531
    %v2533 = vpop.f32.mrf.mxu0
    %v2534 = vpop.f32.mrf.mxu0
    %2535 = vdwg.mxu0
    %2536 = vmatprep.subr.bf16.mxu0 %v1791
    %2537 = vmatpush1.bf16.msra.mxu0 %v1790
    %2538 = vmatprep.subr.bf16.mxu0 %v1789
    %2539 = vmatpush1.bf16.msra.mxu0 %v1788
    %2540 = vmatprep.subr.bf16.mxu0 %v1787
    %2541 = vmatpush1.bf16.msra.mxu0 %v1786
    %2542 = vmatprep.subr.bf16.mxu0 %v1785
    %2543 = vmatpush1.bf16.msra.mxu0 %v1784
    %2544 = vmatprep.subr.bf16.mxu0 %v1783
    %2545 = vmatpush1.bf16.msra.mxu0 %v1782
    %2546 = vmatprep.subr.bf16.mxu0 %v1781
    %2547 = vmatpush1.bf16.msra.mxu0 %v1780
    %2548 = vmatprep.subr.bf16.mxu0 %v1779
    %2549 = vmatpush1.bf16.msra.mxu0 %v1778
    %2550 = vmatprep.subr.bf16.mxu0 %v1777
    %2551 = vmatpush1.bf16.msra.mxu0 %v1776
    %2552 = vmatprep.subr.bf16.mxu0 %v1807
    %2553 = vmatpush2.bf16.msra.mxu0 %v1806
    %2554 = vmatprep.subr.bf16.mxu0 %v1805
    %2555 = vmatpush2.bf16.msra.mxu0 %v1804
    %2556 = vmatprep.subr.bf16.mxu0 %v1803
    %2557 = vmatpush2.bf16.msra.mxu0 %v1802
    %2558 = vmatprep.subr.bf16.mxu0 %v1801
    %2559 = vmatpush2.bf16.msra.mxu0 %v1800
    %2560 = vmatprep.subr.bf16.mxu0 %v1799
    %2561 = vmatpush2.bf16.msra.mxu0 %v1798
    %2562 = vmatprep.subr.bf16.mxu0 %v1797
    %2563 = vmatpush2.bf16.msra.mxu0 %v1796
    %2564 = vmatprep.subr.bf16.mxu0 %v1795
    %2565 = vmatpush2.bf16.msra.mxu0 %v1794
    %2566 = vmatprep.subr.bf16.mxu0 %v1793
    %2567 = vmatpush2.bf16.msra.mxu0 %v1792
    %2568 = vmatprep.mubr.bf16.mxu0 %v486
    %2569 = vmatmul.mubr.bf16.gmra.mxu0 %v472
    %v2570 = vpop.f32.mrf.mxu0
    %v2571 = vadd.f32 %v2530, %v2570
    %v2572 = vpop.f32.mrf.mxu0
    %v2573 = vadd.f32 %v2532, %v2572
    %v2574 = vpop.f32.mrf.mxu0
    %v2575 = vpop.f32.mrf.mxu0
    %2576 = vdwg.mxu0
    %2577 = vmatprep.subr.bf16.mxu0 %v1823
    %2578 = vmatpush1.bf16.msra.mxu0 %v1822
    %2579 = vmatprep.subr.bf16.mxu0 %v1821
    %2580 = vmatpush1.bf16.msra.mxu0 %v1820
    %2581 = vmatprep.subr.bf16.mxu0 %v1819
    %2582 = vmatpush1.bf16.msra.mxu0 %v1818
    %2583 = vmatprep.subr.bf16.mxu0 %v1817
    %2584 = vmatpush1.bf16.msra.mxu0 %v1816
    %2585 = vmatprep.subr.bf16.mxu0 %v1815
    %2586 = vmatpush1.bf16.msra.mxu0 %v1814
    %2587 = vmatprep.subr.bf16.mxu0 %v1813
    %2588 = vmatpush1.bf16.msra.mxu0 %v1812
    %2589 = vmatprep.subr.bf16.mxu0 %v1811
    %2590 = vmatpush1.bf16.msra.mxu0 %v1810
    %2591 = vmatprep.subr.bf16.mxu0 %v1809
    %2592 = vmatpush1.bf16.msra.mxu0 %v1808
    %2593 = vmatprep.subr.bf16.mxu0 %v1839
    %2594 = vmatpush2.bf16.msra.mxu0 %v1838
    %2595 = vmatprep.subr.bf16.mxu0 %v1837
    %2596 = vmatpush2.bf16.msra.mxu0 %v1836
    %2597 = vmatprep.subr.bf16.mxu0 %v1835
    %2598 = vmatpush2.bf16.msra.mxu0 %v1834
    %2599 = vmatprep.subr.bf16.mxu0 %v1833
    %2600 = vmatpush2.bf16.msra.mxu0 %v1832
    %2601 = vmatprep.subr.bf16.mxu0 %v1831
    %2602 = vmatpush2.bf16.msra.mxu0 %v1830
    %2603 = vmatprep.subr.bf16.mxu0 %v1829
    %2604 = vmatpush2.bf16.msra.mxu0 %v1828
    %2605 = vmatprep.subr.bf16.mxu0 %v1827
    %2606 = vmatpush2.bf16.msra.mxu0 %v1826
    %2607 = vmatprep.subr.bf16.mxu0 %v1825
    %2608 = vmatpush2.bf16.msra.mxu0 %v1824
    %2609 = vmatprep.mubr.bf16.mxu0 %v496
    %2610 = vmatmul.mubr.bf16.gmra.mxu0 %v494
    %v2611 = vpop.f32.mrf.mxu0
    %v2612 = vadd.f32 %v2571, %v2611
    %v2613 = vpop.f32.mrf.mxu0
    %v2614 = vadd.f32 %v2573, %v2613
    %v2615 = vpop.f32.mrf.mxu0
    %v2616 = vpop.f32.mrf.mxu0
    %2617 = vdwg.mxu0
    %2618 = vmatprep.subr.bf16.mxu0 %v1855
    %2619 = vmatpush1.bf16.msra.mxu0 %v1854
    %2620 = vmatprep.subr.bf16.mxu0 %v1853
    %2621 = vmatpush1.bf16.msra.mxu0 %v1852
    %2622 = vmatprep.subr.bf16.mxu0 %v1851
    %2623 = vmatpush1.bf16.msra.mxu0 %v1850
    %2624 = vmatprep.subr.bf16.mxu0 %v1849
    %2625 = vmatpush1.bf16.msra.mxu0 %v1848
    %2626 = vmatprep.subr.bf16.mxu0 %v1847
    %2627 = vmatpush1.bf16.msra.mxu0 %v1846
    %2628 = vmatprep.subr.bf16.mxu0 %v1845
    %2629 = vmatpush1.bf16.msra.mxu0 %v1844
    %2630 = vmatprep.subr.bf16.mxu0 %v1843
    %2631 = vmatpush1.bf16.msra.mxu0 %v1842
    %2632 = vmatprep.subr.bf16.mxu0 %v1841
    %2633 = vmatpush1.bf16.msra.mxu0 %v1840
    %2634 = vmatprep.subr.bf16.mxu0 %v1871
    %2635 = vmatpush2.bf16.msra.mxu0 %v1870
    %2636 = vmatprep.subr.bf16.mxu0 %v1869
    %2637 = vmatpush2.bf16.msra.mxu0 %v1868
    %2638 = vmatprep.subr.bf16.mxu0 %v1867
    %2639 = vmatpush2.bf16.msra.mxu0 %v1866
    %2640 = vmatprep.subr.bf16.mxu0 %v1865
    %2641 = vmatpush2.bf16.msra.mxu0 %v1864
    %2642 = vmatprep.subr.bf16.mxu0 %v1863
    %2643 = vmatpush2.bf16.msra.mxu0 %v1862
    %2644 = vmatprep.subr.bf16.mxu0 %v1861
    %2645 = vmatpush2.bf16.msra.mxu0 %v1860
    %2646 = vmatprep.subr.bf16.mxu0 %v1859
    %2647 = vmatpush2.bf16.msra.mxu0 %v1858
    %2648 = vmatprep.subr.bf16.mxu0 %v1857
    %2649 = vmatpush2.bf16.msra.mxu0 %v1856
    %2650 = vmatprep.mubr.bf16.mxu0 %v493
    %2651 = vmatmul.mubr.bf16.gmra.mxu0 %v479
    %v2652 = vpop.f32.mrf.mxu0
    %v2653 = vadd.f32 %v2612, %v2652
    %v2654 = vpop.f32.mrf.mxu0
    %v2655 = vadd.f32 %v2614, %v2654
    %v2656 = vpop.f32.mrf.mxu0
    %v2657 = vpop.f32.mrf.mxu0
    %2658 = vdwg.mxu0
    %2659 = vmatprep.subr.bf16.mxu0 %v1887
    %2660 = vmatpush1.bf16.msra.mxu0 %v1886
    %2661 = vmatprep.subr.bf16.mxu0 %v1885
    %2662 = vmatpush1.bf16.msra.mxu0 %v1884
    %2663 = vmatprep.subr.bf16.mxu0 %v1883
    %2664 = vmatpush1.bf16.msra.mxu0 %v1882
    %2665 = vmatprep.subr.bf16.mxu0 %v1881
    %2666 = vmatpush1.bf16.msra.mxu0 %v1880
    %2667 = vmatprep.subr.bf16.mxu0 %v1879
    %2668 = vmatpush1.bf16.msra.mxu0 %v1878
    %2669 = vmatprep.subr.bf16.mxu0 %v1877
    %2670 = vmatpush1.bf16.msra.mxu0 %v1876
    %2671 = vmatprep.subr.bf16.mxu0 %v1875
    %2672 = vmatpush1.bf16.msra.mxu0 %v1874
    %2673 = vmatprep.subr.bf16.mxu0 %v1873
    %2674 = vmatpush1.bf16.msra.mxu0 %v1872
    %2675 = vmatprep.subr.bf16.mxu0 %v1903
    %2676 = vmatpush2.bf16.msra.mxu0 %v1902
    %2677 = vmatprep.subr.bf16.mxu0 %v1901
    %2678 = vmatpush2.bf16.msra.mxu0 %v1900
    %2679 = vmatprep.subr.bf16.mxu0 %v1899
    %2680 = vmatpush2.bf16.msra.mxu0 %v1898
    %2681 = vmatprep.subr.bf16.mxu0 %v1897
    %2682 = vmatpush2.bf16.msra.mxu0 %v1896
    %2683 = vmatprep.subr.bf16.mxu0 %v1895
    %2684 = vmatpush2.bf16.msra.mxu0 %v1894
    %2685 = vmatprep.subr.bf16.mxu0 %v1893
    %2686 = vmatpush2.bf16.msra.mxu0 %v1892
    %2687 = vmatprep.subr.bf16.mxu0 %v1891
    %2688 = vmatpush2.bf16.msra.mxu0 %v1890
    %2689 = vmatprep.subr.bf16.mxu0 %v1889
    %2690 = vmatpush2.bf16.msra.mxu0 %v1888
    %2691 = vmatprep.mubr.bf16.mxu0 %v497
    %2692 = vmatmul.mubr.bf16.gmra.mxu0 %v495
    %v2693 = vpop.f32.mrf.mxu0
    %v2694 = vadd.f32 %v2653, %v2693
    %v2695 = vpop.f32.mrf.mxu0
    %v2696 = vadd.f32 %v2655, %v2695
    %v2697 = vpop.f32.mrf.mxu0
    %v2698 = vpop.f32.mrf.mxu0
    %2699 = vdwg.mxu0
    %2700 = vmatprep.subr.bf16.mxu0 %v1919
    %2701 = vmatpush1.bf16.msra.mxu0 %v1918
    %2702 = vmatprep.subr.bf16.mxu0 %v1917
    %2703 = vmatpush1.bf16.msra.mxu0 %v1916
    %2704 = vmatprep.subr.bf16.mxu0 %v1915
    %2705 = vmatpush1.bf16.msra.mxu0 %v1914
    %2706 = vmatprep.subr.bf16.mxu0 %v1913
    %2707 = vmatpush1.bf16.msra.mxu0 %v1912
    %2708 = vmatprep.subr.bf16.mxu0 %v1911
    %2709 = vmatpush1.bf16.msra.mxu0 %v1910
    %2710 = vmatprep.subr.bf16.mxu0 %v1909
    %2711 = vmatpush1.bf16.msra.mxu0 %v1908
    %2712 = vmatprep.subr.bf16.mxu0 %v1907
    %2713 = vmatpush1.bf16.msra.mxu0 %v1906
    %2714 = vmatprep.subr.bf16.mxu0 %v1905
    %2715 = vmatpush1.bf16.msra.mxu0 %v1904
    %2716 = vmatprep.subr.bf16.mxu0 %v1935
    %2717 = vmatpush2.bf16.msra.mxu0 %v1934
    %2718 = vmatprep.subr.bf16.mxu0 %v1933
    %2719 = vmatpush2.bf16.msra.mxu0 %v1932
    %2720 = vmatprep.subr.bf16.mxu0 %v1931
    %2721 = vmatpush2.bf16.msra.mxu0 %v1930
    %2722 = vmatprep.subr.bf16.mxu0 %v1929
    %2723 = vmatpush2.bf16.msra.mxu0 %v1928
    %2724 = vmatprep.subr.bf16.mxu0 %v1927
    %2725 = vmatpush2.bf16.msra.mxu0 %v1926
    %2726 = vmatprep.subr.bf16.mxu0 %v1925
    %2727 = vmatpush2.bf16.msra.mxu0 %v1924
    %2728 = vmatprep.subr.bf16.mxu0 %v1923
    %2729 = vmatpush2.bf16.msra.mxu0 %v1922
    %2730 = vmatprep.subr.bf16.mxu0 %v1921
    %2731 = vmatpush2.bf16.msra.mxu0 %v1920
    %2732 = vmatprep.mubr.bf16.mxu0 %v535
    %2733 = vmatmul.mubr.bf16.gmra.mxu0 %v521
    %v2734 = vpop.f32.mrf.mxu0
    %v2735 = vadd.f32 %v2694, %v2734
    %v2736 = vpop.f32.mrf.mxu0
    %v2737 = vadd.f32 %v2696, %v2736
    %v2738 = vpop.f32.mrf.mxu0
    %v2739 = vpop.f32.mrf.mxu0
    %2740 = vdwg.mxu0
    %2741 = vmatprep.subr.bf16.mxu0 %v1951
    %2742 = vmatpush1.bf16.msra.mxu0 %v1950
    %2743 = vmatprep.subr.bf16.mxu0 %v1949
    %2744 = vmatpush1.bf16.msra.mxu0 %v1948
    %2745 = vmatprep.subr.bf16.mxu0 %v1947
    %2746 = vmatpush1.bf16.msra.mxu0 %v1946
    %2747 = vmatprep.subr.bf16.mxu0 %v1945
    %2748 = vmatpush1.bf16.msra.mxu0 %v1944
    %2749 = vmatprep.subr.bf16.mxu0 %v1943
    %2750 = vmatpush1.bf16.msra.mxu0 %v1942
    %2751 = vmatprep.subr.bf16.mxu0 %v1941
    %2752 = vmatpush1.bf16.msra.mxu0 %v1940
    %2753 = vmatprep.subr.bf16.mxu0 %v1939
    %2754 = vmatpush1.bf16.msra.mxu0 %v1938
    %2755 = vmatprep.subr.bf16.mxu0 %v1937
    %2756 = vmatpush1.bf16.msra.mxu0 %v1936
    %2757 = vmatprep.subr.bf16.mxu0 %v1967
    %2758 = vmatpush2.bf16.msra.mxu0 %v1966
    %2759 = vmatprep.subr.bf16.mxu0 %v1965
    %2760 = vmatpush2.bf16.msra.mxu0 %v1964
    %2761 = vmatprep.subr.bf16.mxu0 %v1963
    %2762 = vmatpush2.bf16.msra.mxu0 %v1962
    %2763 = vmatprep.subr.bf16.mxu0 %v1961
    %2764 = vmatpush2.bf16.msra.mxu0 %v1960
    %2765 = vmatprep.subr.bf16.mxu0 %v1959
    %2766 = vmatpush2.bf16.msra.mxu0 %v1958
    %2767 = vmatprep.subr.bf16.mxu0 %v1957
    %2768 = vmatpush2.bf16.msra.mxu0 %v1956
    %2769 = vmatprep.subr.bf16.mxu0 %v1955
    %2770 = vmatpush2.bf16.msra.mxu0 %v1954
    %2771 = vmatprep.subr.bf16.mxu0 %v1953
    %2772 = vmatpush2.bf16.msra.mxu0 %v1952
    %2773 = vmatprep.mubr.bf16.mxu0 %v545
    %2774 = vmatmul.mubr.bf16.gmra.mxu0 %v543
    %v2775 = vpop.f32.mrf.mxu0
    %v2776 = vadd.f32 %v2735, %v2775
    %v2777 = vpop.f32.mrf.mxu0
    %v2778 = vadd.f32 %v2737, %v2777
    %v2779 = vpop.f32.mrf.mxu0
    %v2780 = vpop.f32.mrf.mxu0
    %2781 = vdwg.mxu0
    %2782 = vmatprep.subr.bf16.mxu0 %v1983
    %2783 = vmatpush1.bf16.msra.mxu0 %v1982
    %2784 = vmatprep.subr.bf16.mxu0 %v1981
    %2785 = vmatpush1.bf16.msra.mxu0 %v1980
    %2786 = vmatprep.subr.bf16.mxu0 %v1979
    %2787 = vmatpush1.bf16.msra.mxu0 %v1978
    %2788 = vmatprep.subr.bf16.mxu0 %v1977
    %2789 = vmatpush1.bf16.msra.mxu0 %v1976
    %2790 = vmatprep.subr.bf16.mxu0 %v1975
    %2791 = vmatpush1.bf16.msra.mxu0 %v1974
    %2792 = vmatprep.subr.bf16.mxu0 %v1973
    %2793 = vmatpush1.bf16.msra.mxu0 %v1972
    %2794 = vmatprep.subr.bf16.mxu0 %v1971
    %2795 = vmatpush1.bf16.msra.mxu0 %v1970
    %2796 = vmatprep.subr.bf16.mxu0 %v1969
    %2797 = vmatpush1.bf16.msra.mxu0 %v1968
    %2798 = vmatprep.subr.bf16.mxu0 %v1999
    %2799 = vmatpush2.bf16.msra.mxu0 %v1998
    %2800 = vmatprep.subr.bf16.mxu0 %v1997
    %2801 = vmatpush2.bf16.msra.mxu0 %v1996
    %2802 = vmatprep.subr.bf16.mxu0 %v1995
    %2803 = vmatpush2.bf16.msra.mxu0 %v1994
    %2804 = vmatprep.subr.bf16.mxu0 %v1993
    %2805 = vmatpush2.bf16.msra.mxu0 %v1992
    %2806 = vmatprep.subr.bf16.mxu0 %v1991
    %2807 = vmatpush2.bf16.msra.mxu0 %v1990
    %2808 = vmatprep.subr.bf16.mxu0 %v1989
    %2809 = vmatpush2.bf16.msra.mxu0 %v1988
    %2810 = vmatprep.subr.bf16.mxu0 %v1987
    %2811 = vmatpush2.bf16.msra.mxu0 %v1986
    %2812 = vmatprep.subr.bf16.mxu0 %v1985
    %2813 = vmatpush2.bf16.msra.mxu0 %v1984
    %2814 = vmatprep.mubr.bf16.mxu0 %v542
    %2815 = vmatmul.mubr.bf16.gmra.mxu0 %v528
    %v2816 = vpop.f32.mrf.mxu0
    %v2817 = vadd.f32 %v2776, %v2816
    %v2818 = vpop.f32.mrf.mxu0
    %v2819 = vadd.f32 %v2778, %v2818
    %v2820 = vpop.f32.mrf.mxu0
    %v2821 = vpop.f32.mrf.mxu0
    %2822 = vdwg.mxu0
    %2823 = vmatprep.subr.bf16.mxu0 0
    %2824 = vmatpush1.bf16.msra.mxu0 0
    %2825 = vmatprep.subr.bf16.mxu0 0
    %2826 = vmatpush1.bf16.msra.mxu0 0
    %2827 = vmatprep.subr.bf16.mxu0 0
    %2828 = vmatpush1.bf16.msra.mxu0 0
    %2829 = vmatprep.subr.bf16.mxu0 0
    %2830 = vmatpush1.bf16.msra.mxu0 0
    %2831 = vmatprep.subr.bf16.mxu0 %v2007
    %2832 = vmatpush1.bf16.msra.mxu0 %v2006
    %2833 = vmatprep.subr.bf16.mxu0 %v2005
    %2834 = vmatpush1.bf16.msra.mxu0 %v2004
    %2835 = vmatprep.subr.bf16.mxu0 %v2003
    %2836 = vmatpush1.bf16.msra.mxu0 %v2002
    %2837 = vmatprep.subr.bf16.mxu0 %v2001
    %2838 = vmatpush1.bf16.msra.mxu0 %v2000
    %2839 = vmatprep.subr.bf16.mxu0 0
    %2840 = vmatpush2.bf16.msra.mxu0 0
    %2841 = vmatprep.subr.bf16.mxu0 0
    %2842 = vmatpush2.bf16.msra.mxu0 0
    %2843 = vmatprep.subr.bf16.mxu0 0
    %2844 = vmatpush2.bf16.msra.mxu0 0
    %2845 = vmatprep.subr.bf16.mxu0 0
    %2846 = vmatpush2.bf16.msra.mxu0 0
    %2847 = vmatprep.subr.bf16.mxu0 0
    %2848 = vmatpush2.bf16.msra.mxu0 0
    %2849 = vmatprep.subr.bf16.mxu0 0
    %2850 = vmatpush2.bf16.msra.mxu0 0
    %2851 = vmatprep.subr.bf16.mxu0 0
    %2852 = vmatpush2.bf16.msra.mxu0 0
    %2853 = vmatprep.subr.bf16.mxu0 0
    %2854 = vmatpush2.bf16.msra.mxu0 0
    %2855 = vmatprep.mubr.bf16.mxu0 0
    %2856 = vmatmul.mubr.bf16.gmra.mxu0 %v2370
    %v2857 = vpop.f32.mrf.mxu0
    %v2858 = vadd.f32 %v2817, %v2857
    %v2859 = vpop.f32.mrf.mxu0
    %v2860 = vadd.f32 %v2819, %v2859
    %v2861 = vpop.f32.mrf.mxu0
    %v2862 = vpop.f32.mrf.mxu0
    %2863 = vdwg.mxu0
    %v2864 = vmax.f32 %v2858, 0.0
    %v2865 = vmax.f32 %v2860, 0.0
    %v2866 = vpack.c.bf16 %v2864, %v2864
    %v2867 = vpack.c.bf16 %v2865, %v2865
    %v2868 = vld [vmem:[%s3] sm:$0xf]
    %v2869 = vld [vmem:[%s3 + $0x4] sm:$0xf]
    %v2870 = vld [vmem:[%s3 + $0x8] sm:$0xf]
    %v2871 = vld [vmem:[%s3 + $0xc] sm:$0xf]
    %v2872 = vld [vmem:[%s3 + $0x10] sm:$0xf]
    %v2873 = vld [vmem:[%s3 + $0x14] sm:$0xf]
    %v2874 = vld [vmem:[%s3 + $0x18] sm:$0xf]
    %v2875 = vld [vmem:[%s3 + $0x1c] sm:$0xf]
    %v2876 = vld [vmem:[%s3 + $0x20] sm:$0xf]
    %v2877 = vld [vmem:[%s3 + $0x24] sm:$0xf]
    %v2878 = vld [vmem:[%s3 + $0x28] sm:$0xf]
    %v2879 = vld [vmem:[%s3 + $0x2c] sm:$0xf]
    %v2880 = vld [vmem:[%s3 + $0x30] sm:$0xf]
    %v2881 = vld [vmem:[%s3 + $0x34] sm:$0xf]
    %v2882 = vld [vmem:[%s3 + $0x38] sm:$0xf]
    %v2883 = vld [vmem:[%s3 + $0x3c] sm:$0xf]
    %v2884 = vld [vmem:[%s3 + $0x40] sm:$0xf]
    %v2885 = vld [vmem:[%s3 + $0x44] sm:$0xf]
    %v2886 = vld [vmem:[%s3 + $0x48] sm:$0xf]
    %v2887 = vld [vmem:[%s3 + $0x4c] sm:$0xf]
    %v2888 = vld [vmem:[%s3 + $0x50] sm:$0xf]
    %v2889 = vld [vmem:[%s3 + $0x54] sm:$0xf]
    %v2890 = vld [vmem:[%s3 + $0x58] sm:$0xf]
    %v2891 = vld [vmem:[%s3 + $0x5c] sm:$0xf]
    %v2892 = vld [vmem:[%s3 + $0x60] sm:$0xf]
    %v2893 = vld [vmem:[%s3 + $0x64] sm:$0xf]
    %v2894 = vld [vmem:[%s3 + $0x68] sm:$0xf]
    %v2895 = vld [vmem:[%s3 + $0x6c] sm:$0xf]
    %v2896 = vld [vmem:[%s3 + $0x70] sm:$0xf]
    %v2897 = vld [vmem:[%s3 + $0x74] sm:$0xf]
    %v2898 = vld [vmem:[%s3 + $0x78] sm:$0xf]
    %v2899 = vld [vmem:[%s3 + $0x7c] sm:$0xf]
    %v2900 = vld [vmem:[%s4] sm:$0x1]
    %v2902 = vlaneseq
    %v2903 = vshrl.u32 %v2902, 7
    %v2904 = vsub.s32 0, %v2903
    %v2905 = vrot.slane %v2900, %v2904
    %v2939 = vunpack.c.l.b16 %v2868
    %v2940 = vunpack.c.l.b16 %v2869
    %v2941 = vunpack.c.l.b16 %v2870
    %v2942 = vunpack.c.l.b16 %v2871
    %v2943 = vunpack.c.l.b16 %v2872
    %v2944 = vunpack.c.l.b16 %v2873
    %v2945 = vunpack.c.l.b16 %v2874
    %v2946 = vunpack.c.l.b16 %v2875
    %v2947 = vunpack.c.l.b16 %v2876
    %v2948 = vunpack.c.l.b16 %v2877
    %v2949 = vunpack.c.l.b16 %v2878
    %v2950 = vunpack.c.l.b16 %v2879
    %v2951 = vunpack.c.l.b16 %v2880
    %v2952 = vunpack.c.l.b16 %v2881
    %v2953 = vunpack.c.l.b16 %v2882
    %v2954 = vunpack.c.l.b16 %v2883
    %v2955 = vunpack.c.l.b16 %v2884
    %v2956 = vunpack.c.l.b16 %v2885
    %v2957 = vunpack.c.l.b16 %v2886
    %v2958 = vunpack.c.l.b16 %v2887
    %v2959 = vunpack.c.l.b16 %v2888
    %v2960 = vunpack.c.l.b16 %v2889
    %v2961 = vunpack.c.l.b16 %v2890
    %v2962 = vunpack.c.l.b16 %v2891
    %v2963 = vunpack.c.l.b16 %v2892
    %v2964 = vunpack.c.l.b16 %v2893
    %v2965 = vunpack.c.l.b16 %v2894
    %v2966 = vunpack.c.l.b16 %v2895
    %v2967 = vunpack.c.l.b16 %v2896
    %v2968 = vunpack.c.l.b16 %v2897
    %v2969 = vunpack.c.l.b16 %v2898
    %v2970 = vunpack.c.l.b16 %v2899
    %v2971 = vpack.c.b16 %v2940, %v2939
    %v2972 = vpack.c.b16 %v2942, %v2941
    %v2973 = vpack.c.b16 %v2944, %v2943
    %v2974 = vpack.c.b16 %v2946, %v2945
    %v2975 = vpack.c.b16 %v2948, %v2947
    %v2976 = vpack.c.b16 %v2950, %v2949
    %v2977 = vpack.c.b16 %v2952, %v2951
    %v2978 = vpack.c.b16 %v2954, %v2953
    %v2979 = vpack.c.b16 %v2956, %v2955
    %v2980 = vpack.c.b16 %v2958, %v2957
    %v2981 = vpack.c.b16 %v2960, %v2959
    %v2982 = vpack.c.b16 %v2962, %v2961
    %v2983 = vpack.c.b16 %v2964, %v2963
    %v2984 = vpack.c.b16 %v2966, %v2965
    %v2985 = vpack.c.b16 %v2968, %v2967
    %v2986 = vpack.c.b16 %v2970, %v2969
    %3003 = vmatprep.subr.bf16.mxu0 0
    %3004 = vmatpush1.bf16.msra.mxu0 %v2978
    %3005 = vmatprep.subr.bf16.mxu0 0
    %3006 = vmatpush1.bf16.msra.mxu0 %v2977
    %3007 = vmatprep.subr.bf16.mxu0 0
    %3008 = vmatpush1.bf16.msra.mxu0 %v2976
    %3009 = vmatprep.subr.bf16.mxu0 0
    %3010 = vmatpush1.bf16.msra.mxu0 %v2975
    %3011 = vmatprep.subr.bf16.mxu0 0
    %3012 = vmatpush1.bf16.msra.mxu0 %v2974
    %3013 = vmatprep.subr.bf16.mxu0 0
    %3014 = vmatpush1.bf16.msra.mxu0 %v2973
    %3015 = vmatprep.subr.bf16.mxu0 0
    %3016 = vmatpush1.bf16.msra.mxu0 %v2972
    %3017 = vmatprep.subr.bf16.mxu0 0
    %3018 = vmatpush1.bf16.msra.mxu0 %v2971
    %3019 = vmatprep.subr.bf16.mxu0 0
    %3020 = vmatpush2.bf16.msra.mxu0 %v2986
    %3021 = vmatprep.subr.bf16.mxu0 0
    %3022 = vmatpush2.bf16.msra.mxu0 %v2985
    %3023 = vmatprep.subr.bf16.mxu0 0
    %3024 = vmatpush2.bf16.msra.mxu0 %v2984
    %3025 = vmatprep.subr.bf16.mxu0 0
    %3026 = vmatpush2.bf16.msra.mxu0 %v2983
    %3027 = vmatprep.subr.bf16.mxu0 0
    %3028 = vmatpush2.bf16.msra.mxu0 %v2982
    %3029 = vmatprep.subr.bf16.mxu0 0
    %3030 = vmatpush2.bf16.msra.mxu0 %v2981
    %3031 = vmatprep.subr.bf16.mxu0 0
    %3032 = vmatpush2.bf16.msra.mxu0 %v2980
    %3033 = vmatprep.subr.bf16.mxu0 0
    %3034 = vmatpush2.bf16.msra.mxu0 %v2979
    %3035 = vmatprep.mubr.bf16.mxu0 %v2867
    %3036 = vmatmul.mubr.bf16.gmra.mxu0 %v2866
    %v3037 = vpop.f32.mrf.mxu0
    %v3038 = vadd.f32 %v2905, %v3037
    %v3039 = vpop.f32.mrf.mxu0
    %v3040 = vpop.f32.mrf.mxu0
    %v3041 = vpop.f32.mrf.mxu0
    %3042 = vdwg.mxu0
    %3043 = vst [vmem:[#allocation2] sm:$0x3] %v3038
    // Predicated region
    $region22: #{extra_cnn_forward.7} parent=1 // pred_check
      _
    $region23: #{extra_cnn_forward.7} parent=1 // pred_check_branch
      %3045 = sbr.rel (0) target = $region25
    $region24: #{extra_cnn_forward.7} parent=1 // pred_region
      %s3047 = ssub.s32 32, 32
      %3048 = vsyncadd [#allocation3], %s3047
      %s3050 = sshll.u32 [#allocation2], 4
      %s3051 = int_to_ptr.vmem [resolvable:$true] %s3050
      %3053 = dma.vmem_to_hbm [thread:$0]  %s3051, 32, %s5, [#allocation3]
    $region25: #{extra_cnn_forward.7} parent=1 // pred_fallthru
      _
    // Predicated region
    $region26: #{extra_cnn_forward.7} parent=1 // pred_check
      _
    $region27: #{extra_cnn_forward.7} parent=1 // pred_check_branch
      %3055 = sbr.rel (0) target = $region29
    $region28: #{extra_cnn_forward.7} parent=1 // pred_region
      %3056 = dma.done [#allocation3], 32
    $region29: #{extra_cnn_forward.7} parent=1 // pred_fallthru
      _
    %3057 = vsyncpa [#allocation3], 1

</llo_original>
